<compile_context>
chip_gen: v6e
topology: v6e:2x2x1
jax: 0.10.0
libtpu: 0.0.40
codegen_flags: <defaults>
</compile_context>

<pallas_src>
import functools

import numpy as np

import jax
import jax.numpy as jnp
from jax.experimental import pallas as pl
from jax.experimental.pallas import tpu as pltpu


# 3x3 Conv2dSame: pad (1,1) -> tap offsets (kh-1, kw-1), tap index kh*3+kw.
_OFF3 = tuple((kh - 1, kw - 1) for kh in range(3) for kw in range(3))
# 2x2 Conv2dSame: pad (0,1) -> tap offsets (kh, kw), tap index kh*2+kw.
_OFF2 = tuple((kh, kw) for kh in range(2) for kw in range(2))

# The [secret | image] group is padded to this many channels so every sublane
# concatenation inside the kernel is aligned to the native (16,128) bf16 tile.
_SI_PAD = 16

_PARAM_ORDER = (
    "w1", "b1",
    "w2", "b2",
    "w3", "b3",
    "w4", "b4",
    "w5u", "b5u",
    "w5a", "w5b", "b5",
    "w6u", "b6u",
    "w6a", "w6b", "b6",
    "w7u", "b7u",
    "w7a", "w7b", "w7s", "b7",
    "wr", "br",
)


# ------------------------------ fused kernel --------------------------------

def _encoder_kernel(
    si_ref, mh_ref, ml_ref, d1_ref, d2_ref, u1_ref, u2_ref,
    w1_ref, b1_ref,
    w2_ref, b2_ref,
    w3_ref, b3_ref,
    w4_ref, b4_ref,
    w5u_ref, b5u_ref,
    w5a_ref, w5b_ref, b5_ref,
    w6u_ref, b6u_ref,
    w6a_ref, w6b_ref, b6_ref,
    w7u_ref, b7u_ref,
    w7a_ref, w7b_ref, w7s_ref, b7_ref,
    wr_ref, br_ref,
    out_ref, *, width):
    """Whole MNISTStegaStampEncoder forward; activations are (C, N*H*W) f32."""
    bf16 = jnp.bfloat16
    w_full = width
    w_half = width // 2

    def mm(a, b):
        return jnp.dot(a, b, preferred_element_type=jnp.float32)

    def slab(x, offsets, mask_ref, wdt):
        """Tap-stacked (n_taps*Cin, m) bf16 slab of a lane-flattened activation.

        Per tap: a circular lane roll (XLU) replaces the old padded copy +
        unaligned slice; the precomputed boundary masks zero every wrapped /
        out-of-image lane, so the circular roll is numerically exact.  The
        all-ones centre tap skips both the roll and the mask.
        """
        m = x.shape[1]
        pieces = []
        for (dh, dw) in offsets:
            if dh == 0 and dw == 0:
                pieces.append(x.astype(bf16))
            else:
                shift = dh * wdt + dw
                xt = pltpu.roll(x, (-shift) % m, axis=1)
                xt = xt * mask_ref[(dh + 1) * 3 + (dw + 1)]
                pieces.append(xt.astype(bf16))
        return jnp.concatenate(pieces, axis=0)

    def conv(pairs, b_ref, relu=True):
        """One big-K bf16 MXU matmul per (stacked weight, slab) pair; f32 acc."""
        acc = None
        for w_ref, s in pairs:
            p = mm(w_ref[...], s)
            acc = p if acc is None else acc + p
        acc = acc + b_ref[...]
        return jnp.maximum(acc, 0.0) if relu else acc

    si = si_ref[...]                                     # (16, m) [sec|img|0...]

    # Slabs consumed by more than one conv are built once and kept in VMEM.
    si_slab = slab(si, _OFF3, mh_ref, w_full)            # conv1 + conv7
    c1 = conv([(w1_ref, si_slab)], b1_ref)
    c1_slab = slab(c1, _OFF3, mh_ref, w_full)            # conv2 + conv7
    c2 = conv([(w2_ref, c1_slab)], b2_ref)
    c2_slab = slab(c2, _OFF3, mh_ref, w_full)            # conv3 + conv6
    # stride-2 conv == stride-1 conv followed by an even-pixel selection matmul.
    c3 = mm(conv([(w3_ref, c2_slab)], b3_ref).astype(bf16), d1_ref[...])
    c3_slab = slab(c3, _OFF3, ml_ref, w_half)            # conv4 + conv5
    c4 = mm(conv([(w4_ref, c3_slab)], b4_ref).astype(bf16), d2_ref[...])
    # nearest 2x upsample == selection matmul.
    u5_in = mm(c4.astype(bf16), u1_ref[...])
    u5 = conv([(w5u_ref, slab(u5_in, _OFF2, ml_ref, w_half))], b5u_ref)
    c5 = conv([(w5a_ref, c3_slab),
               (w5b_ref, slab(u5, _OFF3, ml_ref, w_half))], b5_ref)
    u6_in = mm(c5.astype(bf16), u2_ref[...])
    u6 = conv([(w6u_ref, slab(u6_in, _OFF2, mh_ref, w_full))], b6u_ref)
    c6 = conv([(w6a_ref, c2_slab),
               (w6b_ref, slab(u6, _OFF3, mh_ref, w_full))], b6_ref)
    u7 = conv([(w7u_ref, slab(c6, _OFF2, mh_ref, w_full))], b7u_ref)
    c7 = conv([(w7a_ref, c1_slab),
               (w7b_ref, slab(u7, _OFF3, mh_ref, w_full)),
               (w7s_ref, si_slab)], b7_ref)
    # residual 1x1 conv (Cout=1): an M=1 MXU matmul wastes the array, so do a
    # VPU broadcast-MAC + cross-sublane reduce; output stays lane dense (1, m).
    out_ref[...] = jnp.sum(wr_ref[...] * c7, axis=0, keepdims=True) + br_ref[...]


# --------------------- shape-only constants (numpy, host) -------------------

def _tap_masks(n, h, w):
    """(9, 1, n*h*w) f32 validity of the (dh, dw)-shifted source pixel."""
    m = n * h * w
    r = np.arange(m)
    yy = (r // w) % h
    xx = r % w
    masks = np.zeros((9, 1, m), np.float32)
    for dh in (-1, 0, 1):
        for dw in (-1, 0, 1):
            ok = (yy + dh >= 0) & (yy + dh < h) & (xx + dw >= 0) & (xx + dw < w)
            masks[(dh + 1) * 3 + (dw + 1), 0, :] = ok
    return masks


def _down_mat(n, h, w):
    """(n*h*w, n*(h//2)*(w//2)) 0/1 selector == stride-2 spatial subsampling."""
    ho, wo = h // 2, w // 2
    d = np.zeros((n * h * w, n * ho * wo), np.float32)
    ro = np.arange(n * ho * wo)
    b, rem = ro // (ho * wo), ro % (ho * wo)
    yo, xo = rem // wo, rem % wo
    d[b * h * w + 2 * yo * w + 2 * xo, ro] = 1.0
    return d


def _up_mat(n, h, w):
    """(n*h*w, n*2h*2w) 0/1 selector == nearest-neighbour 2x upsampling."""
    ho, wo = 2 * h, 2 * w
    u = np.zeros((n * h * w, n * ho * wo), np.float32)
    ro = np.arange(n * ho * wo)
    b, rem = ro // (ho * wo), ro % (ho * wo)
    yo, xo = rem // wo, rem % wo
    u[b * h * w + (yo // 2) * w + (xo // 2), ro] = 1.0
    return u


# ------------------------------- parameters ---------------------------------

def init_params(key, secret_size, height, width, in_channel):
    """Random params in PyTorch layout (Conv: OIHW, Linear: (out, in))."""
    hwc = height * width * in_channel
    keys = iter(jax.random.split(key, 24))

    def conv(cout, cin, ksz):
        w = jax.random.normal(next(keys), (cout, cin, ksz, ksz), jnp.float32) * 0.1
        b = jax.random.normal(next(keys), (cout,), jnp.float32) * 0.05
        return w, b

    dense_w = jax.random.normal(next(keys), (hwc, secret_size), jnp.float32) * 0.1
    dense_b = jax.random.normal(next(keys), (hwc,), jnp.float32) * 0.05
    p = {"dense_w": dense_w, "dense_b": dense_b}
    p["conv1_w"], p["conv1_b"] = conv(32, 2 * in_channel, 3)
    p["conv2_w"], p["conv2_b"] = conv(32, 32, 3)
    p["conv3_w"], p["conv3_b"] = conv(64, 32, 3)
    p["conv4_w"], p["conv4_b"] = conv(128, 64, 3)
    p["up5_w"], p["up5_b"] = conv(64, 128, 2)
    p["conv5_w"], p["conv5_b"] = conv(64, 128, 3)
    p["up6_w"], p["up6_b"] = conv(32, 64, 2)
    p["conv6_w"], p["conv6_b"] = conv(32, 64, 3)
    p["up7_w"], p["up7_b"] = conv(32, 32, 2)
    p["conv7_w"], p["conv7_b"] = conv(32, 64 + 2 * in_channel, 3)
    p["res_w"], p["res_b"] = conv(1, 32, 1)
    return p


def prepare_params(params, in_channel):
    """One-time weight re-layout for the tap-stacked kernel.

    (Cout, Cin, KH, KW) -> bf16 (Cout, KH*KW*Cin) stacked matrices (tap-major,
    channel-minor along K), split along Cin wherever the torch forward
    concatenates channels, so the kernel never concatenates activations along
    channels at runtime.  The [secret|image] Cin slices are zero-padded to
    _SI_PAD channels to match the padded si activation.
    """
    c = in_channel
    assert 2 * c <= _SI_PAD
    bf16 = jnp.bfloat16

    def stack(wt):
        cout, cin, kh, kw = wt.shape
        return jnp.transpose(wt, (0, 2, 3, 1)).reshape(cout, kh * kw * cin).astype(bf16)

    def pad_cin(wt, cin_to):
        return jnp.pad(wt, ((0, 0), (0, cin_to - wt.shape[1]), (0, 0), (0, 0)))

    def col(b):
        return b.reshape(-1, 1).astype(jnp.float32)

    w5 = params["conv5_w"]
    w6 = params["conv6_w"]
    w7 = params["conv7_w"]
    return {
        "dense_wT": params["dense_w"].T, "dense_b": params["dense_b"],
        "w1": stack(pad_cin(params["conv1_w"], _SI_PAD)), "b1": col(params["conv1_b"]),
        "w2": stack(params["conv2_w"]), "b2": col(params["conv2_b"]),
        "w3": stack(params["conv3_w"]), "b3": col(params["conv3_b"]),
        "w4": stack(params["conv4_w"]), "b4": col(params["conv4_b"]),
        "w5u": stack(params["up5_w"]), "b5u": col(params["up5_b"]),
        "w5a": stack(w5[:, :64]), "w5b": stack(w5[:, 64:]), "b5": col(params["conv5_b"]),
        "w6u": stack(params["up6_w"]), "b6u": col(params["up6_b"]),
        "w6a": stack(w6[:, :32]), "w6b": stack(w6[:, 32:]), "b6": col(params["conv6_b"]),
        "w7u": stack(params["up7_w"]), "b7u": col(params["up7_b"]),
        "w7a": stack(w7[:, :32]), "w7b": stack(w7[:, 32:64]),
        "w7s": stack(pad_cin(w7[:, 64:64 + 2 * c], _SI_PAD)), "b7": col(params["conv7_b"]),
        "wr": params["res_w"][:, :, 0, 0].reshape(-1, 1).astype(jnp.float32),
        "br": col(params["res_b"]),
    }


# --------------------------------- forward ----------------------------------

def encoder_forward(prep, secret, image):
    """secret: (N, secret_size); image: (N, C, H, W) NCHW. Returns (N, 1, H, W)."""
    n, c, h, w = image.shape
    assert h % 4 == 0 and w % 4 == 0
    m_full = n * h * w

    # Tiny secret_dense FC left to XLA (per perf review); then build the padded
    # [secret | image-0.5] group in the kernel's (C, N*H*W) lane-flat layout.
    sec = jnp.dot(secret - 0.5, prep["dense_wT"],
                  precision=jax.lax.Precision.HIGHEST) + prep["dense_b"]
    sec = jnp.maximum(sec, 0.0).reshape(n, c, h, w)
    si = jnp.concatenate([sec, image - 0.5], axis=1)
    si = jnp.pad(si, ((0, 0), (0, _SI_PAD - 2 * c), (0, 0), (0, 0)))
    si_flat = si.transpose(1, 0, 2, 3).reshape(_SI_PAD, m_full)

    # Shape-only constants: boundary masks (f32) + bf16 selection matrices for
    # stride-2 subsampling / nearest 2x upsampling.
    masks_hi = jnp.asarray(_tap_masks(n, h, w))
    masks_lo = jnp.asarray(_tap_masks(n, h // 2, w // 2))
    bf16 = jnp.bfloat16
    d1 = jnp.asarray(_down_mat(n, h, w)).astype(bf16)
    d2 = jnp.asarray(_down_mat(n, h // 2, w // 2)).astype(bf16)
    u1 = jnp.asarray(_up_mat(n, h // 4, w // 4)).astype(bf16)
    u2 = jnp.asarray(_up_mat(n, h // 2, w // 2)).astype(bf16)

    operands = [si_flat, masks_hi, masks_lo, d1, d2, u1, u2]
    operands += [prep[k] for k in _PARAM_ORDER]

    vmem = pl.BlockSpec(memory_space=pltpu.MemorySpace.VMEM)
    out = pl.pallas_call(
        functools.partial(_encoder_kernel, width=w),
        out_shape=jax.ShapeDtypeStruct((1, m_full), jnp.float32),
        in_specs=[vmem] * len(operands),
        out_specs=vmem,
        # Total working set here is ~3 MiB; 32 MiB also stays safely under
        # v7x's 64 MiB physical VMEM (re-derive if the shapes are scaled up).
        compiler_params=pltpu.CompilerParams(vmem_limit_bytes=32 * 1024 * 1024),
    )(*operands)
    return out.reshape(n, 1, h, w)


# ------------------------ plain-JAX reference (check) ------------------------

def _conv2d_same_ref(x, w, b, stride=1):
    k = w.shape[-1]
    lo = (k - 1) // 2
    hi = (k - 1) - lo
    y = jax.lax.conv_general_dilated(
        x, w, window_strides=(stride, stride), padding=((lo, hi), (lo, hi)),
        dimension_numbers=("NCHW", "OIHW", "NCHW"),
        precision=jax.lax.Precision.HIGHEST)
    return y + b.reshape(1, -1, 1, 1)


def encoder_reference(params, secret, image):
    n, c, h, w = image.shape
    relu = lambda t: jnp.maximum(t, 0.0)
    up2 = lambda t: jnp.repeat(jnp.repeat(t, 2, axis=2), 2, axis=3)
    sec = relu(jnp.dot(secret - 0.5, params["dense_w"].T,
                       precision=jax.lax.Precision.HIGHEST) + params["dense_b"])
    sec = sec.reshape(n, c, h, w)
    inputs = jnp.concatenate([sec, image - 0.5], axis=1)
    c1 = relu(_conv2d_same_ref(inputs, params["conv1_w"], params["conv1_b"]))
    c2 = relu(_conv2d_same_ref(c1, params["conv2_w"], params["conv2_b"]))
    c3 = relu(_conv2d_same_ref(c2, params["conv3_w"], params["conv3_b"], stride=2))
    c4 = relu(_conv2d_same_ref(c3, params["conv4_w"], params["conv4_b"], stride=2))
    u5 = relu(_conv2d_same_ref(up2(c4), params["up5_w"], params["up5_b"]))
    c5 = relu(_conv2d_same_ref(jnp.concatenate([c3, u5], axis=1),
                               params["conv5_w"], params["conv5_b"]))
    u6 = relu(_conv2d_same_ref(up2(c5), params["up6_w"], params["up6_b"]))
    c6 = relu(_conv2d_same_ref(jnp.concatenate([c2, u6], axis=1),
                               params["conv6_w"], params["conv6_b"]))
    u7 = relu(_conv2d_same_ref(c6, params["up7_w"], params["up7_b"]))
    c7 = relu(_conv2d_same_ref(jnp.concatenate([c1, u7, inputs], axis=1),
                               params["conv7_w"], params["conv7_b"]))
    return _conv2d_same_ref(c7, params["res_w"], params["res_b"])


# ----------------------------------- main ------------------------------------

if __name__ == "__main__":
    N, C, H, W = 2, 1, 16, 16          # conv7 Cin=66 in the module => in_channel=1
    SECRET_SIZE = 8

    key = jax.random.PRNGKey(0)
    kp, ks, ki = jax.random.split(key, 3)
    params = init_params(kp, SECRET_SIZE, H, W, C)
    secret = jax.random.uniform(ks, (N, SECRET_SIZE), dtype=jnp.float32)
    image = jax.random.uniform(ki, (N, C, H, W), dtype=jnp.float32)

    prep = prepare_params(params, C)   # one-time weight permutation / bf16 cast

    fwd = jax.jit(encoder_forward)
    out = jax.block_until_ready(fwd(prep, secret, image))

    assert out.shape == (N, 1, H, W), out.shape
    assert out.dtype == jnp.float32
    assert bool(jnp.all(jnp.isfinite(out)))

    ref = encoder_reference(params, secret, image)
    err = float(jnp.max(jnp.abs(out - ref)))
    # bf16 MXU operands with f32 accumulation: rounding noise stays well below
    # this bound, while structural bugs (wrong tap/group/roll) show up as O(0.1).
    assert err < 5e-2, f"max abs err vs plain-JAX reference: {err}"

    print("KERNEL_OK")
</pallas_src>

<mosaic_0001>
module attributes {stable_mosaic.version = 11 : i64} {
  func.func @_encoder_kernel(%arg0: memref<16x512xf32, #tpu.memory_space<vmem>>, %arg1: memref<9x1x512xf32, #tpu.memory_space<vmem>>, %arg2: memref<9x1x128xf32, #tpu.memory_space<vmem>>, %arg3: memref<512x128xbf16, #tpu.memory_space<vmem>>, %arg4: memref<128x32xbf16, #tpu.memory_space<vmem>>, %arg5: memref<32x128xbf16, #tpu.memory_space<vmem>>, %arg6: memref<128x512xbf16, #tpu.memory_space<vmem>>, %arg7: memref<32x144xbf16, #tpu.memory_space<vmem>>, %arg8: memref<32x1xf32, #tpu.memory_space<vmem>>, %arg9: memref<32x288xbf16, #tpu.memory_space<vmem>>, %arg10: memref<32x1xf32, #tpu.memory_space<vmem>>, %arg11: memref<64x288xbf16, #tpu.memory_space<vmem>>, %arg12: memref<64x1xf32, #tpu.memory_space<vmem>>, %arg13: memref<128x576xbf16, #tpu.memory_space<vmem>>, %arg14: memref<128x1xf32, #tpu.memory_space<vmem>>, %arg15: memref<64x512xbf16, #tpu.memory_space<vmem>>, %arg16: memref<64x1xf32, #tpu.memory_space<vmem>>, %arg17: memref<64x576xbf16, #tpu.memory_space<vmem>>, %arg18: memref<64x576xbf16, #tpu.memory_space<vmem>>, %arg19: memref<64x1xf32, #tpu.memory_space<vmem>>, %arg20: memref<32x256xbf16, #tpu.memory_space<vmem>>, %arg21: memref<32x1xf32, #tpu.memory_space<vmem>>, %arg22: memref<32x288xbf16, #tpu.memory_space<vmem>>, %arg23: memref<32x288xbf16, #tpu.memory_space<vmem>>, %arg24: memref<32x1xf32, #tpu.memory_space<vmem>>, %arg25: memref<32x128xbf16, #tpu.memory_space<vmem>>, %arg26: memref<32x1xf32, #tpu.memory_space<vmem>>, %arg27: memref<32x288xbf16, #tpu.memory_space<vmem>>, %arg28: memref<32x288xbf16, #tpu.memory_space<vmem>>, %arg29: memref<32x144xbf16, #tpu.memory_space<vmem>>, %arg30: memref<32x1xf32, #tpu.memory_space<vmem>>, %arg31: memref<32x1xf32, #tpu.memory_space<vmem>>, %arg32: memref<1x1xf32, #tpu.memory_space<vmem>>, %arg33: memref<1x512xf32, #tpu.memory_space<vmem>>) attributes {dimension_semantics = [], scalar_prefetch = 0 : i64, scratch_operands = 0 : i64, tpu.core_type = #tpu.core_type<tc>} {
    %c0 = arith.constant 0 : index
    %c0_0 = arith.constant 0 : index
    %0 = vector.load %arg0[%c0, %c0_0] : memref<16x512xf32, #tpu.memory_space<vmem>>, vector<16x512xf32>
    %c17_i32 = arith.constant 17 : i32
    %1 = tpu.dynamic_rotate %0 by %c17_i32 dim 1 : vector<16x512xf32>, i32 -> vector<16x512xf32>
    %c0_1 = arith.constant 0 : index
    %c0_2 = arith.constant 0 : index
    %c0_3 = arith.constant 0 : index
    %2 = vector.load %arg1[%c0_1, %c0_2, %c0_3] : memref<9x1x512xf32, #tpu.memory_space<vmem>>, vector<1x1x512xf32>
    %3 = vector.shape_cast %2 : vector<1x1x512xf32> to vector<1x512xf32>
    %4 = vector.broadcast %3 : vector<1x512xf32> to vector<16x512xf32>
    %5 = arith.mulf %1, %4 : vector<16x512xf32>
    %6 = arith.truncf %5 : vector<16x512xf32> to vector<16x512xbf16>
    %c16_i32 = arith.constant 16 : i32
    %7 = tpu.dynamic_rotate %0 by %c16_i32 dim 1 : vector<16x512xf32>, i32 -> vector<16x512xf32>
    %c1 = arith.constant 1 : index
    %c0_4 = arith.constant 0 : index
    %c0_5 = arith.constant 0 : index
    %8 = vector.load %arg1[%c1, %c0_4, %c0_5] : memref<9x1x512xf32, #tpu.memory_space<vmem>>, vector<1x1x512xf32>
    %9 = vector.shape_cast %8 : vector<1x1x512xf32> to vector<1x512xf32>
    %10 = vector.broadcast %9 : vector<1x512xf32> to vector<16x512xf32>
    %11 = arith.mulf %7, %10 : vector<16x512xf32>
    %12 = arith.truncf %11 : vector<16x512xf32> to vector<16x512xbf16>
    %c15_i32 = arith.constant 15 : i32
    %13 = tpu.dynamic_rotate %0 by %c15_i32 dim 1 : vector<16x512xf32>, i32 -> vector<16x512xf32>
    %c2 = arith.constant 2 : index
    %c0_6 = arith.constant 0 : index
    %c0_7 = arith.constant 0 : index
    %14 = vector.load %arg1[%c2, %c0_6, %c0_7] : memref<9x1x512xf32, #tpu.memory_space<vmem>>, vector<1x1x512xf32>
    %15 = vector.shape_cast %14 : vector<1x1x512xf32> to vector<1x512xf32>
    %16 = vector.broadcast %15 : vector<1x512xf32> to vector<16x512xf32>
    %17 = arith.mulf %13, %16 : vector<16x512xf32>
    %18 = arith.truncf %17 : vector<16x512xf32> to vector<16x512xbf16>
    %c1_i32 = arith.constant 1 : i32
    %19 = tpu.dynamic_rotate %0 by %c1_i32 dim 1 : vector<16x512xf32>, i32 -> vector<16x512xf32>
    %c3 = arith.constant 3 : index
    %c0_8 = arith.constant 0 : index
    %c0_9 = arith.constant 0 : index
    %20 = vector.load %arg1[%c3, %c0_8, %c0_9] : memref<9x1x512xf32, #tpu.memory_space<vmem>>, vector<1x1x512xf32>
    %21 = vector.shape_cast %20 : vector<1x1x512xf32> to vector<1x512xf32>
    %22 = vector.broadcast %21 : vector<1x512xf32> to vector<16x512xf32>
    %23 = arith.mulf %19, %22 : vector<16x512xf32>
    %24 = arith.truncf %23 : vector<16x512xf32> to vector<16x512xbf16>
    %25 = arith.truncf %0 : vector<16x512xf32> to vector<16x512xbf16>
    %c511_i32 = arith.constant 511 : i32
    %26 = tpu.dynamic_rotate %0 by %c511_i32 dim 1 : vector<16x512xf32>, i32 -> vector<16x512xf32>
    %c5 = arith.constant 5 : index
    %c0_10 = arith.constant 0 : index
    %c0_11 = arith.constant 0 : index
    %27 = vector.load %arg1[%c5, %c0_10, %c0_11] : memref<9x1x512xf32, #tpu.memory_space<vmem>>, vector<1x1x512xf32>
    %28 = vector.shape_cast %27 : vector<1x1x512xf32> to vector<1x512xf32>
    %29 = vector.broadcast %28 : vector<1x512xf32> to vector<16x512xf32>
    %30 = arith.mulf %26, %29 : vector<16x512xf32>
    %31 = arith.truncf %30 : vector<16x512xf32> to vector<16x512xbf16>
    %c497_i32 = arith.constant 497 : i32
    %32 = tpu.dynamic_rotate %0 by %c497_i32 dim 1 : vector<16x512xf32>, i32 -> vector<16x512xf32>
    %c6 = arith.constant 6 : index
    %c0_12 = arith.constant 0 : index
    %c0_13 = arith.constant 0 : index
    %33 = vector.load %arg1[%c6, %c0_12, %c0_13] : memref<9x1x512xf32, #tpu.memory_space<vmem>>, vector<1x1x512xf32>
    %34 = vector.shape_cast %33 : vector<1x1x512xf32> to vector<1x512xf32>
    %35 = vector.broadcast %34 : vector<1x512xf32> to vector<16x512xf32>
    %36 = arith.mulf %32, %35 : vector<16x512xf32>
    %37 = arith.truncf %36 : vector<16x512xf32> to vector<16x512xbf16>
    %c496_i32 = arith.constant 496 : i32
    %38 = tpu.dynamic_rotate %0 by %c496_i32 dim 1 : vector<16x512xf32>, i32 -> vector<16x512xf32>
    %c7 = arith.constant 7 : index
    %c0_14 = arith.constant 0 : index
    %c0_15 = arith.constant 0 : index
    %39 = vector.load %arg1[%c7, %c0_14, %c0_15] : memref<9x1x512xf32, #tpu.memory_space<vmem>>, vector<1x1x512xf32>
    %40 = vector.shape_cast %39 : vector<1x1x512xf32> to vector<1x512xf32>
    %41 = vector.broadcast %40 : vector<1x512xf32> to vector<16x512xf32>
    %42 = arith.mulf %38, %41 : vector<16x512xf32>
    %43 = arith.truncf %42 : vector<16x512xf32> to vector<16x512xbf16>
    %c495_i32 = arith.constant 495 : i32
    %44 = tpu.dynamic_rotate %0 by %c495_i32 dim 1 : vector<16x512xf32>, i32 -> vector<16x512xf32>
    %c8 = arith.constant 8 : index
    %c0_16 = arith.constant 0 : index
    %c0_17 = arith.constant 0 : index
    %45 = vector.load %arg1[%c8, %c0_16, %c0_17] : memref<9x1x512xf32, #tpu.memory_space<vmem>>, vector<1x1x512xf32>
    %46 = vector.shape_cast %45 : vector<1x1x512xf32> to vector<1x512xf32>
    %47 = vector.broadcast %46 : vector<1x512xf32> to vector<16x512xf32>
    %48 = arith.mulf %44, %47 : vector<16x512xf32>
    %49 = arith.truncf %48 : vector<16x512xf32> to vector<16x512xbf16>
    %50 = tpu.concatenate %6, %12, %18, %24, %25, %31, %37, %43, %49 in 0 : vector<16x512xbf16>, vector<16x512xbf16>, vector<16x512xbf16>, vector<16x512xbf16>, vector<16x512xbf16>, vector<16x512xbf16>, vector<16x512xbf16>, vector<16x512xbf16>, vector<16x512xbf16> -> vector<144x512xbf16>
    %c0_18 = arith.constant 0 : index
    %c0_19 = arith.constant 0 : index
    %51 = vector.load %arg7[%c0_18, %c0_19] : memref<32x144xbf16, #tpu.memory_space<vmem>>, vector<32x144xbf16>
    %cst = arith.constant dense<0.000000e+00> : vector<32x512xf32>
    %52 = tpu.matmul %51, %50, %cst {dimension_numbers = #tpu.dot_dimension_numbers<[1], [0], [0], [1], [0, 0, 1, 1], [], []>} : vector<32x144xbf16>, vector<144x512xbf16>, vector<32x512xf32> -> vector<32x512xf32>
    %c0_20 = arith.constant 0 : index
    %c0_21 = arith.constant 0 : index
    %53 = vector.load %arg8[%c0_20, %c0_21] : memref<32x1xf32, #tpu.memory_space<vmem>>, vector<32x1xf32>
    %54 = vector.broadcast %53 : vector<32x1xf32> to vector<32x512xf32>
    %55 = arith.addf %52, %54 : vector<32x512xf32>
    %cst_22 = arith.constant 0.000000e+00 : f32
    %56 = vector.broadcast %cst_22 : f32 to vector<32x512xf32>
    %57 = arith.maximumf %55, %56 : vector<32x512xf32>
    %c17_i32_23 = arith.constant 17 : i32
    %58 = tpu.dynamic_rotate %57 by %c17_i32_23 dim 1 : vector<32x512xf32>, i32 -> vector<32x512xf32>
    %c0_24 = arith.constant 0 : index
    %c0_25 = arith.constant 0 : index
    %c0_26 = arith.constant 0 : index
    %59 = vector.load %arg1[%c0_24, %c0_25, %c0_26] : memref<9x1x512xf32, #tpu.memory_space<vmem>>, vector<1x1x512xf32>
    %60 = vector.shape_cast %59 : vector<1x1x512xf32> to vector<1x512xf32>
    %61 = vector.broadcast %60 : vector<1x512xf32> to vector<32x512xf32>
    %62 = arith.mulf %58, %61 : vector<32x512xf32>
    %63 = arith.truncf %62 : vector<32x512xf32> to vector<32x512xbf16>
    %c16_i32_27 = arith.constant 16 : i32
    %64 = tpu.dynamic_rotate %57 by %c16_i32_27 dim 1 : vector<32x512xf32>, i32 -> vector<32x512xf32>
    %c1_28 = arith.constant 1 : index
    %c0_29 = arith.constant 0 : index
    %c0_30 = arith.constant 0 : index
    %65 = vector.load %arg1[%c1_28, %c0_29, %c0_30] : memref<9x1x512xf32, #tpu.memory_space<vmem>>, vector<1x1x512xf32>
    %66 = vector.shape_cast %65 : vector<1x1x512xf32> to vector<1x512xf32>
    %67 = vector.broadcast %66 : vector<1x512xf32> to vector<32x512xf32>
    %68 = arith.mulf %64, %67 : vector<32x512xf32>
    %69 = arith.truncf %68 : vector<32x512xf32> to vector<32x512xbf16>
    %c15_i32_31 = arith.constant 15 : i32
    %70 = tpu.dynamic_rotate %57 by %c15_i32_31 dim 1 : vector<32x512xf32>, i32 -> vector<32x512xf32>
    %c2_32 = arith.constant 2 : index
    %c0_33 = arith.constant 0 : index
    %c0_34 = arith.constant 0 : index
    %71 = vector.load %arg1[%c2_32, %c0_33, %c0_34] : memref<9x1x512xf32, #tpu.memory_space<vmem>>, vector<1x1x512xf32>
    %72 = vector.shape_cast %71 : vector<1x1x512xf32> to vector<1x512xf32>
    %73 = vector.broadcast %72 : vector<1x512xf32> to vector<32x512xf32>
    %74 = arith.mulf %70, %73 : vector<32x512xf32>
    %75 = arith.truncf %74 : vector<32x512xf32> to vector<32x512xbf16>
    %c1_i32_35 = arith.constant 1 : i32
    %76 = tpu.dynamic_rotate %57 by %c1_i32_35 dim 1 : vector<32x512xf32>, i32 -> vector<32x512xf32>
    %c3_36 = arith.constant 3 : index
    %c0_37 = arith.constant 0 : index
    %c0_38 = arith.constant 0 : index
    %77 = vector.load %arg1[%c3_36, %c0_37, %c0_38] : memref<9x1x512xf32, #tpu.memory_space<vmem>>, vector<1x1x512xf32>
    %78 = vector.shape_cast %77 : vector<1x1x512xf32> to vector<1x512xf32>
    %79 = vector.broadcast %78 : vector<1x512xf32> to vector<32x512xf32>
    %80 = arith.mulf %76, %79 : vector<32x512xf32>
    %81 = arith.truncf %80 : vector<32x512xf32> to vector<32x512xbf16>
    %82 = arith.truncf %57 : vector<32x512xf32> to vector<32x512xbf16>
    %c511_i32_39 = arith.constant 511 : i32
    %83 = tpu.dynamic_rotate %57 by %c511_i32_39 dim 1 : vector<32x512xf32>, i32 -> vector<32x512xf32>
    %c5_40 = arith.constant 5 : index
    %c0_41 = arith.constant 0 : index
    %c0_42 = arith.constant 0 : index
    %84 = vector.load %arg1[%c5_40, %c0_41, %c0_42] : memref<9x1x512xf32, #tpu.memory_space<vmem>>, vector<1x1x512xf32>
    %85 = vector.shape_cast %84 : vector<1x1x512xf32> to vector<1x512xf32>
    %86 = vector.broadcast %85 : vector<1x512xf32> to vector<32x512xf32>
    %87 = arith.mulf %83, %86 : vector<32x512xf32>
    %88 = arith.truncf %87 : vector<32x512xf32> to vector<32x512xbf16>
    %c497_i32_43 = arith.constant 497 : i32
    %89 = tpu.dynamic_rotate %57 by %c497_i32_43 dim 1 : vector<32x512xf32>, i32 -> vector<32x512xf32>
    %c6_44 = arith.constant 6 : index
    %c0_45 = arith.constant 0 : index
    %c0_46 = arith.constant 0 : index
    %90 = vector.load %arg1[%c6_44, %c0_45, %c0_46] : memref<9x1x512xf32, #tpu.memory_space<vmem>>, vector<1x1x512xf32>
    %91 = vector.shape_cast %90 : vector<1x1x512xf32> to vector<1x512xf32>
    %92 = vector.broadcast %91 : vector<1x512xf32> to vector<32x512xf32>
    %93 = arith.mulf %89, %92 : vector<32x512xf32>
    %94 = arith.truncf %93 : vector<32x512xf32> to vector<32x512xbf16>
    %c496_i32_47 = arith.constant 496 : i32
    %95 = tpu.dynamic_rotate %57 by %c496_i32_47 dim 1 : vector<32x512xf32>, i32 -> vector<32x512xf32>
    %c7_48 = arith.constant 7 : index
    %c0_49 = arith.constant 0 : index
    %c0_50 = arith.constant 0 : index
    %96 = vector.load %arg1[%c7_48, %c0_49, %c0_50] : memref<9x1x512xf32, #tpu.memory_space<vmem>>, vector<1x1x512xf32>
    %97 = vector.shape_cast %96 : vector<1x1x512xf32> to vector<1x512xf32>
    %98 = vector.broadcast %97 : vector<1x512xf32> to vector<32x512xf32>
    %99 = arith.mulf %95, %98 : vector<32x512xf32>
    %100 = arith.truncf %99 : vector<32x512xf32> to vector<32x512xbf16>
    %c495_i32_51 = arith.constant 495 : i32
    %101 = tpu.dynamic_rotate %57 by %c495_i32_51 dim 1 : vector<32x512xf32>, i32 -> vector<32x512xf32>
    %c8_52 = arith.constant 8 : index
    %c0_53 = arith.constant 0 : index
    %c0_54 = arith.constant 0 : index
    %102 = vector.load %arg1[%c8_52, %c0_53, %c0_54] : memref<9x1x512xf32, #tpu.memory_space<vmem>>, vector<1x1x512xf32>
    %103 = vector.shape_cast %102 : vector<1x1x512xf32> to vector<1x512xf32>
    %104 = vector.broadcast %103 : vector<1x512xf32> to vector<32x512xf32>
    %105 = arith.mulf %101, %104 : vector<32x512xf32>
    %106 = arith.truncf %105 : vector<32x512xf32> to vector<32x512xbf16>
    %107 = tpu.concatenate %63, %69, %75, %81, %82, %88, %94, %100, %106 in 0 : vector<32x512xbf16>, vector<32x512xbf16>, vector<32x512xbf16>, vector<32x512xbf16>, vector<32x512xbf16>, vector<32x512xbf16>, vector<32x512xbf16>, vector<32x512xbf16>, vector<32x512xbf16> -> vector<288x512xbf16>
    %c0_55 = arith.constant 0 : index
    %c0_56 = arith.constant 0 : index
    %108 = vector.load %arg9[%c0_55, %c0_56] : memref<32x288xbf16, #tpu.memory_space<vmem>>, vector<32x288xbf16>
    %cst_57 = arith.constant dense<0.000000e+00> : vector<32x512xf32>
    %109 = tpu.matmul %108, %107, %cst_57 {dimension_numbers = #tpu.dot_dimension_numbers<[1], [0], [0], [1], [0, 0, 1, 1], [], []>} : vector<32x288xbf16>, vector<288x512xbf16>, vector<32x512xf32> -> vector<32x512xf32>
    %c0_58 = arith.constant 0 : index
    %c0_59 = arith.constant 0 : index
    %110 = vector.load %arg10[%c0_58, %c0_59] : memref<32x1xf32, #tpu.memory_space<vmem>>, vector<32x1xf32>
    %111 = vector.broadcast %110 : vector<32x1xf32> to vector<32x512xf32>
    %112 = arith.addf %109, %111 : vector<32x512xf32>
    %cst_60 = arith.constant 0.000000e+00 : f32
    %113 = vector.broadcast %cst_60 : f32 to vector<32x512xf32>
    %114 = arith.maximumf %112, %113 : vector<32x512xf32>
    %c17_i32_61 = arith.constant 17 : i32
    %115 = tpu.dynamic_rotate %114 by %c17_i32_61 dim 1 : vector<32x512xf32>, i32 -> vector<32x512xf32>
    %c0_62 = arith.constant 0 : index
    %c0_63 = arith.constant 0 : index
    %c0_64 = arith.constant 0 : index
    %116 = vector.load %arg1[%c0_62, %c0_63, %c0_64] : memref<9x1x512xf32, #tpu.memory_space<vmem>>, vector<1x1x512xf32>
    %117 = vector.shape_cast %116 : vector<1x1x512xf32> to vector<1x512xf32>
    %118 = vector.broadcast %117 : vector<1x512xf32> to vector<32x512xf32>
    %119 = arith.mulf %115, %118 : vector<32x512xf32>
    %120 = arith.truncf %119 : vector<32x512xf32> to vector<32x512xbf16>
    %c16_i32_65 = arith.constant 16 : i32
    %121 = tpu.dynamic_rotate %114 by %c16_i32_65 dim 1 : vector<32x512xf32>, i32 -> vector<32x512xf32>
    %c1_66 = arith.constant 1 : index
    %c0_67 = arith.constant 0 : index
    %c0_68 = arith.constant 0 : index
    %122 = vector.load %arg1[%c1_66, %c0_67, %c0_68] : memref<9x1x512xf32, #tpu.memory_space<vmem>>, vector<1x1x512xf32>
    %123 = vector.shape_cast %122 : vector<1x1x512xf32> to vector<1x512xf32>
    %124 = vector.broadcast %123 : vector<1x512xf32> to vector<32x512xf32>
    %125 = arith.mulf %121, %124 : vector<32x512xf32>
    %126 = arith.truncf %125 : vector<32x512xf32> to vector<32x512xbf16>
    %c15_i32_69 = arith.constant 15 : i32
    %127 = tpu.dynamic_rotate %114 by %c15_i32_69 dim 1 : vector<32x512xf32>, i32 -> vector<32x512xf32>
    %c2_70 = arith.constant 2 : index
    %c0_71 = arith.constant 0 : index
    %c0_72 = arith.constant 0 : index
    %128 = vector.load %arg1[%c2_70, %c0_71, %c0_72] : memref<9x1x512xf32, #tpu.memory_space<vmem>>, vector<1x1x512xf32>
    %129 = vector.shape_cast %128 : vector<1x1x512xf32> to vector<1x512xf32>
    %130 = vector.broadcast %129 : vector<1x512xf32> to vector<32x512xf32>
    %131 = arith.mulf %127, %130 : vector<32x512xf32>
    %132 = arith.truncf %131 : vector<32x512xf32> to vector<32x512xbf16>
    %c1_i32_73 = arith.constant 1 : i32
    %133 = tpu.dynamic_rotate %114 by %c1_i32_73 dim 1 : vector<32x512xf32>, i32 -> vector<32x512xf32>
    %c3_74 = arith.constant 3 : index
    %c0_75 = arith.constant 0 : index
    %c0_76 = arith.constant 0 : index
    %134 = vector.load %arg1[%c3_74, %c0_75, %c0_76] : memref<9x1x512xf32, #tpu.memory_space<vmem>>, vector<1x1x512xf32>
    %135 = vector.shape_cast %134 : vector<1x1x512xf32> to vector<1x512xf32>
    %136 = vector.broadcast %135 : vector<1x512xf32> to vector<32x512xf32>
    %137 = arith.mulf %133, %136 : vector<32x512xf32>
    %138 = arith.truncf %137 : vector<32x512xf32> to vector<32x512xbf16>
    %139 = arith.truncf %114 : vector<32x512xf32> to vector<32x512xbf16>
    %c511_i32_77 = arith.constant 511 : i32
    %140 = tpu.dynamic_rotate %114 by %c511_i32_77 dim 1 : vector<32x512xf32>, i32 -> vector<32x512xf32>
    %c5_78 = arith.constant 5 : index
    %c0_79 = arith.constant 0 : index
    %c0_80 = arith.constant 0 : index
    %141 = vector.load %arg1[%c5_78, %c0_79, %c0_80] : memref<9x1x512xf32, #tpu.memory_space<vmem>>, vector<1x1x512xf32>
    %142 = vector.shape_cast %141 : vector<1x1x512xf32> to vector<1x512xf32>
    %143 = vector.broadcast %142 : vector<1x512xf32> to vector<32x512xf32>
    %144 = arith.mulf %140, %143 : vector<32x512xf32>
    %145 = arith.truncf %144 : vector<32x512xf32> to vector<32x512xbf16>
    %c497_i32_81 = arith.constant 497 : i32
    %146 = tpu.dynamic_rotate %114 by %c497_i32_81 dim 1 : vector<32x512xf32>, i32 -> vector<32x512xf32>
    %c6_82 = arith.constant 6 : index
    %c0_83 = arith.constant 0 : index
    %c0_84 = arith.constant 0 : index
    %147 = vector.load %arg1[%c6_82, %c0_83, %c0_84] : memref<9x1x512xf32, #tpu.memory_space<vmem>>, vector<1x1x512xf32>
    %148 = vector.shape_cast %147 : vector<1x1x512xf32> to vector<1x512xf32>
    %149 = vector.broadcast %148 : vector<1x512xf32> to vector<32x512xf32>
    %150 = arith.mulf %146, %149 : vector<32x512xf32>
    %151 = arith.truncf %150 : vector<32x512xf32> to vector<32x512xbf16>
    %c496_i32_85 = arith.constant 496 : i32
    %152 = tpu.dynamic_rotate %114 by %c496_i32_85 dim 1 : vector<32x512xf32>, i32 -> vector<32x512xf32>
    %c7_86 = arith.constant 7 : index
    %c0_87 = arith.constant 0 : index
    %c0_88 = arith.constant 0 : index
    %153 = vector.load %arg1[%c7_86, %c0_87, %c0_88] : memref<9x1x512xf32, #tpu.memory_space<vmem>>, vector<1x1x512xf32>
    %154 = vector.shape_cast %153 : vector<1x1x512xf32> to vector<1x512xf32>
    %155 = vector.broadcast %154 : vector<1x512xf32> to vector<32x512xf32>
    %156 = arith.mulf %152, %155 : vector<32x512xf32>
    %157 = arith.truncf %156 : vector<32x512xf32> to vector<32x512xbf16>
    %c495_i32_89 = arith.constant 495 : i32
    %158 = tpu.dynamic_rotate %114 by %c495_i32_89 dim 1 : vector<32x512xf32>, i32 -> vector<32x512xf32>
    %c8_90 = arith.constant 8 : index
    %c0_91 = arith.constant 0 : index
    %c0_92 = arith.constant 0 : index
    %159 = vector.load %arg1[%c8_90, %c0_91, %c0_92] : memref<9x1x512xf32, #tpu.memory_space<vmem>>, vector<1x1x512xf32>
    %160 = vector.shape_cast %159 : vector<1x1x512xf32> to vector<1x512xf32>
    %161 = vector.broadcast %160 : vector<1x512xf32> to vector<32x512xf32>
    %162 = arith.mulf %158, %161 : vector<32x512xf32>
    %163 = arith.truncf %162 : vector<32x512xf32> to vector<32x512xbf16>
    %164 = tpu.concatenate %120, %126, %132, %138, %139, %145, %151, %157, %163 in 0 : vector<32x512xbf16>, vector<32x512xbf16>, vector<32x512xbf16>, vector<32x512xbf16>, vector<32x512xbf16>, vector<32x512xbf16>, vector<32x512xbf16>, vector<32x512xbf16>, vector<32x512xbf16> -> vector<288x512xbf16>
    %c0_93 = arith.constant 0 : index
    %c0_94 = arith.constant 0 : index
    %165 = vector.load %arg11[%c0_93, %c0_94] : memref<64x288xbf16, #tpu.memory_space<vmem>>, vector<64x288xbf16>
    %cst_95 = arith.constant dense<0.000000e+00> : vector<64x512xf32>
    %166 = tpu.matmul %165, %164, %cst_95 {dimension_numbers = #tpu.dot_dimension_numbers<[1], [0], [0], [1], [0, 0, 1, 1], [], []>} : vector<64x288xbf16>, vector<288x512xbf16>, vector<64x512xf32> -> vector<64x512xf32>
    %c0_96 = arith.constant 0 : index
    %c0_97 = arith.constant 0 : index
    %167 = vector.load %arg12[%c0_96, %c0_97] : memref<64x1xf32, #tpu.memory_space<vmem>>, vector<64x1xf32>
    %168 = vector.broadcast %167 : vector<64x1xf32> to vector<64x512xf32>
    %169 = arith.addf %166, %168 : vector<64x512xf32>
    %cst_98 = arith.constant 0.000000e+00 : f32
    %170 = vector.broadcast %cst_98 : f32 to vector<64x512xf32>
    %171 = arith.maximumf %169, %170 : vector<64x512xf32>
    %172 = arith.truncf %171 : vector<64x512xf32> to vector<64x512xbf16>
    %c0_99 = arith.constant 0 : index
    %c0_100 = arith.constant 0 : index
    %173 = vector.load %arg3[%c0_99, %c0_100] : memref<512x128xbf16, #tpu.memory_space<vmem>>, vector<512x128xbf16>
    %cst_101 = arith.constant dense<0.000000e+00> : vector<64x128xf32>
    %174 = tpu.matmul %172, %173, %cst_101 {dimension_numbers = #tpu.dot_dimension_numbers<[1], [0], [0], [1], [0, 0, 1, 1], [], []>} : vector<64x512xbf16>, vector<512x128xbf16>, vector<64x128xf32> -> vector<64x128xf32>
    %c9_i32 = arith.constant 9 : i32
    %175 = tpu.dynamic_rotate %174 by %c9_i32 dim 1 : vector<64x128xf32>, i32 -> vector<64x128xf32>
    %c0_102 = arith.constant 0 : index
    %c0_103 = arith.constant 0 : index
    %c0_104 = arith.constant 0 : index
    %176 = vector.load %arg2[%c0_102, %c0_103, %c0_104] : memref<9x1x128xf32, #tpu.memory_space<vmem>>, vector<1x1x128xf32>
    %177 = vector.shape_cast %176 : vector<1x1x128xf32> to vector<1x128xf32>
    %178 = vector.broadcast %177 : vector<1x128xf32> to vector<64x128xf32>
    %179 = arith.mulf %175, %178 : vector<64x128xf32>
    %180 = arith.truncf %179 : vector<64x128xf32> to vector<64x128xbf16>
    %c8_i32 = arith.constant 8 : i32
    %181 = tpu.dynamic_rotate %174 by %c8_i32 dim 1 : vector<64x128xf32>, i32 -> vector<64x128xf32>
    %c1_105 = arith.constant 1 : index
    %c0_106 = arith.constant 0 : index
    %c0_107 = arith.constant 0 : index
    %182 = vector.load %arg2[%c1_105, %c0_106, %c0_107] : memref<9x1x128xf32, #tpu.memory_space<vmem>>, vector<1x1x128xf32>
    %183 = vector.shape_cast %182 : vector<1x1x128xf32> to vector<1x128xf32>
    %184 = vector.broadcast %183 : vector<1x128xf32> to vector<64x128xf32>
    %185 = arith.mulf %181, %184 : vector<64x128xf32>
    %186 = arith.truncf %185 : vector<64x128xf32> to vector<64x128xbf16>
    %c7_i32 = arith.constant 7 : i32
    %187 = tpu.dynamic_rotate %174 by %c7_i32 dim 1 : vector<64x128xf32>, i32 -> vector<64x128xf32>
    %c2_108 = arith.constant 2 : index
    %c0_109 = arith.constant 0 : index
    %c0_110 = arith.constant 0 : index
    %188 = vector.load %arg2[%c2_108, %c0_109, %c0_110] : memref<9x1x128xf32, #tpu.memory_space<vmem>>, vector<1x1x128xf32>
    %189 = vector.shape_cast %188 : vector<1x1x128xf32> to vector<1x128xf32>
    %190 = vector.broadcast %189 : vector<1x128xf32> to vector<64x128xf32>
    %191 = arith.mulf %187, %190 : vector<64x128xf32>
    %192 = arith.truncf %191 : vector<64x128xf32> to vector<64x128xbf16>
    %c1_i32_111 = arith.constant 1 : i32
    %193 = tpu.dynamic_rotate %174 by %c1_i32_111 dim 1 : vector<64x128xf32>, i32 -> vector<64x128xf32>
    %c3_112 = arith.constant 3 : index
    %c0_113 = arith.constant 0 : index
    %c0_114 = arith.constant 0 : index
    %194 = vector.load %arg2[%c3_112, %c0_113, %c0_114] : memref<9x1x128xf32, #tpu.memory_space<vmem>>, vector<1x1x128xf32>
    %195 = vector.shape_cast %194 : vector<1x1x128xf32> to vector<1x128xf32>
    %196 = vector.broadcast %195 : vector<1x128xf32> to vector<64x128xf32>
    %197 = arith.mulf %193, %196 : vector<64x128xf32>
    %198 = arith.truncf %197 : vector<64x128xf32> to vector<64x128xbf16>
    %199 = arith.truncf %174 : vector<64x128xf32> to vector<64x128xbf16>
    %c127_i32 = arith.constant 127 : i32
    %200 = tpu.dynamic_rotate %174 by %c127_i32 dim 1 : vector<64x128xf32>, i32 -> vector<64x128xf32>
    %c5_115 = arith.constant 5 : index
    %c0_116 = arith.constant 0 : index
    %c0_117 = arith.constant 0 : index
    %201 = vector.load %arg2[%c5_115, %c0_116, %c0_117] : memref<9x1x128xf32, #tpu.memory_space<vmem>>, vector<1x1x128xf32>
    %202 = vector.shape_cast %201 : vector<1x1x128xf32> to vector<1x128xf32>
    %203 = vector.broadcast %202 : vector<1x128xf32> to vector<64x128xf32>
    %204 = arith.mulf %200, %203 : vector<64x128xf32>
    %205 = arith.truncf %204 : vector<64x128xf32> to vector<64x128xbf16>
    %c121_i32 = arith.constant 121 : i32
    %206 = tpu.dynamic_rotate %174 by %c121_i32 dim 1 : vector<64x128xf32>, i32 -> vector<64x128xf32>
    %c6_118 = arith.constant 6 : index
    %c0_119 = arith.constant 0 : index
    %c0_120 = arith.constant 0 : index
    %207 = vector.load %arg2[%c6_118, %c0_119, %c0_120] : memref<9x1x128xf32, #tpu.memory_space<vmem>>, vector<1x1x128xf32>
    %208 = vector.shape_cast %207 : vector<1x1x128xf32> to vector<1x128xf32>
    %209 = vector.broadcast %208 : vector<1x128xf32> to vector<64x128xf32>
    %210 = arith.mulf %206, %209 : vector<64x128xf32>
    %211 = arith.truncf %210 : vector<64x128xf32> to vector<64x128xbf16>
    %c120_i32 = arith.constant 120 : i32
    %212 = tpu.dynamic_rotate %174 by %c120_i32 dim 1 : vector<64x128xf32>, i32 -> vector<64x128xf32>
    %c7_121 = arith.constant 7 : index
    %c0_122 = arith.constant 0 : index
    %c0_123 = arith.constant 0 : index
    %213 = vector.load %arg2[%c7_121, %c0_122, %c0_123] : memref<9x1x128xf32, #tpu.memory_space<vmem>>, vector<1x1x128xf32>
    %214 = vector.shape_cast %213 : vector<1x1x128xf32> to vector<1x128xf32>
    %215 = vector.broadcast %214 : vector<1x128xf32> to vector<64x128xf32>
    %216 = arith.mulf %212, %215 : vector<64x128xf32>
    %217 = arith.truncf %216 : vector<64x128xf32> to vector<64x128xbf16>
    %c119_i32 = arith.constant 119 : i32
    %218 = tpu.dynamic_rotate %174 by %c119_i32 dim 1 : vector<64x128xf32>, i32 -> vector<64x128xf32>
    %c8_124 = arith.constant 8 : index
    %c0_125 = arith.constant 0 : index
    %c0_126 = arith.constant 0 : index
    %219 = vector.load %arg2[%c8_124, %c0_125, %c0_126] : memref<9x1x128xf32, #tpu.memory_space<vmem>>, vector<1x1x128xf32>
    %220 = vector.shape_cast %219 : vector<1x1x128xf32> to vector<1x128xf32>
    %221 = vector.broadcast %220 : vector<1x128xf32> to vector<64x128xf32>
    %222 = arith.mulf %218, %221 : vector<64x128xf32>
    %223 = arith.truncf %222 : vector<64x128xf32> to vector<64x128xbf16>
    %224 = tpu.concatenate %180, %186, %192, %198, %199, %205, %211, %217, %223 in 0 : vector<64x128xbf16>, vector<64x128xbf16>, vector<64x128xbf16>, vector<64x128xbf16>, vector<64x128xbf16>, vector<64x128xbf16>, vector<64x128xbf16>, vector<64x128xbf16>, vector<64x128xbf16> -> vector<576x128xbf16>
    %c0_127 = arith.constant 0 : index
    %c0_128 = arith.constant 0 : index
    %225 = vector.load %arg13[%c0_127, %c0_128] : memref<128x576xbf16, #tpu.memory_space<vmem>>, vector<128x576xbf16>
    %cst_129 = arith.constant dense<0.000000e+00> : vector<128x128xf32>
    %226 = tpu.matmul %225, %224, %cst_129 {dimension_numbers = #tpu.dot_dimension_numbers<[1], [0], [0], [1], [0, 0, 1, 1], [], []>} : vector<128x576xbf16>, vector<576x128xbf16>, vector<128x128xf32> -> vector<128x128xf32>
    %c0_130 = arith.constant 0 : index
    %c0_131 = arith.constant 0 : index
    %227 = vector.load %arg14[%c0_130, %c0_131] : memref<128x1xf32, #tpu.memory_space<vmem>>, vector<128x1xf32>
    %228 = vector.broadcast %227 : vector<128x1xf32> to vector<128x128xf32>
    %229 = arith.addf %226, %228 : vector<128x128xf32>
    %cst_132 = arith.constant 0.000000e+00 : f32
    %230 = vector.broadcast %cst_132 : f32 to vector<128x128xf32>
    %231 = arith.maximumf %229, %230 : vector<128x128xf32>
    %232 = arith.truncf %231 : vector<128x128xf32> to vector<128x128xbf16>
    %c0_133 = arith.constant 0 : index
    %c0_134 = arith.constant 0 : index
    %233 = vector.load %arg4[%c0_133, %c0_134] : memref<128x32xbf16, #tpu.memory_space<vmem>>, vector<128x32xbf16>
    %cst_135 = arith.constant dense<0.000000e+00> : vector<128x32xf32>
    %234 = tpu.matmul %232, %233, %cst_135 {dimension_numbers = #tpu.dot_dimension_numbers<[1], [0], [0], [1], [0, 0, 1, 1], [], []>} : vector<128x128xbf16>, vector<128x32xbf16>, vector<128x32xf32> -> vector<128x32xf32>
    %235 = arith.truncf %234 : vector<128x32xf32> to vector<128x32xbf16>
    %c0_136 = arith.constant 0 : index
    %c0_137 = arith.constant 0 : index
    %236 = vector.load %arg5[%c0_136, %c0_137] : memref<32x128xbf16, #tpu.memory_space<vmem>>, vector<32x128xbf16>
    %cst_138 = arith.constant dense<0.000000e+00> : vector<128x128xf32>
    %237 = tpu.matmul %235, %236, %cst_138 {dimension_numbers = #tpu.dot_dimension_numbers<[1], [0], [0], [1], [0, 0, 1, 1], [], []>} : vector<128x32xbf16>, vector<32x128xbf16>, vector<128x128xf32> -> vector<128x128xf32>
    %238 = arith.truncf %237 : vector<128x128xf32> to vector<128x128xbf16>
    %c127_i32_139 = arith.constant 127 : i32
    %239 = tpu.dynamic_rotate %237 by %c127_i32_139 dim 1 : vector<128x128xf32>, i32 -> vector<128x128xf32>
    %c5_140 = arith.constant 5 : index
    %c0_141 = arith.constant 0 : index
    %c0_142 = arith.constant 0 : index
    %240 = vector.load %arg2[%c5_140, %c0_141, %c0_142] : memref<9x1x128xf32, #tpu.memory_space<vmem>>, vector<1x1x128xf32>
    %241 = vector.shape_cast %240 : vector<1x1x128xf32> to vector<1x128xf32>
    %242 = vector.broadcast %241 : vector<1x128xf32> to vector<128x128xf32>
    %243 = arith.mulf %239, %242 : vector<128x128xf32>
    %244 = arith.truncf %243 : vector<128x128xf32> to vector<128x128xbf16>
    %c120_i32_143 = arith.constant 120 : i32
    %245 = tpu.dynamic_rotate %237 by %c120_i32_143 dim 1 : vector<128x128xf32>, i32 -> vector<128x128xf32>
    %c7_144 = arith.constant 7 : index
    %c0_145 = arith.constant 0 : index
    %c0_146 = arith.constant 0 : index
    %246 = vector.load %arg2[%c7_144, %c0_145, %c0_146] : memref<9x1x128xf32, #tpu.memory_space<vmem>>, vector<1x1x128xf32>
    %247 = vector.shape_cast %246 : vector<1x1x128xf32> to vector<1x128xf32>
    %248 = vector.broadcast %247 : vector<1x128xf32> to vector<128x128xf32>
    %249 = arith.mulf %245, %248 : vector<128x128xf32>
    %250 = arith.truncf %249 : vector<128x128xf32> to vector<128x128xbf16>
    %c119_i32_147 = arith.constant 119 : i32
    %251 = tpu.dynamic_rotate %237 by %c119_i32_147 dim 1 : vector<128x128xf32>, i32 -> vector<128x128xf32>
    %c8_148 = arith.constant 8 : index
    %c0_149 = arith.constant 0 : index
    %c0_150 = arith.constant 0 : index
    %252 = vector.load %arg2[%c8_148, %c0_149, %c0_150] : memref<9x1x128xf32, #tpu.memory_space<vmem>>, vector<1x1x128xf32>
    %253 = vector.shape_cast %252 : vector<1x1x128xf32> to vector<1x128xf32>
    %254 = vector.broadcast %253 : vector<1x128xf32> to vector<128x128xf32>
    %255 = arith.mulf %251, %254 : vector<128x128xf32>
    %256 = arith.truncf %255 : vector<128x128xf32> to vector<128x128xbf16>
    %257 = tpu.concatenate %238, %244, %250, %256 in 0 : vector<128x128xbf16>, vector<128x128xbf16>, vector<128x128xbf16>, vector<128x128xbf16> -> vector<512x128xbf16>
    %c0_151 = arith.constant 0 : index
    %c0_152 = arith.constant 0 : index
    %258 = vector.load %arg15[%c0_151, %c0_152] : memref<64x512xbf16, #tpu.memory_space<vmem>>, vector<64x512xbf16>
    %cst_153 = arith.constant dense<0.000000e+00> : vector<64x128xf32>
    %259 = tpu.matmul %258, %257, %cst_153 {dimension_numbers = #tpu.dot_dimension_numbers<[1], [0], [0], [1], [0, 0, 1, 1], [], []>} : vector<64x512xbf16>, vector<512x128xbf16>, vector<64x128xf32> -> vector<64x128xf32>
    %c0_154 = arith.constant 0 : index
    %c0_155 = arith.constant 0 : index
    %260 = vector.load %arg16[%c0_154, %c0_155] : memref<64x1xf32, #tpu.memory_space<vmem>>, vector<64x1xf32>
    %261 = vector.broadcast %260 : vector<64x1xf32> to vector<64x128xf32>
    %262 = arith.addf %259, %261 : vector<64x128xf32>
    %cst_156 = arith.constant 0.000000e+00 : f32
    %263 = vector.broadcast %cst_156 : f32 to vector<64x128xf32>
    %264 = arith.maximumf %262, %263 : vector<64x128xf32>
    %c9_i32_157 = arith.constant 9 : i32
    %265 = tpu.dynamic_rotate %264 by %c9_i32_157 dim 1 : vector<64x128xf32>, i32 -> vector<64x128xf32>
    %c0_158 = arith.constant 0 : index
    %c0_159 = arith.constant 0 : index
    %c0_160 = arith.constant 0 : index
    %266 = vector.load %arg2[%c0_158, %c0_159, %c0_160] : memref<9x1x128xf32, #tpu.memory_space<vmem>>, vector<1x1x128xf32>
    %267 = vector.shape_cast %266 : vector<1x1x128xf32> to vector<1x128xf32>
    %268 = vector.broadcast %267 : vector<1x128xf32> to vector<64x128xf32>
    %269 = arith.mulf %265, %268 : vector<64x128xf32>
    %270 = arith.truncf %269 : vector<64x128xf32> to vector<64x128xbf16>
    %c8_i32_161 = arith.constant 8 : i32
    %271 = tpu.dynamic_rotate %264 by %c8_i32_161 dim 1 : vector<64x128xf32>, i32 -> vector<64x128xf32>
    %c1_162 = arith.constant 1 : index
    %c0_163 = arith.constant 0 : index
    %c0_164 = arith.constant 0 : index
    %272 = vector.load %arg2[%c1_162, %c0_163, %c0_164] : memref<9x1x128xf32, #tpu.memory_space<vmem>>, vector<1x1x128xf32>
    %273 = vector.shape_cast %272 : vector<1x1x128xf32> to vector<1x128xf32>
    %274 = vector.broadcast %273 : vector<1x128xf32> to vector<64x128xf32>
    %275 = arith.mulf %271, %274 : vector<64x128xf32>
    %276 = arith.truncf %275 : vector<64x128xf32> to vector<64x128xbf16>
    %c7_i32_165 = arith.constant 7 : i32
    %277 = tpu.dynamic_rotate %264 by %c7_i32_165 dim 1 : vector<64x128xf32>, i32 -> vector<64x128xf32>
    %c2_166 = arith.constant 2 : index
    %c0_167 = arith.constant 0 : index
    %c0_168 = arith.constant 0 : index
    %278 = vector.load %arg2[%c2_166, %c0_167, %c0_168] : memref<9x1x128xf32, #tpu.memory_space<vmem>>, vector<1x1x128xf32>
    %279 = vector.shape_cast %278 : vector<1x1x128xf32> to vector<1x128xf32>
    %280 = vector.broadcast %279 : vector<1x128xf32> to vector<64x128xf32>
    %281 = arith.mulf %277, %280 : vector<64x128xf32>
    %282 = arith.truncf %281 : vector<64x128xf32> to vector<64x128xbf16>
    %c1_i32_169 = arith.constant 1 : i32
    %283 = tpu.dynamic_rotate %264 by %c1_i32_169 dim 1 : vector<64x128xf32>, i32 -> vector<64x128xf32>
    %c3_170 = arith.constant 3 : index
    %c0_171 = arith.constant 0 : index
    %c0_172 = arith.constant 0 : index
    %284 = vector.load %arg2[%c3_170, %c0_171, %c0_172] : memref<9x1x128xf32, #tpu.memory_space<vmem>>, vector<1x1x128xf32>
    %285 = vector.shape_cast %284 : vector<1x1x128xf32> to vector<1x128xf32>
    %286 = vector.broadcast %285 : vector<1x128xf32> to vector<64x128xf32>
    %287 = arith.mulf %283, %286 : vector<64x128xf32>
    %288 = arith.truncf %287 : vector<64x128xf32> to vector<64x128xbf16>
    %289 = arith.truncf %264 : vector<64x128xf32> to vector<64x128xbf16>
    %c127_i32_173 = arith.constant 127 : i32
    %290 = tpu.dynamic_rotate %264 by %c127_i32_173 dim 1 : vector<64x128xf32>, i32 -> vector<64x128xf32>
    %c5_174 = arith.constant 5 : index
    %c0_175 = arith.constant 0 : index
    %c0_176 = arith.constant 0 : index
    %291 = vector.load %arg2[%c5_174, %c0_175, %c0_176] : memref<9x1x128xf32, #tpu.memory_space<vmem>>, vector<1x1x128xf32>
    %292 = vector.shape_cast %291 : vector<1x1x128xf32> to vector<1x128xf32>
    %293 = vector.broadcast %292 : vector<1x128xf32> to vector<64x128xf32>
    %294 = arith.mulf %290, %293 : vector<64x128xf32>
    %295 = arith.truncf %294 : vector<64x128xf32> to vector<64x128xbf16>
    %c121_i32_177 = arith.constant 121 : i32
    %296 = tpu.dynamic_rotate %264 by %c121_i32_177 dim 1 : vector<64x128xf32>, i32 -> vector<64x128xf32>
    %c6_178 = arith.constant 6 : index
    %c0_179 = arith.constant 0 : index
    %c0_180 = arith.constant 0 : index
    %297 = vector.load %arg2[%c6_178, %c0_179, %c0_180] : memref<9x1x128xf32, #tpu.memory_space<vmem>>, vector<1x1x128xf32>
    %298 = vector.shape_cast %297 : vector<1x1x128xf32> to vector<1x128xf32>
    %299 = vector.broadcast %298 : vector<1x128xf32> to vector<64x128xf32>
    %300 = arith.mulf %296, %299 : vector<64x128xf32>
    %301 = arith.truncf %300 : vector<64x128xf32> to vector<64x128xbf16>
    %c120_i32_181 = arith.constant 120 : i32
    %302 = tpu.dynamic_rotate %264 by %c120_i32_181 dim 1 : vector<64x128xf32>, i32 -> vector<64x128xf32>
    %c7_182 = arith.constant 7 : index
    %c0_183 = arith.constant 0 : index
    %c0_184 = arith.constant 0 : index
    %303 = vector.load %arg2[%c7_182, %c0_183, %c0_184] : memref<9x1x128xf32, #tpu.memory_space<vmem>>, vector<1x1x128xf32>
    %304 = vector.shape_cast %303 : vector<1x1x128xf32> to vector<1x128xf32>
    %305 = vector.broadcast %304 : vector<1x128xf32> to vector<64x128xf32>
    %306 = arith.mulf %302, %305 : vector<64x128xf32>
    %307 = arith.truncf %306 : vector<64x128xf32> to vector<64x128xbf16>
    %c119_i32_185 = arith.constant 119 : i32
    %308 = tpu.dynamic_rotate %264 by %c119_i32_185 dim 1 : vector<64x128xf32>, i32 -> vector<64x128xf32>
    %c8_186 = arith.constant 8 : index
    %c0_187 = arith.constant 0 : index
    %c0_188 = arith.constant 0 : index
    %309 = vector.load %arg2[%c8_186, %c0_187, %c0_188] : memref<9x1x128xf32, #tpu.memory_space<vmem>>, vector<1x1x128xf32>
    %310 = vector.shape_cast %309 : vector<1x1x128xf32> to vector<1x128xf32>
    %311 = vector.broadcast %310 : vector<1x128xf32> to vector<64x128xf32>
    %312 = arith.mulf %308, %311 : vector<64x128xf32>
    %313 = arith.truncf %312 : vector<64x128xf32> to vector<64x128xbf16>
    %314 = tpu.concatenate %270, %276, %282, %288, %289, %295, %301, %307, %313 in 0 : vector<64x128xbf16>, vector<64x128xbf16>, vector<64x128xbf16>, vector<64x128xbf16>, vector<64x128xbf16>, vector<64x128xbf16>, vector<64x128xbf16>, vector<64x128xbf16>, vector<64x128xbf16> -> vector<576x128xbf16>
    %c0_189 = arith.constant 0 : index
    %c0_190 = arith.constant 0 : index
    %315 = vector.load %arg17[%c0_189, %c0_190] : memref<64x576xbf16, #tpu.memory_space<vmem>>, vector<64x576xbf16>
    %cst_191 = arith.constant dense<0.000000e+00> : vector<64x128xf32>
    %316 = tpu.matmul %315, %224, %cst_191 {dimension_numbers = #tpu.dot_dimension_numbers<[1], [0], [0], [1], [0, 0, 1, 1], [], []>} : vector<64x576xbf16>, vector<576x128xbf16>, vector<64x128xf32> -> vector<64x128xf32>
    %c0_192 = arith.constant 0 : index
    %c0_193 = arith.constant 0 : index
    %317 = vector.load %arg18[%c0_192, %c0_193] : memref<64x576xbf16, #tpu.memory_space<vmem>>, vector<64x576xbf16>
    %cst_194 = arith.constant dense<0.000000e+00> : vector<64x128xf32>
    %318 = tpu.matmul %317, %314, %cst_194 {dimension_numbers = #tpu.dot_dimension_numbers<[1], [0], [0], [1], [0, 0, 1, 1], [], []>} : vector<64x576xbf16>, vector<576x128xbf16>, vector<64x128xf32> -> vector<64x128xf32>
    %319 = arith.addf %316, %318 : vector<64x128xf32>
    %c0_195 = arith.constant 0 : index
    %c0_196 = arith.constant 0 : index
    %320 = vector.load %arg19[%c0_195, %c0_196] : memref<64x1xf32, #tpu.memory_space<vmem>>, vector<64x1xf32>
    %321 = vector.broadcast %320 : vector<64x1xf32> to vector<64x128xf32>
    %322 = arith.addf %319, %321 : vector<64x128xf32>
    %cst_197 = arith.constant 0.000000e+00 : f32
    %323 = vector.broadcast %cst_197 : f32 to vector<64x128xf32>
    %324 = arith.maximumf %322, %323 : vector<64x128xf32>
    %325 = arith.truncf %324 : vector<64x128xf32> to vector<64x128xbf16>
    %c0_198 = arith.constant 0 : index
    %c0_199 = arith.constant 0 : index
    %326 = vector.load %arg6[%c0_198, %c0_199] : memref<128x512xbf16, #tpu.memory_space<vmem>>, vector<128x512xbf16>
    %cst_200 = arith.constant dense<0.000000e+00> : vector<64x512xf32>
    %327 = tpu.matmul %325, %326, %cst_200 {dimension_numbers = #tpu.dot_dimension_numbers<[1], [0], [0], [1], [0, 0, 1, 1], [], []>} : vector<64x128xbf16>, vector<128x512xbf16>, vector<64x512xf32> -> vector<64x512xf32>
    %328 = arith.truncf %327 : vector<64x512xf32> to vector<64x512xbf16>
    %c511_i32_201 = arith.constant 511 : i32
    %329 = tpu.dynamic_rotate %327 by %c511_i32_201 dim 1 : vector<64x512xf32>, i32 -> vector<64x512xf32>
    %c5_202 = arith.constant 5 : index
    %c0_203 = arith.constant 0 : index
    %c0_204 = arith.constant 0 : index
    %330 = vector.load %arg1[%c5_202, %c0_203, %c0_204] : memref<9x1x512xf32, #tpu.memory_space<vmem>>, vector<1x1x512xf32>
    %331 = vector.shape_cast %330 : vector<1x1x512xf32> to vector<1x512xf32>
    %332 = vector.broadcast %331 : vector<1x512xf32> to vector<64x512xf32>
    %333 = arith.mulf %329, %332 : vector<64x512xf32>
    %334 = arith.truncf %333 : vector<64x512xf32> to vector<64x512xbf16>
    %c496_i32_205 = arith.constant 496 : i32
    %335 = tpu.dynamic_rotate %327 by %c496_i32_205 dim 1 : vector<64x512xf32>, i32 -> vector<64x512xf32>
    %c7_206 = arith.constant 7 : index
    %c0_207 = arith.constant 0 : index
    %c0_208 = arith.constant 0 : index
    %336 = vector.load %arg1[%c7_206, %c0_207, %c0_208] : memref<9x1x512xf32, #tpu.memory_space<vmem>>, vector<1x1x512xf32>
    %337 = vector.shape_cast %336 : vector<1x1x512xf32> to vector<1x512xf32>
    %338 = vector.broadcast %337 : vector<1x512xf32> to vector<64x512xf32>
    %339 = arith.mulf %335, %338 : vector<64x512xf32>
    %340 = arith.truncf %339 : vector<64x512xf32> to vector<64x512xbf16>
    %c495_i32_209 = arith.constant 495 : i32
    %341 = tpu.dynamic_rotate %327 by %c495_i32_209 dim 1 : vector<64x512xf32>, i32 -> vector<64x512xf32>
    %c8_210 = arith.constant 8 : index
    %c0_211 = arith.constant 0 : index
    %c0_212 = arith.constant 0 : index
    %342 = vector.load %arg1[%c8_210, %c0_211, %c0_212] : memref<9x1x512xf32, #tpu.memory_space<vmem>>, vector<1x1x512xf32>
    %343 = vector.shape_cast %342 : vector<1x1x512xf32> to vector<1x512xf32>
    %344 = vector.broadcast %343 : vector<1x512xf32> to vector<64x512xf32>
    %345 = arith.mulf %341, %344 : vector<64x512xf32>
    %346 = arith.truncf %345 : vector<64x512xf32> to vector<64x512xbf16>
    %347 = tpu.concatenate %328, %334, %340, %346 in 0 : vector<64x512xbf16>, vector<64x512xbf16>, vector<64x512xbf16>, vector<64x512xbf16> -> vector<256x512xbf16>
    %c0_213 = arith.constant 0 : index
    %c0_214 = arith.constant 0 : index
    %348 = vector.load %arg20[%c0_213, %c0_214] : memref<32x256xbf16, #tpu.memory_space<vmem>>, vector<32x256xbf16>
    %cst_215 = arith.constant dense<0.000000e+00> : vector<32x512xf32>
    %349 = tpu.matmul %348, %347, %cst_215 {dimension_numbers = #tpu.dot_dimension_numbers<[1], [0], [0], [1], [0, 0, 1, 1], [], []>} : vector<32x256xbf16>, vector<256x512xbf16>, vector<32x512xf32> -> vector<32x512xf32>
    %c0_216 = arith.constant 0 : index
    %c0_217 = arith.constant 0 : index
    %350 = vector.load %arg21[%c0_216, %c0_217] : memref<32x1xf32, #tpu.memory_space<vmem>>, vector<32x1xf32>
    %351 = vector.broadcast %350 : vector<32x1xf32> to vector<32x512xf32>
    %352 = arith.addf %349, %351 : vector<32x512xf32>
    %cst_218 = arith.constant 0.000000e+00 : f32
    %353 = vector.broadcast %cst_218 : f32 to vector<32x512xf32>
    %354 = arith.maximumf %352, %353 : vector<32x512xf32>
    %c17_i32_219 = arith.constant 17 : i32
    %355 = tpu.dynamic_rotate %354 by %c17_i32_219 dim 1 : vector<32x512xf32>, i32 -> vector<32x512xf32>
    %c0_220 = arith.constant 0 : index
    %c0_221 = arith.constant 0 : index
    %c0_222 = arith.constant 0 : index
    %356 = vector.load %arg1[%c0_220, %c0_221, %c0_222] : memref<9x1x512xf32, #tpu.memory_space<vmem>>, vector<1x1x512xf32>
    %357 = vector.shape_cast %356 : vector<1x1x512xf32> to vector<1x512xf32>
    %358 = vector.broadcast %357 : vector<1x512xf32> to vector<32x512xf32>
    %359 = arith.mulf %355, %358 : vector<32x512xf32>
    %360 = arith.truncf %359 : vector<32x512xf32> to vector<32x512xbf16>
    %c16_i32_223 = arith.constant 16 : i32
    %361 = tpu.dynamic_rotate %354 by %c16_i32_223 dim 1 : vector<32x512xf32>, i32 -> vector<32x512xf32>
    %c1_224 = arith.constant 1 : index
    %c0_225 = arith.constant 0 : index
    %c0_226 = arith.constant 0 : index
    %362 = vector.load %arg1[%c1_224, %c0_225, %c0_226] : memref<9x1x512xf32, #tpu.memory_space<vmem>>, vector<1x1x512xf32>
    %363 = vector.shape_cast %362 : vector<1x1x512xf32> to vector<1x512xf32>
    %364 = vector.broadcast %363 : vector<1x512xf32> to vector<32x512xf32>
    %365 = arith.mulf %361, %364 : vector<32x512xf32>
    %366 = arith.truncf %365 : vector<32x512xf32> to vector<32x512xbf16>
    %c15_i32_227 = arith.constant 15 : i32
    %367 = tpu.dynamic_rotate %354 by %c15_i32_227 dim 1 : vector<32x512xf32>, i32 -> vector<32x512xf32>
    %c2_228 = arith.constant 2 : index
    %c0_229 = arith.constant 0 : index
    %c0_230 = arith.constant 0 : index
    %368 = vector.load %arg1[%c2_228, %c0_229, %c0_230] : memref<9x1x512xf32, #tpu.memory_space<vmem>>, vector<1x1x512xf32>
    %369 = vector.shape_cast %368 : vector<1x1x512xf32> to vector<1x512xf32>
    %370 = vector.broadcast %369 : vector<1x512xf32> to vector<32x512xf32>
    %371 = arith.mulf %367, %370 : vector<32x512xf32>
    %372 = arith.truncf %371 : vector<32x512xf32> to vector<32x512xbf16>
    %c1_i32_231 = arith.constant 1 : i32
    %373 = tpu.dynamic_rotate %354 by %c1_i32_231 dim 1 : vector<32x512xf32>, i32 -> vector<32x512xf32>
    %c3_232 = arith.constant 3 : index
    %c0_233 = arith.constant 0 : index
    %c0_234 = arith.constant 0 : index
    %374 = vector.load %arg1[%c3_232, %c0_233, %c0_234] : memref<9x1x512xf32, #tpu.memory_space<vmem>>, vector<1x1x512xf32>
    %375 = vector.shape_cast %374 : vector<1x1x512xf32> to vector<1x512xf32>
    %376 = vector.broadcast %375 : vector<1x512xf32> to vector<32x512xf32>
    %377 = arith.mulf %373, %376 : vector<32x512xf32>
    %378 = arith.truncf %377 : vector<32x512xf32> to vector<32x512xbf16>
    %379 = arith.truncf %354 : vector<32x512xf32> to vector<32x512xbf16>
    %c511_i32_235 = arith.constant 511 : i32
    %380 = tpu.dynamic_rotate %354 by %c511_i32_235 dim 1 : vector<32x512xf32>, i32 -> vector<32x512xf32>
    %c5_236 = arith.constant 5 : index
    %c0_237 = arith.constant 0 : index
    %c0_238 = arith.constant 0 : index
    %381 = vector.load %arg1[%c5_236, %c0_237, %c0_238] : memref<9x1x512xf32, #tpu.memory_space<vmem>>, vector<1x1x512xf32>
    %382 = vector.shape_cast %381 : vector<1x1x512xf32> to vector<1x512xf32>
    %383 = vector.broadcast %382 : vector<1x512xf32> to vector<32x512xf32>
    %384 = arith.mulf %380, %383 : vector<32x512xf32>
    %385 = arith.truncf %384 : vector<32x512xf32> to vector<32x512xbf16>
    %c497_i32_239 = arith.constant 497 : i32
    %386 = tpu.dynamic_rotate %354 by %c497_i32_239 dim 1 : vector<32x512xf32>, i32 -> vector<32x512xf32>
    %c6_240 = arith.constant 6 : index
    %c0_241 = arith.constant 0 : index
    %c0_242 = arith.constant 0 : index
    %387 = vector.load %arg1[%c6_240, %c0_241, %c0_242] : memref<9x1x512xf32, #tpu.memory_space<vmem>>, vector<1x1x512xf32>
    %388 = vector.shape_cast %387 : vector<1x1x512xf32> to vector<1x512xf32>
    %389 = vector.broadcast %388 : vector<1x512xf32> to vector<32x512xf32>
    %390 = arith.mulf %386, %389 : vector<32x512xf32>
    %391 = arith.truncf %390 : vector<32x512xf32> to vector<32x512xbf16>
    %c496_i32_243 = arith.constant 496 : i32
    %392 = tpu.dynamic_rotate %354 by %c496_i32_243 dim 1 : vector<32x512xf32>, i32 -> vector<32x512xf32>
    %c7_244 = arith.constant 7 : index
    %c0_245 = arith.constant 0 : index
    %c0_246 = arith.constant 0 : index
    %393 = vector.load %arg1[%c7_244, %c0_245, %c0_246] : memref<9x1x512xf32, #tpu.memory_space<vmem>>, vector<1x1x512xf32>
    %394 = vector.shape_cast %393 : vector<1x1x512xf32> to vector<1x512xf32>
    %395 = vector.broadcast %394 : vector<1x512xf32> to vector<32x512xf32>
    %396 = arith.mulf %392, %395 : vector<32x512xf32>
    %397 = arith.truncf %396 : vector<32x512xf32> to vector<32x512xbf16>
    %c495_i32_247 = arith.constant 495 : i32
    %398 = tpu.dynamic_rotate %354 by %c495_i32_247 dim 1 : vector<32x512xf32>, i32 -> vector<32x512xf32>
    %c8_248 = arith.constant 8 : index
    %c0_249 = arith.constant 0 : index
    %c0_250 = arith.constant 0 : index
    %399 = vector.load %arg1[%c8_248, %c0_249, %c0_250] : memref<9x1x512xf32, #tpu.memory_space<vmem>>, vector<1x1x512xf32>
    %400 = vector.shape_cast %399 : vector<1x1x512xf32> to vector<1x512xf32>
    %401 = vector.broadcast %400 : vector<1x512xf32> to vector<32x512xf32>
    %402 = arith.mulf %398, %401 : vector<32x512xf32>
    %403 = arith.truncf %402 : vector<32x512xf32> to vector<32x512xbf16>
    %404 = tpu.concatenate %360, %366, %372, %378, %379, %385, %391, %397, %403 in 0 : vector<32x512xbf16>, vector<32x512xbf16>, vector<32x512xbf16>, vector<32x512xbf16>, vector<32x512xbf16>, vector<32x512xbf16>, vector<32x512xbf16>, vector<32x512xbf16>, vector<32x512xbf16> -> vector<288x512xbf16>
    %c0_251 = arith.constant 0 : index
    %c0_252 = arith.constant 0 : index
    %405 = vector.load %arg22[%c0_251, %c0_252] : memref<32x288xbf16, #tpu.memory_space<vmem>>, vector<32x288xbf16>
    %cst_253 = arith.constant dense<0.000000e+00> : vector<32x512xf32>
    %406 = tpu.matmul %405, %164, %cst_253 {dimension_numbers = #tpu.dot_dimension_numbers<[1], [0], [0], [1], [0, 0, 1, 1], [], []>} : vector<32x288xbf16>, vector<288x512xbf16>, vector<32x512xf32> -> vector<32x512xf32>
    %c0_254 = arith.constant 0 : index
    %c0_255 = arith.constant 0 : index
    %407 = vector.load %arg23[%c0_254, %c0_255] : memref<32x288xbf16, #tpu.memory_space<vmem>>, vector<32x288xbf16>
    %cst_256 = arith.constant dense<0.000000e+00> : vector<32x512xf32>
    %408 = tpu.matmul %407, %404, %cst_256 {dimension_numbers = #tpu.dot_dimension_numbers<[1], [0], [0], [1], [0, 0, 1, 1], [], []>} : vector<32x288xbf16>, vector<288x512xbf16>, vector<32x512xf32> -> vector<32x512xf32>
    %409 = arith.addf %406, %408 : vector<32x512xf32>
    %c0_257 = arith.constant 0 : index
    %c0_258 = arith.constant 0 : index
    %410 = vector.load %arg24[%c0_257, %c0_258] : memref<32x1xf32, #tpu.memory_space<vmem>>, vector<32x1xf32>
    %411 = vector.broadcast %410 : vector<32x1xf32> to vector<32x512xf32>
    %412 = arith.addf %409, %411 : vector<32x512xf32>
    %cst_259 = arith.constant 0.000000e+00 : f32
    %413 = vector.broadcast %cst_259 : f32 to vector<32x512xf32>
    %414 = arith.maximumf %412, %413 : vector<32x512xf32>
    %415 = arith.truncf %414 : vector<32x512xf32> to vector<32x512xbf16>
    %c511_i32_260 = arith.constant 511 : i32
    %416 = tpu.dynamic_rotate %414 by %c511_i32_260 dim 1 : vector<32x512xf32>, i32 -> vector<32x512xf32>
    %c5_261 = arith.constant 5 : index
    %c0_262 = arith.constant 0 : index
    %c0_263 = arith.constant 0 : index
    %417 = vector.load %arg1[%c5_261, %c0_262, %c0_263] : memref<9x1x512xf32, #tpu.memory_space<vmem>>, vector<1x1x512xf32>
    %418 = vector.shape_cast %417 : vector<1x1x512xf32> to vector<1x512xf32>
    %419 = vector.broadcast %418 : vector<1x512xf32> to vector<32x512xf32>
    %420 = arith.mulf %416, %419 : vector<32x512xf32>
    %421 = arith.truncf %420 : vector<32x512xf32> to vector<32x512xbf16>
    %c496_i32_264 = arith.constant 496 : i32
    %422 = tpu.dynamic_rotate %414 by %c496_i32_264 dim 1 : vector<32x512xf32>, i32 -> vector<32x512xf32>
    %c7_265 = arith.constant 7 : index
    %c0_266 = arith.constant 0 : index
    %c0_267 = arith.constant 0 : index
    %423 = vector.load %arg1[%c7_265, %c0_266, %c0_267] : memref<9x1x512xf32, #tpu.memory_space<vmem>>, vector<1x1x512xf32>
    %424 = vector.shape_cast %423 : vector<1x1x512xf32> to vector<1x512xf32>
    %425 = vector.broadcast %424 : vector<1x512xf32> to vector<32x512xf32>
    %426 = arith.mulf %422, %425 : vector<32x512xf32>
    %427 = arith.truncf %426 : vector<32x512xf32> to vector<32x512xbf16>
    %c495_i32_268 = arith.constant 495 : i32
    %428 = tpu.dynamic_rotate %414 by %c495_i32_268 dim 1 : vector<32x512xf32>, i32 -> vector<32x512xf32>
    %c8_269 = arith.constant 8 : index
    %c0_270 = arith.constant 0 : index
    %c0_271 = arith.constant 0 : index
    %429 = vector.load %arg1[%c8_269, %c0_270, %c0_271] : memref<9x1x512xf32, #tpu.memory_space<vmem>>, vector<1x1x512xf32>
    %430 = vector.shape_cast %429 : vector<1x1x512xf32> to vector<1x512xf32>
    %431 = vector.broadcast %430 : vector<1x512xf32> to vector<32x512xf32>
    %432 = arith.mulf %428, %431 : vector<32x512xf32>
    %433 = arith.truncf %432 : vector<32x512xf32> to vector<32x512xbf16>
    %434 = tpu.concatenate %415, %421, %427, %433 in 0 : vector<32x512xbf16>, vector<32x512xbf16>, vector<32x512xbf16>, vector<32x512xbf16> -> vector<128x512xbf16>
    %c0_272 = arith.constant 0 : index
    %c0_273 = arith.constant 0 : index
    %435 = vector.load %arg25[%c0_272, %c0_273] : memref<32x128xbf16, #tpu.memory_space<vmem>>, vector<32x128xbf16>
    %cst_274 = arith.constant dense<0.000000e+00> : vector<32x512xf32>
    %436 = tpu.matmul %435, %434, %cst_274 {dimension_numbers = #tpu.dot_dimension_numbers<[1], [0], [0], [1], [0, 0, 1, 1], [], []>} : vector<32x128xbf16>, vector<128x512xbf16>, vector<32x512xf32> -> vector<32x512xf32>
    %c0_275 = arith.constant 0 : index
    %c0_276 = arith.constant 0 : index
    %437 = vector.load %arg26[%c0_275, %c0_276] : memref<32x1xf32, #tpu.memory_space<vmem>>, vector<32x1xf32>
    %438 = vector.broadcast %437 : vector<32x1xf32> to vector<32x512xf32>
    %439 = arith.addf %436, %438 : vector<32x512xf32>
    %cst_277 = arith.constant 0.000000e+00 : f32
    %440 = vector.broadcast %cst_277 : f32 to vector<32x512xf32>
    %441 = arith.maximumf %439, %440 : vector<32x512xf32>
    %c17_i32_278 = arith.constant 17 : i32
    %442 = tpu.dynamic_rotate %441 by %c17_i32_278 dim 1 : vector<32x512xf32>, i32 -> vector<32x512xf32>
    %c0_279 = arith.constant 0 : index
    %c0_280 = arith.constant 0 : index
    %c0_281 = arith.constant 0 : index
    %443 = vector.load %arg1[%c0_279, %c0_280, %c0_281] : memref<9x1x512xf32, #tpu.memory_space<vmem>>, vector<1x1x512xf32>
    %444 = vector.shape_cast %443 : vector<1x1x512xf32> to vector<1x512xf32>
    %445 = vector.broadcast %444 : vector<1x512xf32> to vector<32x512xf32>
    %446 = arith.mulf %442, %445 : vector<32x512xf32>
    %447 = arith.truncf %446 : vector<32x512xf32> to vector<32x512xbf16>
    %c16_i32_282 = arith.constant 16 : i32
    %448 = tpu.dynamic_rotate %441 by %c16_i32_282 dim 1 : vector<32x512xf32>, i32 -> vector<32x512xf32>
    %c1_283 = arith.constant 1 : index
    %c0_284 = arith.constant 0 : index
    %c0_285 = arith.constant 0 : index
    %449 = vector.load %arg1[%c1_283, %c0_284, %c0_285] : memref<9x1x512xf32, #tpu.memory_space<vmem>>, vector<1x1x512xf32>
    %450 = vector.shape_cast %449 : vector<1x1x512xf32> to vector<1x512xf32>
    %451 = vector.broadcast %450 : vector<1x512xf32> to vector<32x512xf32>
    %452 = arith.mulf %448, %451 : vector<32x512xf32>
    %453 = arith.truncf %452 : vector<32x512xf32> to vector<32x512xbf16>
    %c15_i32_286 = arith.constant 15 : i32
    %454 = tpu.dynamic_rotate %441 by %c15_i32_286 dim 1 : vector<32x512xf32>, i32 -> vector<32x512xf32>
    %c2_287 = arith.constant 2 : index
    %c0_288 = arith.constant 0 : index
    %c0_289 = arith.constant 0 : index
    %455 = vector.load %arg1[%c2_287, %c0_288, %c0_289] : memref<9x1x512xf32, #tpu.memory_space<vmem>>, vector<1x1x512xf32>
    %456 = vector.shape_cast %455 : vector<1x1x512xf32> to vector<1x512xf32>
    %457 = vector.broadcast %456 : vector<1x512xf32> to vector<32x512xf32>
    %458 = arith.mulf %454, %457 : vector<32x512xf32>
    %459 = arith.truncf %458 : vector<32x512xf32> to vector<32x512xbf16>
    %c1_i32_290 = arith.constant 1 : i32
    %460 = tpu.dynamic_rotate %441 by %c1_i32_290 dim 1 : vector<32x512xf32>, i32 -> vector<32x512xf32>
    %c3_291 = arith.constant 3 : index
    %c0_292 = arith.constant 0 : index
    %c0_293 = arith.constant 0 : index
    %461 = vector.load %arg1[%c3_291, %c0_292, %c0_293] : memref<9x1x512xf32, #tpu.memory_space<vmem>>, vector<1x1x512xf32>
    %462 = vector.shape_cast %461 : vector<1x1x512xf32> to vector<1x512xf32>
    %463 = vector.broadcast %462 : vector<1x512xf32> to vector<32x512xf32>
    %464 = arith.mulf %460, %463 : vector<32x512xf32>
    %465 = arith.truncf %464 : vector<32x512xf32> to vector<32x512xbf16>
    %466 = arith.truncf %441 : vector<32x512xf32> to vector<32x512xbf16>
    %c511_i32_294 = arith.constant 511 : i32
    %467 = tpu.dynamic_rotate %441 by %c511_i32_294 dim 1 : vector<32x512xf32>, i32 -> vector<32x512xf32>
    %c5_295 = arith.constant 5 : index
    %c0_296 = arith.constant 0 : index
    %c0_297 = arith.constant 0 : index
    %468 = vector.load %arg1[%c5_295, %c0_296, %c0_297] : memref<9x1x512xf32, #tpu.memory_space<vmem>>, vector<1x1x512xf32>
    %469 = vector.shape_cast %468 : vector<1x1x512xf32> to vector<1x512xf32>
    %470 = vector.broadcast %469 : vector<1x512xf32> to vector<32x512xf32>
    %471 = arith.mulf %467, %470 : vector<32x512xf32>
    %472 = arith.truncf %471 : vector<32x512xf32> to vector<32x512xbf16>
    %c497_i32_298 = arith.constant 497 : i32
    %473 = tpu.dynamic_rotate %441 by %c497_i32_298 dim 1 : vector<32x512xf32>, i32 -> vector<32x512xf32>
    %c6_299 = arith.constant 6 : index
    %c0_300 = arith.constant 0 : index
    %c0_301 = arith.constant 0 : index
    %474 = vector.load %arg1[%c6_299, %c0_300, %c0_301] : memref<9x1x512xf32, #tpu.memory_space<vmem>>, vector<1x1x512xf32>
    %475 = vector.shape_cast %474 : vector<1x1x512xf32> to vector<1x512xf32>
    %476 = vector.broadcast %475 : vector<1x512xf32> to vector<32x512xf32>
    %477 = arith.mulf %473, %476 : vector<32x512xf32>
    %478 = arith.truncf %477 : vector<32x512xf32> to vector<32x512xbf16>
    %c496_i32_302 = arith.constant 496 : i32
    %479 = tpu.dynamic_rotate %441 by %c496_i32_302 dim 1 : vector<32x512xf32>, i32 -> vector<32x512xf32>
    %c7_303 = arith.constant 7 : index
    %c0_304 = arith.constant 0 : index
    %c0_305 = arith.constant 0 : index
    %480 = vector.load %arg1[%c7_303, %c0_304, %c0_305] : memref<9x1x512xf32, #tpu.memory_space<vmem>>, vector<1x1x512xf32>
    %481 = vector.shape_cast %480 : vector<1x1x512xf32> to vector<1x512xf32>
    %482 = vector.broadcast %481 : vector<1x512xf32> to vector<32x512xf32>
    %483 = arith.mulf %479, %482 : vector<32x512xf32>
    %484 = arith.truncf %483 : vector<32x512xf32> to vector<32x512xbf16>
    %c495_i32_306 = arith.constant 495 : i32
    %485 = tpu.dynamic_rotate %441 by %c495_i32_306 dim 1 : vector<32x512xf32>, i32 -> vector<32x512xf32>
    %c8_307 = arith.constant 8 : index
    %c0_308 = arith.constant 0 : index
    %c0_309 = arith.constant 0 : index
    %486 = vector.load %arg1[%c8_307, %c0_308, %c0_309] : memref<9x1x512xf32, #tpu.memory_space<vmem>>, vector<1x1x512xf32>
    %487 = vector.shape_cast %486 : vector<1x1x512xf32> to vector<1x512xf32>
    %488 = vector.broadcast %487 : vector<1x512xf32> to vector<32x512xf32>
    %489 = arith.mulf %485, %488 : vector<32x512xf32>
    %490 = arith.truncf %489 : vector<32x512xf32> to vector<32x512xbf16>
    %491 = tpu.concatenate %447, %453, %459, %465, %466, %472, %478, %484, %490 in 0 : vector<32x512xbf16>, vector<32x512xbf16>, vector<32x512xbf16>, vector<32x512xbf16>, vector<32x512xbf16>, vector<32x512xbf16>, vector<32x512xbf16>, vector<32x512xbf16>, vector<32x512xbf16> -> vector<288x512xbf16>
    %c0_310 = arith.constant 0 : index
    %c0_311 = arith.constant 0 : index
    %492 = vector.load %arg27[%c0_310, %c0_311] : memref<32x288xbf16, #tpu.memory_space<vmem>>, vector<32x288xbf16>
    %cst_312 = arith.constant dense<0.000000e+00> : vector<32x512xf32>
    %493 = tpu.matmul %492, %107, %cst_312 {dimension_numbers = #tpu.dot_dimension_numbers<[1], [0], [0], [1], [0, 0, 1, 1], [], []>} : vector<32x288xbf16>, vector<288x512xbf16>, vector<32x512xf32> -> vector<32x512xf32>
    %c0_313 = arith.constant 0 : index
    %c0_314 = arith.constant 0 : index
    %494 = vector.load %arg28[%c0_313, %c0_314] : memref<32x288xbf16, #tpu.memory_space<vmem>>, vector<32x288xbf16>
    %cst_315 = arith.constant dense<0.000000e+00> : vector<32x512xf32>
    %495 = tpu.matmul %494, %491, %cst_315 {dimension_numbers = #tpu.dot_dimension_numbers<[1], [0], [0], [1], [0, 0, 1, 1], [], []>} : vector<32x288xbf16>, vector<288x512xbf16>, vector<32x512xf32> -> vector<32x512xf32>
    %496 = arith.addf %493, %495 : vector<32x512xf32>
    %c0_316 = arith.constant 0 : index
    %c0_317 = arith.constant 0 : index
    %497 = vector.load %arg29[%c0_316, %c0_317] : memref<32x144xbf16, #tpu.memory_space<vmem>>, vector<32x144xbf16>
    %cst_318 = arith.constant dense<0.000000e+00> : vector<32x512xf32>
    %498 = tpu.matmul %497, %50, %cst_318 {dimension_numbers = #tpu.dot_dimension_numbers<[1], [0], [0], [1], [0, 0, 1, 1], [], []>} : vector<32x144xbf16>, vector<144x512xbf16>, vector<32x512xf32> -> vector<32x512xf32>
    %499 = arith.addf %496, %498 : vector<32x512xf32>
    %c0_319 = arith.constant 0 : index
    %c0_320 = arith.constant 0 : index
    %500 = vector.load %arg30[%c0_319, %c0_320] : memref<32x1xf32, #tpu.memory_space<vmem>>, vector<32x1xf32>
    %501 = vector.broadcast %500 : vector<32x1xf32> to vector<32x512xf32>
    %502 = arith.addf %499, %501 : vector<32x512xf32>
    %cst_321 = arith.constant 0.000000e+00 : f32
    %503 = vector.broadcast %cst_321 : f32 to vector<32x512xf32>
    %504 = arith.maximumf %502, %503 : vector<32x512xf32>
    %c0_322 = arith.constant 0 : index
    %c0_323 = arith.constant 0 : index
    %505 = vector.load %arg31[%c0_322, %c0_323] : memref<32x1xf32, #tpu.memory_space<vmem>>, vector<32x1xf32>
    %506 = vector.broadcast %505 : vector<32x1xf32> to vector<32x512xf32>
    %507 = arith.mulf %506, %504 : vector<32x512xf32>
    %cst_324 = arith.constant dense<0.000000e+00> : vector<512xf32>
    %508 = vector.multi_reduction <add>, %507, %cst_324 [0] : vector<32x512xf32> to vector<512xf32>
    %509 = vector.shape_cast %508 : vector<512xf32> to vector<1x512xf32>
    %c0_325 = arith.constant 0 : index
    %c0_326 = arith.constant 0 : index
    %510 = vector.load %arg32[%c0_325, %c0_326] : memref<1x1xf32, #tpu.memory_space<vmem>>, vector<1x1xf32>
    %511 = vector.broadcast %510 : vector<1x1xf32> to vector<1x512xf32>
    %512 = arith.addf %509, %511 : vector<1x512xf32>
    %c0_327 = arith.constant 0 : index
    %c0_328 = arith.constant 0 : index
    %513 = vector.load %arg33[%c0_327, %c0_328] : memref<1x512xf32, #tpu.memory_space<vmem>>, vector<1x512xf32>
    tpu.vector_store %arg33[%c0_327, %c0_328], %512 {strides = array<i32>} : memref<1x512xf32, #tpu.memory_space<vmem>>, vector<1x512xf32>,
    return
  }
}

</mosaic_0001>

<llo_original>
// kernel: encoder_forward.1
$region0: #{encoder_forward.1}
  #allocation0 [shape = 'u32[]', space=smem, size = 0x4, offset = 0x4, fixed_abs, tag = 'smem constant byte address 0x4 - core index']
  #allocation1 [shape = 'u32[144,128]{1,0:T(1,128)}', space=vmem, size = 0x12000, scoped, tag = 'internal scratch']
  #allocation2 [shape = 'f32[1,1]{1,0:T(1,128)S(1)}', space=vmem, size = 0x200, scoped, tag = 'scoped memory for encoder_forward.1']
  %s0 = inlined_call_operand.smem [shape: u32[34], index: -1, kind: input, shape index: {}]
  %s1 = sld [smem:[%s0]]
  %s2 = scalar_lea.smem %s0, 1
  %s3 = sld [smem:[%s2]]
  %s4 = scalar_lea.smem %s0, 2
  %s5 = sld [smem:[%s4]]
  %s6 = scalar_lea.smem %s0, 3
  %s7 = sld [smem:[%s6]]
  %s8 = scalar_lea.smem %s0, 4
  %s9 = sld [smem:[%s8]]
  %s10 = scalar_lea.smem %s0, 5
  %s11 = sld [smem:[%s10]]
  %s12 = scalar_lea.smem %s0, 6
  %s13 = sld [smem:[%s12]]
  %s14 = scalar_lea.smem %s0, 7
  %s15 = sld [smem:[%s14]]
  %s16 = scalar_lea.smem %s0, 8
  %s17 = sld [smem:[%s16]]
  %s18 = scalar_lea.smem %s0, 9
  %s19 = sld [smem:[%s18]]
  %s20 = scalar_lea.smem %s0, 10
  %s21 = sld [smem:[%s20]]
  %s22 = scalar_lea.smem %s0, 11
  %s23 = sld [smem:[%s22]]
  %s24 = scalar_lea.smem %s0, 12
  %s25 = sld [smem:[%s24]]
  %s26 = scalar_lea.smem %s0, 13
  %s27 = sld [smem:[%s26]]
  %s28 = scalar_lea.smem %s0, 14
  %s29 = sld [smem:[%s28]]
  %s30 = scalar_lea.smem %s0, 15
  %s31 = sld [smem:[%s30]]
  %s32 = scalar_lea.smem %s0, 16
  %s33 = sld [smem:[%s32]]
  %s34 = scalar_lea.smem %s0, 17
  %s35 = sld [smem:[%s34]]
  %s36 = scalar_lea.smem %s0, 18
  %s37 = sld [smem:[%s36]]
  %s38 = scalar_lea.smem %s0, 19
  %s39 = sld [smem:[%s38]]
  %s40 = scalar_lea.smem %s0, 20
  %s41 = sld [smem:[%s40]]
  %s42 = scalar_lea.smem %s0, 21
  %s43 = sld [smem:[%s42]]
  %s44 = scalar_lea.smem %s0, 22
  %s45 = sld [smem:[%s44]]
  %s46 = scalar_lea.smem %s0, 23
  %s47 = sld [smem:[%s46]]
  %s48 = scalar_lea.smem %s0, 24
  %s49 = sld [smem:[%s48]]
  %s50 = scalar_lea.smem %s0, 25
  %s51 = sld [smem:[%s50]]
  %s52 = scalar_lea.smem %s0, 26
  %s53 = sld [smem:[%s52]]
  %s54 = scalar_lea.smem %s0, 27
  %s55 = sld [smem:[%s54]]
  %s56 = scalar_lea.smem %s0, 28
  %s57 = sld [smem:[%s56]]
  %s58 = scalar_lea.smem %s0, 29
  %s59 = sld [smem:[%s58]]
  %s60 = scalar_lea.smem %s0, 30
  %s61 = sld [smem:[%s60]]
  %s62 = scalar_lea.smem %s0, 31
  %s63 = sld [smem:[%s62]]
  %s64 = scalar_lea.smem %s0, 32
  %s65 = sld [smem:[%s64]]
  %s66 = scalar_lea.smem %s0, 33
  %s67 = sld [smem:[%s66]]
  %s68 = sld [smem:[#allocation0]]
  $region142: #{encoder_forward.1} parent=0
    _
  %s70 = ssub.s32 1, %s68
  %s71 = scalar_select 0, %s70, %s68
  %v72 = vstv %s65
  %73 = vst [vmem:[#allocation2] sm:$0x1] %v72
  // Predicated region
  $region2: #{encoder_forward.1} parent=0 // pred_check
    _
  $region3: #{encoder_forward.1} parent=0 // pred_check_branch
    %75 = sbr.rel (0) target = $region5
  $region4: #{encoder_forward.1} parent=0 // pred_region
    _
  $region5: #{encoder_forward.1} parent=0 // pred_fallthru
    _
  // Predicated region
  $region6: #{encoder_forward.1} parent=0 // pred_check
    _
  $region7: #{encoder_forward.1} parent=0 // pred_check_branch
    %77 = sbr.rel (0) target = $region9
  $region8: #{encoder_forward.1} parent=0 // pred_region
    _
  $region9: #{encoder_forward.1} parent=0 // pred_fallthru
    _
  // Predicated region
  $region10: #{encoder_forward.1} parent=0 // pred_check
    _
  $region11: #{encoder_forward.1} parent=0 // pred_check_branch
    %79 = sbr.rel (0) target = $region13
  $region12: #{encoder_forward.1} parent=0 // pred_region
    _
  $region13: #{encoder_forward.1} parent=0 // pred_fallthru
    _
  // Predicated region
  $region14: #{encoder_forward.1} parent=0 // pred_check
    _
  $region15: #{encoder_forward.1} parent=0 // pred_check_branch
    %81 = sbr.rel (0) target = $region17
  $region16: #{encoder_forward.1} parent=0 // pred_region
    _
  $region17: #{encoder_forward.1} parent=0 // pred_fallthru
    _
  // Predicated region
  $region18: #{encoder_forward.1} parent=0 // pred_check
    _
  $region19: #{encoder_forward.1} parent=0 // pred_check_branch
    %83 = sbr.rel (0) target = $region21
  $region20: #{encoder_forward.1} parent=0 // pred_region
    _
  $region21: #{encoder_forward.1} parent=0 // pred_fallthru
    _
  // Predicated region
  $region22: #{encoder_forward.1} parent=0 // pred_check
    _
  $region23: #{encoder_forward.1} parent=0 // pred_check_branch
    %85 = sbr.rel (0) target = $region25
  $region24: #{encoder_forward.1} parent=0 // pred_region
    _
  $region25: #{encoder_forward.1} parent=0 // pred_fallthru
    _
  // Predicated region
  $region26: #{encoder_forward.1} parent=0 // pred_check
    _
  $region27: #{encoder_forward.1} parent=0 // pred_check_branch
    %87 = sbr.rel (0) target = $region29
  $region28: #{encoder_forward.1} parent=0 // pred_region
    _
  $region29: #{encoder_forward.1} parent=0 // pred_fallthru
    _
  // Predicated region
  $region30: #{encoder_forward.1} parent=0 // pred_check
    _
  $region31: #{encoder_forward.1} parent=0 // pred_check_branch
    %89 = sbr.rel (0) target = $region33
  $region32: #{encoder_forward.1} parent=0 // pred_region
    _
  $region33: #{encoder_forward.1} parent=0 // pred_fallthru
    _
  // Predicated region
  $region34: #{encoder_forward.1} parent=0 // pred_check
    _
  $region35: #{encoder_forward.1} parent=0 // pred_check_branch
    %91 = sbr.rel (0) target = $region37
  $region36: #{encoder_forward.1} parent=0 // pred_region
    _
  $region37: #{encoder_forward.1} parent=0 // pred_fallthru
    _
  // Predicated region
  $region38: #{encoder_forward.1} parent=0 // pred_check
    _
  $region39: #{encoder_forward.1} parent=0 // pred_check_branch
    %93 = sbr.rel (0) target = $region41
  $region40: #{encoder_forward.1} parent=0 // pred_region
    _
  $region41: #{encoder_forward.1} parent=0 // pred_fallthru
    _
  // Predicated region
  $region42: #{encoder_forward.1} parent=0 // pred_check
    _
  $region43: #{encoder_forward.1} parent=0 // pred_check_branch
    %95 = sbr.rel (0) target = $region45
  $region44: #{encoder_forward.1} parent=0 // pred_region
    _
  $region45: #{encoder_forward.1} parent=0 // pred_fallthru
    _
  // Predicated region
  $region46: #{encoder_forward.1} parent=0 // pred_check
    _
  $region47: #{encoder_forward.1} parent=0 // pred_check_branch
    %97 = sbr.rel (0) target = $region49
  $region48: #{encoder_forward.1} parent=0 // pred_region
    _
  $region49: #{encoder_forward.1} parent=0 // pred_fallthru
    _
  // Predicated region
  $region50: #{encoder_forward.1} parent=0 // pred_check
    _
  $region51: #{encoder_forward.1} parent=0 // pred_check_branch
    %99 = sbr.rel (0) target = $region53
  $region52: #{encoder_forward.1} parent=0 // pred_region
    _
  $region53: #{encoder_forward.1} parent=0 // pred_fallthru
    _
  // Predicated region
  $region54: #{encoder_forward.1} parent=0 // pred_check
    _
  $region55: #{encoder_forward.1} parent=0 // pred_check_branch
    %101 = sbr.rel (0) target = $region57
  $region56: #{encoder_forward.1} parent=0 // pred_region
    _
  $region57: #{encoder_forward.1} parent=0 // pred_fallthru
    _
  // Predicated region
  $region58: #{encoder_forward.1} parent=0 // pred_check
    _
  $region59: #{encoder_forward.1} parent=0 // pred_check_branch
    %103 = sbr.rel (0) target = $region61
  $region60: #{encoder_forward.1} parent=0 // pred_region
    _
  $region61: #{encoder_forward.1} parent=0 // pred_fallthru
    _
  // Predicated region
  $region62: #{encoder_forward.1} parent=0 // pred_check
    _
  $region63: #{encoder_forward.1} parent=0 // pred_check_branch
    %105 = sbr.rel (0) target = $region65
  $region64: #{encoder_forward.1} parent=0 // pred_region
    _
  $region65: #{encoder_forward.1} parent=0 // pred_fallthru
    _
  // Predicated region
  $region66: #{encoder_forward.1} parent=0 // pred_check
    _
  $region67: #{encoder_forward.1} parent=0 // pred_check_branch
    %107 = sbr.rel (0) target = $region69
  $region68: #{encoder_forward.1} parent=0 // pred_region
    _
  $region69: #{encoder_forward.1} parent=0 // pred_fallthru
    _
  // Predicated region
  $region70: #{encoder_forward.1} parent=0 // pred_check
    _
  $region71: #{encoder_forward.1} parent=0 // pred_check_branch
    %109 = sbr.rel (0) target = $region73
  $region72: #{encoder_forward.1} parent=0 // pred_region
    _
  $region73: #{encoder_forward.1} parent=0 // pred_fallthru
    _
  // Predicated region
  $region74: #{encoder_forward.1} parent=0 // pred_check
    _
  $region75: #{encoder_forward.1} parent=0 // pred_check_branch
    %111 = sbr.rel (0) target = $region77
  $region76: #{encoder_forward.1} parent=0 // pred_region
    _
  $region77: #{encoder_forward.1} parent=0 // pred_fallthru
    _
  // Predicated region
  $region78: #{encoder_forward.1} parent=0 // pred_check
    _
  $region79: #{encoder_forward.1} parent=0 // pred_check_branch
    %113 = sbr.rel (0) target = $region81
  $region80: #{encoder_forward.1} parent=0 // pred_region
    _
  $region81: #{encoder_forward.1} parent=0 // pred_fallthru
    _
  // Predicated region
  $region82: #{encoder_forward.1} parent=0 // pred_check
    _
  $region83: #{encoder_forward.1} parent=0 // pred_check_branch
    %115 = sbr.rel (0) target = $region85
  $region84: #{encoder_forward.1} parent=0 // pred_region
    _
  $region85: #{encoder_forward.1} parent=0 // pred_fallthru
    _
  // Predicated region
  $region86: #{encoder_forward.1} parent=0 // pred_check
    _
  $region87: #{encoder_forward.1} parent=0 // pred_check_branch
    %117 = sbr.rel (0) target = $region89
  $region88: #{encoder_forward.1} parent=0 // pred_region
    _
  $region89: #{encoder_forward.1} parent=0 // pred_fallthru
    _
  // Predicated region
  $region90: #{encoder_forward.1} parent=0 // pred_check
    _
  $region91: #{encoder_forward.1} parent=0 // pred_check_branch
    %119 = sbr.rel (0) target = $region93
  $region92: #{encoder_forward.1} parent=0 // pred_region
    _
  $region93: #{encoder_forward.1} parent=0 // pred_fallthru
    _
  // Predicated region
  $region94: #{encoder_forward.1} parent=0 // pred_check
    _
  $region95: #{encoder_forward.1} parent=0 // pred_check_branch
    %121 = sbr.rel (0) target = $region97
  $region96: #{encoder_forward.1} parent=0 // pred_region
    _
  $region97: #{encoder_forward.1} parent=0 // pred_fallthru
    _
  // Predicated region
  $region98: #{encoder_forward.1} parent=0 // pred_check
    _
  $region99: #{encoder_forward.1} parent=0 // pred_check_branch
    %123 = sbr.rel (0) target = $region101
  $region100: #{encoder_forward.1} parent=0 // pred_region
    _
  $region101: #{encoder_forward.1} parent=0 // pred_fallthru
    _
  // Predicated region
  $region102: #{encoder_forward.1} parent=0 // pred_check
    _
  $region103: #{encoder_forward.1} parent=0 // pred_check_branch
    %125 = sbr.rel (0) target = $region105
  $region104: #{encoder_forward.1} parent=0 // pred_region
    _
  $region105: #{encoder_forward.1} parent=0 // pred_fallthru
    _
  // Predicated region
  $region106: #{encoder_forward.1} parent=0 // pred_check
    _
  $region107: #{encoder_forward.1} parent=0 // pred_check_branch
    %127 = sbr.rel (0) target = $region109
  $region108: #{encoder_forward.1} parent=0 // pred_region
    _
  $region109: #{encoder_forward.1} parent=0 // pred_fallthru
    _
  // Predicated region
  $region110: #{encoder_forward.1} parent=0 // pred_check
    _
  $region111: #{encoder_forward.1} parent=0 // pred_check_branch
    %129 = sbr.rel (0) target = $region113
  $region112: #{encoder_forward.1} parent=0 // pred_region
    _
  $region113: #{encoder_forward.1} parent=0 // pred_fallthru
    _
  // Predicated region
  $region114: #{encoder_forward.1} parent=0 // pred_check
    _
  $region115: #{encoder_forward.1} parent=0 // pred_check_branch
    %131 = sbr.rel (0) target = $region117
  $region116: #{encoder_forward.1} parent=0 // pred_region
    _
  $region117: #{encoder_forward.1} parent=0 // pred_fallthru
    _
  // Predicated region
  $region118: #{encoder_forward.1} parent=0 // pred_check
    _
  $region119: #{encoder_forward.1} parent=0 // pred_check_branch
    %133 = sbr.rel (0) target = $region121
  $region120: #{encoder_forward.1} parent=0 // pred_region
    _
  $region121: #{encoder_forward.1} parent=0 // pred_fallthru
    _
  // Predicated region
  $region122: #{encoder_forward.1} parent=0 // pred_check
    _
  $region123: #{encoder_forward.1} parent=0 // pred_check_branch
    %135 = sbr.rel (0) target = $region125
  $region124: #{encoder_forward.1} parent=0 // pred_region
    _
  $region125: #{encoder_forward.1} parent=0 // pred_fallthru
    _
  // Predicated region
  $region126: #{encoder_forward.1} parent=0 // pred_check
    _
  $region127: #{encoder_forward.1} parent=0 // pred_check_branch
    %137 = sbr.rel (0) target = $region129
  $region128: #{encoder_forward.1} parent=0 // pred_region
    _
  $region129: #{encoder_forward.1} parent=0 // pred_fallthru
    _
  // Predicated region
  $region130: #{encoder_forward.1} parent=0 // pred_check
    _
  $region131: #{encoder_forward.1} parent=0 // pred_check_branch
    %139 = sbr.rel (0) target = $region133
  $region132: #{encoder_forward.1} parent=0 // pred_region
    _
  $region133: #{encoder_forward.1} parent=0 // pred_fallthru
    _
  %v141 = vld [vmem:[%s1] sm:$0xff]
  %v142 = vld [vmem:[%s1 + $0x8] sm:$0xff]
  %v143 = vld [vmem:[%s1 + $0x10] sm:$0xff]
  %v144 = vld [vmem:[%s1 + $0x18] sm:$0xff]
  %v145 = vld [vmem:[%s1 + $0x20] sm:$0xff]
  %v146 = vld [vmem:[%s1 + $0x28] sm:$0xff]
  %v147 = vld [vmem:[%s1 + $0x30] sm:$0xff]
  %v148 = vld [vmem:[%s1 + $0x38] sm:$0xff]
  %149 = vrot.lane.b32.xlu0 %v141, 17
  %v150 = vpop.permute.xlu0 %149
  %151 = vrot.lane.b32.xlu0 %v145, 17
  %v152 = vpop.permute.xlu0 %151
  %153 = vrot.lane.b32.xlu0 %v142, 17
  %v154 = vpop.permute.xlu0 %153
  %155 = vrot.lane.b32.xlu0 %v146, 17
  %v156 = vpop.permute.xlu0 %155
  %157 = vrot.lane.b32.xlu0 %v143, 17
  %v158 = vpop.permute.xlu0 %157
  %159 = vrot.lane.b32.xlu0 %v147, 17
  %v160 = vpop.permute.xlu0 %159
  %161 = vrot.lane.b32.xlu0 %v144, 17
  %v162 = vpop.permute.xlu0 %161
  %163 = vrot.lane.b32.xlu0 %v148, 17
  %v164 = vpop.permute.xlu0 %163
  %v165 = vlaneseq
  %v166 = vand.u32 %v165, 127
  %vm167 = vcmp.lt.s32.totalorder %v166, 17
  %v168 = vsel %vm167, %v158, %v162
  %v169 = vsel %vm167, %v160, %v164
  %v170 = vsel %vm167, %v154, %v158
  %v171 = vsel %vm167, %v156, %v160
  %v172 = vsel %vm167, %v150, %v154
  %v173 = vsel %vm167, %v152, %v156
  %v174 = vsel %vm167, %v162, %v150
  %v175 = vsel %vm167, %v164, %v152
  %v176 = vld [vmem:[%s3] sm:$0xf]
  %v178 = vlaneseq
  %v179 = vshrl.u32 %v178, 7
  %v180 = vsub.s32 0, %v179
  %v181 = vrot.slane %v176, %v180
  %v182 = vlaneseq
  %v183 = vshrl.u32 %v182, 7
  %v184 = vsub.s32 1, %v183
  %v185 = vrot.slane %v176, %v184
  %v186 = vlaneseq
  %v187 = vshrl.u32 %v186, 7
  %v188 = vsub.s32 2, %v187
  %v189 = vrot.slane %v176, %v188
  %v190 = vlaneseq
  %v191 = vshrl.u32 %v190, 7
  %v192 = vsub.s32 3, %v191
  %v193 = vrot.slane %v176, %v192
  %v198 = vmul.f32 %v174, %v181
  %v199 = vmul.f32 %v172, %v185
  %v200 = vmul.f32 %v170, %v189
  %v201 = vmul.f32 %v168, %v193
  %v202 = vmul.f32 %v175, %v181
  %v203 = vmul.f32 %v173, %v185
  %v204 = vmul.f32 %v171, %v189
  %v205 = vmul.f32 %v169, %v193
  %v206 = vpack.c.bf16 %v202, %v198
  %v207 = vpack.c.bf16 %v203, %v199
  %v208 = vpack.c.bf16 %v204, %v200
  %v209 = vpack.c.bf16 %v205, %v201
  %210 = vrot.lane.b32.xlu0 %v141, 16
  %v211 = vpop.permute.xlu0 %210
  %212 = vrot.lane.b32.xlu0 %v145, 16
  %v213 = vpop.permute.xlu0 %212
  %214 = vrot.lane.b32.xlu0 %v142, 16
  %v215 = vpop.permute.xlu0 %214
  %216 = vrot.lane.b32.xlu0 %v146, 16
  %v217 = vpop.permute.xlu0 %216
  %218 = vrot.lane.b32.xlu0 %v143, 16
  %v219 = vpop.permute.xlu0 %218
  %220 = vrot.lane.b32.xlu0 %v147, 16
  %v221 = vpop.permute.xlu0 %220
  %222 = vrot.lane.b32.xlu0 %v144, 16
  %v223 = vpop.permute.xlu0 %222
  %224 = vrot.lane.b32.xlu0 %v148, 16
  %v225 = vpop.permute.xlu0 %224
  %vm226 = vcmp.lt.s32.totalorder %v166, 16
  %v227 = vsel %vm226, %v219, %v223
  %v228 = vsel %vm226, %v221, %v225
  %v229 = vsel %vm226, %v215, %v219
  %v230 = vsel %vm226, %v217, %v221
  %v231 = vsel %vm226, %v211, %v215
  %v232 = vsel %vm226, %v213, %v217
  %v233 = vsel %vm226, %v223, %v211
  %v234 = vsel %vm226, %v225, %v213
  %s235 = scalar_lea.vmem %s3, 4
  %v236 = vld [vmem:[%s235] sm:$0xf]
  %v238 = vlaneseq
  %v239 = vshrl.u32 %v238, 7
  %v240 = vsub.s32 0, %v239
  %v241 = vrot.slane %v236, %v240
  %v242 = vlaneseq
  %v243 = vshrl.u32 %v242, 7
  %v244 = vsub.s32 1, %v243
  %v245 = vrot.slane %v236, %v244
  %v246 = vlaneseq
  %v247 = vshrl.u32 %v246, 7
  %v248 = vsub.s32 2, %v247
  %v249 = vrot.slane %v236, %v248
  %v250 = vlaneseq
  %v251 = vshrl.u32 %v250, 7
  %v252 = vsub.s32 3, %v251
  %v253 = vrot.slane %v236, %v252
  %v258 = vmul.f32 %v233, %v241
  %v259 = vmul.f32 %v231, %v245
  %v260 = vmul.f32 %v229, %v249
  %v261 = vmul.f32 %v227, %v253
  %v262 = vmul.f32 %v234, %v241
  %v263 = vmul.f32 %v232, %v245
  %v264 = vmul.f32 %v230, %v249
  %v265 = vmul.f32 %v228, %v253
  %v266 = vpack.c.bf16 %v262, %v258
  %v267 = vpack.c.bf16 %v263, %v259
  %v268 = vpack.c.bf16 %v264, %v260
  %v269 = vpack.c.bf16 %v265, %v261
  %270 = vrot.lane.b32.xlu0 %v141, 15
  %v271 = vpop.permute.xlu0 %270
  %272 = vrot.lane.b32.xlu0 %v145, 15
  %v273 = vpop.permute.xlu0 %272
  %274 = vrot.lane.b32.xlu0 %v142, 15
  %v275 = vpop.permute.xlu0 %274
  %276 = vrot.lane.b32.xlu0 %v146, 15
  %v277 = vpop.permute.xlu0 %276
  %278 = vrot.lane.b32.xlu0 %v143, 15
  %v279 = vpop.permute.xlu0 %278
  %280 = vrot.lane.b32.xlu0 %v147, 15
  %v281 = vpop.permute.xlu0 %280
  %282 = vrot.lane.b32.xlu0 %v144, 15
  %v283 = vpop.permute.xlu0 %282
  %284 = vrot.lane.b32.xlu0 %v148, 15
  %v285 = vpop.permute.xlu0 %284
  %vm286 = vcmp.lt.s32.totalorder %v166, 15
  %v287 = vsel %vm286, %v279, %v283
  %v288 = vsel %vm286, %v281, %v285
  %v289 = vsel %vm286, %v275, %v279
  %v290 = vsel %vm286, %v277, %v281
  %v291 = vsel %vm286, %v271, %v275
  %v292 = vsel %vm286, %v273, %v277
  %v293 = vsel %vm286, %v283, %v271
  %v294 = vsel %vm286, %v285, %v273
  %s295 = scalar_lea.vmem %s3, 8
  %v296 = vld [vmem:[%s295] sm:$0xf]
  %v298 = vlaneseq
  %v299 = vshrl.u32 %v298, 7
  %v300 = vsub.s32 0, %v299
  %v301 = vrot.slane %v296, %v300
  %v302 = vlaneseq
  %v303 = vshrl.u32 %v302, 7
  %v304 = vsub.s32 1, %v303
  %v305 = vrot.slane %v296, %v304
  %v306 = vlaneseq
  %v307 = vshrl.u32 %v306, 7
  %v308 = vsub.s32 2, %v307
  %v309 = vrot.slane %v296, %v308
  %v310 = vlaneseq
  %v311 = vshrl.u32 %v310, 7
  %v312 = vsub.s32 3, %v311
  %v313 = vrot.slane %v296, %v312
  %v318 = vmul.f32 %v293, %v301
  %v319 = vmul.f32 %v291, %v305
  %v320 = vmul.f32 %v289, %v309
  %v321 = vmul.f32 %v287, %v313
  %v322 = vmul.f32 %v294, %v301
  %v323 = vmul.f32 %v292, %v305
  %v324 = vmul.f32 %v290, %v309
  %v325 = vmul.f32 %v288, %v313
  %v326 = vpack.c.bf16 %v322, %v318
  %v327 = vpack.c.bf16 %v323, %v319
  %v328 = vpack.c.bf16 %v324, %v320
  %v329 = vpack.c.bf16 %v325, %v321
  %330 = vrot.lane.b32.xlu0 %v141, 1
  %v331 = vpop.permute.xlu0 %330
  %332 = vrot.lane.b32.xlu0 %v145, 1
  %v333 = vpop.permute.xlu0 %332
  %334 = vrot.lane.b32.xlu0 %v142, 1
  %v335 = vpop.permute.xlu0 %334
  %336 = vrot.lane.b32.xlu0 %v146, 1
  %v337 = vpop.permute.xlu0 %336
  %338 = vrot.lane.b32.xlu0 %v143, 1
  %v339 = vpop.permute.xlu0 %338
  %340 = vrot.lane.b32.xlu0 %v147, 1
  %v341 = vpop.permute.xlu0 %340
  %342 = vrot.lane.b32.xlu0 %v144, 1
  %v343 = vpop.permute.xlu0 %342
  %344 = vrot.lane.b32.xlu0 %v148, 1
  %v345 = vpop.permute.xlu0 %344
  %vm346 = vcmp.lt.s32.totalorder %v166, 1
  %v347 = vsel %vm346, %v339, %v343
  %v348 = vsel %vm346, %v341, %v345
  %v349 = vsel %vm346, %v335, %v339
  %v350 = vsel %vm346, %v337, %v341
  %v351 = vsel %vm346, %v331, %v335
  %v352 = vsel %vm346, %v333, %v337
  %v353 = vsel %vm346, %v343, %v331
  %v354 = vsel %vm346, %v345, %v333
  %s355 = scalar_lea.vmem %s3, 12
  %v356 = vld [vmem:[%s355] sm:$0xf]
  %v358 = vlaneseq
  %v359 = vshrl.u32 %v358, 7
  %v360 = vsub.s32 0, %v359
  %v361 = vrot.slane %v356, %v360
  %v362 = vlaneseq
  %v363 = vshrl.u32 %v362, 7
  %v364 = vsub.s32 1, %v363
  %v365 = vrot.slane %v356, %v364
  %v366 = vlaneseq
  %v367 = vshrl.u32 %v366, 7
  %v368 = vsub.s32 2, %v367
  %v369 = vrot.slane %v356, %v368
  %v370 = vlaneseq
  %v371 = vshrl.u32 %v370, 7
  %v372 = vsub.s32 3, %v371
  %v373 = vrot.slane %v356, %v372
  %v378 = vmul.f32 %v353, %v361
  %v379 = vmul.f32 %v351, %v365
  %v380 = vmul.f32 %v349, %v369
  %v381 = vmul.f32 %v347, %v373
  %v382 = vmul.f32 %v354, %v361
  %v383 = vmul.f32 %v352, %v365
  %v384 = vmul.f32 %v350, %v369
  %v385 = vmul.f32 %v348, %v373
  %v386 = vpack.c.bf16 %v382, %v378
  %v387 = vpack.c.bf16 %v383, %v379
  %v388 = vpack.c.bf16 %v384, %v380
  %v389 = vpack.c.bf16 %v385, %v381
  %v390 = vpack.c.bf16 %v145, %v141
  %v391 = vpack.c.bf16 %v146, %v142
  %v392 = vpack.c.bf16 %v147, %v143
  %v393 = vpack.c.bf16 %v148, %v144
  %394 = vrot.lane.b32.xlu0 %v141, 127
  %v395 = vpop.permute.xlu0 %394
  %396 = vrot.lane.b32.xlu0 %v145, 127
  %v397 = vpop.permute.xlu0 %396
  %398 = vrot.lane.b32.xlu0 %v142, 127
  %v399 = vpop.permute.xlu0 %398
  %400 = vrot.lane.b32.xlu0 %v146, 127
  %v401 = vpop.permute.xlu0 %400
  %402 = vrot.lane.b32.xlu0 %v143, 127
  %v403 = vpop.permute.xlu0 %402
  %404 = vrot.lane.b32.xlu0 %v147, 127
  %v405 = vpop.permute.xlu0 %404
  %406 = vrot.lane.b32.xlu0 %v144, 127
  %v407 = vpop.permute.xlu0 %406
  %408 = vrot.lane.b32.xlu0 %v148, 127
  %v409 = vpop.permute.xlu0 %408
  %vm410 = vcmp.lt.s32.totalorder %v166, 127
  %v411 = vsel %vm410, %v403, %v407
  %v412 = vsel %vm410, %v405, %v409
  %v413 = vsel %vm410, %v399, %v403
  %v414 = vsel %vm410, %v401, %v405
  %v415 = vsel %vm410, %v395, %v399
  %v416 = vsel %vm410, %v397, %v401
  %v417 = vsel %vm410, %v407, %v395
  %v418 = vsel %vm410, %v409, %v397
  %s419 = scalar_lea.vmem %s3, 20
  %v420 = vld [vmem:[%s419] sm:$0xf]
  %v422 = vlaneseq
  %v423 = vshrl.u32 %v422, 7
  %v424 = vsub.s32 0, %v423
  %v425 = vrot.slane %v420, %v424
  %v426 = vlaneseq
  %v427 = vshrl.u32 %v426, 7
  %v428 = vsub.s32 1, %v427
  %v429 = vrot.slane %v420, %v428
  %v430 = vlaneseq
  %v431 = vshrl.u32 %v430, 7
  %v432 = vsub.s32 2, %v431
  %v433 = vrot.slane %v420, %v432
  %v434 = vlaneseq
  %v435 = vshrl.u32 %v434, 7
  %v436 = vsub.s32 3, %v435
  %v437 = vrot.slane %v420, %v436
  %v442 = vmul.f32 %v415, %v425
  %v443 = vmul.f32 %v413, %v429
  %v444 = vmul.f32 %v411, %v433
  %v445 = vmul.f32 %v417, %v437
  %v446 = vmul.f32 %v416, %v425
  %v447 = vmul.f32 %v414, %v429
  %v448 = vmul.f32 %v412, %v433
  %v449 = vmul.f32 %v418, %v437
  %v450 = vpack.c.bf16 %v446, %v442
  %v451 = vpack.c.bf16 %v447, %v443
  %v452 = vpack.c.bf16 %v448, %v444
  %v453 = vpack.c.bf16 %v449, %v445
  %454 = vrot.lane.b32.xlu0 %v141, 113
  %v455 = vpop.permute.xlu0 %454
  %456 = vrot.lane.b32.xlu0 %v145, 113
  %v457 = vpop.permute.xlu0 %456
  %458 = vrot.lane.b32.xlu0 %v142, 113
  %v459 = vpop.permute.xlu0 %458
  %460 = vrot.lane.b32.xlu0 %v146, 113
  %v461 = vpop.permute.xlu0 %460
  %462 = vrot.lane.b32.xlu0 %v143, 113
  %v463 = vpop.permute.xlu0 %462
  %464 = vrot.lane.b32.xlu0 %v147, 113
  %v465 = vpop.permute.xlu0 %464
  %466 = vrot.lane.b32.xlu0 %v144, 113
  %v467 = vpop.permute.xlu0 %466
  %468 = vrot.lane.b32.xlu0 %v148, 113
  %v469 = vpop.permute.xlu0 %468
  %vm470 = vcmp.lt.s32.totalorder %v166, 113
  %v471 = vsel %vm470, %v463, %v467
  %v472 = vsel %vm470, %v465, %v469
  %v473 = vsel %vm470, %v459, %v463
  %v474 = vsel %vm470, %v461, %v465
  %v475 = vsel %vm470, %v455, %v459
  %v476 = vsel %vm470, %v457, %v461
  %v477 = vsel %vm470, %v467, %v455
  %v478 = vsel %vm470, %v469, %v457
  %s479 = scalar_lea.vmem %s3, 24
  %v480 = vld [vmem:[%s479] sm:$0xf]
  %v482 = vlaneseq
  %v483 = vshrl.u32 %v482, 7
  %v484 = vsub.s32 0, %v483
  %v485 = vrot.slane %v480, %v484
  %v486 = vlaneseq
  %v487 = vshrl.u32 %v486, 7
  %v488 = vsub.s32 1, %v487
  %v489 = vrot.slane %v480, %v488
  %v490 = vlaneseq
  %v491 = vshrl.u32 %v490, 7
  %v492 = vsub.s32 2, %v491
  %v493 = vrot.slane %v480, %v492
  %v494 = vlaneseq
  %v495 = vshrl.u32 %v494, 7
  %v496 = vsub.s32 3, %v495
  %v497 = vrot.slane %v480, %v496
  %v502 = vmul.f32 %v475, %v485
  %v503 = vmul.f32 %v473, %v489
  %v504 = vmul.f32 %v471, %v493
  %v505 = vmul.f32 %v477, %v497
  %v506 = vmul.f32 %v476, %v485
  %v507 = vmul.f32 %v474, %v489
  %v508 = vmul.f32 %v472, %v493
  %v509 = vmul.f32 %v478, %v497
  %v510 = vpack.c.bf16 %v506, %v502
  %v511 = vpack.c.bf16 %v507, %v503
  %v512 = vpack.c.bf16 %v508, %v504
  %v513 = vpack.c.bf16 %v509, %v505
  %514 = vrot.lane.b32.xlu0 %v141, 112
  %v515 = vpop.permute.xlu0 %514
  %516 = vrot.lane.b32.xlu0 %v145, 112
  %v517 = vpop.permute.xlu0 %516
  %518 = vrot.lane.b32.xlu0 %v142, 112
  %v519 = vpop.permute.xlu0 %518
  %520 = vrot.lane.b32.xlu0 %v146, 112
  %v521 = vpop.permute.xlu0 %520
  %522 = vrot.lane.b32.xlu0 %v143, 112
  %v523 = vpop.permute.xlu0 %522
  %524 = vrot.lane.b32.xlu0 %v147, 112
  %v525 = vpop.permute.xlu0 %524
  %526 = vrot.lane.b32.xlu0 %v144, 112
  %v527 = vpop.permute.xlu0 %526
  %528 = vrot.lane.b32.xlu0 %v148, 112
  %v529 = vpop.permute.xlu0 %528
  %vm530 = vcmp.lt.s32.totalorder %v166, 112
  %v531 = vsel %vm530, %v523, %v527
  %v532 = vsel %vm530, %v525, %v529
  %v533 = vsel %vm530, %v519, %v523
  %v534 = vsel %vm530, %v521, %v525
  %v535 = vsel %vm530, %v515, %v519
  %v536 = vsel %vm530, %v517, %v521
  %v537 = vsel %vm530, %v527, %v515
  %v538 = vsel %vm530, %v529, %v517
  %s539 = scalar_lea.vmem %s3, 28
  %v540 = vld [vmem:[%s539] sm:$0xf]
  %v542 = vlaneseq
  %v543 = vshrl.u32 %v542, 7
  %v544 = vsub.s32 0, %v543
  %v545 = vrot.slane %v540, %v544
  %v546 = vlaneseq
  %v547 = vshrl.u32 %v546, 7
  %v548 = vsub.s32 1, %v547
  %v549 = vrot.slane %v540, %v548
  %v550 = vlaneseq
  %v551 = vshrl.u32 %v550, 7
  %v552 = vsub.s32 2, %v551
  %v553 = vrot.slane %v540, %v552
  %v554 = vlaneseq
  %v555 = vshrl.u32 %v554, 7
  %v556 = vsub.s32 3, %v555
  %v557 = vrot.slane %v540, %v556
  %v562 = vmul.f32 %v535, %v545
  %v563 = vmul.f32 %v533, %v549
  %v564 = vmul.f32 %v531, %v553
  %v565 = vmul.f32 %v537, %v557
  %v566 = vmul.f32 %v536, %v545
  %v567 = vmul.f32 %v534, %v549
  %v568 = vmul.f32 %v532, %v553
  %v569 = vmul.f32 %v538, %v557
  %v570 = vpack.c.bf16 %v566, %v562
  %v571 = vpack.c.bf16 %v567, %v563
  %v572 = vpack.c.bf16 %v568, %v564
  %v573 = vpack.c.bf16 %v569, %v565
  %574 = vrot.lane.b32.xlu0 %v141, 111
  %v575 = vpop.permute.xlu0 %574
  %576 = vrot.lane.b32.xlu0 %v145, 111
  %v577 = vpop.permute.xlu0 %576
  %578 = vrot.lane.b32.xlu0 %v142, 111
  %v579 = vpop.permute.xlu0 %578
  %580 = vrot.lane.b32.xlu0 %v146, 111
  %v581 = vpop.permute.xlu0 %580
  %582 = vrot.lane.b32.xlu0 %v143, 111
  %v583 = vpop.permute.xlu0 %582
  %584 = vrot.lane.b32.xlu0 %v147, 111
  %v585 = vpop.permute.xlu0 %584
  %586 = vrot.lane.b32.xlu0 %v144, 111
  %v587 = vpop.permute.xlu0 %586
  %588 = vrot.lane.b32.xlu0 %v148, 111
  %v589 = vpop.permute.xlu0 %588
  %vm590 = vcmp.lt.s32.totalorder %v166, 111
  %v591 = vsel %vm590, %v583, %v587
  %v592 = vsel %vm590, %v585, %v589
  %v593 = vsel %vm590, %v579, %v583
  %v594 = vsel %vm590, %v581, %v585
  %v595 = vsel %vm590, %v575, %v579
  %v596 = vsel %vm590, %v577, %v581
  %v597 = vsel %vm590, %v587, %v575
  %v598 = vsel %vm590, %v589, %v577
  %s599 = scalar_lea.vmem %s3, 32
  %v600 = vld [vmem:[%s599] sm:$0xf]
  %v602 = vlaneseq
  %v603 = vshrl.u32 %v602, 7
  %v604 = vsub.s32 0, %v603
  %v605 = vrot.slane %v600, %v604
  %v606 = vlaneseq
  %v607 = vshrl.u32 %v606, 7
  %v608 = vsub.s32 1, %v607
  %v609 = vrot.slane %v600, %v608
  %v610 = vlaneseq
  %v611 = vshrl.u32 %v610, 7
  %v612 = vsub.s32 2, %v611
  %v613 = vrot.slane %v600, %v612
  %v614 = vlaneseq
  %v615 = vshrl.u32 %v614, 7
  %v616 = vsub.s32 3, %v615
  %v617 = vrot.slane %v600, %v616
  %v622 = vmul.f32 %v595, %v605
  %v623 = vmul.f32 %v593, %v609
  %v624 = vmul.f32 %v591, %v613
  %v625 = vmul.f32 %v597, %v617
  %v626 = vmul.f32 %v596, %v605
  %v627 = vmul.f32 %v594, %v609
  %v628 = vmul.f32 %v592, %v613
  %v629 = vmul.f32 %v598, %v617
  %v630 = vpack.c.bf16 %v626, %v622
  %v631 = vpack.c.bf16 %v627, %v623
  %v632 = vpack.c.bf16 %v628, %v624
  %v633 = vpack.c.bf16 %v629, %v625
  %v634 = vld [vmem:[%s15] sm:$0xff]
  %v635 = vld [vmem:[%s15 + $0x8] sm:$0xff]
  %v636 = vld [vmem:[%s15 + $0x10] sm:$0xff]
  %v637 = vld [vmem:[%s15 + $0x18] sm:$0xff]
  %v638 = vld [vmem:[%s17] sm:$0xff]
  %v639 = vld [vmem:[%s17 + $0x8] sm:$0xff]
  %v640 = vld [vmem:[%s17 + $0x10] sm:$0xff]
  %v641 = vld [vmem:[%s17 + $0x18] sm:$0xff]
  %643 = vset.pattern.permute.xlu0 0
  %644 = vperm.xlu0 %643, %v638
  %v645 = vpop.permute.xlu0 %644
  %648 = vset.pattern.permute.xlu0 0
  %649 = vperm.xlu0 %648, %v639
  %v650 = vpop.permute.xlu0 %649
  %653 = vset.pattern.permute.xlu0 0
  %654 = vperm.xlu0 %653, %v640
  %v655 = vpop.permute.xlu0 %654
  %658 = vset.pattern.permute.xlu0 0
  %659 = vperm.xlu0 %658, %v641
  %v660 = vpop.permute.xlu0 %659
  %v666 = vunpack.c.l.b16 %v634
  %v667 = vunpack.c.h.b16 %v634
  %v668 = vunpack.c.l.b16 %v635
  %v669 = vunpack.c.h.b16 %v635
  %v670 = vunpack.c.l.b16 %v636
  %v671 = vunpack.c.h.b16 %v636
  %v672 = vunpack.c.l.b16 %v637
  %v673 = vunpack.c.h.b16 %v637
  %v674 = vpack.c.b16 %v668, %v666
  %v675 = vpack.c.b16 %v669, %v667
  %v676 = vpack.c.b16 %v672, %v670
  %v677 = vpack.c.b16 %v673, %v671
  %vm680 = vcmask 130048
  %v682 = vsel %vm680, %v675, 0
  %v685 = vsel %vm680, %v677, 0
  %687 = vmatprep.subr.bf16.mxu0 %v571
  %688 = vmatpush1.bf16.msra.mxu0 %v570
  %689 = vmatprep.subr.bf16.mxu0 %v511
  %690 = vmatpush1.bf16.msra.mxu0 %v510
  %691 = vmatprep.subr.bf16.mxu0 %v451
  %692 = vmatpush1.bf16.msra.mxu0 %v450
  %693 = vmatprep.subr.bf16.mxu0 %v391
  %694 = vmatpush1.bf16.msra.mxu0 %v390
  %695 = vmatprep.subr.bf16.mxu0 %v387
  %696 = vmatpush1.bf16.msra.mxu0 %v386
  %697 = vmatprep.subr.bf16.mxu0 %v327
  %698 = vmatpush1.bf16.msra.mxu0 %v326
  %699 = vmatprep.subr.bf16.mxu0 %v267
  %700 = vmatpush1.bf16.msra.mxu0 %v266
  %701 = vmatprep.subr.bf16.mxu0 %v207
  %702 = vmatpush1.bf16.msra.mxu0 %v206
  %703 = vmatprep.subr.bf16.mxu0 0
  %704 = vmatpush2.bf16.msra.mxu0 0
  %705 = vmatprep.subr.bf16.mxu0 0
  %706 = vmatpush2.bf16.msra.mxu0 0
  %707 = vmatprep.subr.bf16.mxu0 0
  %708 = vmatpush2.bf16.msra.mxu0 0
  %709 = vmatprep.subr.bf16.mxu0 0
  %710 = vmatpush2.bf16.msra.mxu0 0
  %711 = vmatprep.subr.bf16.mxu0 0
  %712 = vmatpush2.bf16.msra.mxu0 0
  %713 = vmatprep.subr.bf16.mxu0 0
  %714 = vmatpush2.bf16.msra.mxu0 0
  %715 = vmatprep.subr.bf16.mxu0 0
  %716 = vmatpush2.bf16.msra.mxu0 0
  %717 = vmatprep.subr.bf16.mxu0 %v631
  %718 = vmatpush2.bf16.msra.mxu0 %v630
  %719 = vmatprep.mubr.bf16.mxu0 %v682
  %720 = vmatmul.mubr.bf16.gmra.mxu0 %v674
  %v721 = vpop.f32.mrf.mxu0
  %v722 = vadd.f32 %v645, %v721
  %v723 = vpop.f32.mrf.mxu0
  %v724 = vadd.f32 %v645, %v723
  %v725 = vpop.f32.mrf.mxu0
  %v726 = vadd.f32 %v650, %v725
  %v727 = vpop.f32.mrf.mxu0
  %v728 = vadd.f32 %v650, %v727
  %729 = vmatprep.mubr.bf16.mxu0 %v685
  %730 = vmatmul.mubr.bf16.gmra.mxu0 %v676
  %v731 = vpop.f32.mrf.mxu0
  %v732 = vadd.f32 %v655, %v731
  %v733 = vpop.f32.mrf.mxu0
  %v734 = vadd.f32 %v655, %v733
  %v735 = vpop.f32.mrf.mxu0
  %v736 = vadd.f32 %v660, %v735
  %v737 = vpop.f32.mrf.mxu0
  %v738 = vadd.f32 %v660, %v737
  %739 = vdwg.mxu0
  %740 = vmatprep.subr.bf16.mxu0 %v573
  %741 = vmatpush1.bf16.msra.mxu0 %v572
  %742 = vmatprep.subr.bf16.mxu0 %v513
  %743 = vmatpush1.bf16.msra.mxu0 %v512
  %744 = vmatprep.subr.bf16.mxu0 %v453
  %745 = vmatpush1.bf16.msra.mxu0 %v452
  %746 = vmatprep.subr.bf16.mxu0 %v393
  %747 = vmatpush1.bf16.msra.mxu0 %v392
  %748 = vmatprep.subr.bf16.mxu0 %v389
  %749 = vmatpush1.bf16.msra.mxu0 %v388
  %750 = vmatprep.subr.bf16.mxu0 %v329
  %751 = vmatpush1.bf16.msra.mxu0 %v328
  %752 = vmatprep.subr.bf16.mxu0 %v269
  %753 = vmatpush1.bf16.msra.mxu0 %v268
  %754 = vmatprep.subr.bf16.mxu0 %v209
  %755 = vmatpush1.bf16.msra.mxu0 %v208
  %756 = vmatprep.subr.bf16.mxu0 0
  %757 = vmatpush2.bf16.msra.mxu0 0
  %758 = vmatprep.subr.bf16.mxu0 0
  %759 = vmatpush2.bf16.msra.mxu0 0
  %760 = vmatprep.subr.bf16.mxu0 0
  %761 = vmatpush2.bf16.msra.mxu0 0
  %762 = vmatprep.subr.bf16.mxu0 0
  %763 = vmatpush2.bf16.msra.mxu0 0
  %764 = vmatprep.subr.bf16.mxu0 0
  %765 = vmatpush2.bf16.msra.mxu0 0
  %766 = vmatprep.subr.bf16.mxu0 0
  %767 = vmatpush2.bf16.msra.mxu0 0
  %768 = vmatprep.subr.bf16.mxu0 0
  %769 = vmatpush2.bf16.msra.mxu0 0
  %770 = vmatprep.subr.bf16.mxu0 %v633
  %771 = vmatpush2.bf16.msra.mxu0 %v632
  %772 = vmatprep.mubr.bf16.mxu0 %v682
  %773 = vmatmul.mubr.bf16.gmra.mxu0 %v674
  %v774 = vpop.f32.mrf.mxu0
  %v775 = vadd.f32 %v645, %v774
  %v776 = vpop.f32.mrf.mxu0
  %v777 = vadd.f32 %v645, %v776
  %v778 = vpop.f32.mrf.mxu0
  %v779 = vadd.f32 %v650, %v778
  %v780 = vpop.f32.mrf.mxu0
  %v781 = vadd.f32 %v650, %v780
  %782 = vmatprep.mubr.bf16.mxu0 %v685
  %783 = vmatmul.mubr.bf16.gmra.mxu0 %v676
  %v784 = vpop.f32.mrf.mxu0
  %v785 = vadd.f32 %v655, %v784
  %v786 = vpop.f32.mrf.mxu0
  %v787 = vadd.f32 %v655, %v786
  %v788 = vpop.f32.mrf.mxu0
  %v789 = vadd.f32 %v660, %v788
  %v790 = vpop.f32.mrf.mxu0
  %v791 = vadd.f32 %v660, %v790
  %792 = vdwg.mxu0
  %v793 = vmax.f32 %v722, 0.0
  %v794 = vmax.f32 %v724, 0.0
  %v795 = vmax.f32 %v775, 0.0
  %v796 = vmax.f32 %v777, 0.0
  %v797 = vmax.f32 %v726, 0.0
  %v798 = vmax.f32 %v728, 0.0
  %v799 = vmax.f32 %v779, 0.0
  %v800 = vmax.f32 %v781, 0.0
  %v801 = vmax.f32 %v732, 0.0
  %v802 = vmax.f32 %v734, 0.0
  %v803 = vmax.f32 %v785, 0.0
  %v804 = vmax.f32 %v787, 0.0
  %v805 = vmax.f32 %v736, 0.0
  %v806 = vmax.f32 %v738, 0.0
  %v807 = vmax.f32 %v789, 0.0
  %v808 = vmax.f32 %v791, 0.0
  %809 = vrot.lane.b32.xlu0 %v793, 17
  %v810 = vpop.permute.xlu0 %809
  %811 = vrot.lane.b32.xlu0 %v797, 17
  %v812 = vpop.permute.xlu0 %811
  %813 = vrot.lane.b32.xlu0 %v801, 17
  %v814 = vpop.permute.xlu0 %813
  %815 = vrot.lane.b32.xlu0 %v805, 17
  %v816 = vpop.permute.xlu0 %815
  %817 = vrot.lane.b32.xlu0 %v794, 17
  %v818 = vpop.permute.xlu0 %817
  %819 = vrot.lane.b32.xlu0 %v798, 17
  %v820 = vpop.permute.xlu0 %819
  %821 = vrot.lane.b32.xlu0 %v802, 17
  %v822 = vpop.permute.xlu0 %821
  %823 = vrot.lane.b32.xlu0 %v806, 17
  %v824 = vpop.permute.xlu0 %823
  %825 = vrot.lane.b32.xlu0 %v795, 17
  %v826 = vpop.permute.xlu0 %825
  %827 = vrot.lane.b32.xlu0 %v799, 17
  %v828 = vpop.permute.xlu0 %827
  %829 = vrot.lane.b32.xlu0 %v803, 17
  %v830 = vpop.permute.xlu0 %829
  %831 = vrot.lane.b32.xlu0 %v807, 17
  %v832 = vpop.permute.xlu0 %831
  %833 = vrot.lane.b32.xlu0 %v796, 17
  %v834 = vpop.permute.xlu0 %833
  %835 = vrot.lane.b32.xlu0 %v800, 17
  %v836 = vpop.permute.xlu0 %835
  %837 = vrot.lane.b32.xlu0 %v804, 17
  %v838 = vpop.permute.xlu0 %837
  %839 = vrot.lane.b32.xlu0 %v808, 17
  %v840 = vpop.permute.xlu0 %839
  %v841 = vsel %vm167, %v826, %v834
  %v842 = vsel %vm167, %v828, %v836
  %v843 = vsel %vm167, %v830, %v838
  %v844 = vsel %vm167, %v832, %v840
  %v845 = vsel %vm167, %v818, %v826
  %v846 = vsel %vm167, %v820, %v828
  %v847 = vsel %vm167, %v822, %v830
  %v848 = vsel %vm167, %v824, %v832
  %v849 = vsel %vm167, %v810, %v818
  %v850 = vsel %vm167, %v812, %v820
  %v851 = vsel %vm167, %v814, %v822
  %v852 = vsel %vm167, %v816, %v824
  %v853 = vsel %vm167, %v834, %v810
  %v854 = vsel %vm167, %v836, %v812
  %v855 = vsel %vm167, %v838, %v814
  %v856 = vsel %vm167, %v840, %v816
  %v857 = vmul.f32 %v853, %v181
  %v858 = vmul.f32 %v849, %v185
  %v859 = vmul.f32 %v845, %v189
  %v860 = vmul.f32 %v841, %v193
  %v861 = vmul.f32 %v854, %v181
  %v862 = vmul.f32 %v850, %v185
  %v863 = vmul.f32 %v846, %v189
  %v864 = vmul.f32 %v842, %v193
  %v865 = vmul.f32 %v855, %v181
  %v866 = vmul.f32 %v851, %v185
  %v867 = vmul.f32 %v847, %v189
  %v868 = vmul.f32 %v843, %v193
  %v869 = vmul.f32 %v856, %v181
  %v870 = vmul.f32 %v852, %v185
  %v871 = vmul.f32 %v848, %v189
  %v872 = vmul.f32 %v844, %v193
  %v873 = vpack.c.bf16 %v861, %v857
  %v874 = vpack.c.bf16 %v862, %v858
  %v875 = vpack.c.bf16 %v863, %v859
  %v876 = vpack.c.bf16 %v864, %v860
  %v877 = vpack.c.bf16 %v869, %v865
  %v878 = vpack.c.bf16 %v870, %v866
  %v879 = vpack.c.bf16 %v871, %v867
  %v880 = vpack.c.bf16 %v872, %v868
  %881 = vrot.lane.b32.xlu0 %v793, 16
  %v882 = vpop.permute.xlu0 %881
  %883 = vrot.lane.b32.xlu0 %v797, 16
  %v884 = vpop.permute.xlu0 %883
  %885 = vrot.lane.b32.xlu0 %v801, 16
  %v886 = vpop.permute.xlu0 %885
  %887 = vrot.lane.b32.xlu0 %v805, 16
  %v888 = vpop.permute.xlu0 %887
  %889 = vrot.lane.b32.xlu0 %v794, 16
  %v890 = vpop.permute.xlu0 %889
  %891 = vrot.lane.b32.xlu0 %v798, 16
  %v892 = vpop.permute.xlu0 %891
  %893 = vrot.lane.b32.xlu0 %v802, 16
  %v894 = vpop.permute.xlu0 %893
  %895 = vrot.lane.b32.xlu0 %v806, 16
  %v896 = vpop.permute.xlu0 %895
  %897 = vrot.lane.b32.xlu0 %v795, 16
  %v898 = vpop.permute.xlu0 %897
  %899 = vrot.lane.b32.xlu0 %v799, 16
  %v900 = vpop.permute.xlu0 %899
  %901 = vrot.lane.b32.xlu0 %v803, 16
  %v902 = vpop.permute.xlu0 %901
  %903 = vrot.lane.b32.xlu0 %v807, 16
  %v904 = vpop.permute.xlu0 %903
  %905 = vrot.lane.b32.xlu0 %v796, 16
  %v906 = vpop.permute.xlu0 %905
  %907 = vrot.lane.b32.xlu0 %v800, 16
  %v908 = vpop.permute.xlu0 %907
  %909 = vrot.lane.b32.xlu0 %v804, 16
  %v910 = vpop.permute.xlu0 %909
  %911 = vrot.lane.b32.xlu0 %v808, 16
  %v912 = vpop.permute.xlu0 %911
  %v913 = vsel %vm226, %v898, %v906
  %v914 = vsel %vm226, %v900, %v908
  %v915 = vsel %vm226, %v902, %v910
  %v916 = vsel %vm226, %v904, %v912
  %v917 = vsel %vm226, %v890, %v898
  %v918 = vsel %vm226, %v892, %v900
  %v919 = vsel %vm226, %v894, %v902
  %v920 = vsel %vm226, %v896, %v904
  %v921 = vsel %vm226, %v882, %v890
  %v922 = vsel %vm226, %v884, %v892
  %v923 = vsel %vm226, %v886, %v894
  %v924 = vsel %vm226, %v888, %v896
  %v925 = vsel %vm226, %v906, %v882
  %v926 = vsel %vm226, %v908, %v884
  %v927 = vsel %vm226, %v910, %v886
  %v928 = vsel %vm226, %v912, %v888
  %v929 = vmul.f32 %v925, %v241
  %v930 = vmul.f32 %v921, %v245
  %v931 = vmul.f32 %v917, %v249
  %v932 = vmul.f32 %v913, %v253
  %v933 = vmul.f32 %v926, %v241
  %v934 = vmul.f32 %v922, %v245
  %v935 = vmul.f32 %v918, %v249
  %v936 = vmul.f32 %v914, %v253
  %v937 = vmul.f32 %v927, %v241
  %v938 = vmul.f32 %v923, %v245
  %v939 = vmul.f32 %v919, %v249
  %v940 = vmul.f32 %v915, %v253
  %v941 = vmul.f32 %v928, %v241
  %v942 = vmul.f32 %v924, %v245
  %v943 = vmul.f32 %v920, %v249
  %v944 = vmul.f32 %v916, %v253
  %v945 = vpack.c.bf16 %v933, %v929
  %v946 = vpack.c.bf16 %v934, %v930
  %v947 = vpack.c.bf16 %v935, %v931
  %v948 = vpack.c.bf16 %v936, %v932
  %v949 = vpack.c.bf16 %v941, %v937
  %v950 = vpack.c.bf16 %v942, %v938
  %v951 = vpack.c.bf16 %v943, %v939
  %v952 = vpack.c.bf16 %v944, %v940
  %953 = vrot.lane.b32.xlu0 %v793, 15
  %v954 = vpop.permute.xlu0 %953
  %955 = vrot.lane.b32.xlu0 %v797, 15
  %v956 = vpop.permute.xlu0 %955
  %957 = vrot.lane.b32.xlu0 %v801, 15
  %v958 = vpop.permute.xlu0 %957
  %959 = vrot.lane.b32.xlu0 %v805, 15
  %v960 = vpop.permute.xlu0 %959
  %961 = vrot.lane.b32.xlu0 %v794, 15
  %v962 = vpop.permute.xlu0 %961
  %963 = vrot.lane.b32.xlu0 %v798, 15
  %v964 = vpop.permute.xlu0 %963
  %965 = vrot.lane.b32.xlu0 %v802, 15
  %v966 = vpop.permute.xlu0 %965
  %967 = vrot.lane.b32.xlu0 %v806, 15
  %v968 = vpop.permute.xlu0 %967
  %969 = vrot.lane.b32.xlu0 %v795, 15
  %v970 = vpop.permute.xlu0 %969
  %971 = vrot.lane.b32.xlu0 %v799, 15
  %v972 = vpop.permute.xlu0 %971
  %973 = vrot.lane.b32.xlu0 %v803, 15
  %v974 = vpop.permute.xlu0 %973
  %975 = vrot.lane.b32.xlu0 %v807, 15
  %v976 = vpop.permute.xlu0 %975
  %977 = vrot.lane.b32.xlu0 %v796, 15
  %v978 = vpop.permute.xlu0 %977
  %979 = vrot.lane.b32.xlu0 %v800, 15
  %v980 = vpop.permute.xlu0 %979
  %981 = vrot.lane.b32.xlu0 %v804, 15
  %v982 = vpop.permute.xlu0 %981
  %983 = vrot.lane.b32.xlu0 %v808, 15
  %v984 = vpop.permute.xlu0 %983
  %v985 = vsel %vm286, %v970, %v978
  %v986 = vsel %vm286, %v972, %v980
  %v987 = vsel %vm286, %v974, %v982
  %v988 = vsel %vm286, %v976, %v984
  %v989 = vsel %vm286, %v962, %v970
  %v990 = vsel %vm286, %v964, %v972
  %v991 = vsel %vm286, %v966, %v974
  %v992 = vsel %vm286, %v968, %v976
  %v993 = vsel %vm286, %v954, %v962
  %v994 = vsel %vm286, %v956, %v964
  %v995 = vsel %vm286, %v958, %v966
  %v996 = vsel %vm286, %v960, %v968
  %v997 = vsel %vm286, %v978, %v954
  %v998 = vsel %vm286, %v980, %v956
  %v999 = vsel %vm286, %v982, %v958
  %v1000 = vsel %vm286, %v984, %v960
  %v1001 = vmul.f32 %v997, %v301
  %v1002 = vmul.f32 %v993, %v305
  %v1003 = vmul.f32 %v989, %v309
  %v1004 = vmul.f32 %v985, %v313
  %v1005 = vmul.f32 %v998, %v301
  %v1006 = vmul.f32 %v994, %v305
  %v1007 = vmul.f32 %v990, %v309
  %v1008 = vmul.f32 %v986, %v313
  %v1009 = vmul.f32 %v999, %v301
  %v1010 = vmul.f32 %v995, %v305
  %v1011 = vmul.f32 %v991, %v309
  %v1012 = vmul.f32 %v987, %v313
  %v1013 = vmul.f32 %v1000, %v301
  %v1014 = vmul.f32 %v996, %v305
  %v1015 = vmul.f32 %v992, %v309
  %v1016 = vmul.f32 %v988, %v313
  %v1017 = vpack.c.bf16 %v1005, %v1001
  %v1018 = vpack.c.bf16 %v1006, %v1002
  %v1019 = vpack.c.bf16 %v1007, %v1003
  %v1020 = vpack.c.bf16 %v1008, %v1004
  %v1021 = vpack.c.bf16 %v1013, %v1009
  %v1022 = vpack.c.bf16 %v1014, %v1010
  %v1023 = vpack.c.bf16 %v1015, %v1011
  %v1024 = vpack.c.bf16 %v1016, %v1012
  %1025 = vrot.lane.b32.xlu0 %v793, 1
  %v1026 = vpop.permute.xlu0 %1025
  %1027 = vrot.lane.b32.xlu0 %v797, 1
  %v1028 = vpop.permute.xlu0 %1027
  %1029 = vrot.lane.b32.xlu0 %v801, 1
  %v1030 = vpop.permute.xlu0 %1029
  %1031 = vrot.lane.b32.xlu0 %v805, 1
  %v1032 = vpop.permute.xlu0 %1031
  %1033 = vrot.lane.b32.xlu0 %v794, 1
  %v1034 = vpop.permute.xlu0 %1033
  %1035 = vrot.lane.b32.xlu0 %v798, 1
  %v1036 = vpop.permute.xlu0 %1035
  %1037 = vrot.lane.b32.xlu0 %v802, 1
  %v1038 = vpop.permute.xlu0 %1037
  %1039 = vrot.lane.b32.xlu0 %v806, 1
  %v1040 = vpop.permute.xlu0 %1039
  %1041 = vrot.lane.b32.xlu0 %v795, 1
  %v1042 = vpop.permute.xlu0 %1041
  %1043 = vrot.lane.b32.xlu0 %v799, 1
  %v1044 = vpop.permute.xlu0 %1043
  %1045 = vrot.lane.b32.xlu0 %v803, 1
  %v1046 = vpop.permute.xlu0 %1045
  %1047 = vrot.lane.b32.xlu0 %v807, 1
  %v1048 = vpop.permute.xlu0 %1047
  %1049 = vrot.lane.b32.xlu0 %v796, 1
  %v1050 = vpop.permute.xlu0 %1049
  %1051 = vrot.lane.b32.xlu0 %v800, 1
  %v1052 = vpop.permute.xlu0 %1051
  %1053 = vrot.lane.b32.xlu0 %v804, 1
  %v1054 = vpop.permute.xlu0 %1053
  %1055 = vrot.lane.b32.xlu0 %v808, 1
  %v1056 = vpop.permute.xlu0 %1055
  %v1057 = vsel %vm346, %v1042, %v1050
  %v1058 = vsel %vm346, %v1044, %v1052
  %v1059 = vsel %vm346, %v1046, %v1054
  %v1060 = vsel %vm346, %v1048, %v1056
  %v1061 = vsel %vm346, %v1034, %v1042
  %v1062 = vsel %vm346, %v1036, %v1044
  %v1063 = vsel %vm346, %v1038, %v1046
  %v1064 = vsel %vm346, %v1040, %v1048
  %v1065 = vsel %vm346, %v1026, %v1034
  %v1066 = vsel %vm346, %v1028, %v1036
  %v1067 = vsel %vm346, %v1030, %v1038
  %v1068 = vsel %vm346, %v1032, %v1040
  %v1069 = vsel %vm346, %v1050, %v1026
  %v1070 = vsel %vm346, %v1052, %v1028
  %v1071 = vsel %vm346, %v1054, %v1030
  %v1072 = vsel %vm346, %v1056, %v1032
  %v1073 = vmul.f32 %v1069, %v361
  %v1074 = vmul.f32 %v1065, %v365
  %v1075 = vmul.f32 %v1061, %v369
  %v1076 = vmul.f32 %v1057, %v373
  %v1077 = vmul.f32 %v1070, %v361
  %v1078 = vmul.f32 %v1066, %v365
  %v1079 = vmul.f32 %v1062, %v369
  %v1080 = vmul.f32 %v1058, %v373
  %v1081 = vmul.f32 %v1071, %v361
  %v1082 = vmul.f32 %v1067, %v365
  %v1083 = vmul.f32 %v1063, %v369
  %v1084 = vmul.f32 %v1059, %v373
  %v1085 = vmul.f32 %v1072, %v361
  %v1086 = vmul.f32 %v1068, %v365
  %v1087 = vmul.f32 %v1064, %v369
  %v1088 = vmul.f32 %v1060, %v373
  %v1089 = vpack.c.bf16 %v1077, %v1073
  %v1090 = vpack.c.bf16 %v1078, %v1074
  %v1091 = vpack.c.bf16 %v1079, %v1075
  %v1092 = vpack.c.bf16 %v1080, %v1076
  %v1093 = vpack.c.bf16 %v1085, %v1081
  %v1094 = vpack.c.bf16 %v1086, %v1082
  %v1095 = vpack.c.bf16 %v1087, %v1083
  %v1096 = vpack.c.bf16 %v1088, %v1084
  %v1097 = vpack.c.bf16 %v797, %v793
  %v1098 = vpack.c.bf16 %v798, %v794
  %v1099 = vpack.c.bf16 %v799, %v795
  %v1100 = vpack.c.bf16 %v800, %v796
  %v1101 = vpack.c.bf16 %v805, %v801
  %v1102 = vpack.c.bf16 %v806, %v802
  %v1103 = vpack.c.bf16 %v807, %v803
  %v1104 = vpack.c.bf16 %v808, %v804
  %1105 = vrot.lane.b32.xlu0 %v793, 127
  %v1106 = vpop.permute.xlu0 %1105
  %1107 = vrot.lane.b32.xlu0 %v797, 127
  %v1108 = vpop.permute.xlu0 %1107
  %1109 = vrot.lane.b32.xlu0 %v801, 127
  %v1110 = vpop.permute.xlu0 %1109
  %1111 = vrot.lane.b32.xlu0 %v805, 127
  %v1112 = vpop.permute.xlu0 %1111
  %1113 = vrot.lane.b32.xlu0 %v794, 127
  %v1114 = vpop.permute.xlu0 %1113
  %1115 = vrot.lane.b32.xlu0 %v798, 127
  %v1116 = vpop.permute.xlu0 %1115
  %1117 = vrot.lane.b32.xlu0 %v802, 127
  %v1118 = vpop.permute.xlu0 %1117
  %1119 = vrot.lane.b32.xlu0 %v806, 127
  %v1120 = vpop.permute.xlu0 %1119
  %1121 = vrot.lane.b32.xlu0 %v795, 127
  %v1122 = vpop.permute.xlu0 %1121
  %1123 = vrot.lane.b32.xlu0 %v799, 127
  %v1124 = vpop.permute.xlu0 %1123
  %1125 = vrot.lane.b32.xlu0 %v803, 127
  %v1126 = vpop.permute.xlu0 %1125
  %1127 = vrot.lane.b32.xlu0 %v807, 127
  %v1128 = vpop.permute.xlu0 %1127
  %1129 = vrot.lane.b32.xlu0 %v796, 127
  %v1130 = vpop.permute.xlu0 %1129
  %1131 = vrot.lane.b32.xlu0 %v800, 127
  %v1132 = vpop.permute.xlu0 %1131
  %1133 = vrot.lane.b32.xlu0 %v804, 127
  %v1134 = vpop.permute.xlu0 %1133
  %1135 = vrot.lane.b32.xlu0 %v808, 127
  %v1136 = vpop.permute.xlu0 %1135
  %v1137 = vsel %vm410, %v1122, %v1130
  %v1138 = vsel %vm410, %v1124, %v1132
  %v1139 = vsel %vm410, %v1126, %v1134
  %v1140 = vsel %vm410, %v1128, %v1136
  %v1141 = vsel %vm410, %v1114, %v1122
  %v1142 = vsel %vm410, %v1116, %v1124
  %v1143 = vsel %vm410, %v1118, %v1126
  %v1144 = vsel %vm410, %v1120, %v1128
  %v1145 = vsel %vm410, %v1106, %v1114
  %v1146 = vsel %vm410, %v1108, %v1116
  %v1147 = vsel %vm410, %v1110, %v1118
  %v1148 = vsel %vm410, %v1112, %v1120
  %v1149 = vsel %vm410, %v1130, %v1106
  %v1150 = vsel %vm410, %v1132, %v1108
  %v1151 = vsel %vm410, %v1134, %v1110
  %v1152 = vsel %vm410, %v1136, %v1112
  %v1153 = vmul.f32 %v1145, %v425
  %v1154 = vmul.f32 %v1141, %v429
  %v1155 = vmul.f32 %v1137, %v433
  %v1156 = vmul.f32 %v1149, %v437
  %v1157 = vmul.f32 %v1146, %v425
  %v1158 = vmul.f32 %v1142, %v429
  %v1159 = vmul.f32 %v1138, %v433
  %v1160 = vmul.f32 %v1150, %v437
  %v1161 = vmul.f32 %v1147, %v425
  %v1162 = vmul.f32 %v1143, %v429
  %v1163 = vmul.f32 %v1139, %v433
  %v1164 = vmul.f32 %v1151, %v437
  %v1165 = vmul.f32 %v1148, %v425
  %v1166 = vmul.f32 %v1144, %v429
  %v1167 = vmul.f32 %v1140, %v433
  %v1168 = vmul.f32 %v1152, %v437
  %v1169 = vpack.c.bf16 %v1157, %v1153
  %v1170 = vpack.c.bf16 %v1158, %v1154
  %v1171 = vpack.c.bf16 %v1159, %v1155
  %v1172 = vpack.c.bf16 %v1160, %v1156
  %v1173 = vpack.c.bf16 %v1165, %v1161
  %v1174 = vpack.c.bf16 %v1166, %v1162
  %v1175 = vpack.c.bf16 %v1167, %v1163
  %v1176 = vpack.c.bf16 %v1168, %v1164
  %1177 = vrot.lane.b32.xlu0 %v793, 113
  %v1178 = vpop.permute.xlu0 %1177
  %1179 = vrot.lane.b32.xlu0 %v797, 113
  %v1180 = vpop.permute.xlu0 %1179
  %1181 = vrot.lane.b32.xlu0 %v801, 113
  %v1182 = vpop.permute.xlu0 %1181
  %1183 = vrot.lane.b32.xlu0 %v805, 113
  %v1184 = vpop.permute.xlu0 %1183
  %1185 = vrot.lane.b32.xlu0 %v794, 113
  %v1186 = vpop.permute.xlu0 %1185
  %1187 = vrot.lane.b32.xlu0 %v798, 113
  %v1188 = vpop.permute.xlu0 %1187
  %1189 = vrot.lane.b32.xlu0 %v802, 113
  %v1190 = vpop.permute.xlu0 %1189
  %1191 = vrot.lane.b32.xlu0 %v806, 113
  %v1192 = vpop.permute.xlu0 %1191
  %1193 = vrot.lane.b32.xlu0 %v795, 113
  %v1194 = vpop.permute.xlu0 %1193
  %1195 = vrot.lane.b32.xlu0 %v799, 113
  %v1196 = vpop.permute.xlu0 %1195
  %1197 = vrot.lane.b32.xlu0 %v803, 113
  %v1198 = vpop.permute.xlu0 %1197
  %1199 = vrot.lane.b32.xlu0 %v807, 113
  %v1200 = vpop.permute.xlu0 %1199
  %1201 = vrot.lane.b32.xlu0 %v796, 113
  %v1202 = vpop.permute.xlu0 %1201
  %1203 = vrot.lane.b32.xlu0 %v800, 113
  %v1204 = vpop.permute.xlu0 %1203
  %1205 = vrot.lane.b32.xlu0 %v804, 113
  %v1206 = vpop.permute.xlu0 %1205
  %1207 = vrot.lane.b32.xlu0 %v808, 113
  %v1208 = vpop.permute.xlu0 %1207
  %v1209 = vsel %vm470, %v1194, %v1202
  %v1210 = vsel %vm470, %v1196, %v1204
  %v1211 = vsel %vm470, %v1198, %v1206
  %v1212 = vsel %vm470, %v1200, %v1208
  %v1213 = vsel %vm470, %v1186, %v1194
  %v1214 = vsel %vm470, %v1188, %v1196
  %v1215 = vsel %vm470, %v1190, %v1198
  %v1216 = vsel %vm470, %v1192, %v1200
  %v1217 = vsel %vm470, %v1178, %v1186
  %v1218 = vsel %vm470, %v1180, %v1188
  %v1219 = vsel %vm470, %v1182, %v1190
  %v1220 = vsel %vm470, %v1184, %v1192
  %v1221 = vsel %vm470, %v1202, %v1178
  %v1222 = vsel %vm470, %v1204, %v1180
  %v1223 = vsel %vm470, %v1206, %v1182
  %v1224 = vsel %vm470, %v1208, %v1184
  %v1225 = vmul.f32 %v1217, %v485
  %v1226 = vmul.f32 %v1213, %v489
  %v1227 = vmul.f32 %v1209, %v493
  %v1228 = vmul.f32 %v1221, %v497
  %v1229 = vmul.f32 %v1218, %v485
  %v1230 = vmul.f32 %v1214, %v489
  %v1231 = vmul.f32 %v1210, %v493
  %v1232 = vmul.f32 %v1222, %v497
  %v1233 = vmul.f32 %v1219, %v485
  %v1234 = vmul.f32 %v1215, %v489
  %v1235 = vmul.f32 %v1211, %v493
  %v1236 = vmul.f32 %v1223, %v497
  %v1237 = vmul.f32 %v1220, %v485
  %v1238 = vmul.f32 %v1216, %v489
  %v1239 = vmul.f32 %v1212, %v493
  %v1240 = vmul.f32 %v1224, %v497
  %v1241 = vpack.c.bf16 %v1229, %v1225
  %v1242 = vpack.c.bf16 %v1230, %v1226
  %v1243 = vpack.c.bf16 %v1231, %v1227
  %v1244 = vpack.c.bf16 %v1232, %v1228
  %v1245 = vpack.c.bf16 %v1237, %v1233
  %v1246 = vpack.c.bf16 %v1238, %v1234
  %v1247 = vpack.c.bf16 %v1239, %v1235
  %v1248 = vpack.c.bf16 %v1240, %v1236
  %1249 = vrot.lane.b32.xlu0 %v793, 112
  %v1250 = vpop.permute.xlu0 %1249
  %1251 = vrot.lane.b32.xlu0 %v797, 112
  %v1252 = vpop.permute.xlu0 %1251
  %1253 = vrot.lane.b32.xlu0 %v801, 112
  %v1254 = vpop.permute.xlu0 %1253
  %1255 = vrot.lane.b32.xlu0 %v805, 112
  %v1256 = vpop.permute.xlu0 %1255
  %1257 = vrot.lane.b32.xlu0 %v794, 112
  %v1258 = vpop.permute.xlu0 %1257
  %1259 = vrot.lane.b32.xlu0 %v798, 112
  %v1260 = vpop.permute.xlu0 %1259
  %1261 = vrot.lane.b32.xlu0 %v802, 112
  %v1262 = vpop.permute.xlu0 %1261
  %1263 = vrot.lane.b32.xlu0 %v806, 112
  %v1264 = vpop.permute.xlu0 %1263
  %1265 = vrot.lane.b32.xlu0 %v795, 112
  %v1266 = vpop.permute.xlu0 %1265
  %1267 = vrot.lane.b32.xlu0 %v799, 112
  %v1268 = vpop.permute.xlu0 %1267
  %1269 = vrot.lane.b32.xlu0 %v803, 112
  %v1270 = vpop.permute.xlu0 %1269
  %1271 = vrot.lane.b32.xlu0 %v807, 112
  %v1272 = vpop.permute.xlu0 %1271
  %1273 = vrot.lane.b32.xlu0 %v796, 112
  %v1274 = vpop.permute.xlu0 %1273
  %1275 = vrot.lane.b32.xlu0 %v800, 112
  %v1276 = vpop.permute.xlu0 %1275
  %1277 = vrot.lane.b32.xlu0 %v804, 112
  %v1278 = vpop.permute.xlu0 %1277
  %1279 = vrot.lane.b32.xlu0 %v808, 112
  %v1280 = vpop.permute.xlu0 %1279
  %v1281 = vsel %vm530, %v1266, %v1274
  %v1282 = vsel %vm530, %v1268, %v1276
  %v1283 = vsel %vm530, %v1270, %v1278
  %v1284 = vsel %vm530, %v1272, %v1280
  %v1285 = vsel %vm530, %v1258, %v1266
  %v1286 = vsel %vm530, %v1260, %v1268
  %v1287 = vsel %vm530, %v1262, %v1270
  %v1288 = vsel %vm530, %v1264, %v1272
  %v1289 = vsel %vm530, %v1250, %v1258
  %v1290 = vsel %vm530, %v1252, %v1260
  %v1291 = vsel %vm530, %v1254, %v1262
  %v1292 = vsel %vm530, %v1256, %v1264
  %v1293 = vsel %vm530, %v1274, %v1250
  %v1294 = vsel %vm530, %v1276, %v1252
  %v1295 = vsel %vm530, %v1278, %v1254
  %v1296 = vsel %vm530, %v1280, %v1256
  %v1297 = vmul.f32 %v1289, %v545
  %v1298 = vmul.f32 %v1285, %v549
  %v1299 = vmul.f32 %v1281, %v553
  %v1300 = vmul.f32 %v1293, %v557
  %v1301 = vmul.f32 %v1290, %v545
  %v1302 = vmul.f32 %v1286, %v549
  %v1303 = vmul.f32 %v1282, %v553
  %v1304 = vmul.f32 %v1294, %v557
  %v1305 = vmul.f32 %v1291, %v545
  %v1306 = vmul.f32 %v1287, %v549
  %v1307 = vmul.f32 %v1283, %v553
  %v1308 = vmul.f32 %v1295, %v557
  %v1309 = vmul.f32 %v1292, %v545
  %v1310 = vmul.f32 %v1288, %v549
  %v1311 = vmul.f32 %v1284, %v553
  %v1312 = vmul.f32 %v1296, %v557
  %v1313 = vpack.c.bf16 %v1301, %v1297
  %v1314 = vpack.c.bf16 %v1302, %v1298
  %v1315 = vpack.c.bf16 %v1303, %v1299
  %v1316 = vpack.c.bf16 %v1304, %v1300
  %v1317 = vpack.c.bf16 %v1309, %v1305
  %v1318 = vpack.c.bf16 %v1310, %v1306
  %v1319 = vpack.c.bf16 %v1311, %v1307
  %v1320 = vpack.c.bf16 %v1312, %v1308
  %1321 = vrot.lane.b32.xlu0 %v793, 111
  %v1322 = vpop.permute.xlu0 %1321
  %1323 = vrot.lane.b32.xlu0 %v797, 111
  %v1324 = vpop.permute.xlu0 %1323
  %1325 = vrot.lane.b32.xlu0 %v801, 111
  %v1326 = vpop.permute.xlu0 %1325
  %1327 = vrot.lane.b32.xlu0 %v805, 111
  %v1328 = vpop.permute.xlu0 %1327
  %1329 = vrot.lane.b32.xlu0 %v794, 111
  %v1330 = vpop.permute.xlu0 %1329
  %1331 = vrot.lane.b32.xlu0 %v798, 111
  %v1332 = vpop.permute.xlu0 %1331
  %1333 = vrot.lane.b32.xlu0 %v802, 111
  %v1334 = vpop.permute.xlu0 %1333
  %1335 = vrot.lane.b32.xlu0 %v806, 111
  %v1336 = vpop.permute.xlu0 %1335
  %1337 = vrot.lane.b32.xlu0 %v795, 111
  %v1338 = vpop.permute.xlu0 %1337
  %1339 = vrot.lane.b32.xlu0 %v799, 111
  %v1340 = vpop.permute.xlu0 %1339
  %1341 = vrot.lane.b32.xlu0 %v803, 111
  %v1342 = vpop.permute.xlu0 %1341
  %1343 = vrot.lane.b32.xlu0 %v807, 111
  %v1344 = vpop.permute.xlu0 %1343
  %1345 = vrot.lane.b32.xlu0 %v796, 111
  %v1346 = vpop.permute.xlu0 %1345
  %1347 = vrot.lane.b32.xlu0 %v800, 111
  %v1348 = vpop.permute.xlu0 %1347
  %1349 = vrot.lane.b32.xlu0 %v804, 111
  %v1350 = vpop.permute.xlu0 %1349
  %1351 = vrot.lane.b32.xlu0 %v808, 111
  %v1352 = vpop.permute.xlu0 %1351
  %v1353 = vsel %vm590, %v1338, %v1346
  %v1354 = vsel %vm590, %v1340, %v1348
  %v1355 = vsel %vm590, %v1342, %v1350
  %v1356 = vsel %vm590, %v1344, %v1352
  %v1357 = vsel %vm590, %v1330, %v1338
  %v1358 = vsel %vm590, %v1332, %v1340
  %v1359 = vsel %vm590, %v1334, %v1342
  %v1360 = vsel %vm590, %v1336, %v1344
  %v1361 = vsel %vm590, %v1322, %v1330
  %v1362 = vsel %vm590, %v1324, %v1332
  %v1363 = vsel %vm590, %v1326, %v1334
  %v1364 = vsel %vm590, %v1328, %v1336
  %v1365 = vsel %vm590, %v1346, %v1322
  %v1366 = vsel %vm590, %v1348, %v1324
  %v1367 = vsel %vm590, %v1350, %v1326
  %v1368 = vsel %vm590, %v1352, %v1328
  %v1369 = vmul.f32 %v1361, %v605
  %v1370 = vmul.f32 %v1357, %v609
  %v1371 = vmul.f32 %v1353, %v613
  %v1372 = vmul.f32 %v1365, %v617
  %v1373 = vmul.f32 %v1362, %v605
  %v1374 = vmul.f32 %v1358, %v609
  %v1375 = vmul.f32 %v1354, %v613
  %v1376 = vmul.f32 %v1366, %v617
  %v1377 = vmul.f32 %v1363, %v605
  %v1378 = vmul.f32 %v1359, %v609
  %v1379 = vmul.f32 %v1355, %v613
  %v1380 = vmul.f32 %v1367, %v617
  %v1381 = vmul.f32 %v1364, %v605
  %v1382 = vmul.f32 %v1360, %v609
  %v1383 = vmul.f32 %v1356, %v613
  %v1384 = vmul.f32 %v1368, %v617
  %v1385 = vpack.c.bf16 %v1373, %v1369
  %v1386 = vpack.c.bf16 %v1374, %v1370
  %v1387 = vpack.c.bf16 %v1375, %v1371
  %v1388 = vpack.c.bf16 %v1376, %v1372
  %v1389 = vpack.c.bf16 %v1381, %v1377
  %v1390 = vpack.c.bf16 %v1382, %v1378
  %v1391 = vpack.c.bf16 %v1383, %v1379
  %v1392 = vpack.c.bf16 %v1384, %v1380
  %v1393 = vld [vmem:[%s19] sm:$0xff]
  %v1394 = vld [vmem:[%s19 + $0x8] sm:$0xf]
  %v1395 = vld [vmem:[%s19 + $0xc] sm:$0xff]
  %v1396 = vld [vmem:[%s19 + $0x14] sm:$0xf]
  %v1397 = vld [vmem:[%s19 + $0x18] sm:$0xff]
  %v1398 = vld [vmem:[%s19 + $0x20] sm:$0xf]
  %v1399 = vld [vmem:[%s19 + $0x24] sm:$0xff]
  %v1400 = vld [vmem:[%s19 + $0x2c] sm:$0xf]
  %v1401 = vld [vmem:[%s21] sm:$0xff]
  %v1402 = vld [vmem:[%s21 + $0x8] sm:$0xff]
  %v1403 = vld [vmem:[%s21 + $0x10] sm:$0xff]
  %v1404 = vld [vmem:[%s21 + $0x18] sm:$0xff]
  %1406 = vset.pattern.permute.xlu0 0
  %1407 = vperm.xlu0 %1406, %v1401
  %v1408 = vpop.permute.xlu0 %1407
  %1411 = vset.pattern.permute.xlu0 0
  %1412 = vperm.xlu0 %1411, %v1402
  %v1413 = vpop.permute.xlu0 %1412
  %1416 = vset.pattern.permute.xlu0 0
  %1417 = vperm.xlu0 %1416, %v1403
  %v1418 = vpop.permute.xlu0 %1417
  %1421 = vset.pattern.permute.xlu0 0
  %1422 = vperm.xlu0 %1421, %v1404
  %v1423 = vpop.permute.xlu0 %1422
  %v1433 = vunpack.c.l.b16 %v1393
  %v1434 = vunpack.c.h.b16 %v1393
  %v1435 = vunpack.c.l.b16 %v1394
  %v1436 = vunpack.c.l.b16 %v1395
  %v1437 = vunpack.c.h.b16 %v1395
  %v1438 = vunpack.c.l.b16 %v1396
  %v1439 = vunpack.c.l.b16 %v1397
  %v1440 = vunpack.c.h.b16 %v1397
  %v1441 = vunpack.c.l.b16 %v1398
  %v1442 = vunpack.c.l.b16 %v1399
  %v1443 = vunpack.c.h.b16 %v1399
  %v1444 = vunpack.c.l.b16 %v1400
  %v1445 = vpack.c.b16 %v1436, %v1433
  %v1446 = vpack.c.b16 %v1437, %v1434
  %v1447 = vpack.c.b16 %v1438, %v1435
  %v1448 = vpack.c.b16 %v1442, %v1439
  %v1449 = vpack.c.b16 %v1443, %v1440
  %v1450 = vpack.c.b16 %v1444, %v1441
  %vm1455 = vcmask 261120
  %v1457 = vsel %vm1455, %v1447, 0
  %v1460 = vsel %vm1455, %v1450, 0
  %1462 = vmatprep.subr.bf16.mxu0 %v1094
  %1463 = vmatpush1.bf16.msra.mxu0 %v1093
  %1464 = vmatprep.subr.bf16.mxu0 %v1090
  %1465 = vmatpush1.bf16.msra.mxu0 %v1089
  %1466 = vmatprep.subr.bf16.mxu0 %v1022
  %1467 = vmatpush1.bf16.msra.mxu0 %v1021
  %1468 = vmatprep.subr.bf16.mxu0 %v1018
  %1469 = vmatpush1.bf16.msra.mxu0 %v1017
  %1470 = vmatprep.subr.bf16.mxu0 %v950
  %1471 = vmatpush1.bf16.msra.mxu0 %v949
  %1472 = vmatprep.subr.bf16.mxu0 %v946
  %1473 = vmatpush1.bf16.msra.mxu0 %v945
  %1474 = vmatprep.subr.bf16.mxu0 %v878
  %1475 = vmatpush1.bf16.msra.mxu0 %v877
  %1476 = vmatprep.subr.bf16.mxu0 %v874
  %1477 = vmatpush1.bf16.msra.mxu0 %v873
  %1478 = vmatprep.subr.bf16.mxu0 %v1318
  %1479 = vmatpush2.bf16.msra.mxu0 %v1317
  %1480 = vmatprep.subr.bf16.mxu0 %v1314
  %1481 = vmatpush2.bf16.msra.mxu0 %v1313
  %1482 = vmatprep.subr.bf16.mxu0 %v1246
  %1483 = vmatpush2.bf16.msra.mxu0 %v1245
  %1484 = vmatprep.subr.bf16.mxu0 %v1242
  %1485 = vmatpush2.bf16.msra.mxu0 %v1241
  %1486 = vmatprep.subr.bf16.mxu0 %v1174
  %1487 = vmatpush2.bf16.msra.mxu0 %v1173
  %1488 = vmatprep.subr.bf16.mxu0 %v1170
  %1489 = vmatpush2.bf16.msra.mxu0 %v1169
  %1490 = vmatprep.subr.bf16.mxu0 %v1102
  %1491 = vmatpush2.bf16.msra.mxu0 %v1101
  %1492 = vmatprep.subr.bf16.mxu0 %v1098
  %1493 = vmatpush2.bf16.msra.mxu0 %v1097
  %1494 = vmatprep.mubr.bf16.mxu0 %v1446
  %1495 = vmatmul.mubr.bf16.gmra.mxu0 %v1445
  %v1496 = vpop.f32.mrf.mxu0
  %v1497 = vadd.f32 %v1408, %v1496
  %v1498 = vpop.f32.mrf.mxu0
  %v1499 = vadd.f32 %v1408, %v1498
  %v1500 = vpop.f32.mrf.mxu0
  %v1501 = vadd.f32 %v1413, %v1500
  %v1502 = vpop.f32.mrf.mxu0
  %v1503 = vadd.f32 %v1413, %v1502
  %1504 = vmatprep.mubr.bf16.mxu0 %v1449
  %1505 = vmatmul.mubr.bf16.gmra.mxu0 %v1448
  %v1506 = vpop.f32.mrf.mxu0
  %v1507 = vadd.f32 %v1418, %v1506
  %v1508 = vpop.f32.mrf.mxu0
  %v1509 = vadd.f32 %v1418, %v1508
  %v1510 = vpop.f32.mrf.mxu0
  %v1511 = vadd.f32 %v1423, %v1510
  %v1512 = vpop.f32.mrf.mxu0
  %v1513 = vadd.f32 %v1423, %v1512
  %1514 = vdwg.mxu0
  %1515 = vmatprep.subr.bf16.mxu0 0
  %1516 = vmatpush1.bf16.msra.mxu0 0
  %1517 = vmatprep.subr.bf16.mxu0 0
  %1518 = vmatpush1.bf16.msra.mxu0 0
  %1519 = vmatprep.subr.bf16.mxu0 0
  %1520 = vmatpush1.bf16.msra.mxu0 0
  %1521 = vmatprep.subr.bf16.mxu0 0
  %1522 = vmatpush1.bf16.msra.mxu0 0
  %1523 = vmatprep.subr.bf16.mxu0 0
  %1524 = vmatpush1.bf16.msra.mxu0 0
  %1525 = vmatprep.subr.bf16.mxu0 0
  %1526 = vmatpush1.bf16.msra.mxu0 0
  %1527 = vmatprep.subr.bf16.mxu0 %v1390
  %1528 = vmatpush1.bf16.msra.mxu0 %v1389
  %1529 = vmatprep.subr.bf16.mxu0 %v1386
  %1530 = vmatpush1.bf16.msra.mxu0 %v1385
  %1531 = vmatprep.subr.bf16.mxu0 0
  %1532 = vmatpush2.bf16.msra.mxu0 0
  %1533 = vmatprep.subr.bf16.mxu0 0
  %1534 = vmatpush2.bf16.msra.mxu0 0
  %1535 = vmatprep.subr.bf16.mxu0 0
  %1536 = vmatpush2.bf16.msra.mxu0 0
  %1537 = vmatprep.subr.bf16.mxu0 0
  %1538 = vmatpush2.bf16.msra.mxu0 0
  %1539 = vmatprep.subr.bf16.mxu0 0
  %1540 = vmatpush2.bf16.msra.mxu0 0
  %1541 = vmatprep.subr.bf16.mxu0 0
  %1542 = vmatpush2.bf16.msra.mxu0 0
  %1543 = vmatprep.subr.bf16.mxu0 0
  %1544 = vmatpush2.bf16.msra.mxu0 0
  %1545 = vmatprep.subr.bf16.mxu0 0
  %1546 = vmatpush2.bf16.msra.mxu0 0
  %1547 = vmatprep.mubr.bf16.mxu0 0
  %1548 = vmatmul.mubr.bf16.gmra.mxu0 %v1457
  %v1549 = vpop.f32.mrf.mxu0
  %v1550 = vadd.f32 %v1497, %v1549
  %v1551 = vpop.f32.mrf.mxu0
  %v1552 = vadd.f32 %v1499, %v1551
  %v1553 = vpop.f32.mrf.mxu0
  %v1554 = vadd.f32 %v1501, %v1553
  %v1555 = vpop.f32.mrf.mxu0
  %v1556 = vadd.f32 %v1503, %v1555
  %1557 = vmatprep.mubr.bf16.mxu0 0
  %1558 = vmatmul.mubr.bf16.gmra.mxu0 %v1460
  %v1559 = vpop.f32.mrf.mxu0
  %v1560 = vadd.f32 %v1507, %v1559
  %v1561 = vpop.f32.mrf.mxu0
  %v1562 = vadd.f32 %v1509, %v1561
  %v1563 = vpop.f32.mrf.mxu0
  %v1564 = vadd.f32 %v1511, %v1563
  %v1565 = vpop.f32.mrf.mxu0
  %v1566 = vadd.f32 %v1513, %v1565
  %1567 = vdwg.mxu0
  %1568 = vmatprep.subr.bf16.mxu0 %v1096
  %1569 = vmatpush1.bf16.msra.mxu0 %v1095
  %1570 = vmatprep.subr.bf16.mxu0 %v1092
  %1571 = vmatpush1.bf16.msra.mxu0 %v1091
  %1572 = vmatprep.subr.bf16.mxu0 %v1024
  %1573 = vmatpush1.bf16.msra.mxu0 %v1023
  %1574 = vmatprep.subr.bf16.mxu0 %v1020
  %1575 = vmatpush1.bf16.msra.mxu0 %v1019
  %1576 = vmatprep.subr.bf16.mxu0 %v952
  %1577 = vmatpush1.bf16.msra.mxu0 %v951
  %1578 = vmatprep.subr.bf16.mxu0 %v948
  %1579 = vmatpush1.bf16.msra.mxu0 %v947
  %1580 = vmatprep.subr.bf16.mxu0 %v880
  %1581 = vmatpush1.bf16.msra.mxu0 %v879
  %1582 = vmatprep.subr.bf16.mxu0 %v876
  %1583 = vmatpush1.bf16.msra.mxu0 %v875
  %1584 = vmatprep.subr.bf16.mxu0 %v1320
  %1585 = vmatpush2.bf16.msra.mxu0 %v1319
  %1586 = vmatprep.subr.bf16.mxu0 %v1316
  %1587 = vmatpush2.bf16.msra.mxu0 %v1315
  %1588 = vmatprep.subr.bf16.mxu0 %v1248
  %1589 = vmatpush2.bf16.msra.mxu0 %v1247
  %1590 = vmatprep.subr.bf16.mxu0 %v1244
  %1591 = vmatpush2.bf16.msra.mxu0 %v1243
  %1592 = vmatprep.subr.bf16.mxu0 %v1176
  %1593 = vmatpush2.bf16.msra.mxu0 %v1175
  %1594 = vmatprep.subr.bf16.mxu0 %v1172
  %1595 = vmatpush2.bf16.msra.mxu0 %v1171
  %1596 = vmatprep.subr.bf16.mxu0 %v1104
  %1597 = vmatpush2.bf16.msra.mxu0 %v1103
  %1598 = vmatprep.subr.bf16.mxu0 %v1100
  %1599 = vmatpush2.bf16.msra.mxu0 %v1099
  %1600 = vmatprep.mubr.bf16.mxu0 %v1446
  %1601 = vmatmul.mubr.bf16.gmra.mxu0 %v1445
  %v1602 = vpop.f32.mrf.mxu0
  %v1603 = vadd.f32 %v1408, %v1602
  %v1604 = vpop.f32.mrf.mxu0
  %v1605 = vadd.f32 %v1408, %v1604
  %v1606 = vpop.f32.mrf.mxu0
  %v1607 = vadd.f32 %v1413, %v1606
  %v1608 = vpop.f32.mrf.mxu0
  %v1609 = vadd.f32 %v1413, %v1608
  %1610 = vmatprep.mubr.bf16.mxu0 %v1449
  %1611 = vmatmul.mubr.bf16.gmra.mxu0 %v1448
  %v1612 = vpop.f32.mrf.mxu0
  %v1613 = vadd.f32 %v1418, %v1612
  %v1614 = vpop.f32.mrf.mxu0
  %v1615 = vadd.f32 %v1418, %v1614
  %v1616 = vpop.f32.mrf.mxu0
  %v1617 = vadd.f32 %v1423, %v1616
  %v1618 = vpop.f32.mrf.mxu0
  %v1619 = vadd.f32 %v1423, %v1618
  %1620 = vdwg.mxu0
  %1621 = vmatprep.subr.bf16.mxu0 0
  %1622 = vmatpush1.bf16.msra.mxu0 0
  %1623 = vmatprep.subr.bf16.mxu0 0
  %1624 = vmatpush1.bf16.msra.mxu0 0
  %1625 = vmatprep.subr.bf16.mxu0 0
  %1626 = vmatpush1.bf16.msra.mxu0 0
  %1627 = vmatprep.subr.bf16.mxu0 0
  %1628 = vmatpush1.bf16.msra.mxu0 0
  %1629 = vmatprep.subr.bf16.mxu0 0
  %1630 = vmatpush1.bf16.msra.mxu0 0
  %1631 = vmatprep.subr.bf16.mxu0 0
  %1632 = vmatpush1.bf16.msra.mxu0 0
  %1633 = vmatprep.subr.bf16.mxu0 %v1392
  %1634 = vmatpush1.bf16.msra.mxu0 %v1391
  %1635 = vmatprep.subr.bf16.mxu0 %v1388
  %1636 = vmatpush1.bf16.msra.mxu0 %v1387
  %1637 = vmatprep.subr.bf16.mxu0 0
  %1638 = vmatpush2.bf16.msra.mxu0 0
  %1639 = vmatprep.subr.bf16.mxu0 0
  %1640 = vmatpush2.bf16.msra.mxu0 0
  %1641 = vmatprep.subr.bf16.mxu0 0
  %1642 = vmatpush2.bf16.msra.mxu0 0
  %1643 = vmatprep.subr.bf16.mxu0 0
  %1644 = vmatpush2.bf16.msra.mxu0 0
  %1645 = vmatprep.subr.bf16.mxu0 0
  %1646 = vmatpush2.bf16.msra.mxu0 0
  %1647 = vmatprep.subr.bf16.mxu0 0
  %1648 = vmatpush2.bf16.msra.mxu0 0
  %1649 = vmatprep.subr.bf16.mxu0 0
  %1650 = vmatpush2.bf16.msra.mxu0 0
  %1651 = vmatprep.subr.bf16.mxu0 0
  %1652 = vmatpush2.bf16.msra.mxu0 0
  %1653 = vmatprep.mubr.bf16.mxu0 0
  %1654 = vmatmul.mubr.bf16.gmra.mxu0 %v1457
  %v1655 = vpop.f32.mrf.mxu0
  %v1656 = vadd.f32 %v1603, %v1655
  %v1657 = vpop.f32.mrf.mxu0
  %v1658 = vadd.f32 %v1605, %v1657
  %v1659 = vpop.f32.mrf.mxu0
  %v1660 = vadd.f32 %v1607, %v1659
  %v1661 = vpop.f32.mrf.mxu0
  %v1662 = vadd.f32 %v1609, %v1661
  %1663 = vmatprep.mubr.bf16.mxu0 0
  %1664 = vmatmul.mubr.bf16.gmra.mxu0 %v1460
  %v1665 = vpop.f32.mrf.mxu0
  %v1666 = vadd.f32 %v1613, %v1665
  %v1667 = vpop.f32.mrf.mxu0
  %v1668 = vadd.f32 %v1615, %v1667
  %v1669 = vpop.f32.mrf.mxu0
  %v1670 = vadd.f32 %v1617, %v1669
  %v1671 = vpop.f32.mrf.mxu0
  %v1672 = vadd.f32 %v1619, %v1671
  %1673 = vdwg.mxu0
  %v1674 = vmax.f32 %v1550, 0.0
  %v1675 = vmax.f32 %v1552, 0.0
  %v1676 = vmax.f32 %v1656, 0.0
  %v1677 = vmax.f32 %v1658, 0.0
  %v1678 = vmax.f32 %v1554, 0.0
  %v1679 = vmax.f32 %v1556, 0.0
  %v1680 = vmax.f32 %v1660, 0.0
  %v1681 = vmax.f32 %v1662, 0.0
  %v1682 = vmax.f32 %v1560, 0.0
  %v1683 = vmax.f32 %v1562, 0.0
  %v1684 = vmax.f32 %v1666, 0.0
  %v1685 = vmax.f32 %v1668, 0.0
  %v1686 = vmax.f32 %v1564, 0.0
  %v1687 = vmax.f32 %v1566, 0.0
  %v1688 = vmax.f32 %v1670, 0.0
  %v1689 = vmax.f32 %v1672, 0.0
  %1690 = vrot.lane.b32.xlu0 %v1674, 17
  %v1691 = vpop.permute.xlu0 %1690
  %1692 = vrot.lane.b32.xlu0 %v1678, 17
  %v1693 = vpop.permute.xlu0 %1692
  %1694 = vrot.lane.b32.xlu0 %v1682, 17
  %v1695 = vpop.permute.xlu0 %1694
  %1696 = vrot.lane.b32.xlu0 %v1686, 17
  %v1697 = vpop.permute.xlu0 %1696
  %1698 = vrot.lane.b32.xlu0 %v1675, 17
  %v1699 = vpop.permute.xlu0 %1698
  %1700 = vrot.lane.b32.xlu0 %v1679, 17
  %v1701 = vpop.permute.xlu0 %1700
  %1702 = vrot.lane.b32.xlu0 %v1683, 17
  %v1703 = vpop.permute.xlu0 %1702
  %1704 = vrot.lane.b32.xlu0 %v1687, 17
  %v1705 = vpop.permute.xlu0 %1704
  %1706 = vrot.lane.b32.xlu0 %v1676, 17
  %v1707 = vpop.permute.xlu0 %1706
  %1708 = vrot.lane.b32.xlu0 %v1680, 17
  %v1709 = vpop.permute.xlu0 %1708
  %1710 = vrot.lane.b32.xlu0 %v1684, 17
  %v1711 = vpop.permute.xlu0 %1710
  %1712 = vrot.lane.b32.xlu0 %v1688, 17
  %v1713 = vpop.permute.xlu0 %1712
  %1714 = vrot.lane.b32.xlu0 %v1677, 17
  %v1715 = vpop.permute.xlu0 %1714
  %1716 = vrot.lane.b32.xlu0 %v1681, 17
  %v1717 = vpop.permute.xlu0 %1716
  %1718 = vrot.lane.b32.xlu0 %v1685, 17
  %v1719 = vpop.permute.xlu0 %1718
  %1720 = vrot.lane.b32.xlu0 %v1689, 17
  %v1721 = vpop.permute.xlu0 %1720
  %v1722 = vsel %vm167, %v1707, %v1715
  %v1723 = vsel %vm167, %v1709, %v1717
  %v1724 = vsel %vm167, %v1711, %v1719
  %v1725 = vsel %vm167, %v1713, %v1721
  %v1726 = vsel %vm167, %v1699, %v1707
  %v1727 = vsel %vm167, %v1701, %v1709
  %v1728 = vsel %vm167, %v1703, %v1711
  %v1729 = vsel %vm167, %v1705, %v1713
  %v1730 = vsel %vm167, %v1691, %v1699
  %v1731 = vsel %vm167, %v1693, %v1701
  %v1732 = vsel %vm167, %v1695, %v1703
  %v1733 = vsel %vm167, %v1697, %v1705
  %v1734 = vsel %vm167, %v1715, %v1691
  %v1735 = vsel %vm167, %v1717, %v1693
  %v1736 = vsel %vm167, %v1719, %v1695
  %v1737 = vsel %vm167, %v1721, %v1697
  %v1738 = vmul.f32 %v1734, %v181
  %v1739 = vmul.f32 %v1730, %v185
  %v1740 = vmul.f32 %v1726, %v189
  %v1741 = vmul.f32 %v1722, %v193
  %v1742 = vmul.f32 %v1735, %v181
  %v1743 = vmul.f32 %v1731, %v185
  %v1744 = vmul.f32 %v1727, %v189
  %v1745 = vmul.f32 %v1723, %v193
  %v1746 = vmul.f32 %v1736, %v181
  %v1747 = vmul.f32 %v1732, %v185
  %v1748 = vmul.f32 %v1728, %v189
  %v1749 = vmul.f32 %v1724, %v193
  %v1750 = vmul.f32 %v1737, %v181
  %v1751 = vmul.f32 %v1733, %v185
  %v1752 = vmul.f32 %v1729, %v189
  %v1753 = vmul.f32 %v1725, %v193
  %v1754 = vpack.c.bf16 %v1742, %v1738
  %v1755 = vpack.c.bf16 %v1743, %v1739
  %v1756 = vpack.c.bf16 %v1744, %v1740
  %v1757 = vpack.c.bf16 %v1745, %v1741
  %v1758 = vpack.c.bf16 %v1750, %v1746
  %v1759 = vpack.c.bf16 %v1751, %v1747
  %v1760 = vpack.c.bf16 %v1752, %v1748
  %v1761 = vpack.c.bf16 %v1753, %v1749
  %1762 = vrot.lane.b32.xlu0 %v1674, 16
  %v1763 = vpop.permute.xlu0 %1762
  %1764 = vrot.lane.b32.xlu0 %v1678, 16
  %v1765 = vpop.permute.xlu0 %1764
  %1766 = vrot.lane.b32.xlu0 %v1682, 16
  %v1767 = vpop.permute.xlu0 %1766
  %1768 = vrot.lane.b32.xlu0 %v1686, 16
  %v1769 = vpop.permute.xlu0 %1768
  %1770 = vrot.lane.b32.xlu0 %v1675, 16
  %v1771 = vpop.permute.xlu0 %1770
  %1772 = vrot.lane.b32.xlu0 %v1679, 16
  %v1773 = vpop.permute.xlu0 %1772
  %1774 = vrot.lane.b32.xlu0 %v1683, 16
  %v1775 = vpop.permute.xlu0 %1774
  %1776 = vrot.lane.b32.xlu0 %v1687, 16
  %v1777 = vpop.permute.xlu0 %1776
  %1778 = vrot.lane.b32.xlu0 %v1676, 16
  %v1779 = vpop.permute.xlu0 %1778
  %1780 = vrot.lane.b32.xlu0 %v1680, 16
  %v1781 = vpop.permute.xlu0 %1780
  %1782 = vrot.lane.b32.xlu0 %v1684, 16
  %v1783 = vpop.permute.xlu0 %1782
  %1784 = vrot.lane.b32.xlu0 %v1688, 16
  %v1785 = vpop.permute.xlu0 %1784
  %1786 = vrot.lane.b32.xlu0 %v1677, 16
  %v1787 = vpop.permute.xlu0 %1786
  %1788 = vrot.lane.b32.xlu0 %v1681, 16
  %v1789 = vpop.permute.xlu0 %1788
  %1790 = vrot.lane.b32.xlu0 %v1685, 16
  %v1791 = vpop.permute.xlu0 %1790
  %1792 = vrot.lane.b32.xlu0 %v1689, 16
  %v1793 = vpop.permute.xlu0 %1792
  %v1794 = vsel %vm226, %v1779, %v1787
  %v1795 = vsel %vm226, %v1781, %v1789
  %v1796 = vsel %vm226, %v1783, %v1791
  %v1797 = vsel %vm226, %v1785, %v1793
  %v1798 = vsel %vm226, %v1771, %v1779
  %v1799 = vsel %vm226, %v1773, %v1781
  %v1800 = vsel %vm226, %v1775, %v1783
  %v1801 = vsel %vm226, %v1777, %v1785
  %v1802 = vsel %vm226, %v1763, %v1771
  %v1803 = vsel %vm226, %v1765, %v1773
  %v1804 = vsel %vm226, %v1767, %v1775
  %v1805 = vsel %vm226, %v1769, %v1777
  %v1806 = vsel %vm226, %v1787, %v1763
  %v1807 = vsel %vm226, %v1789, %v1765
  %v1808 = vsel %vm226, %v1791, %v1767
  %v1809 = vsel %vm226, %v1793, %v1769
  %v1810 = vmul.f32 %v1806, %v241
  %v1811 = vmul.f32 %v1802, %v245
  %v1812 = vmul.f32 %v1798, %v249
  %v1813 = vmul.f32 %v1794, %v253
  %v1814 = vmul.f32 %v1807, %v241
  %v1815 = vmul.f32 %v1803, %v245
  %v1816 = vmul.f32 %v1799, %v249
  %v1817 = vmul.f32 %v1795, %v253
  %v1818 = vmul.f32 %v1808, %v241
  %v1819 = vmul.f32 %v1804, %v245
  %v1820 = vmul.f32 %v1800, %v249
  %v1821 = vmul.f32 %v1796, %v253
  %v1822 = vmul.f32 %v1809, %v241
  %v1823 = vmul.f32 %v1805, %v245
  %v1824 = vmul.f32 %v1801, %v249
  %v1825 = vmul.f32 %v1797, %v253
  %v1826 = vpack.c.bf16 %v1814, %v1810
  %v1827 = vpack.c.bf16 %v1815, %v1811
  %v1828 = vpack.c.bf16 %v1816, %v1812
  %v1829 = vpack.c.bf16 %v1817, %v1813
  %v1830 = vpack.c.bf16 %v1822, %v1818
  %v1831 = vpack.c.bf16 %v1823, %v1819
  %v1832 = vpack.c.bf16 %v1824, %v1820
  %v1833 = vpack.c.bf16 %v1825, %v1821
  %1834 = vrot.lane.b32.xlu0 %v1674, 15
  %v1835 = vpop.permute.xlu0 %1834
  %1836 = vrot.lane.b32.xlu0 %v1678, 15
  %v1837 = vpop.permute.xlu0 %1836
  %1838 = vrot.lane.b32.xlu0 %v1682, 15
  %v1839 = vpop.permute.xlu0 %1838
  %1840 = vrot.lane.b32.xlu0 %v1686, 15
  %v1841 = vpop.permute.xlu0 %1840
  %1842 = vrot.lane.b32.xlu0 %v1675, 15
  %v1843 = vpop.permute.xlu0 %1842
  %1844 = vrot.lane.b32.xlu0 %v1679, 15
  %v1845 = vpop.permute.xlu0 %1844
  %1846 = vrot.lane.b32.xlu0 %v1683, 15
  %v1847 = vpop.permute.xlu0 %1846
  %1848 = vrot.lane.b32.xlu0 %v1687, 15
  %v1849 = vpop.permute.xlu0 %1848
  %1850 = vrot.lane.b32.xlu0 %v1676, 15
  %v1851 = vpop.permute.xlu0 %1850
  %1852 = vrot.lane.b32.xlu0 %v1680, 15
  %v1853 = vpop.permute.xlu0 %1852
  %1854 = vrot.lane.b32.xlu0 %v1684, 15
  %v1855 = vpop.permute.xlu0 %1854
  %1856 = vrot.lane.b32.xlu0 %v1688, 15
  %v1857 = vpop.permute.xlu0 %1856
  %1858 = vrot.lane.b32.xlu0 %v1677, 15
  %v1859 = vpop.permute.xlu0 %1858
  %1860 = vrot.lane.b32.xlu0 %v1681, 15
  %v1861 = vpop.permute.xlu0 %1860
  %1862 = vrot.lane.b32.xlu0 %v1685, 15
  %v1863 = vpop.permute.xlu0 %1862
  %1864 = vrot.lane.b32.xlu0 %v1689, 15
  %v1865 = vpop.permute.xlu0 %1864
  %v1866 = vsel %vm286, %v1851, %v1859
  %v1867 = vsel %vm286, %v1853, %v1861
  %v1868 = vsel %vm286, %v1855, %v1863
  %v1869 = vsel %vm286, %v1857, %v1865
  %v1870 = vsel %vm286, %v1843, %v1851
  %v1871 = vsel %vm286, %v1845, %v1853
  %v1872 = vsel %vm286, %v1847, %v1855
  %v1873 = vsel %vm286, %v1849, %v1857
  %v1874 = vsel %vm286, %v1835, %v1843
  %v1875 = vsel %vm286, %v1837, %v1845
  %v1876 = vsel %vm286, %v1839, %v1847
  %v1877 = vsel %vm286, %v1841, %v1849
  %v1878 = vsel %vm286, %v1859, %v1835
  %v1879 = vsel %vm286, %v1861, %v1837
  %v1880 = vsel %vm286, %v1863, %v1839
  %v1881 = vsel %vm286, %v1865, %v1841
  %v1882 = vmul.f32 %v1878, %v301
  %v1883 = vmul.f32 %v1874, %v305
  %v1884 = vmul.f32 %v1870, %v309
  %v1885 = vmul.f32 %v1866, %v313
  %v1886 = vmul.f32 %v1879, %v301
  %v1887 = vmul.f32 %v1875, %v305
  %v1888 = vmul.f32 %v1871, %v309
  %v1889 = vmul.f32 %v1867, %v313
  %v1890 = vmul.f32 %v1880, %v301
  %v1891 = vmul.f32 %v1876, %v305
  %v1892 = vmul.f32 %v1872, %v309
  %v1893 = vmul.f32 %v1868, %v313
  %v1894 = vmul.f32 %v1881, %v301
  %v1895 = vmul.f32 %v1877, %v305
  %v1896 = vmul.f32 %v1873, %v309
  %v1897 = vmul.f32 %v1869, %v313
  %v1898 = vpack.c.bf16 %v1886, %v1882
  %v1899 = vpack.c.bf16 %v1887, %v1883
  %v1900 = vpack.c.bf16 %v1888, %v1884
  %v1901 = vpack.c.bf16 %v1889, %v1885
  %v1902 = vpack.c.bf16 %v1894, %v1890
  %v1903 = vpack.c.bf16 %v1895, %v1891
  %v1904 = vpack.c.bf16 %v1896, %v1892
  %v1905 = vpack.c.bf16 %v1897, %v1893
  %1906 = vrot.lane.b32.xlu0 %v1674, 1
  %v1907 = vpop.permute.xlu0 %1906
  %1908 = vrot.lane.b32.xlu0 %v1678, 1
  %v1909 = vpop.permute.xlu0 %1908
  %1910 = vrot.lane.b32.xlu0 %v1682, 1
  %v1911 = vpop.permute.xlu0 %1910
  %1912 = vrot.lane.b32.xlu0 %v1686, 1
  %v1913 = vpop.permute.xlu0 %1912
  %1914 = vrot.lane.b32.xlu0 %v1675, 1
  %v1915 = vpop.permute.xlu0 %1914
  %1916 = vrot.lane.b32.xlu0 %v1679, 1
  %v1917 = vpop.permute.xlu0 %1916
  %1918 = vrot.lane.b32.xlu0 %v1683, 1
  %v1919 = vpop.permute.xlu0 %1918
  %1920 = vrot.lane.b32.xlu0 %v1687, 1
  %v1921 = vpop.permute.xlu0 %1920
  %1922 = vrot.lane.b32.xlu0 %v1676, 1
  %v1923 = vpop.permute.xlu0 %1922
  %1924 = vrot.lane.b32.xlu0 %v1680, 1
  %v1925 = vpop.permute.xlu0 %1924
  %1926 = vrot.lane.b32.xlu0 %v1684, 1
  %v1927 = vpop.permute.xlu0 %1926
  %1928 = vrot.lane.b32.xlu0 %v1688, 1
  %v1929 = vpop.permute.xlu0 %1928
  %1930 = vrot.lane.b32.xlu0 %v1677, 1
  %v1931 = vpop.permute.xlu0 %1930
  %1932 = vrot.lane.b32.xlu0 %v1681, 1
  %v1933 = vpop.permute.xlu0 %1932
  %1934 = vrot.lane.b32.xlu0 %v1685, 1
  %v1935 = vpop.permute.xlu0 %1934
  %1936 = vrot.lane.b32.xlu0 %v1689, 1
  %v1937 = vpop.permute.xlu0 %1936
  %v1938 = vsel %vm346, %v1923, %v1931
  %v1939 = vsel %vm346, %v1925, %v1933
  %v1940 = vsel %vm346, %v1927, %v1935
  %v1941 = vsel %vm346, %v1929, %v1937
  %v1942 = vsel %vm346, %v1915, %v1923
  %v1943 = vsel %vm346, %v1917, %v1925
  %v1944 = vsel %vm346, %v1919, %v1927
  %v1945 = vsel %vm346, %v1921, %v1929
  %v1946 = vsel %vm346, %v1907, %v1915
  %v1947 = vsel %vm346, %v1909, %v1917
  %v1948 = vsel %vm346, %v1911, %v1919
  %v1949 = vsel %vm346, %v1913, %v1921
  %v1950 = vsel %vm346, %v1931, %v1907
  %v1951 = vsel %vm346, %v1933, %v1909
  %v1952 = vsel %vm346, %v1935, %v1911
  %v1953 = vsel %vm346, %v1937, %v1913
  %v1954 = vmul.f32 %v1950, %v361
  %v1955 = vmul.f32 %v1946, %v365
  %v1956 = vmul.f32 %v1942, %v369
  %v1957 = vmul.f32 %v1938, %v373
  %v1958 = vmul.f32 %v1951, %v361
  %v1959 = vmul.f32 %v1947, %v365
  %v1960 = vmul.f32 %v1943, %v369
  %v1961 = vmul.f32 %v1939, %v373
  %v1962 = vmul.f32 %v1952, %v361
  %v1963 = vmul.f32 %v1948, %v365
  %v1964 = vmul.f32 %v1944, %v369
  %v1965 = vmul.f32 %v1940, %v373
  %v1966 = vmul.f32 %v1953, %v361
  %v1967 = vmul.f32 %v1949, %v365
  %v1968 = vmul.f32 %v1945, %v369
  %v1969 = vmul.f32 %v1941, %v373
  %v1970 = vpack.c.bf16 %v1958, %v1954
  %v1971 = vpack.c.bf16 %v1959, %v1955
  %v1972 = vpack.c.bf16 %v1960, %v1956
  %v1973 = vpack.c.bf16 %v1961, %v1957
  %v1974 = vpack.c.bf16 %v1966, %v1962
  %v1975 = vpack.c.bf16 %v1967, %v1963
  %v1976 = vpack.c.bf16 %v1968, %v1964
  %v1977 = vpack.c.bf16 %v1969, %v1965
  %v1978 = vpack.c.bf16 %v1678, %v1674
  %v1979 = vpack.c.bf16 %v1679, %v1675
  %v1980 = vpack.c.bf16 %v1680, %v1676
  %v1981 = vpack.c.bf16 %v1681, %v1677
  %v1982 = vpack.c.bf16 %v1686, %v1682
  %v1983 = vpack.c.bf16 %v1687, %v1683
  %v1984 = vpack.c.bf16 %v1688, %v1684
  %v1985 = vpack.c.bf16 %v1689, %v1685
  %1986 = vrot.lane.b32.xlu0 %v1674, 127
  %v1987 = vpop.permute.xlu0 %1986
  %1988 = vrot.lane.b32.xlu0 %v1678, 127
  %v1989 = vpop.permute.xlu0 %1988
  %1990 = vrot.lane.b32.xlu0 %v1682, 127
  %v1991 = vpop.permute.xlu0 %1990
  %1992 = vrot.lane.b32.xlu0 %v1686, 127
  %v1993 = vpop.permute.xlu0 %1992
  %1994 = vrot.lane.b32.xlu0 %v1675, 127
  %v1995 = vpop.permute.xlu0 %1994
  %1996 = vrot.lane.b32.xlu0 %v1679, 127
  %v1997 = vpop.permute.xlu0 %1996
  %1998 = vrot.lane.b32.xlu0 %v1683, 127
  %v1999 = vpop.permute.xlu0 %1998
  %2000 = vrot.lane.b32.xlu0 %v1687, 127
  %v2001 = vpop.permute.xlu0 %2000
  %2002 = vrot.lane.b32.xlu0 %v1676, 127
  %v2003 = vpop.permute.xlu0 %2002
  %2004 = vrot.lane.b32.xlu0 %v1680, 127
  %v2005 = vpop.permute.xlu0 %2004
  %2006 = vrot.lane.b32.xlu0 %v1684, 127
  %v2007 = vpop.permute.xlu0 %2006
  %2008 = vrot.lane.b32.xlu0 %v1688, 127
  %v2009 = vpop.permute.xlu0 %2008
  %2010 = vrot.lane.b32.xlu0 %v1677, 127
  %v2011 = vpop.permute.xlu0 %2010
  %2012 = vrot.lane.b32.xlu0 %v1681, 127
  %v2013 = vpop.permute.xlu0 %2012
  %2014 = vrot.lane.b32.xlu0 %v1685, 127
  %v2015 = vpop.permute.xlu0 %2014
  %2016 = vrot.lane.b32.xlu0 %v1689, 127
  %v2017 = vpop.permute.xlu0 %2016
  %v2018 = vsel %vm410, %v2003, %v2011
  %v2019 = vsel %vm410, %v2005, %v2013
  %v2020 = vsel %vm410, %v2007, %v2015
  %v2021 = vsel %vm410, %v2009, %v2017
  %v2022 = vsel %vm410, %v1995, %v2003
  %v2023 = vsel %vm410, %v1997, %v2005
  %v2024 = vsel %vm410, %v1999, %v2007
  %v2025 = vsel %vm410, %v2001, %v2009
  %v2026 = vsel %vm410, %v1987, %v1995
  %v2027 = vsel %vm410, %v1989, %v1997
  %v2028 = vsel %vm410, %v1991, %v1999
  %v2029 = vsel %vm410, %v1993, %v2001
  %v2030 = vsel %vm410, %v2011, %v1987
  %v2031 = vsel %vm410, %v2013, %v1989
  %v2032 = vsel %vm410, %v2015, %v1991
  %v2033 = vsel %vm410, %v2017, %v1993
  %v2034 = vmul.f32 %v2026, %v425
  %v2035 = vmul.f32 %v2022, %v429
  %v2036 = vmul.f32 %v2018, %v433
  %v2037 = vmul.f32 %v2030, %v437
  %v2038 = vmul.f32 %v2027, %v425
  %v2039 = vmul.f32 %v2023, %v429
  %v2040 = vmul.f32 %v2019, %v433
  %v2041 = vmul.f32 %v2031, %v437
  %v2042 = vmul.f32 %v2028, %v425
  %v2043 = vmul.f32 %v2024, %v429
  %v2044 = vmul.f32 %v2020, %v433
  %v2045 = vmul.f32 %v2032, %v437
  %v2046 = vmul.f32 %v2029, %v425
  %v2047 = vmul.f32 %v2025, %v429
  %v2048 = vmul.f32 %v2021, %v433
  %v2049 = vmul.f32 %v2033, %v437
  %v2050 = vpack.c.bf16 %v2038, %v2034
  %v2051 = vpack.c.bf16 %v2039, %v2035
  %v2052 = vpack.c.bf16 %v2040, %v2036
  %v2053 = vpack.c.bf16 %v2041, %v2037
  %v2054 = vpack.c.bf16 %v2046, %v2042
  %v2055 = vpack.c.bf16 %v2047, %v2043
  %v2056 = vpack.c.bf16 %v2048, %v2044
  %v2057 = vpack.c.bf16 %v2049, %v2045
  %2058 = vrot.lane.b32.xlu0 %v1674, 113
  %v2059 = vpop.permute.xlu0 %2058
  %2060 = vrot.lane.b32.xlu0 %v1678, 113
  %v2061 = vpop.permute.xlu0 %2060
  %2062 = vrot.lane.b32.xlu0 %v1682, 113
  %v2063 = vpop.permute.xlu0 %2062
  %2064 = vrot.lane.b32.xlu0 %v1686, 113
  %v2065 = vpop.permute.xlu0 %2064
  %2066 = vrot.lane.b32.xlu0 %v1675, 113
  %v2067 = vpop.permute.xlu0 %2066
  %2068 = vrot.lane.b32.xlu0 %v1679, 113
  %v2069 = vpop.permute.xlu0 %2068
  %2070 = vrot.lane.b32.xlu0 %v1683, 113
  %v2071 = vpop.permute.xlu0 %2070
  %2072 = vrot.lane.b32.xlu0 %v1687, 113
  %v2073 = vpop.permute.xlu0 %2072
  %2074 = vrot.lane.b32.xlu0 %v1676, 113
  %v2075 = vpop.permute.xlu0 %2074
  %2076 = vrot.lane.b32.xlu0 %v1680, 113
  %v2077 = vpop.permute.xlu0 %2076
  %2078 = vrot.lane.b32.xlu0 %v1684, 113
  %v2079 = vpop.permute.xlu0 %2078
  %2080 = vrot.lane.b32.xlu0 %v1688, 113
  %v2081 = vpop.permute.xlu0 %2080
  %2082 = vrot.lane.b32.xlu0 %v1677, 113
  %v2083 = vpop.permute.xlu0 %2082
  %2084 = vrot.lane.b32.xlu0 %v1681, 113
  %v2085 = vpop.permute.xlu0 %2084
  %2086 = vrot.lane.b32.xlu0 %v1685, 113
  %v2087 = vpop.permute.xlu0 %2086
  %2088 = vrot.lane.b32.xlu0 %v1689, 113
  %v2089 = vpop.permute.xlu0 %2088
  %v2090 = vsel %vm470, %v2075, %v2083
  %v2091 = vsel %vm470, %v2077, %v2085
  %v2092 = vsel %vm470, %v2079, %v2087
  %v2093 = vsel %vm470, %v2081, %v2089
  %v2094 = vsel %vm470, %v2067, %v2075
  %v2095 = vsel %vm470, %v2069, %v2077
  %v2096 = vsel %vm470, %v2071, %v2079
  %v2097 = vsel %vm470, %v2073, %v2081
  %v2098 = vsel %vm470, %v2059, %v2067
  %v2099 = vsel %vm470, %v2061, %v2069
  %v2100 = vsel %vm470, %v2063, %v2071
  %v2101 = vsel %vm470, %v2065, %v2073
  %v2102 = vsel %vm470, %v2083, %v2059
  %v2103 = vsel %vm470, %v2085, %v2061
  %v2104 = vsel %vm470, %v2087, %v2063
  %v2105 = vsel %vm470, %v2089, %v2065
  %v2106 = vmul.f32 %v2098, %v485
  %v2107 = vmul.f32 %v2094, %v489
  %v2108 = vmul.f32 %v2090, %v493
  %v2109 = vmul.f32 %v2102, %v497
  %v2110 = vmul.f32 %v2099, %v485
  %v2111 = vmul.f32 %v2095, %v489
  %v2112 = vmul.f32 %v2091, %v493
  %v2113 = vmul.f32 %v2103, %v497
  %v2114 = vmul.f32 %v2100, %v485
  %v2115 = vmul.f32 %v2096, %v489
  %v2116 = vmul.f32 %v2092, %v493
  %v2117 = vmul.f32 %v2104, %v497
  %v2118 = vmul.f32 %v2101, %v485
  %v2119 = vmul.f32 %v2097, %v489
  %v2120 = vmul.f32 %v2093, %v493
  %v2121 = vmul.f32 %v2105, %v497
  %v2122 = vpack.c.bf16 %v2110, %v2106
  %v2123 = vpack.c.bf16 %v2111, %v2107
  %v2124 = vpack.c.bf16 %v2112, %v2108
  %v2125 = vpack.c.bf16 %v2113, %v2109
  %v2126 = vpack.c.bf16 %v2118, %v2114
  %v2127 = vpack.c.bf16 %v2119, %v2115
  %v2128 = vpack.c.bf16 %v2120, %v2116
  %v2129 = vpack.c.bf16 %v2121, %v2117
  %2130 = vrot.lane.b32.xlu0 %v1674, 112
  %v2131 = vpop.permute.xlu0 %2130
  %2132 = vrot.lane.b32.xlu0 %v1678, 112
  %v2133 = vpop.permute.xlu0 %2132
  %2134 = vrot.lane.b32.xlu0 %v1682, 112
  %v2135 = vpop.permute.xlu0 %2134
  %2136 = vrot.lane.b32.xlu0 %v1686, 112
  %v2137 = vpop.permute.xlu0 %2136
  %2138 = vrot.lane.b32.xlu0 %v1675, 112
  %v2139 = vpop.permute.xlu0 %2138
  %2140 = vrot.lane.b32.xlu0 %v1679, 112
  %v2141 = vpop.permute.xlu0 %2140
  %2142 = vrot.lane.b32.xlu0 %v1683, 112
  %v2143 = vpop.permute.xlu0 %2142
  %2144 = vrot.lane.b32.xlu0 %v1687, 112
  %v2145 = vpop.permute.xlu0 %2144
  %2146 = vrot.lane.b32.xlu0 %v1676, 112
  %v2147 = vpop.permute.xlu0 %2146
  %2148 = vrot.lane.b32.xlu0 %v1680, 112
  %v2149 = vpop.permute.xlu0 %2148
  %2150 = vrot.lane.b32.xlu0 %v1684, 112
  %v2151 = vpop.permute.xlu0 %2150
  %2152 = vrot.lane.b32.xlu0 %v1688, 112
  %v2153 = vpop.permute.xlu0 %2152
  %2154 = vrot.lane.b32.xlu0 %v1677, 112
  %v2155 = vpop.permute.xlu0 %2154
  %2156 = vrot.lane.b32.xlu0 %v1681, 112
  %v2157 = vpop.permute.xlu0 %2156
  %2158 = vrot.lane.b32.xlu0 %v1685, 112
  %v2159 = vpop.permute.xlu0 %2158
  %2160 = vrot.lane.b32.xlu0 %v1689, 112
  %v2161 = vpop.permute.xlu0 %2160
  %v2162 = vsel %vm530, %v2147, %v2155
  %v2163 = vsel %vm530, %v2149, %v2157
  %v2164 = vsel %vm530, %v2151, %v2159
  %v2165 = vsel %vm530, %v2153, %v2161
  %v2166 = vsel %vm530, %v2139, %v2147
  %v2167 = vsel %vm530, %v2141, %v2149
  %v2168 = vsel %vm530, %v2143, %v2151
  %v2169 = vsel %vm530, %v2145, %v2153
  %v2170 = vsel %vm530, %v2131, %v2139
  %v2171 = vsel %vm530, %v2133, %v2141
  %v2172 = vsel %vm530, %v2135, %v2143
  %v2173 = vsel %vm530, %v2137, %v2145
  %v2174 = vsel %vm530, %v2155, %v2131
  %v2175 = vsel %vm530, %v2157, %v2133
  %v2176 = vsel %vm530, %v2159, %v2135
  %v2177 = vsel %vm530, %v2161, %v2137
  %v2178 = vmul.f32 %v2170, %v545
  %v2179 = vmul.f32 %v2166, %v549
  %v2180 = vmul.f32 %v2162, %v553
  %v2181 = vmul.f32 %v2174, %v557
  %v2182 = vmul.f32 %v2171, %v545
  %v2183 = vmul.f32 %v2167, %v549
  %v2184 = vmul.f32 %v2163, %v553
  %v2185 = vmul.f32 %v2175, %v557
  %v2186 = vmul.f32 %v2172, %v545
  %v2187 = vmul.f32 %v2168, %v549
  %v2188 = vmul.f32 %v2164, %v553
  %v2189 = vmul.f32 %v2176, %v557
  %v2190 = vmul.f32 %v2173, %v545
  %v2191 = vmul.f32 %v2169, %v549
  %v2192 = vmul.f32 %v2165, %v553
  %v2193 = vmul.f32 %v2177, %v557
  %v2194 = vpack.c.bf16 %v2182, %v2178
  %v2195 = vpack.c.bf16 %v2183, %v2179
  %v2196 = vpack.c.bf16 %v2184, %v2180
  %v2197 = vpack.c.bf16 %v2185, %v2181
  %v2198 = vpack.c.bf16 %v2190, %v2186
  %v2199 = vpack.c.bf16 %v2191, %v2187
  %v2200 = vpack.c.bf16 %v2192, %v2188
  %v2201 = vpack.c.bf16 %v2193, %v2189
  %2202 = vrot.lane.b32.xlu0 %v1674, 111
  %v2203 = vpop.permute.xlu0 %2202
  %2204 = vrot.lane.b32.xlu0 %v1678, 111
  %v2205 = vpop.permute.xlu0 %2204
  %2206 = vrot.lane.b32.xlu0 %v1682, 111
  %v2207 = vpop.permute.xlu0 %2206
  %2208 = vrot.lane.b32.xlu0 %v1686, 111
  %v2209 = vpop.permute.xlu0 %2208
  %2210 = vrot.lane.b32.xlu0 %v1675, 111
  %v2211 = vpop.permute.xlu0 %2210
  %2212 = vrot.lane.b32.xlu0 %v1679, 111
  %v2213 = vpop.permute.xlu0 %2212
  %2214 = vrot.lane.b32.xlu0 %v1683, 111
  %v2215 = vpop.permute.xlu0 %2214
  %2216 = vrot.lane.b32.xlu0 %v1687, 111
  %v2217 = vpop.permute.xlu0 %2216
  %2218 = vrot.lane.b32.xlu0 %v1676, 111
  %v2219 = vpop.permute.xlu0 %2218
  %2220 = vrot.lane.b32.xlu0 %v1680, 111
  %v2221 = vpop.permute.xlu0 %2220
  %2222 = vrot.lane.b32.xlu0 %v1684, 111
  %v2223 = vpop.permute.xlu0 %2222
  %2224 = vrot.lane.b32.xlu0 %v1688, 111
  %v2225 = vpop.permute.xlu0 %2224
  %2226 = vrot.lane.b32.xlu0 %v1677, 111
  %v2227 = vpop.permute.xlu0 %2226
  %2228 = vrot.lane.b32.xlu0 %v1681, 111
  %v2229 = vpop.permute.xlu0 %2228
  %2230 = vrot.lane.b32.xlu0 %v1685, 111
  %v2231 = vpop.permute.xlu0 %2230
  %2232 = vrot.lane.b32.xlu0 %v1689, 111
  %v2233 = vpop.permute.xlu0 %2232
  %v2234 = vsel %vm590, %v2219, %v2227
  %v2235 = vsel %vm590, %v2221, %v2229
  %v2236 = vsel %vm590, %v2223, %v2231
  %v2237 = vsel %vm590, %v2225, %v2233
  %v2238 = vsel %vm590, %v2211, %v2219
  %v2239 = vsel %vm590, %v2213, %v2221
  %v2240 = vsel %vm590, %v2215, %v2223
  %v2241 = vsel %vm590, %v2217, %v2225
  %v2242 = vsel %vm590, %v2203, %v2211
  %v2243 = vsel %vm590, %v2205, %v2213
  %v2244 = vsel %vm590, %v2207, %v2215
  %v2245 = vsel %vm590, %v2209, %v2217
  %v2246 = vsel %vm590, %v2227, %v2203
  %v2247 = vsel %vm590, %v2229, %v2205
  %v2248 = vsel %vm590, %v2231, %v2207
  %v2249 = vsel %vm590, %v2233, %v2209
  %v2250 = vmul.f32 %v2242, %v605
  %v2251 = vmul.f32 %v2238, %v609
  %v2252 = vmul.f32 %v2234, %v613
  %v2253 = vmul.f32 %v2246, %v617
  %v2254 = vmul.f32 %v2243, %v605
  %v2255 = vmul.f32 %v2239, %v609
  %v2256 = vmul.f32 %v2235, %v613
  %v2257 = vmul.f32 %v2247, %v617
  %v2258 = vmul.f32 %v2244, %v605
  %v2259 = vmul.f32 %v2240, %v609
  %v2260 = vmul.f32 %v2236, %v613
  %v2261 = vmul.f32 %v2248, %v617
  %v2262 = vmul.f32 %v2245, %v605
  %v2263 = vmul.f32 %v2241, %v609
  %v2264 = vmul.f32 %v2237, %v613
  %v2265 = vmul.f32 %v2249, %v617
  %v2266 = vpack.c.bf16 %v2254, %v2250
  %v2267 = vpack.c.bf16 %v2255, %v2251
  %v2268 = vpack.c.bf16 %v2256, %v2252
  %v2269 = vpack.c.bf16 %v2257, %v2253
  %v2270 = vpack.c.bf16 %v2262, %v2258
  %v2271 = vpack.c.bf16 %v2263, %v2259
  %v2272 = vpack.c.bf16 %v2264, %v2260
  %v2273 = vpack.c.bf16 %v2265, %v2261
  %v2274 = vld [vmem:[%s23] sm:$0xff]
  %v2275 = vld [vmem:[%s23 + $0x8] sm:$0xf]
  %v2276 = vld [vmem:[%s23 + $0xc] sm:$0xff]
  %v2277 = vld [vmem:[%s23 + $0x14] sm:$0xf]
  %v2278 = vld [vmem:[%s23 + $0x18] sm:$0xff]
  %v2279 = vld [vmem:[%s23 + $0x20] sm:$0xf]
  %v2280 = vld [vmem:[%s23 + $0x24] sm:$0xff]
  %v2281 = vld [vmem:[%s23 + $0x2c] sm:$0xf]
  %v2282 = vld [vmem:[%s23 + $0x30] sm:$0xff]
  %v2283 = vld [vmem:[%s23 + $0x38] sm:$0xf]
  %v2284 = vld [vmem:[%s23 + $0x3c] sm:$0xff]
  %v2285 = vld [vmem:[%s23 + $0x44] sm:$0xf]
  %v2286 = vld [vmem:[%s23 + $0x48] sm:$0xff]
  %v2287 = vld [vmem:[%s23 + $0x50] sm:$0xf]
  %v2288 = vld [vmem:[%s23 + $0x54] sm:$0xff]
  %v2289 = vld [vmem:[%s23 + $0x5c] sm:$0xf]
  %v2290 = vld [vmem:[%s25] sm:$0xff]
  %v2291 = vld [vmem:[%s25 + $0x8] sm:$0xff]
  %v2292 = vld [vmem:[%s25 + $0x10] sm:$0xff]
  %v2293 = vld [vmem:[%s25 + $0x18] sm:$0xff]
  %v2294 = vld [vmem:[%s25 + $0x20] sm:$0xff]
  %v2295 = vld [vmem:[%s25 + $0x28] sm:$0xff]
  %v2296 = vld [vmem:[%s25 + $0x30] sm:$0xff]
  %v2297 = vld [vmem:[%s25 + $0x38] sm:$0xff]
  %2299 = vset.pattern.permute.xlu0 0
  %2300 = vperm.xlu0 %2299, %v2290
  %v2301 = vpop.permute.xlu0 %2300
  %2304 = vset.pattern.permute.xlu0 0
  %2305 = vperm.xlu0 %2304, %v2291
  %v2306 = vpop.permute.xlu0 %2305
  %2309 = vset.pattern.permute.xlu0 0
  %2310 = vperm.xlu0 %2309, %v2292
  %v2311 = vpop.permute.xlu0 %2310
  %2314 = vset.pattern.permute.xlu0 0
  %2315 = vperm.xlu0 %2314, %v2293
  %v2316 = vpop.permute.xlu0 %2315
  %2319 = vset.pattern.permute.xlu0 0
  %2320 = vperm.xlu0 %2319, %v2294
  %v2321 = vpop.permute.xlu0 %2320
  %2324 = vset.pattern.permute.xlu0 0
  %2325 = vperm.xlu0 %2324, %v2295
  %v2326 = vpop.permute.xlu0 %2325
  %2329 = vset.pattern.permute.xlu0 0
  %2330 = vperm.xlu0 %2329, %v2296
  %v2331 = vpop.permute.xlu0 %2330
  %2334 = vset.pattern.permute.xlu0 0
  %2335 = vperm.xlu0 %2334, %v2297
  %v2336 = vpop.permute.xlu0 %2335
  %v2354 = vunpack.c.l.b16 %v2274
  %v2355 = vunpack.c.h.b16 %v2274
  %v2356 = vunpack.c.l.b16 %v2275
  %v2357 = vunpack.c.l.b16 %v2276
  %v2358 = vunpack.c.h.b16 %v2276
  %v2359 = vunpack.c.l.b16 %v2277
  %v2360 = vunpack.c.l.b16 %v2278
  %v2361 = vunpack.c.h.b16 %v2278
  %v2362 = vunpack.c.l.b16 %v2279
  %v2363 = vunpack.c.l.b16 %v2280
  %v2364 = vunpack.c.h.b16 %v2280
  %v2365 = vunpack.c.l.b16 %v2281
  %v2366 = vunpack.c.l.b16 %v2282
  %v2367 = vunpack.c.h.b16 %v2282
  %v2368 = vunpack.c.l.b16 %v2283
  %v2369 = vunpack.c.l.b16 %v2284
  %v2370 = vunpack.c.h.b16 %v2284
  %v2371 = vunpack.c.l.b16 %v2285
  %v2372 = vunpack.c.l.b16 %v2286
  %v2373 = vunpack.c.h.b16 %v2286
  %v2374 = vunpack.c.l.b16 %v2287
  %v2375 = vunpack.c.l.b16 %v2288
  %v2376 = vunpack.c.h.b16 %v2288
  %v2377 = vunpack.c.l.b16 %v2289
  %v2378 = vpack.c.b16 %v2357, %v2354
  %v2379 = vpack.c.b16 %v2358, %v2355
  %v2380 = vpack.c.b16 %v2359, %v2356
  %v2381 = vpack.c.b16 %v2363, %v2360
  %v2382 = vpack.c.b16 %v2364, %v2361
  %v2383 = vpack.c.b16 %v2365, %v2362
  %v2384 = vpack.c.b16 %v2369, %v2366
  %v2385 = vpack.c.b16 %v2370, %v2367
  %v2386 = vpack.c.b16 %v2371, %v2368
  %v2387 = vpack.c.b16 %v2375, %v2372
  %v2388 = vpack.c.b16 %v2376, %v2373
  %v2389 = vpack.c.b16 %v2377, %v2374
  %v2399 = vsel %vm1455, %v2380, 0
  %v2402 = vsel %vm1455, %v2383, 0
  %v2405 = vsel %vm1455, %v2386, 0
  %v2408 = vsel %vm1455, %v2389, 0
  %2410 = vmatprep.subr.bf16.mxu0 %v1975
  %2411 = vmatpush1.bf16.msra.mxu0 %v1974
  %2412 = vmatprep.subr.bf16.mxu0 %v1971
  %2413 = vmatpush1.bf16.msra.mxu0 %v1970
  %2414 = vmatprep.subr.bf16.mxu0 %v1903
  %2415 = vmatpush1.bf16.msra.mxu0 %v1902
  %2416 = vmatprep.subr.bf16.mxu0 %v1899
  %2417 = vmatpush1.bf16.msra.mxu0 %v1898
  %2418 = vmatprep.subr.bf16.mxu0 %v1831
  %2419 = vmatpush1.bf16.msra.mxu0 %v1830
  %2420 = vmatprep.subr.bf16.mxu0 %v1827
  %2421 = vmatpush1.bf16.msra.mxu0 %v1826
  %2422 = vmatprep.subr.bf16.mxu0 %v1759
  %2423 = vmatpush1.bf16.msra.mxu0 %v1758
  %2424 = vmatprep.subr.bf16.mxu0 %v1755
  %2425 = vmatpush1.bf16.msra.mxu0 %v1754
  %2426 = vmatprep.subr.bf16.mxu0 %v2199
  %2427 = vmatpush2.bf16.msra.mxu0 %v2198
  %2428 = vmatprep.subr.bf16.mxu0 %v2195
  %2429 = vmatpush2.bf16.msra.mxu0 %v2194
  %2430 = vmatprep.subr.bf16.mxu0 %v2127
  %2431 = vmatpush2.bf16.msra.mxu0 %v2126
  %2432 = vmatprep.subr.bf16.mxu0 %v2123
  %2433 = vmatpush2.bf16.msra.mxu0 %v2122
  %2434 = vmatprep.subr.bf16.mxu0 %v2055
  %2435 = vmatpush2.bf16.msra.mxu0 %v2054
  %2436 = vmatprep.subr.bf16.mxu0 %v2051
  %2437 = vmatpush2.bf16.msra.mxu0 %v2050
  %2438 = vmatprep.subr.bf16.mxu0 %v1983
  %2439 = vmatpush2.bf16.msra.mxu0 %v1982
  %2440 = vmatprep.subr.bf16.mxu0 %v1979
  %2441 = vmatpush2.bf16.msra.mxu0 %v1978
  %2442 = vmatprep.mubr.bf16.mxu0 %v2379
  %2443 = vmatmul.mubr.bf16.gmra.mxu0 %v2378
  %v2444 = vpop.f32.mrf.mxu0
  %v2445 = vadd.f32 %v2301, %v2444
  %v2446 = vpop.f32.mrf.mxu0
  %v2447 = vadd.f32 %v2301, %v2446
  %v2448 = vpop.f32.mrf.mxu0
  %v2449 = vadd.f32 %v2306, %v2448
  %v2450 = vpop.f32.mrf.mxu0
  %v2451 = vadd.f32 %v2306, %v2450
  %2452 = vmatprep.mubr.bf16.mxu0 %v2382
  %2453 = vmatmul.mubr.bf16.gmra.mxu0 %v2381
  %v2454 = vpop.f32.mrf.mxu0
  %v2455 = vadd.f32 %v2311, %v2454
  %v2456 = vpop.f32.mrf.mxu0
  %v2457 = vadd.f32 %v2311, %v2456
  %v2458 = vpop.f32.mrf.mxu0
  %v2459 = vadd.f32 %v2316, %v2458
  %v2460 = vpop.f32.mrf.mxu0
  %v2461 = vadd.f32 %v2316, %v2460
  %2462 = vmatprep.mubr.bf16.mxu0 %v2385
  %2463 = vmatmul.mubr.bf16.gmra.mxu0 %v2384
  %v2464 = vpop.f32.mrf.mxu0
  %v2465 = vadd.f32 %v2321, %v2464
  %v2466 = vpop.f32.mrf.mxu0
  %v2467 = vadd.f32 %v2321, %v2466
  %v2468 = vpop.f32.mrf.mxu0
  %v2469 = vadd.f32 %v2326, %v2468
  %v2470 = vpop.f32.mrf.mxu0
  %v2471 = vadd.f32 %v2326, %v2470
  %2472 = vmatprep.mubr.bf16.mxu0 %v2388
  %2473 = vmatmul.mubr.bf16.gmra.mxu0 %v2387
  %v2474 = vpop.f32.mrf.mxu0
  %v2475 = vadd.f32 %v2331, %v2474
  %v2476 = vpop.f32.mrf.mxu0
  %v2477 = vadd.f32 %v2331, %v2476
  %v2478 = vpop.f32.mrf.mxu0
  %v2479 = vadd.f32 %v2336, %v2478
  %v2480 = vpop.f32.mrf.mxu0
  %v2481 = vadd.f32 %v2336, %v2480
  %2482 = vdwg.mxu0
  %2483 = vmatprep.subr.bf16.mxu0 0
  %2484 = vmatpush1.bf16.msra.mxu0 0
  %2485 = vmatprep.subr.bf16.mxu0 0
  %2486 = vmatpush1.bf16.msra.mxu0 0
  %2487 = vmatprep.subr.bf16.mxu0 0
  %2488 = vmatpush1.bf16.msra.mxu0 0
  %2489 = vmatprep.subr.bf16.mxu0 0
  %2490 = vmatpush1.bf16.msra.mxu0 0
  %2491 = vmatprep.subr.bf16.mxu0 0
  %2492 = vmatpush1.bf16.msra.mxu0 0
  %2493 = vmatprep.subr.bf16.mxu0 0
  %2494 = vmatpush1.bf16.msra.mxu0 0
  %2495 = vmatprep.subr.bf16.mxu0 %v2271
  %2496 = vmatpush1.bf16.msra.mxu0 %v2270
  %2497 = vmatprep.subr.bf16.mxu0 %v2267
  %2498 = vmatpush1.bf16.msra.mxu0 %v2266
  %2499 = vmatprep.subr.bf16.mxu0 0
  %2500 = vmatpush2.bf16.msra.mxu0 0
  %2501 = vmatprep.subr.bf16.mxu0 0
  %2502 = vmatpush2.bf16.msra.mxu0 0
  %2503 = vmatprep.subr.bf16.mxu0 0
  %2504 = vmatpush2.bf16.msra.mxu0 0
  %2505 = vmatprep.subr.bf16.mxu0 0
  %2506 = vmatpush2.bf16.msra.mxu0 0
  %2507 = vmatprep.subr.bf16.mxu0 0
  %2508 = vmatpush2.bf16.msra.mxu0 0
  %2509 = vmatprep.subr.bf16.mxu0 0
  %2510 = vmatpush2.bf16.msra.mxu0 0
  %2511 = vmatprep.subr.bf16.mxu0 0
  %2512 = vmatpush2.bf16.msra.mxu0 0
  %2513 = vmatprep.subr.bf16.mxu0 0
  %2514 = vmatpush2.bf16.msra.mxu0 0
  %2515 = vmatprep.mubr.bf16.mxu0 0
  %2516 = vmatmul.mubr.bf16.gmra.mxu0 %v2399
  %v2517 = vpop.f32.mrf.mxu0
  %v2518 = vadd.f32 %v2445, %v2517
  %v2519 = vpop.f32.mrf.mxu0
  %v2520 = vadd.f32 %v2447, %v2519
  %v2521 = vpop.f32.mrf.mxu0
  %v2522 = vadd.f32 %v2449, %v2521
  %v2523 = vpop.f32.mrf.mxu0
  %v2524 = vadd.f32 %v2451, %v2523
  %2525 = vmatprep.mubr.bf16.mxu0 0
  %2526 = vmatmul.mubr.bf16.gmra.mxu0 %v2402
  %v2527 = vpop.f32.mrf.mxu0
  %v2528 = vadd.f32 %v2455, %v2527
  %v2529 = vpop.f32.mrf.mxu0
  %v2530 = vadd.f32 %v2457, %v2529
  %v2531 = vpop.f32.mrf.mxu0
  %v2532 = vadd.f32 %v2459, %v2531
  %v2533 = vpop.f32.mrf.mxu0
  %v2534 = vadd.f32 %v2461, %v2533
  %2535 = vmatprep.mubr.bf16.mxu0 0
  %2536 = vmatmul.mubr.bf16.gmra.mxu0 %v2405
  %v2537 = vpop.f32.mrf.mxu0
  %v2538 = vadd.f32 %v2465, %v2537
  %v2539 = vpop.f32.mrf.mxu0
  %v2540 = vadd.f32 %v2467, %v2539
  %v2541 = vpop.f32.mrf.mxu0
  %v2542 = vadd.f32 %v2469, %v2541
  %v2543 = vpop.f32.mrf.mxu0
  %v2544 = vadd.f32 %v2471, %v2543
  %2545 = vmatprep.mubr.bf16.mxu0 0
  %2546 = vmatmul.mubr.bf16.gmra.mxu0 %v2408
  %v2547 = vpop.f32.mrf.mxu0
  %v2548 = vadd.f32 %v2475, %v2547
  %v2549 = vpop.f32.mrf.mxu0
  %v2550 = vadd.f32 %v2477, %v2549
  %v2551 = vpop.f32.mrf.mxu0
  %v2552 = vadd.f32 %v2479, %v2551
  %v2553 = vpop.f32.mrf.mxu0
  %v2554 = vadd.f32 %v2481, %v2553
  %2555 = vdwg.mxu0
  %2556 = vmatprep.subr.bf16.mxu0 %v1977
  %2557 = vmatpush1.bf16.msra.mxu0 %v1976
  %2558 = vmatprep.subr.bf16.mxu0 %v1973
  %2559 = vmatpush1.bf16.msra.mxu0 %v1972
  %2560 = vmatprep.subr.bf16.mxu0 %v1905
  %2561 = vmatpush1.bf16.msra.mxu0 %v1904
  %2562 = vmatprep.subr.bf16.mxu0 %v1901
  %2563 = vmatpush1.bf16.msra.mxu0 %v1900
  %2564 = vmatprep.subr.bf16.mxu0 %v1833
  %2565 = vmatpush1.bf16.msra.mxu0 %v1832
  %2566 = vmatprep.subr.bf16.mxu0 %v1829
  %2567 = vmatpush1.bf16.msra.mxu0 %v1828
  %2568 = vmatprep.subr.bf16.mxu0 %v1761
  %2569 = vmatpush1.bf16.msra.mxu0 %v1760
  %2570 = vmatprep.subr.bf16.mxu0 %v1757
  %2571 = vmatpush1.bf16.msra.mxu0 %v1756
  %2572 = vmatprep.subr.bf16.mxu0 %v2201
  %2573 = vmatpush2.bf16.msra.mxu0 %v2200
  %2574 = vmatprep.subr.bf16.mxu0 %v2197
  %2575 = vmatpush2.bf16.msra.mxu0 %v2196
  %2576 = vmatprep.subr.bf16.mxu0 %v2129
  %2577 = vmatpush2.bf16.msra.mxu0 %v2128
  %2578 = vmatprep.subr.bf16.mxu0 %v2125
  %2579 = vmatpush2.bf16.msra.mxu0 %v2124
  %2580 = vmatprep.subr.bf16.mxu0 %v2057
  %2581 = vmatpush2.bf16.msra.mxu0 %v2056
  %2582 = vmatprep.subr.bf16.mxu0 %v2053
  %2583 = vmatpush2.bf16.msra.mxu0 %v2052
  %2584 = vmatprep.subr.bf16.mxu0 %v1985
  %2585 = vmatpush2.bf16.msra.mxu0 %v1984
  %2586 = vmatprep.subr.bf16.mxu0 %v1981
  %2587 = vmatpush2.bf16.msra.mxu0 %v1980
  %2588 = vmatprep.mubr.bf16.mxu0 %v2379
  %2589 = vmatmul.mubr.bf16.gmra.mxu0 %v2378
  %v2590 = vpop.f32.mrf.mxu0
  %v2591 = vadd.f32 %v2301, %v2590
  %v2592 = vpop.f32.mrf.mxu0
  %v2593 = vadd.f32 %v2301, %v2592
  %v2594 = vpop.f32.mrf.mxu0
  %v2595 = vadd.f32 %v2306, %v2594
  %v2596 = vpop.f32.mrf.mxu0
  %v2597 = vadd.f32 %v2306, %v2596
  %2598 = vmatprep.mubr.bf16.mxu0 %v2382
  %2599 = vmatmul.mubr.bf16.gmra.mxu0 %v2381
  %v2600 = vpop.f32.mrf.mxu0
  %v2601 = vadd.f32 %v2311, %v2600
  %v2602 = vpop.f32.mrf.mxu0
  %v2603 = vadd.f32 %v2311, %v2602
  %v2604 = vpop.f32.mrf.mxu0
  %v2605 = vadd.f32 %v2316, %v2604
  %v2606 = vpop.f32.mrf.mxu0
  %v2607 = vadd.f32 %v2316, %v2606
  %2608 = vmatprep.mubr.bf16.mxu0 %v2385
  %2609 = vmatmul.mubr.bf16.gmra.mxu0 %v2384
  %v2610 = vpop.f32.mrf.mxu0
  %v2611 = vadd.f32 %v2321, %v2610
  %v2612 = vpop.f32.mrf.mxu0
  %v2613 = vadd.f32 %v2321, %v2612
  %v2614 = vpop.f32.mrf.mxu0
  %v2615 = vadd.f32 %v2326, %v2614
  %v2616 = vpop.f32.mrf.mxu0
  %v2617 = vadd.f32 %v2326, %v2616
  %2618 = vmatprep.mubr.bf16.mxu0 %v2388
  %2619 = vmatmul.mubr.bf16.gmra.mxu0 %v2387
  %v2620 = vpop.f32.mrf.mxu0
  %v2621 = vadd.f32 %v2331, %v2620
  %v2622 = vpop.f32.mrf.mxu0
  %v2623 = vadd.f32 %v2331, %v2622
  %v2624 = vpop.f32.mrf.mxu0
  %v2625 = vadd.f32 %v2336, %v2624
  %v2626 = vpop.f32.mrf.mxu0
  %v2627 = vadd.f32 %v2336, %v2626
  %2628 = vdwg.mxu0
  %2629 = vmatprep.subr.bf16.mxu0 0
  %2630 = vmatpush1.bf16.msra.mxu0 0
  %2631 = vmatprep.subr.bf16.mxu0 0
  %2632 = vmatpush1.bf16.msra.mxu0 0
  %2633 = vmatprep.subr.bf16.mxu0 0
  %2634 = vmatpush1.bf16.msra.mxu0 0
  %2635 = vmatprep.subr.bf16.mxu0 0
  %2636 = vmatpush1.bf16.msra.mxu0 0
  %2637 = vmatprep.subr.bf16.mxu0 0
  %2638 = vmatpush1.bf16.msra.mxu0 0
  %2639 = vmatprep.subr.bf16.mxu0 0
  %2640 = vmatpush1.bf16.msra.mxu0 0
  %2641 = vmatprep.subr.bf16.mxu0 %v2273
  %2642 = vmatpush1.bf16.msra.mxu0 %v2272
  %2643 = vmatprep.subr.bf16.mxu0 %v2269
  %2644 = vmatpush1.bf16.msra.mxu0 %v2268
  %2645 = vmatprep.subr.bf16.mxu0 0
  %2646 = vmatpush2.bf16.msra.mxu0 0
  %2647 = vmatprep.subr.bf16.mxu0 0
  %2648 = vmatpush2.bf16.msra.mxu0 0
  %2649 = vmatprep.subr.bf16.mxu0 0
  %2650 = vmatpush2.bf16.msra.mxu0 0
  %2651 = vmatprep.subr.bf16.mxu0 0
  %2652 = vmatpush2.bf16.msra.mxu0 0
  %2653 = vmatprep.subr.bf16.mxu0 0
  %2654 = vmatpush2.bf16.msra.mxu0 0
  %2655 = vmatprep.subr.bf16.mxu0 0
  %2656 = vmatpush2.bf16.msra.mxu0 0
  %2657 = vmatprep.subr.bf16.mxu0 0
  %2658 = vmatpush2.bf16.msra.mxu0 0
  %2659 = vmatprep.subr.bf16.mxu0 0
  %2660 = vmatpush2.bf16.msra.mxu0 0
  %2661 = vmatprep.mubr.bf16.mxu0 0
  %2662 = vmatmul.mubr.bf16.gmra.mxu0 %v2399
  %v2663 = vpop.f32.mrf.mxu0
  %v2664 = vadd.f32 %v2591, %v2663
  %v2665 = vpop.f32.mrf.mxu0
  %v2666 = vadd.f32 %v2593, %v2665
  %v2667 = vpop.f32.mrf.mxu0
  %v2668 = vadd.f32 %v2595, %v2667
  %v2669 = vpop.f32.mrf.mxu0
  %v2670 = vadd.f32 %v2597, %v2669
  %2671 = vmatprep.mubr.bf16.mxu0 0
  %2672 = vmatmul.mubr.bf16.gmra.mxu0 %v2402
  %v2673 = vpop.f32.mrf.mxu0
  %v2674 = vadd.f32 %v2601, %v2673
  %v2675 = vpop.f32.mrf.mxu0
  %v2676 = vadd.f32 %v2603, %v2675
  %v2677 = vpop.f32.mrf.mxu0
  %v2678 = vadd.f32 %v2605, %v2677
  %v2679 = vpop.f32.mrf.mxu0
  %v2680 = vadd.f32 %v2607, %v2679
  %2681 = vmatprep.mubr.bf16.mxu0 0
  %2682 = vmatmul.mubr.bf16.gmra.mxu0 %v2405
  %v2683 = vpop.f32.mrf.mxu0
  %v2684 = vadd.f32 %v2611, %v2683
  %v2685 = vpop.f32.mrf.mxu0
  %v2686 = vadd.f32 %v2613, %v2685
  %v2687 = vpop.f32.mrf.mxu0
  %v2688 = vadd.f32 %v2615, %v2687
  %v2689 = vpop.f32.mrf.mxu0
  %v2690 = vadd.f32 %v2617, %v2689
  %2691 = vmatprep.mubr.bf16.mxu0 0
  %2692 = vmatmul.mubr.bf16.gmra.mxu0 %v2408
  %v2693 = vpop.f32.mrf.mxu0
  %v2694 = vadd.f32 %v2621, %v2693
  %v2695 = vpop.f32.mrf.mxu0
  %v2696 = vadd.f32 %v2623, %v2695
  %v2697 = vpop.f32.mrf.mxu0
  %v2698 = vadd.f32 %v2625, %v2697
  %v2699 = vpop.f32.mrf.mxu0
  %v2700 = vadd.f32 %v2627, %v2699
  %2701 = vdwg.mxu0
  %v2702 = vmax.f32 %v2518, 0.0
  %v2703 = vmax.f32 %v2520, 0.0
  %v2704 = vmax.f32 %v2664, 0.0
  %v2705 = vmax.f32 %v2666, 0.0
  %v2706 = vmax.f32 %v2522, 0.0
  %v2707 = vmax.f32 %v2524, 0.0
  %v2708 = vmax.f32 %v2668, 0.0
  %v2709 = vmax.f32 %v2670, 0.0
  %v2710 = vmax.f32 %v2528, 0.0
  %v2711 = vmax.f32 %v2530, 0.0
  %v2712 = vmax.f32 %v2674, 0.0
  %v2713 = vmax.f32 %v2676, 0.0
  %v2714 = vmax.f32 %v2532, 0.0
  %v2715 = vmax.f32 %v2534, 0.0
  %v2716 = vmax.f32 %v2678, 0.0
  %v2717 = vmax.f32 %v2680, 0.0
  %v2718 = vmax.f32 %v2538, 0.0
  %v2719 = vmax.f32 %v2540, 0.0
  %v2720 = vmax.f32 %v2684, 0.0
  %v2721 = vmax.f32 %v2686, 0.0
  %v2722 = vmax.f32 %v2542, 0.0
  %v2723 = vmax.f32 %v2544, 0.0
  %v2724 = vmax.f32 %v2688, 0.0
  %v2725 = vmax.f32 %v2690, 0.0
  %v2726 = vmax.f32 %v2548, 0.0
  %v2727 = vmax.f32 %v2550, 0.0
  %v2728 = vmax.f32 %v2694, 0.0
  %v2729 = vmax.f32 %v2696, 0.0
  %v2730 = vmax.f32 %v2552, 0.0
  %v2731 = vmax.f32 %v2554, 0.0
  %v2732 = vmax.f32 %v2698, 0.0
  %v2733 = vmax.f32 %v2700, 0.0
  %v2734 = vpack.c.bf16 %v2706, %v2702
  %v2735 = vpack.c.bf16 %v2707, %v2703
  %v2736 = vpack.c.bf16 %v2708, %v2704
  %v2737 = vpack.c.bf16 %v2709, %v2705
  %v2738 = vpack.c.bf16 %v2714, %v2710
  %v2739 = vpack.c.bf16 %v2715, %v2711
  %v2740 = vpack.c.bf16 %v2716, %v2712
  %v2741 = vpack.c.bf16 %v2717, %v2713
  %v2742 = vpack.c.bf16 %v2722, %v2718
  %v2743 = vpack.c.bf16 %v2723, %v2719
  %v2744 = vpack.c.bf16 %v2724, %v2720
  %v2745 = vpack.c.bf16 %v2725, %v2721
  %v2746 = vpack.c.bf16 %v2730, %v2726
  %v2747 = vpack.c.bf16 %v2731, %v2727
  %v2748 = vpack.c.bf16 %v2732, %v2728
  %v2749 = vpack.c.bf16 %v2733, %v2729
  %v2750 = vld [vmem:[%s7] sm:$0xf]
  %v2751 = vld [vmem:[%s7 + $0x4] sm:$0xf]
  %v2752 = vld [vmem:[%s7 + $0x8] sm:$0xf]
  %v2753 = vld [vmem:[%s7 + $0xc] sm:$0xf]
  %v2754 = vld [vmem:[%s7 + $0x10] sm:$0xf]
  %v2755 = vld [vmem:[%s7 + $0x14] sm:$0xf]
  %v2756 = vld [vmem:[%s7 + $0x18] sm:$0xf]
  %v2757 = vld [vmem:[%s7 + $0x1c] sm:$0xf]
  %v2758 = vld [vmem:[%s7 + $0x20] sm:$0xf]
  %v2759 = vld [vmem:[%s7 + $0x24] sm:$0xf]
  %v2760 = vld [vmem:[%s7 + $0x28] sm:$0xf]
  %v2761 = vld [vmem:[%s7 + $0x2c] sm:$0xf]
  %v2762 = vld [vmem:[%s7 + $0x30] sm:$0xf]
  %v2763 = vld [vmem:[%s7 + $0x34] sm:$0xf]
  %v2764 = vld [vmem:[%s7 + $0x38] sm:$0xf]
  %v2765 = vld [vmem:[%s7 + $0x3c] sm:$0xf]
  %v2766 = vld [vmem:[%s7 + $0x40] sm:$0xf]
  %v2767 = vld [vmem:[%s7 + $0x44] sm:$0xf]
  %v2768 = vld [vmem:[%s7 + $0x48] sm:$0xf]
  %v2769 = vld [vmem:[%s7 + $0x4c] sm:$0xf]
  %v2770 = vld [vmem:[%s7 + $0x50] sm:$0xf]
  %v2771 = vld [vmem:[%s7 + $0x54] sm:$0xf]
  %v2772 = vld [vmem:[%s7 + $0x58] sm:$0xf]
  %v2773 = vld [vmem:[%s7 + $0x5c] sm:$0xf]
  %v2774 = vld [vmem:[%s7 + $0x60] sm:$0xf]
  %v2775 = vld [vmem:[%s7 + $0x64] sm:$0xf]
  %v2776 = vld [vmem:[%s7 + $0x68] sm:$0xf]
  %v2777 = vld [vmem:[%s7 + $0x6c] sm:$0xf]
  %v2778 = vld [vmem:[%s7 + $0x70] sm:$0xf]
  %v2779 = vld [vmem:[%s7 + $0x74] sm:$0xf]
  %v2780 = vld [vmem:[%s7 + $0x78] sm:$0xf]
  %v2781 = vld [vmem:[%s7 + $0x7c] sm:$0xf]
  %v2782 = vld [vmem:[%s7 + $0x80] sm:$0xf]
  %v2783 = vld [vmem:[%s7 + $0x84] sm:$0xf]
  %v2784 = vld [vmem:[%s7 + $0x88] sm:$0xf]
  %v2785 = vld [vmem:[%s7 + $0x8c] sm:$0xf]
  %v2786 = vld [vmem:[%s7 + $0x90] sm:$0xf]
  %v2787 = vld [vmem:[%s7 + $0x94] sm:$0xf]
  %v2788 = vld [vmem:[%s7 + $0x98] sm:$0xf]
  %v2789 = vld [vmem:[%s7 + $0x9c] sm:$0xf]
  %v2790 = vld [vmem:[%s7 + $0xa0] sm:$0xf]
  %v2791 = vld [vmem:[%s7 + $0xa4] sm:$0xf]
  %v2792 = vld [vmem:[%s7 + $0xa8] sm:$0xf]
  %v2793 = vld [vmem:[%s7 + $0xac] sm:$0xf]
  %v2794 = vld [vmem:[%s7 + $0xb0] sm:$0xf]
  %v2795 = vld [vmem:[%s7 + $0xb4] sm:$0xf]
  %v2796 = vld [vmem:[%s7 + $0xb8] sm:$0xf]
  %v2797 = vld [vmem:[%s7 + $0xbc] sm:$0xf]
  %v2798 = vld [vmem:[%s7 + $0xc0] sm:$0xf]
  %v2799 = vld [vmem:[%s7 + $0xc4] sm:$0xf]
  %v2800 = vld [vmem:[%s7 + $0xc8] sm:$0xf]
  %v2801 = vld [vmem:[%s7 + $0xcc] sm:$0xf]
  %v2802 = vld [vmem:[%s7 + $0xd0] sm:$0xf]
  %v2803 = vld [vmem:[%s7 + $0xd4] sm:$0xf]
  %v2804 = vld [vmem:[%s7 + $0xd8] sm:$0xf]
  %v2805 = vld [vmem:[%s7 + $0xdc] sm:$0xf]
  %v2806 = vld [vmem:[%s7 + $0xe0] sm:$0xf]
  %v2807 = vld [vmem:[%s7 + $0xe4] sm:$0xf]
  %v2808 = vld [vmem:[%s7 + $0xe8] sm:$0xf]
  %v2809 = vld [vmem:[%s7 + $0xec] sm:$0xf]
  %v2810 = vld [vmem:[%s7 + $0xf0] sm:$0xf]
  %v2811 = vld [vmem:[%s7 + $0xf4] sm:$0xf]
  %v2812 = vld [vmem:[%s7 + $0xf8] sm:$0xf]
  %v2813 = vld [vmem:[%s7 + $0xfc] sm:$0xf]
  %v2878 = vunpack.c.l.b16 %v2750
  %v2879 = vunpack.c.l.b16 %v2751
  %v2880 = vunpack.c.l.b16 %v2752
  %v2881 = vunpack.c.l.b16 %v2753
  %v2882 = vunpack.c.l.b16 %v2754
  %v2883 = vunpack.c.l.b16 %v2755
  %v2884 = vunpack.c.l.b16 %v2756
  %v2885 = vunpack.c.l.b16 %v2757
  %v2886 = vunpack.c.l.b16 %v2758
  %v2887 = vunpack.c.l.b16 %v2759
  %v2888 = vunpack.c.l.b16 %v2760
  %v2889 = vunpack.c.l.b16 %v2761
  %v2890 = vunpack.c.l.b16 %v2762
  %v2891 = vunpack.c.l.b16 %v2763
  %v2892 = vunpack.c.l.b16 %v2764
  %v2893 = vunpack.c.l.b16 %v2765
  %v2894 = vunpack.c.l.b16 %v2766
  %v2895 = vunpack.c.l.b16 %v2767
  %v2896 = vunpack.c.l.b16 %v2768
  %v2897 = vunpack.c.l.b16 %v2769
  %v2898 = vunpack.c.l.b16 %v2770
  %v2899 = vunpack.c.l.b16 %v2771
  %v2900 = vunpack.c.l.b16 %v2772
  %v2901 = vunpack.c.l.b16 %v2773
  %v2902 = vunpack.c.l.b16 %v2774
  %v2903 = vunpack.c.l.b16 %v2775
  %v2904 = vunpack.c.l.b16 %v2776
  %v2905 = vunpack.c.l.b16 %v2777
  %v2906 = vunpack.c.l.b16 %v2778
  %v2907 = vunpack.c.l.b16 %v2779
  %v2908 = vunpack.c.l.b16 %v2780
  %v2909 = vunpack.c.l.b16 %v2781
  %v2910 = vunpack.c.l.b16 %v2782
  %v2911 = vunpack.c.l.b16 %v2783
  %v2912 = vunpack.c.l.b16 %v2784
  %v2913 = vunpack.c.l.b16 %v2785
  %v2914 = vunpack.c.l.b16 %v2786
  %v2915 = vunpack.c.l.b16 %v2787
  %v2916 = vunpack.c.l.b16 %v2788
  %v2917 = vunpack.c.l.b16 %v2789
  %v2918 = vunpack.c.l.b16 %v2790
  %v2919 = vunpack.c.l.b16 %v2791
  %v2920 = vunpack.c.l.b16 %v2792
  %v2921 = vunpack.c.l.b16 %v2793
  %v2922 = vunpack.c.l.b16 %v2794
  %v2923 = vunpack.c.l.b16 %v2795
  %v2924 = vunpack.c.l.b16 %v2796
  %v2925 = vunpack.c.l.b16 %v2797
  %v2926 = vunpack.c.l.b16 %v2798
  %v2927 = vunpack.c.l.b16 %v2799
  %v2928 = vunpack.c.l.b16 %v2800
  %v2929 = vunpack.c.l.b16 %v2801
  %v2930 = vunpack.c.l.b16 %v2802
  %v2931 = vunpack.c.l.b16 %v2803
  %v2932 = vunpack.c.l.b16 %v2804
  %v2933 = vunpack.c.l.b16 %v2805
  %v2934 = vunpack.c.l.b16 %v2806
  %v2935 = vunpack.c.l.b16 %v2807
  %v2936 = vunpack.c.l.b16 %v2808
  %v2937 = vunpack.c.l.b16 %v2809
  %v2938 = vunpack.c.l.b16 %v2810
  %v2939 = vunpack.c.l.b16 %v2811
  %v2940 = vunpack.c.l.b16 %v2812
  %v2941 = vunpack.c.l.b16 %v2813
  %v2942 = vpack.c.b16 %v2879, %v2878
  %v2943 = vpack.c.b16 %v2881, %v2880
  %v2944 = vpack.c.b16 %v2883, %v2882
  %v2945 = vpack.c.b16 %v2885, %v2884
  %v2946 = vpack.c.b16 %v2887, %v2886
  %v2947 = vpack.c.b16 %v2889, %v2888
  %v2948 = vpack.c.b16 %v2891, %v2890
  %v2949 = vpack.c.b16 %v2893, %v2892
  %v2950 = vpack.c.b16 %v2895, %v2894
  %v2951 = vpack.c.b16 %v2897, %v2896
  %v2952 = vpack.c.b16 %v2899, %v2898
  %v2953 = vpack.c.b16 %v2901, %v2900
  %v2954 = vpack.c.b16 %v2903, %v2902
  %v2955 = vpack.c.b16 %v2905, %v2904
  %v2956 = vpack.c.b16 %v2907, %v2906
  %v2957 = vpack.c.b16 %v2909, %v2908
  %v2958 = vpack.c.b16 %v2911, %v2910
  %v2959 = vpack.c.b16 %v2913, %v2912
  %v2960 = vpack.c.b16 %v2915, %v2914
  %v2961 = vpack.c.b16 %v2917, %v2916
  %v2962 = vpack.c.b16 %v2919, %v2918
  %v2963 = vpack.c.b16 %v2921, %v2920
  %v2964 = vpack.c.b16 %v2923, %v2922
  %v2965 = vpack.c.b16 %v2925, %v2924
  %v2966 = vpack.c.b16 %v2927, %v2926
  %v2967 = vpack.c.b16 %v2929, %v2928
  %v2968 = vpack.c.b16 %v2931, %v2930
  %v2969 = vpack.c.b16 %v2933, %v2932
  %v2970 = vpack.c.b16 %v2935, %v2934
  %v2971 = vpack.c.b16 %v2937, %v2936
  %v2972 = vpack.c.b16 %v2939, %v2938
  %v2973 = vpack.c.b16 %v2941, %v2940
  %3006 = vmatprep.subr.bf16.mxu0 0
  %3007 = vmatpush1.bf16.msra.mxu0 %v2949
  %3008 = vmatprep.subr.bf16.mxu0 0
  %3009 = vmatpush1.bf16.msra.mxu0 %v2948
  %3010 = vmatprep.subr.bf16.mxu0 0
  %3011 = vmatpush1.bf16.msra.mxu0 %v2947
  %3012 = vmatprep.subr.bf16.mxu0 0
  %3013 = vmatpush1.bf16.msra.mxu0 %v2946
  %3014 = vmatprep.subr.bf16.mxu0 0
  %3015 = vmatpush1.bf16.msra.mxu0 %v2945
  %3016 = vmatprep.subr.bf16.mxu0 0
  %3017 = vmatpush1.bf16.msra.mxu0 %v2944
  %3018 = vmatprep.subr.bf16.mxu0 0
  %3019 = vmatpush1.bf16.msra.mxu0 %v2943
  %3020 = vmatprep.subr.bf16.mxu0 0
  %3021 = vmatpush1.bf16.msra.mxu0 %v2942
  %3022 = vmatprep.subr.bf16.mxu0 0
  %3023 = vmatpush2.bf16.msra.mxu0 %v2957
  %3024 = vmatprep.subr.bf16.mxu0 0
  %3025 = vmatpush2.bf16.msra.mxu0 %v2956
  %3026 = vmatprep.subr.bf16.mxu0 0
  %3027 = vmatpush2.bf16.msra.mxu0 %v2955
  %3028 = vmatprep.subr.bf16.mxu0 0
  %3029 = vmatpush2.bf16.msra.mxu0 %v2954
  %3030 = vmatprep.subr.bf16.mxu0 0
  %3031 = vmatpush2.bf16.msra.mxu0 %v2953
  %3032 = vmatprep.subr.bf16.mxu0 0
  %3033 = vmatpush2.bf16.msra.mxu0 %v2952
  %3034 = vmatprep.subr.bf16.mxu0 0
  %3035 = vmatpush2.bf16.msra.mxu0 %v2951
  %3036 = vmatprep.subr.bf16.mxu0 0
  %3037 = vmatpush2.bf16.msra.mxu0 %v2950
  %3038 = vmatprep.mubr.bf16.mxu0 %v2735
  %3039 = vmatmul.mubr.bf16.gmra.mxu0 %v2734
  %v3040 = vpop.f32.mrf.mxu0
  %v3041 = vadd.f32 0.0, %v3040
  %v3042 = vpop.f32.mrf.mxu0
  %v3043 = vpop.f32.mrf.mxu0
  %v3044 = vadd.f32 0.0, %v3043
  %v3045 = vpop.f32.mrf.mxu0
  %3046 = vmatprep.mubr.bf16.mxu0 %v2739
  %3047 = vmatmul.mubr.bf16.gmra.mxu0 %v2738
  %v3048 = vpop.f32.mrf.mxu0
  %v3049 = vadd.f32 0.0, %v3048
  %v3050 = vpop.f32.mrf.mxu0
  %v3051 = vpop.f32.mrf.mxu0
  %v3052 = vadd.f32 0.0, %v3051
  %v3053 = vpop.f32.mrf.mxu0
  %3054 = vmatprep.mubr.bf16.mxu0 %v2743
  %3055 = vmatmul.mubr.bf16.gmra.mxu0 %v2742
  %v3056 = vpop.f32.mrf.mxu0
  %v3057 = vadd.f32 0.0, %v3056
  %v3058 = vpop.f32.mrf.mxu0
  %v3059 = vpop.f32.mrf.mxu0
  %v3060 = vadd.f32 0.0, %v3059
  %v3061 = vpop.f32.mrf.mxu0
  %3062 = vmatprep.mubr.bf16.mxu0 %v2747
  %3063 = vmatmul.mubr.bf16.gmra.mxu0 %v2746
  %v3064 = vpop.f32.mrf.mxu0
  %v3065 = vadd.f32 0.0, %v3064
  %v3066 = vpop.f32.mrf.mxu0
  %v3067 = vpop.f32.mrf.mxu0
  %v3068 = vadd.f32 0.0, %v3067
  %v3069 = vpop.f32.mrf.mxu0
  %3070 = vdwg.mxu0
  %3071 = vmatprep.subr.bf16.mxu0 0
  %3072 = vmatpush1.bf16.msra.mxu0 %v2965
  %3073 = vmatprep.subr.bf16.mxu0 0
  %3074 = vmatpush1.bf16.msra.mxu0 %v2964
  %3075 = vmatprep.subr.bf16.mxu0 0
  %3076 = vmatpush1.bf16.msra.mxu0 %v2963
  %3077 = vmatprep.subr.bf16.mxu0 0
  %3078 = vmatpush1.bf16.msra.mxu0 %v2962
  %3079 = vmatprep.subr.bf16.mxu0 0
  %3080 = vmatpush1.bf16.msra.mxu0 %v2961
  %3081 = vmatprep.subr.bf16.mxu0 0
  %3082 = vmatpush1.bf16.msra.mxu0 %v2960
  %3083 = vmatprep.subr.bf16.mxu0 0
  %3084 = vmatpush1.bf16.msra.mxu0 %v2959
  %3085 = vmatprep.subr.bf16.mxu0 0
  %3086 = vmatpush1.bf16.msra.mxu0 %v2958
  %3087 = vmatprep.subr.bf16.mxu0 0
  %3088 = vmatpush2.bf16.msra.mxu0 %v2973
  %3089 = vmatprep.subr.bf16.mxu0 0
  %3090 = vmatpush2.bf16.msra.mxu0 %v2972
  %3091 = vmatprep.subr.bf16.mxu0 0
  %3092 = vmatpush2.bf16.msra.mxu0 %v2971
  %3093 = vmatprep.subr.bf16.mxu0 0
  %3094 = vmatpush2.bf16.msra.mxu0 %v2970
  %3095 = vmatprep.subr.bf16.mxu0 0
  %3096 = vmatpush2.bf16.msra.mxu0 %v2969
  %3097 = vmatprep.subr.bf16.mxu0 0
  %3098 = vmatpush2.bf16.msra.mxu0 %v2968
  %3099 = vmatprep.subr.bf16.mxu0 0
  %3100 = vmatpush2.bf16.msra.mxu0 %v2967
  %3101 = vmatprep.subr.bf16.mxu0 0
  %3102 = vmatpush2.bf16.msra.mxu0 %v2966
  %3103 = vmatprep.mubr.bf16.mxu0 %v2737
  %3104 = vmatmul.mubr.bf16.gmra.mxu0 %v2736
  %v3105 = vpop.f32.mrf.mxu0
  %v3106 = vadd.f32 %v3041, %v3105
  %v3107 = vpop.f32.mrf.mxu0
  %v3108 = vpop.f32.mrf.mxu0
  %v3109 = vadd.f32 %v3044, %v3108
  %v3110 = vpop.f32.mrf.mxu0
  %3111 = vmatprep.mubr.bf16.mxu0 %v2741
  %3112 = vmatmul.mubr.bf16.gmra.mxu0 %v2740
  %v3113 = vpop.f32.mrf.mxu0
  %v3114 = vadd.f32 %v3049, %v3113
  %v3115 = vpop.f32.mrf.mxu0
  %v3116 = vpop.f32.mrf.mxu0
  %v3117 = vadd.f32 %v3052, %v3116
  %v3118 = vpop.f32.mrf.mxu0
  %3119 = vmatprep.mubr.bf16.mxu0 %v2745
  %3120 = vmatmul.mubr.bf16.gmra.mxu0 %v2744
  %v3121 = vpop.f32.mrf.mxu0
  %v3122 = vadd.f32 %v3057, %v3121
  %v3123 = vpop.f32.mrf.mxu0
  %v3124 = vpop.f32.mrf.mxu0
  %v3125 = vadd.f32 %v3060, %v3124
  %v3126 = vpop.f32.mrf.mxu0
  %3127 = vmatprep.mubr.bf16.mxu0 %v2749
  %3128 = vmatmul.mubr.bf16.gmra.mxu0 %v2748
  %v3129 = vpop.f32.mrf.mxu0
  %v3130 = vadd.f32 %v3065, %v3129
  %v3131 = vpop.f32.mrf.mxu0
  %v3132 = vpop.f32.mrf.mxu0
  %v3133 = vadd.f32 %v3068, %v3132
  %v3134 = vpop.f32.mrf.mxu0
  %3135 = vdwg.mxu0
  %3136 = vrot.lane.b32.xlu0 %v3106, 9
  %v3137 = vpop.permute.xlu0 %3136
  %3138 = vrot.lane.b32.xlu0 %v3109, 9
  %v3139 = vpop.permute.xlu0 %3138
  %3140 = vrot.lane.b32.xlu0 %v3114, 9
  %v3141 = vpop.permute.xlu0 %3140
  %3142 = vrot.lane.b32.xlu0 %v3117, 9
  %v3143 = vpop.permute.xlu0 %3142
  %3144 = vrot.lane.b32.xlu0 %v3122, 9
  %v3145 = vpop.permute.xlu0 %3144
  %3146 = vrot.lane.b32.xlu0 %v3125, 9
  %v3147 = vpop.permute.xlu0 %3146
  %3148 = vrot.lane.b32.xlu0 %v3130, 9
  %v3149 = vpop.permute.xlu0 %3148
  %3150 = vrot.lane.b32.xlu0 %v3133, 9
  %v3151 = vpop.permute.xlu0 %3150
  %v3152 = vld [vmem:[%s5] sm:$0x1]
  %v3154 = vlaneseq
  %v3155 = vshrl.u32 %v3154, 7
  %v3156 = vsub.s32 0, %v3155
  %v3157 = vrot.slane %v3152, %v3156
  %v3159 = vmul.f32 %v3137, %v3157
  %v3160 = vmul.f32 %v3139, %v3157
  %v3161 = vmul.f32 %v3141, %v3157
  %v3162 = vmul.f32 %v3143, %v3157
  %v3163 = vmul.f32 %v3145, %v3157
  %v3164 = vmul.f32 %v3147, %v3157
  %v3165 = vmul.f32 %v3149, %v3157
  %v3166 = vmul.f32 %v3151, %v3157
  %v3167 = vpack.c.bf16 %v3160, %v3159
  %v3168 = vpack.c.bf16 %v3162, %v3161
  %v3169 = vpack.c.bf16 %v3164, %v3163
  %v3170 = vpack.c.bf16 %v3166, %v3165
  %3171 = vrot.lane.b32.xlu0 %v3106, 8
  %v3172 = vpop.permute.xlu0 %3171
  %3173 = vrot.lane.b32.xlu0 %v3109, 8
  %v3174 = vpop.permute.xlu0 %3173
  %3175 = vrot.lane.b32.xlu0 %v3114, 8
  %v3176 = vpop.permute.xlu0 %3175
  %3177 = vrot.lane.b32.xlu0 %v3117, 8
  %v3178 = vpop.permute.xlu0 %3177
  %3179 = vrot.lane.b32.xlu0 %v3122, 8
  %v3180 = vpop.permute.xlu0 %3179
  %3181 = vrot.lane.b32.xlu0 %v3125, 8
  %v3182 = vpop.permute.xlu0 %3181
  %3183 = vrot.lane.b32.xlu0 %v3130, 8
  %v3184 = vpop.permute.xlu0 %3183
  %3185 = vrot.lane.b32.xlu0 %v3133, 8
  %v3186 = vpop.permute.xlu0 %3185
  %s3187 = scalar_lea.vmem %s5, 1
  %v3188 = vld [vmem:[%s3187] sm:$0x1]
  %v3190 = vlaneseq
  %v3191 = vshrl.u32 %v3190, 7
  %v3192 = vsub.s32 0, %v3191
  %v3193 = vrot.slane %v3188, %v3192
  %v3195 = vmul.f32 %v3172, %v3193
  %v3196 = vmul.f32 %v3174, %v3193
  %v3197 = vmul.f32 %v3176, %v3193
  %v3198 = vmul.f32 %v3178, %v3193
  %v3199 = vmul.f32 %v3180, %v3193
  %v3200 = vmul.f32 %v3182, %v3193
  %v3201 = vmul.f32 %v3184, %v3193
  %v3202 = vmul.f32 %v3186, %v3193
  %v3203 = vpack.c.bf16 %v3196, %v3195
  %v3204 = vpack.c.bf16 %v3198, %v3197
  %v3205 = vpack.c.bf16 %v3200, %v3199
  %v3206 = vpack.c.bf16 %v3202, %v3201
  %3207 = vrot.lane.b32.xlu0 %v3106, 7
  %v3208 = vpop.permute.xlu0 %3207
  %3209 = vrot.lane.b32.xlu0 %v3109, 7
  %v3210 = vpop.permute.xlu0 %3209
  %3211 = vrot.lane.b32.xlu0 %v3114, 7
  %v3212 = vpop.permute.xlu0 %3211
  %3213 = vrot.lane.b32.xlu0 %v3117, 7
  %v3214 = vpop.permute.xlu0 %3213
  %3215 = vrot.lane.b32.xlu0 %v3122, 7
  %v3216 = vpop.permute.xlu0 %3215
  %3217 = vrot.lane.b32.xlu0 %v3125, 7
  %v3218 = vpop.permute.xlu0 %3217
  %3219 = vrot.lane.b32.xlu0 %v3130, 7
  %v3220 = vpop.permute.xlu0 %3219
  %3221 = vrot.lane.b32.xlu0 %v3133, 7
  %v3222 = vpop.permute.xlu0 %3221
  %s3223 = scalar_lea.vmem %s5, 2
  %v3224 = vld [vmem:[%s3223] sm:$0x1]
  %v3226 = vlaneseq
  %v3227 = vshrl.u32 %v3226, 7
  %v3228 = vsub.s32 0, %v3227
  %v3229 = vrot.slane %v3224, %v3228
  %v3231 = vmul.f32 %v3208, %v3229
  %v3232 = vmul.f32 %v3210, %v3229
  %v3233 = vmul.f32 %v3212, %v3229
  %v3234 = vmul.f32 %v3214, %v3229
  %v3235 = vmul.f32 %v3216, %v3229
  %v3236 = vmul.f32 %v3218, %v3229
  %v3237 = vmul.f32 %v3220, %v3229
  %v3238 = vmul.f32 %v3222, %v3229
  %v3239 = vpack.c.bf16 %v3232, %v3231
  %v3240 = vpack.c.bf16 %v3234, %v3233
  %v3241 = vpack.c.bf16 %v3236, %v3235
  %v3242 = vpack.c.bf16 %v3238, %v3237
  %3243 = vrot.lane.b32.xlu0 %v3106, 1
  %v3244 = vpop.permute.xlu0 %3243
  %3245 = vrot.lane.b32.xlu0 %v3109, 1
  %v3246 = vpop.permute.xlu0 %3245
  %3247 = vrot.lane.b32.xlu0 %v3114, 1
  %v3248 = vpop.permute.xlu0 %3247
  %3249 = vrot.lane.b32.xlu0 %v3117, 1
  %v3250 = vpop.permute.xlu0 %3249
  %3251 = vrot.lane.b32.xlu0 %v3122, 1
  %v3252 = vpop.permute.xlu0 %3251
  %3253 = vrot.lane.b32.xlu0 %v3125, 1
  %v3254 = vpop.permute.xlu0 %3253
  %3255 = vrot.lane.b32.xlu0 %v3130, 1
  %v3256 = vpop.permute.xlu0 %3255
  %3257 = vrot.lane.b32.xlu0 %v3133, 1
  %v3258 = vpop.permute.xlu0 %3257
  %s3259 = scalar_lea.vmem %s5, 3
  %v3260 = vld [vmem:[%s3259] sm:$0x1]
  %v3262 = vlaneseq
  %v3263 = vshrl.u32 %v3262, 7
  %v3264 = vsub.s32 0, %v3263
  %v3265 = vrot.slane %v3260, %v3264
  %v3267 = vmul.f32 %v3244, %v3265
  %v3268 = vmul.f32 %v3246, %v3265
  %v3269 = vmul.f32 %v3248, %v3265
  %v3270 = vmul.f32 %v3250, %v3265
  %v3271 = vmul.f32 %v3252, %v3265
  %v3272 = vmul.f32 %v3254, %v3265
  %v3273 = vmul.f32 %v3256, %v3265
  %v3274 = vmul.f32 %v3258, %v3265
  %v3275 = vpack.c.bf16 %v3268, %v3267
  %v3276 = vpack.c.bf16 %v3270, %v3269
  %v3277 = vpack.c.bf16 %v3272, %v3271
  %v3278 = vpack.c.bf16 %v3274, %v3273
  %v3279 = vpack.c.bf16 %v3109, %v3106
  %v3280 = vpack.c.bf16 %v3117, %v3114
  %v3281 = vpack.c.bf16 %v3125, %v3122
  %v3282 = vpack.c.bf16 %v3133, %v3130
  %3283 = vrot.lane.b32.xlu0 %v3106, 127
  %v3284 = vpop.permute.xlu0 %3283
  %3285 = vrot.lane.b32.xlu0 %v3109, 127
  %v3286 = vpop.permute.xlu0 %3285
  %3287 = vrot.lane.b32.xlu0 %v3114, 127
  %v3288 = vpop.permute.xlu0 %3287
  %3289 = vrot.lane.b32.xlu0 %v3117, 127
  %v3290 = vpop.permute.xlu0 %3289
  %3291 = vrot.lane.b32.xlu0 %v3122, 127
  %v3292 = vpop.permute.xlu0 %3291
  %3293 = vrot.lane.b32.xlu0 %v3125, 127
  %v3294 = vpop.permute.xlu0 %3293
  %3295 = vrot.lane.b32.xlu0 %v3130, 127
  %v3296 = vpop.permute.xlu0 %3295
  %3297 = vrot.lane.b32.xlu0 %v3133, 127
  %v3298 = vpop.permute.xlu0 %3297
  %s3299 = scalar_lea.vmem %s5, 5
  %v3300 = vld [vmem:[%s3299] sm:$0x1]
  %v3302 = vlaneseq
  %v3303 = vshrl.u32 %v3302, 7
  %v3304 = vsub.s32 0, %v3303
  %v3305 = vrot.slane %v3300, %v3304
  %v3307 = vmul.f32 %v3284, %v3305
  %v3308 = vmul.f32 %v3286, %v3305
  %v3309 = vmul.f32 %v3288, %v3305
  %v3310 = vmul.f32 %v3290, %v3305
  %v3311 = vmul.f32 %v3292, %v3305
  %v3312 = vmul.f32 %v3294, %v3305
  %v3313 = vmul.f32 %v3296, %v3305
  %v3314 = vmul.f32 %v3298, %v3305
  %v3315 = vpack.c.bf16 %v3308, %v3307
  %v3316 = vpack.c.bf16 %v3310, %v3309
  %v3317 = vpack.c.bf16 %v3312, %v3311
  %v3318 = vpack.c.bf16 %v3314, %v3313
  %3319 = vrot.lane.b32.xlu0 %v3106, 121
  %v3320 = vpop.permute.xlu0 %3319
  %3321 = vrot.lane.b32.xlu0 %v3109, 121
  %v3322 = vpop.permute.xlu0 %3321
  %3323 = vrot.lane.b32.xlu0 %v3114, 121
  %v3324 = vpop.permute.xlu0 %3323
  %3325 = vrot.lane.b32.xlu0 %v3117, 121
  %v3326 = vpop.permute.xlu0 %3325
  %3327 = vrot.lane.b32.xlu0 %v3122, 121
  %v3328 = vpop.permute.xlu0 %3327
  %3329 = vrot.lane.b32.xlu0 %v3125, 121
  %v3330 = vpop.permute.xlu0 %3329
  %3331 = vrot.lane.b32.xlu0 %v3130, 121
  %v3332 = vpop.permute.xlu0 %3331
  %3333 = vrot.lane.b32.xlu0 %v3133, 121
  %v3334 = vpop.permute.xlu0 %3333
  %s3335 = scalar_lea.vmem %s5, 6
  %v3336 = vld [vmem:[%s3335] sm:$0x1]
  %v3338 = vlaneseq
  %v3339 = vshrl.u32 %v3338, 7
  %v3340 = vsub.s32 0, %v3339
  %v3341 = vrot.slane %v3336, %v3340
  %v3343 = vmul.f32 %v3320, %v3341
  %v3344 = vmul.f32 %v3322, %v3341
  %v3345 = vmul.f32 %v3324, %v3341
  %v3346 = vmul.f32 %v3326, %v3341
  %v3347 = vmul.f32 %v3328, %v3341
  %v3348 = vmul.f32 %v3330, %v3341
  %v3349 = vmul.f32 %v3332, %v3341
  %v3350 = vmul.f32 %v3334, %v3341
  %v3351 = vpack.c.bf16 %v3344, %v3343
  %v3352 = vpack.c.bf16 %v3346, %v3345
  %v3353 = vpack.c.bf16 %v3348, %v3347
  %v3354 = vpack.c.bf16 %v3350, %v3349
  %3355 = vrot.lane.b32.xlu0 %v3106, 120
  %v3356 = vpop.permute.xlu0 %3355
  %3357 = vrot.lane.b32.xlu0 %v3109, 120
  %v3358 = vpop.permute.xlu0 %3357
  %3359 = vrot.lane.b32.xlu0 %v3114, 120
  %v3360 = vpop.permute.xlu0 %3359
  %3361 = vrot.lane.b32.xlu0 %v3117, 120
  %v3362 = vpop.permute.xlu0 %3361
  %3363 = vrot.lane.b32.xlu0 %v3122, 120
  %v3364 = vpop.permute.xlu0 %3363
  %3365 = vrot.lane.b32.xlu0 %v3125, 120
  %v3366 = vpop.permute.xlu0 %3365
  %3367 = vrot.lane.b32.xlu0 %v3130, 120
  %v3368 = vpop.permute.xlu0 %3367
  %3369 = vrot.lane.b32.xlu0 %v3133, 120
  %v3370 = vpop.permute.xlu0 %3369
  %s3371 = scalar_lea.vmem %s5, 7
  %v3372 = vld [vmem:[%s3371] sm:$0x1]
  %v3374 = vlaneseq
  %v3375 = vshrl.u32 %v3374, 7
  %v3376 = vsub.s32 0, %v3375
  %v3377 = vrot.slane %v3372, %v3376
  %v3379 = vmul.f32 %v3356, %v3377
  %v3380 = vmul.f32 %v3358, %v3377
  %v3381 = vmul.f32 %v3360, %v3377
  %v3382 = vmul.f32 %v3362, %v3377
  %v3383 = vmul.f32 %v3364, %v3377
  %v3384 = vmul.f32 %v3366, %v3377
  %v3385 = vmul.f32 %v3368, %v3377
  %v3386 = vmul.f32 %v3370, %v3377
  %v3387 = vpack.c.bf16 %v3380, %v3379
  %v3388 = vpack.c.bf16 %v3382, %v3381
  %v3389 = vpack.c.bf16 %v3384, %v3383
  %v3390 = vpack.c.bf16 %v3386, %v3385
  %3391 = vrot.lane.b32.xlu0 %v3106, 119
  %v3392 = vpop.permute.xlu0 %3391
  %3393 = vrot.lane.b32.xlu0 %v3109, 119
  %v3394 = vpop.permute.xlu0 %3393
  %3395 = vrot.lane.b32.xlu0 %v3114, 119
  %v3396 = vpop.permute.xlu0 %3395
  %3397 = vrot.lane.b32.xlu0 %v3117, 119
  %v3398 = vpop.permute.xlu0 %3397
  %3399 = vrot.lane.b32.xlu0 %v3122, 119
  %v3400 = vpop.permute.xlu0 %3399
  %3401 = vrot.lane.b32.xlu0 %v3125, 119
  %v3402 = vpop.permute.xlu0 %3401
  %3403 = vrot.lane.b32.xlu0 %v3130, 119
  %v3404 = vpop.permute.xlu0 %3403
  %3405 = vrot.lane.b32.xlu0 %v3133, 119
  %v3406 = vpop.permute.xlu0 %3405
  %s3407 = scalar_lea.vmem %s5, 8
  %v3408 = vld [vmem:[%s3407] sm:$0x1]
  %v3410 = vlaneseq
  %v3411 = vshrl.u32 %v3410, 7
  %v3412 = vsub.s32 0, %v3411
  %v3413 = vrot.slane %v3408, %v3412
  %v3415 = vmul.f32 %v3392, %v3413
  %v3416 = vmul.f32 %v3394, %v3413
  %v3417 = vmul.f32 %v3396, %v3413
  %v3418 = vmul.f32 %v3398, %v3413
  %v3419 = vmul.f32 %v3400, %v3413
  %v3420 = vmul.f32 %v3402, %v3413
  %v3421 = vmul.f32 %v3404, %v3413
  %v3422 = vmul.f32 %v3406, %v3413
  %v3423 = vpack.c.bf16 %v3416, %v3415
  %v3424 = vpack.c.bf16 %v3418, %v3417
  %v3425 = vpack.c.bf16 %v3420, %v3419
  %v3426 = vpack.c.bf16 %v3422, %v3421
  %v3427 = vld [vmem:[%s27] sm:$0xff]
  %v3428 = vld [vmem:[%s27 + $0x8] sm:$0xff]
  %v3429 = vld [vmem:[%s27 + $0x10] sm:$0xf]
  %v3430 = vld [vmem:[%s27 + $0x14] sm:$0xff]
  %v3431 = vld [vmem:[%s27 + $0x1c] sm:$0xff]
  %v3432 = vld [vmem:[%s27 + $0x24] sm:$0xf]
  %v3433 = vld [vmem:[%s27 + $0x28] sm:$0xff]
  %v3434 = vld [vmem:[%s27 + $0x30] sm:$0xff]
  %v3435 = vld [vmem:[%s27 + $0x38] sm:$0xf]
  %v3436 = vld [vmem:[%s27 + $0x3c] sm:$0xff]
  %v3437 = vld [vmem:[%s27 + $0x44] sm:$0xff]
  %v3438 = vld [vmem:[%s27 + $0x4c] sm:$0xf]
  %v3439 = vld [vmem:[%s27 + $0x50] sm:$0xff]
  %v3440 = vld [vmem:[%s27 + $0x58] sm:$0xff]
  %v3441 = vld [vmem:[%s27 + $0x60] sm:$0xf]
  %v3442 = vld [vmem:[%s27 + $0x64] sm:$0xff]
  %v3443 = vld [vmem:[%s27 + $0x6c] sm:$0xff]
  %v3444 = vld [vmem:[%s27 + $0x74] sm:$0xf]
  %v3445 = vld [vmem:[%s27 + $0x78] sm:$0xff]
  %v3446 = vld [vmem:[%s27 + $0x80] sm:$0xff]
  %v3447 = vld [vmem:[%s27 + $0x88] sm:$0xf]
  %v3448 = vld [vmem:[%s27 + $0x8c] sm:$0xff]
  %v3449 = vld [vmem:[%s27 + $0x94] sm:$0xff]
  %v3450 = vld [vmem:[%s27 + $0x9c] sm:$0xf]
  %v3451 = vld [vmem:[%s27 + $0xa0] sm:$0xff]
  %v3452 = vld [vmem:[%s27 + $0xa8] sm:$0xff]
  %v3453 = vld [vmem:[%s27 + $0xb0] sm:$0xf]
  %v3454 = vld [vmem:[%s27 + $0xb4] sm:$0xff]
  %v3455 = vld [vmem:[%s27 + $0xbc] sm:$0xff]
  %v3456 = vld [vmem:[%s27 + $0xc4] sm:$0xf]
  %v3457 = vld [vmem:[%s27 + $0xc8] sm:$0xff]
  %v3458 = vld [vmem:[%s27 + $0xd0] sm:$0xff]
  %v3459 = vld [vmem:[%s27 + $0xd8] sm:$0xf]
  %v3460 = vld [vmem:[%s27 + $0xdc] sm:$0xff]
  %v3461 = vld [vmem:[%s27 + $0xe4] sm:$0xff]
  %v3462 = vld [vmem:[%s27 + $0xec] sm:$0xf]
  %v3463 = vld [vmem:[%s27 + $0xf0] sm:$0xff]
  %v3464 = vld [vmem:[%s27 + $0xf8] sm:$0xff]
  %v3465 = vld [vmem:[%s27 + $0x100] sm:$0xf]
  %v3466 = vld [vmem:[%s27 + $0x104] sm:$0xff]
  %v3467 = vld [vmem:[%s27 + $0x10c] sm:$0xff]
  %v3468 = vld [vmem:[%s27 + $0x114] sm:$0xf]
  %v3469 = vld [vmem:[%s27 + $0x118] sm:$0xff]
  %v3470 = vld [vmem:[%s27 + $0x120] sm:$0xff]
  %v3471 = vld [vmem:[%s27 + $0x128] sm:$0xf]
  %v3472 = vld [vmem:[%s27 + $0x12c] sm:$0xff]
  %v3473 = vld [vmem:[%s27 + $0x134] sm:$0xff]
  %v3474 = vld [vmem:[%s27 + $0x13c] sm:$0xf]
  %v3475 = vld [vmem:[%s29] sm:$0xff]
  %v3476 = vld [vmem:[%s29 + $0x8] sm:$0xff]
  %v3477 = vld [vmem:[%s29 + $0x10] sm:$0xff]
  %v3478 = vld [vmem:[%s29 + $0x18] sm:$0xff]
  %v3479 = vld [vmem:[%s29 + $0x20] sm:$0xff]
  %v3480 = vld [vmem:[%s29 + $0x28] sm:$0xff]
  %v3481 = vld [vmem:[%s29 + $0x30] sm:$0xff]
  %v3482 = vld [vmem:[%s29 + $0x38] sm:$0xff]
  %v3483 = vld [vmem:[%s29 + $0x40] sm:$0xff]
  %v3484 = vld [vmem:[%s29 + $0x48] sm:$0xff]
  %v3485 = vld [vmem:[%s29 + $0x50] sm:$0xff]
  %v3486 = vld [vmem:[%s29 + $0x58] sm:$0xff]
  %v3487 = vld [vmem:[%s29 + $0x60] sm:$0xff]
  %v3488 = vld [vmem:[%s29 + $0x68] sm:$0xff]
  %v3489 = vld [vmem:[%s29 + $0x70] sm:$0xff]
  %v3490 = vld [vmem:[%s29 + $0x78] sm:$0xff]
  %3492 = vset.pattern.permute.xlu0 0
  %3493 = vperm.xlu0 %3492, %v3475
  %v3494 = vpop.permute.xlu0 %3493
  %3497 = vset.pattern.permute.xlu0 0
  %3498 = vperm.xlu0 %3497, %v3476
  %v3499 = vpop.permute.xlu0 %3498
  %3502 = vset.pattern.permute.xlu0 0
  %3503 = vperm.xlu0 %3502, %v3477
  %v3504 = vpop.permute.xlu0 %3503
  %3507 = vset.pattern.permute.xlu0 0
  %3508 = vperm.xlu0 %3507, %v3478
  %v3509 = vpop.permute.xlu0 %3508
  %3512 = vset.pattern.permute.xlu0 0
  %3513 = vperm.xlu0 %3512, %v3479
  %v3514 = vpop.permute.xlu0 %3513
  %3517 = vset.pattern.permute.xlu0 0
  %3518 = vperm.xlu0 %3517, %v3480
  %v3519 = vpop.permute.xlu0 %3518
  %3522 = vset.pattern.permute.xlu0 0
  %3523 = vperm.xlu0 %3522, %v3481
  %v3524 = vpop.permute.xlu0 %3523
  %3527 = vset.pattern.permute.xlu0 0
  %3528 = vperm.xlu0 %3527, %v3482
  %v3529 = vpop.permute.xlu0 %3528
  %3532 = vset.pattern.permute.xlu0 0
  %3533 = vperm.xlu0 %3532, %v3483
  %v3534 = vpop.permute.xlu0 %3533
  %3537 = vset.pattern.permute.xlu0 0
  %3538 = vperm.xlu0 %3537, %v3484
  %v3539 = vpop.permute.xlu0 %3538
  %3542 = vset.pattern.permute.xlu0 0
  %3543 = vperm.xlu0 %3542, %v3485
  %v3544 = vpop.permute.xlu0 %3543
  %3547 = vset.pattern.permute.xlu0 0
  %3548 = vperm.xlu0 %3547, %v3486
  %v3549 = vpop.permute.xlu0 %3548
  %3552 = vset.pattern.permute.xlu0 0
  %3553 = vperm.xlu0 %3552, %v3487
  %v3554 = vpop.permute.xlu0 %3553
  %3557 = vset.pattern.permute.xlu0 0
  %3558 = vperm.xlu0 %3557, %v3488
  %v3559 = vpop.permute.xlu0 %3558
  %3562 = vset.pattern.permute.xlu0 0
  %3563 = vperm.xlu0 %3562, %v3489
  %v3564 = vpop.permute.xlu0 %3563
  %3567 = vset.pattern.permute.xlu0 0
  %3568 = vperm.xlu0 %3567, %v3490
  %v3569 = vpop.permute.xlu0 %3568
  %v3619 = vunpack.c.l.b16 %v3427
  %v3620 = vunpack.c.h.b16 %v3427
  %v3621 = vunpack.c.l.b16 %v3428
  %v3622 = vunpack.c.h.b16 %v3428
  %v3623 = vunpack.c.l.b16 %v3429
  %v3624 = vunpack.c.l.b16 %v3430
  %v3625 = vunpack.c.h.b16 %v3430
  %v3626 = vunpack.c.l.b16 %v3431
  %v3627 = vunpack.c.h.b16 %v3431
  %v3628 = vunpack.c.l.b16 %v3432
  %v3629 = vunpack.c.l.b16 %v3433
  %v3630 = vunpack.c.h.b16 %v3433
  %v3631 = vunpack.c.l.b16 %v3434
  %v3632 = vunpack.c.h.b16 %v3434
  %v3633 = vunpack.c.l.b16 %v3435
  %v3634 = vunpack.c.l.b16 %v3436
  %v3635 = vunpack.c.h.b16 %v3436
  %v3636 = vunpack.c.l.b16 %v3437
  %v3637 = vunpack.c.h.b16 %v3437
  %v3638 = vunpack.c.l.b16 %v3438
  %v3639 = vunpack.c.l.b16 %v3439
  %v3640 = vunpack.c.h.b16 %v3439
  %v3641 = vunpack.c.l.b16 %v3440
  %v3642 = vunpack.c.h.b16 %v3440
  %v3643 = vunpack.c.l.b16 %v3441
  %v3644 = vunpack.c.l.b16 %v3442
  %v3645 = vunpack.c.h.b16 %v3442
  %v3646 = vunpack.c.l.b16 %v3443
  %v3647 = vunpack.c.h.b16 %v3443
  %v3648 = vunpack.c.l.b16 %v3444
  %v3649 = vunpack.c.l.b16 %v3445
  %v3650 = vunpack.c.h.b16 %v3445
  %v3651 = vunpack.c.l.b16 %v3446
  %v3652 = vunpack.c.h.b16 %v3446
  %v3653 = vunpack.c.l.b16 %v3447
  %v3654 = vunpack.c.l.b16 %v3448
  %v3655 = vunpack.c.h.b16 %v3448
  %v3656 = vunpack.c.l.b16 %v3449
  %v3657 = vunpack.c.h.b16 %v3449
  %v3658 = vunpack.c.l.b16 %v3450
  %v3659 = vunpack.c.l.b16 %v3451
  %v3660 = vunpack.c.h.b16 %v3451
  %v3661 = vunpack.c.l.b16 %v3452
  %v3662 = vunpack.c.h.b16 %v3452
  %v3663 = vunpack.c.l.b16 %v3453
  %v3664 = vunpack.c.l.b16 %v3454
  %v3665 = vunpack.c.h.b16 %v3454
  %v3666 = vunpack.c.l.b16 %v3455
  %v3667 = vunpack.c.h.b16 %v3455
  %v3668 = vunpack.c.l.b16 %v3456
  %v3669 = vunpack.c.l.b16 %v3457
  %v3670 = vunpack.c.h.b16 %v3457
  %v3671 = vunpack.c.l.b16 %v3458
  %v3672 = vunpack.c.h.b16 %v3458
  %v3673 = vunpack.c.l.b16 %v3459
  %v3674 = vunpack.c.l.b16 %v3460
  %v3675 = vunpack.c.h.b16 %v3460
  %v3676 = vunpack.c.l.b16 %v3461
  %v3677 = vunpack.c.h.b16 %v3461
  %v3678 = vunpack.c.l.b16 %v3462
  %v3679 = vunpack.c.l.b16 %v3463
  %v3680 = vunpack.c.h.b16 %v3463
  %v3681 = vunpack.c.l.b16 %v3464
  %v3682 = vunpack.c.h.b16 %v3464
  %v3683 = vunpack.c.l.b16 %v3465
  %v3684 = vunpack.c.l.b16 %v3466
  %v3685 = vunpack.c.h.b16 %v3466
  %v3686 = vunpack.c.l.b16 %v3467
  %v3687 = vunpack.c.h.b16 %v3467
  %v3688 = vunpack.c.l.b16 %v3468
  %v3689 = vunpack.c.l.b16 %v3469
  %v3690 = vunpack.c.h.b16 %v3469
  %v3691 = vunpack.c.l.b16 %v3470
  %v3692 = vunpack.c.h.b16 %v3470
  %v3693 = vunpack.c.l.b16 %v3471
  %v3694 = vunpack.c.l.b16 %v3472
  %v3695 = vunpack.c.h.b16 %v3472
  %v3696 = vunpack.c.l.b16 %v3473
  %v3697 = vunpack.c.h.b16 %v3473
  %v3698 = vunpack.c.l.b16 %v3474
  %v3699 = vpack.c.b16 %v3624, %v3619
  %v3700 = vpack.c.b16 %v3625, %v3620
  %v3701 = vpack.c.b16 %v3626, %v3621
  %v3702 = vpack.c.b16 %v3627, %v3622
  %v3703 = vpack.c.b16 %v3628, %v3623
  %v3704 = vpack.c.b16 %v3634, %v3629
  %v3705 = vpack.c.b16 %v3635, %v3630
  %v3706 = vpack.c.b16 %v3636, %v3631
  %v3707 = vpack.c.b16 %v3637, %v3632
  %v3708 = vpack.c.b16 %v3638, %v3633
  %v3709 = vpack.c.b16 %v3644, %v3639
  %v3710 = vpack.c.b16 %v3645, %v3640
  %v3711 = vpack.c.b16 %v3646, %v3641
  %v3712 = vpack.c.b16 %v3647, %v3642
  %v3713 = vpack.c.b16 %v3648, %v3643
  %v3714 = vpack.c.b16 %v3654, %v3649
  %v3715 = vpack.c.b16 %v3655, %v3650
  %v3716 = vpack.c.b16 %v3656, %v3651
  %v3717 = vpack.c.b16 %v3657, %v3652
  %v3718 = vpack.c.b16 %v3658, %v3653
  %v3719 = vpack.c.b16 %v3664, %v3659
  %v3720 = vpack.c.b16 %v3665, %v3660
  %v3721 = vpack.c.b16 %v3666, %v3661
  %v3722 = vpack.c.b16 %v3667, %v3662
  %v3723 = vpack.c.b16 %v3668, %v3663
  %v3724 = vpack.c.b16 %v3674, %v3669
  %v3725 = vpack.c.b16 %v3675, %v3670
  %v3726 = vpack.c.b16 %v3676, %v3671
  %v3727 = vpack.c.b16 %v3677, %v3672
  %v3728 = vpack.c.b16 %v3678, %v3673
  %v3729 = vpack.c.b16 %v3684, %v3679
  %v3730 = vpack.c.b16 %v3685, %v3680
  %v3731 = vpack.c.b16 %v3686, %v3681
  %v3732 = vpack.c.b16 %v3687, %v3682
  %v3733 = vpack.c.b16 %v3688, %v3683
  %v3734 = vpack.c.b16 %v3694, %v3689
  %v3735 = vpack.c.b16 %v3695, %v3690
  %v3736 = vpack.c.b16 %v3696, %v3691
  %v3737 = vpack.c.b16 %v3697, %v3692
  %v3738 = vpack.c.b16 %v3698, %v3693
  %vm3771 = vcmask 523264
  %v3773 = vsel %vm3771, %v3703, 0
  %v3776 = vsel %vm3771, %v3708, 0
  %v3779 = vsel %vm3771, %v3713, 0
  %v3782 = vsel %vm3771, %v3718, 0
  %v3785 = vsel %vm3771, %v3723, 0
  %v3788 = vsel %vm3771, %v3728, 0
  %v3791 = vsel %vm3771, %v3733, 0
  %v3794 = vsel %vm3771, %v3738, 0
  %3796 = vmatprep.subr.bf16.mxu0 0
  %3797 = vmatpush1.bf16.msra.mxu0 %v3206
  %3798 = vmatprep.subr.bf16.mxu0 0
  %3799 = vmatpush1.bf16.msra.mxu0 %v3205
  %3800 = vmatprep.subr.bf16.mxu0 0
  %3801 = vmatpush1.bf16.msra.mxu0 %v3204
  %3802 = vmatprep.subr.bf16.mxu0 0
  %3803 = vmatpush1.bf16.msra.mxu0 %v3203
  %3804 = vmatprep.subr.bf16.mxu0 0
  %3805 = vmatpush1.bf16.msra.mxu0 %v3170
  %3806 = vmatprep.subr.bf16.mxu0 0
  %3807 = vmatpush1.bf16.msra.mxu0 %v3169
  %3808 = vmatprep.subr.bf16.mxu0 0
  %3809 = vmatpush1.bf16.msra.mxu0 %v3168
  %3810 = vmatprep.subr.bf16.mxu0 0
  %3811 = vmatpush1.bf16.msra.mxu0 %v3167
  %3812 = vmatprep.subr.bf16.mxu0 0
  %3813 = vmatpush2.bf16.msra.mxu0 %v3278
  %3814 = vmatprep.subr.bf16.mxu0 0
  %3815 = vmatpush2.bf16.msra.mxu0 %v3277
  %3816 = vmatprep.subr.bf16.mxu0 0
  %3817 = vmatpush2.bf16.msra.mxu0 %v3276
  %3818 = vmatprep.subr.bf16.mxu0 0
  %3819 = vmatpush2.bf16.msra.mxu0 %v3275
  %3820 = vmatprep.subr.bf16.mxu0 0
  %3821 = vmatpush2.bf16.msra.mxu0 %v3242
  %3822 = vmatprep.subr.bf16.mxu0 0
  %3823 = vmatpush2.bf16.msra.mxu0 %v3241
  %3824 = vmatprep.subr.bf16.mxu0 0
  %3825 = vmatpush2.bf16.msra.mxu0 %v3240
  %3826 = vmatprep.subr.bf16.mxu0 0
  %3827 = vmatpush2.bf16.msra.mxu0 %v3239
  %3828 = vmatprep.mubr.bf16.mxu0 %v3700
  %3829 = vmatmul.mubr.bf16.gmra.mxu0 %v3699
  %v3830 = vpop.f32.mrf.mxu0
  %v3831 = vadd.f32 %v3494, %v3830
  %v3832 = vpop.f32.mrf.mxu0
  %v3833 = vpop.f32.mrf.mxu0
  %v3834 = vadd.f32 %v3499, %v3833
  %v3835 = vpop.f32.mrf.mxu0
  %3836 = vmatprep.mubr.bf16.mxu0 %v3705
  %3837 = vmatmul.mubr.bf16.gmra.mxu0 %v3704
  %v3838 = vpop.f32.mrf.mxu0
  %v3839 = vadd.f32 %v3504, %v3838
  %v3840 = vpop.f32.mrf.mxu0
  %v3841 = vpop.f32.mrf.mxu0
  %v3842 = vadd.f32 %v3509, %v3841
  %v3843 = vpop.f32.mrf.mxu0
  %3844 = vmatprep.mubr.bf16.mxu0 %v3710
  %3845 = vmatmul.mubr.bf16.gmra.mxu0 %v3709
  %v3846 = vpop.f32.mrf.mxu0
  %v3847 = vadd.f32 %v3514, %v3846
  %v3848 = vpop.f32.mrf.mxu0
  %v3849 = vpop.f32.mrf.mxu0
  %v3850 = vadd.f32 %v3519, %v3849
  %v3851 = vpop.f32.mrf.mxu0
  %3852 = vmatprep.mubr.bf16.mxu0 %v3715
  %3853 = vmatmul.mubr.bf16.gmra.mxu0 %v3714
  %v3854 = vpop.f32.mrf.mxu0
  %v3855 = vadd.f32 %v3524, %v3854
  %v3856 = vpop.f32.mrf.mxu0
  %v3857 = vpop.f32.mrf.mxu0
  %v3858 = vadd.f32 %v3529, %v3857
  %v3859 = vpop.f32.mrf.mxu0
  %3860 = vmatprep.mubr.bf16.mxu0 %v3720
  %3861 = vmatmul.mubr.bf16.gmra.mxu0 %v3719
  %v3862 = vpop.f32.mrf.mxu0
  %v3863 = vadd.f32 %v3534, %v3862
  %v3864 = vpop.f32.mrf.mxu0
  %v3865 = vpop.f32.mrf.mxu0
  %v3866 = vadd.f32 %v3539, %v3865
  %v3867 = vpop.f32.mrf.mxu0
  %3868 = vmatprep.mubr.bf16.mxu0 %v3725
  %3869 = vmatmul.mubr.bf16.gmra.mxu0 %v3724
  %v3870 = vpop.f32.mrf.mxu0
  %v3871 = vadd.f32 %v3544, %v3870
  %v3872 = vpop.f32.mrf.mxu0
  %v3873 = vpop.f32.mrf.mxu0
  %v3874 = vadd.f32 %v3549, %v3873
  %v3875 = vpop.f32.mrf.mxu0
  %3876 = vmatprep.mubr.bf16.mxu0 %v3730
  %3877 = vmatmul.mubr.bf16.gmra.mxu0 %v3729
  %v3878 = vpop.f32.mrf.mxu0
  %v3879 = vadd.f32 %v3554, %v3878
  %v3880 = vpop.f32.mrf.mxu0
  %v3881 = vpop.f32.mrf.mxu0
  %v3882 = vadd.f32 %v3559, %v3881
  %v3883 = vpop.f32.mrf.mxu0
  %3884 = vmatprep.mubr.bf16.mxu0 %v3735
  %3885 = vmatmul.mubr.bf16.gmra.mxu0 %v3734
  %v3886 = vpop.f32.mrf.mxu0
  %v3887 = vadd.f32 %v3564, %v3886
  %v3888 = vpop.f32.mrf.mxu0
  %v3889 = vpop.f32.mrf.mxu0
  %v3890 = vadd.f32 %v3569, %v3889
  %v3891 = vpop.f32.mrf.mxu0
  %3892 = vdwg.mxu0
  %3893 = vmatprep.subr.bf16.mxu0 0
  %3894 = vmatpush1.bf16.msra.mxu0 %v3318
  %3895 = vmatprep.subr.bf16.mxu0 0
  %3896 = vmatpush1.bf16.msra.mxu0 %v3317
  %3897 = vmatprep.subr.bf16.mxu0 0
  %3898 = vmatpush1.bf16.msra.mxu0 %v3316
  %3899 = vmatprep.subr.bf16.mxu0 0
  %3900 = vmatpush1.bf16.msra.mxu0 %v3315
  %3901 = vmatprep.subr.bf16.mxu0 0
  %3902 = vmatpush1.bf16.msra.mxu0 %v3282
  %3903 = vmatprep.subr.bf16.mxu0 0
  %3904 = vmatpush1.bf16.msra.mxu0 %v3281
  %3905 = vmatprep.subr.bf16.mxu0 0
  %3906 = vmatpush1.bf16.msra.mxu0 %v3280
  %3907 = vmatprep.subr.bf16.mxu0 0
  %3908 = vmatpush1.bf16.msra.mxu0 %v3279
  %3909 = vmatprep.subr.bf16.mxu0 0
  %3910 = vmatpush2.bf16.msra.mxu0 %v3390
  %3911 = vmatprep.subr.bf16.mxu0 0
  %3912 = vmatpush2.bf16.msra.mxu0 %v3389
  %3913 = vmatprep.subr.bf16.mxu0 0
  %3914 = vmatpush2.bf16.msra.mxu0 %v3388
  %3915 = vmatprep.subr.bf16.mxu0 0
  %3916 = vmatpush2.bf16.msra.mxu0 %v3387
  %3917 = vmatprep.subr.bf16.mxu0 0
  %3918 = vmatpush2.bf16.msra.mxu0 %v3354
  %3919 = vmatprep.subr.bf16.mxu0 0
  %3920 = vmatpush2.bf16.msra.mxu0 %v3353
  %3921 = vmatprep.subr.bf16.mxu0 0
  %3922 = vmatpush2.bf16.msra.mxu0 %v3352
  %3923 = vmatprep.subr.bf16.mxu0 0
  %3924 = vmatpush2.bf16.msra.mxu0 %v3351
  %3925 = vmatprep.mubr.bf16.mxu0 %v3702
  %3926 = vmatmul.mubr.bf16.gmra.mxu0 %v3701
  %v3927 = vpop.f32.mrf.mxu0
  %v3928 = vadd.f32 %v3831, %v3927
  %v3929 = vpop.f32.mrf.mxu0
  %v3930 = vpop.f32.mrf.mxu0
  %v3931 = vadd.f32 %v3834, %v3930
  %v3932 = vpop.f32.mrf.mxu0
  %3933 = vmatprep.mubr.bf16.mxu0 %v3707
  %3934 = vmatmul.mubr.bf16.gmra.mxu0 %v3706
  %v3935 = vpop.f32.mrf.mxu0
  %v3936 = vadd.f32 %v3839, %v3935
  %v3937 = vpop.f32.mrf.mxu0
  %v3938 = vpop.f32.mrf.mxu0
  %v3939 = vadd.f32 %v3842, %v3938
  %v3940 = vpop.f32.mrf.mxu0
  %3941 = vmatprep.mubr.bf16.mxu0 %v3712
  %3942 = vmatmul.mubr.bf16.gmra.mxu0 %v3711
  %v3943 = vpop.f32.mrf.mxu0
  %v3944 = vadd.f32 %v3847, %v3943
  %v3945 = vpop.f32.mrf.mxu0
  %v3946 = vpop.f32.mrf.mxu0
  %v3947 = vadd.f32 %v3850, %v3946
  %v3948 = vpop.f32.mrf.mxu0
  %3949 = vmatprep.mubr.bf16.mxu0 %v3717
  %3950 = vmatmul.mubr.bf16.gmra.mxu0 %v3716
  %v3951 = vpop.f32.mrf.mxu0
  %v3952 = vadd.f32 %v3855, %v3951
  %v3953 = vpop.f32.mrf.mxu0
  %v3954 = vpop.f32.mrf.mxu0
  %v3955 = vadd.f32 %v3858, %v3954
  %v3956 = vpop.f32.mrf.mxu0
  %3957 = vmatprep.mubr.bf16.mxu0 %v3722
  %3958 = vmatmul.mubr.bf16.gmra.mxu0 %v3721
  %v3959 = vpop.f32.mrf.mxu0
  %v3960 = vadd.f32 %v3863, %v3959
  %v3961 = vpop.f32.mrf.mxu0
  %v3962 = vpop.f32.mrf.mxu0
  %v3963 = vadd.f32 %v3866, %v3962
  %v3964 = vpop.f32.mrf.mxu0
  %3965 = vmatprep.mubr.bf16.mxu0 %v3727
  %3966 = vmatmul.mubr.bf16.gmra.mxu0 %v3726
  %v3967 = vpop.f32.mrf.mxu0
  %v3968 = vadd.f32 %v3871, %v3967
  %v3969 = vpop.f32.mrf.mxu0
  %v3970 = vpop.f32.mrf.mxu0
  %v3971 = vadd.f32 %v3874, %v3970
  %v3972 = vpop.f32.mrf.mxu0
  %3973 = vmatprep.mubr.bf16.mxu0 %v3732
  %3974 = vmatmul.mubr.bf16.gmra.mxu0 %v3731
  %v3975 = vpop.f32.mrf.mxu0
  %v3976 = vadd.f32 %v3879, %v3975
  %v3977 = vpop.f32.mrf.mxu0
  %v3978 = vpop.f32.mrf.mxu0
  %v3979 = vadd.f32 %v3882, %v3978
  %v3980 = vpop.f32.mrf.mxu0
  %3981 = vmatprep.mubr.bf16.mxu0 %v3737
  %3982 = vmatmul.mubr.bf16.gmra.mxu0 %v3736
  %v3983 = vpop.f32.mrf.mxu0
  %v3984 = vadd.f32 %v3887, %v3983
  %v3985 = vpop.f32.mrf.mxu0
  %v3986 = vpop.f32.mrf.mxu0
  %v3987 = vadd.f32 %v3890, %v3986
  %v3988 = vpop.f32.mrf.mxu0
  %3989 = vdwg.mxu0
  %3990 = vmatprep.subr.bf16.mxu0 0
  %3991 = vmatpush1.bf16.msra.mxu0 0
  %3992 = vmatprep.subr.bf16.mxu0 0
  %3993 = vmatpush1.bf16.msra.mxu0 0
  %3994 = vmatprep.subr.bf16.mxu0 0
  %3995 = vmatpush1.bf16.msra.mxu0 0
  %3996 = vmatprep.subr.bf16.mxu0 0
  %3997 = vmatpush1.bf16.msra.mxu0 0
  %3998 = vmatprep.subr.bf16.mxu0 0
  %3999 = vmatpush1.bf16.msra.mxu0 %v3426
  %4000 = vmatprep.subr.bf16.mxu0 0
  %4001 = vmatpush1.bf16.msra.mxu0 %v3425
  %4002 = vmatprep.subr.bf16.mxu0 0
  %4003 = vmatpush1.bf16.msra.mxu0 %v3424
  %4004 = vmatprep.subr.bf16.mxu0 0
  %4005 = vmatpush1.bf16.msra.mxu0 %v3423
  %4006 = vmatprep.subr.bf16.mxu0 0
  %4007 = vmatpush2.bf16.msra.mxu0 0
  %4008 = vmatprep.subr.bf16.mxu0 0
  %4009 = vmatpush2.bf16.msra.mxu0 0
  %4010 = vmatprep.subr.bf16.mxu0 0
  %4011 = vmatpush2.bf16.msra.mxu0 0
  %4012 = vmatprep.subr.bf16.mxu0 0
  %4013 = vmatpush2.bf16.msra.mxu0 0
  %4014 = vmatprep.subr.bf16.mxu0 0
  %4015 = vmatpush2.bf16.msra.mxu0 0
  %4016 = vmatprep.subr.bf16.mxu0 0
  %4017 = vmatpush2.bf16.msra.mxu0 0
  %4018 = vmatprep.subr.bf16.mxu0 0
  %4019 = vmatpush2.bf16.msra.mxu0 0
  %4020 = vmatprep.subr.bf16.mxu0 0
  %4021 = vmatpush2.bf16.msra.mxu0 0
  %4022 = vmatprep.mubr.bf16.mxu0 0
  %4023 = vmatmul.mubr.bf16.gmra.mxu0 %v3773
  %v4024 = vpop.f32.mrf.mxu0
  %v4025 = vadd.f32 %v3928, %v4024
  %v4026 = vpop.f32.mrf.mxu0
  %v4027 = vpop.f32.mrf.mxu0
  %v4028 = vadd.f32 %v3931, %v4027
  %v4029 = vpop.f32.mrf.mxu0
  %4030 = vmatprep.mubr.bf16.mxu0 0
  %4031 = vmatmul.mubr.bf16.gmra.mxu0 %v3776
  %v4032 = vpop.f32.mrf.mxu0
  %v4033 = vadd.f32 %v3936, %v4032
  %v4034 = vpop.f32.mrf.mxu0
  %v4035 = vpop.f32.mrf.mxu0
  %v4036 = vadd.f32 %v3939, %v4035
  %v4037 = vpop.f32.mrf.mxu0
  %4038 = vmatprep.mubr.bf16.mxu0 0
  %4039 = vmatmul.mubr.bf16.gmra.mxu0 %v3779
  %v4040 = vpop.f32.mrf.mxu0
  %v4041 = vadd.f32 %v3944, %v4040
  %v4042 = vpop.f32.mrf.mxu0
  %v4043 = vpop.f32.mrf.mxu0
  %v4044 = vadd.f32 %v3947, %v4043
  %v4045 = vpop.f32.mrf.mxu0
  %4046 = vmatprep.mubr.bf16.mxu0 0
  %4047 = vmatmul.mubr.bf16.gmra.mxu0 %v3782
  %v4048 = vpop.f32.mrf.mxu0
  %v4049 = vadd.f32 %v3952, %v4048
  %v4050 = vpop.f32.mrf.mxu0
  %v4051 = vpop.f32.mrf.mxu0
  %v4052 = vadd.f32 %v3955, %v4051
  %v4053 = vpop.f32.mrf.mxu0
  %4054 = vmatprep.mubr.bf16.mxu0 0
  %4055 = vmatmul.mubr.bf16.gmra.mxu0 %v3785
  %v4056 = vpop.f32.mrf.mxu0
  %v4057 = vadd.f32 %v3960, %v4056
  %v4058 = vpop.f32.mrf.mxu0
  %v4059 = vpop.f32.mrf.mxu0
  %v4060 = vadd.f32 %v3963, %v4059
  %v4061 = vpop.f32.mrf.mxu0
  %4062 = vmatprep.mubr.bf16.mxu0 0
  %4063 = vmatmul.mubr.bf16.gmra.mxu0 %v3788
  %v4064 = vpop.f32.mrf.mxu0
  %v4065 = vadd.f32 %v3968, %v4064
  %v4066 = vpop.f32.mrf.mxu0
  %v4067 = vpop.f32.mrf.mxu0
  %v4068 = vadd.f32 %v3971, %v4067
  %v4069 = vpop.f32.mrf.mxu0
  %4070 = vmatprep.mubr.bf16.mxu0 0
  %4071 = vmatmul.mubr.bf16.gmra.mxu0 %v3791
  %v4072 = vpop.f32.mrf.mxu0
  %v4073 = vadd.f32 %v3976, %v4072
  %v4074 = vpop.f32.mrf.mxu0
  %v4075 = vpop.f32.mrf.mxu0
  %v4076 = vadd.f32 %v3979, %v4075
  %v4077 = vpop.f32.mrf.mxu0
  %4078 = vmatprep.mubr.bf16.mxu0 0
  %4079 = vmatmul.mubr.bf16.gmra.mxu0 %v3794
  %v4080 = vpop.f32.mrf.mxu0
  %v4081 = vadd.f32 %v3984, %v4080
  %v4082 = vpop.f32.mrf.mxu0
  %v4083 = vpop.f32.mrf.mxu0
  %v4084 = vadd.f32 %v3987, %v4083
  %v4085 = vpop.f32.mrf.mxu0
  %4086 = vdwg.mxu0
  %v4087 = vmax.f32 %v4025, 0.0
  %v4088 = vmax.f32 %v4028, 0.0
  %v4089 = vmax.f32 %v4033, 0.0
  %v4090 = vmax.f32 %v4036, 0.0
  %v4091 = vmax.f32 %v4041, 0.0
  %v4092 = vmax.f32 %v4044, 0.0
  %v4093 = vmax.f32 %v4049, 0.0
  %v4094 = vmax.f32 %v4052, 0.0
  %v4095 = vmax.f32 %v4057, 0.0
  %v4096 = vmax.f32 %v4060, 0.0
  %v4097 = vmax.f32 %v4065, 0.0
  %v4098 = vmax.f32 %v4068, 0.0
  %v4099 = vmax.f32 %v4073, 0.0
  %v4100 = vmax.f32 %v4076, 0.0
  %v4101 = vmax.f32 %v4081, 0.0
  %v4102 = vmax.f32 %v4084, 0.0
  %v4103 = vpack.c.bf16 %v4088, %v4087
  %v4104 = vpack.c.bf16 %v4090, %v4089
  %v4105 = vpack.c.bf16 %v4092, %v4091
  %v4106 = vpack.c.bf16 %v4094, %v4093
  %v4107 = vpack.c.bf16 %v4096, %v4095
  %v4108 = vpack.c.bf16 %v4098, %v4097
  %v4109 = vpack.c.bf16 %v4100, %v4099
  %v4110 = vpack.c.bf16 %v4102, %v4101
  %v4111 = vld [vmem:[%s9] sm:$0xf]
  %v4112 = vld [vmem:[%s9 + $0x4] sm:$0xf]
  %v4113 = vld [vmem:[%s9 + $0x8] sm:$0xf]
  %v4114 = vld [vmem:[%s9 + $0xc] sm:$0xf]
  %v4115 = vld [vmem:[%s9 + $0x10] sm:$0xf]
  %v4116 = vld [vmem:[%s9 + $0x14] sm:$0xf]
  %v4117 = vld [vmem:[%s9 + $0x18] sm:$0xf]
  %v4118 = vld [vmem:[%s9 + $0x1c] sm:$0xf]
  %v4119 = vld [vmem:[%s9 + $0x20] sm:$0xf]
  %v4120 = vld [vmem:[%s9 + $0x24] sm:$0xf]
  %v4121 = vld [vmem:[%s9 + $0x28] sm:$0xf]
  %v4122 = vld [vmem:[%s9 + $0x2c] sm:$0xf]
  %v4123 = vld [vmem:[%s9 + $0x30] sm:$0xf]
  %v4124 = vld [vmem:[%s9 + $0x34] sm:$0xf]
  %v4125 = vld [vmem:[%s9 + $0x38] sm:$0xf]
  %v4126 = vld [vmem:[%s9 + $0x3c] sm:$0xf]
  %v4143 = vunpack.c.l.b16 %v4111
  %v4144 = vunpack.c.l.b16 %v4112
  %v4145 = vunpack.c.l.b16 %v4113
  %v4146 = vunpack.c.l.b16 %v4114
  %v4147 = vunpack.c.l.b16 %v4115
  %v4148 = vunpack.c.l.b16 %v4116
  %v4149 = vunpack.c.l.b16 %v4117
  %v4150 = vunpack.c.l.b16 %v4118
  %v4151 = vunpack.c.l.b16 %v4119
  %v4152 = vunpack.c.l.b16 %v4120
  %v4153 = vunpack.c.l.b16 %v4121
  %v4154 = vunpack.c.l.b16 %v4122
  %v4155 = vunpack.c.l.b16 %v4123
  %v4156 = vunpack.c.l.b16 %v4124
  %v4157 = vunpack.c.l.b16 %v4125
  %v4158 = vunpack.c.l.b16 %v4126
  %v4159 = vpack.c.b16 %v4144, %v4143
  %v4160 = vpack.c.b16 %v4146, %v4145
  %v4161 = vpack.c.b16 %v4148, %v4147
  %v4162 = vpack.c.b16 %v4150, %v4149
  %v4163 = vpack.c.b16 %v4152, %v4151
  %v4164 = vpack.c.b16 %v4154, %v4153
  %v4165 = vpack.c.b16 %v4156, %v4155
  %v4166 = vpack.c.b16 %v4158, %v4157
  %4175 = vmatprep.subr.bf16.mxu0 0
  %4176 = vmatpush1.bf16.msra.mxu0 %v4166
  %4177 = vmatprep.subr.bf16.mxu0 0
  %4178 = vmatpush1.bf16.msra.mxu0 %v4165
  %4179 = vmatprep.subr.bf16.mxu0 0
  %4180 = vmatpush1.bf16.msra.mxu0 %v4164
  %4181 = vmatprep.subr.bf16.mxu0 0
  %4182 = vmatpush1.bf16.msra.mxu0 %v4163
  %4183 = vmatprep.subr.bf16.mxu0 0
  %4184 = vmatpush1.bf16.msra.mxu0 %v4162
  %4185 = vmatprep.subr.bf16.mxu0 0
  %4186 = vmatpush1.bf16.msra.mxu0 %v4161
  %4187 = vmatprep.subr.bf16.mxu0 0
  %4188 = vmatpush1.bf16.msra.mxu0 %v4160
  %4189 = vmatprep.subr.bf16.mxu0 0
  %4190 = vmatpush1.bf16.msra.mxu0 %v4159
  %4191 = vmatprep.subr.bf16.mxu0 0
  %4192 = vmatpush2.bf16.msra.mxu0 0
  %4193 = vmatprep.subr.bf16.mxu0 0
  %4194 = vmatpush2.bf16.msra.mxu0 0
  %4195 = vmatprep.subr.bf16.mxu0 0
  %4196 = vmatpush2.bf16.msra.mxu0 0
  %4197 = vmatprep.subr.bf16.mxu0 0
  %4198 = vmatpush2.bf16.msra.mxu0 0
  %4199 = vmatprep.subr.bf16.mxu0 0
  %4200 = vmatpush2.bf16.msra.mxu0 0
  %4201 = vmatprep.subr.bf16.mxu0 0
  %4202 = vmatpush2.bf16.msra.mxu0 0
  %4203 = vmatprep.subr.bf16.mxu0 0
  %4204 = vmatpush2.bf16.msra.mxu0 0
  %4205 = vmatprep.subr.bf16.mxu0 0
  %4206 = vmatpush2.bf16.msra.mxu0 0
  %4207 = vmatprep.mubr.bf16.mxu0 0
  %4208 = vmatmul.mubr.bf16.gmra.mxu0 %v4103
  %v4209 = vpop.f32.mrf.mxu0
  %v4210 = vadd.f32 0.0, %v4209
  %v4211 = vpop.f32.mrf.mxu0
  %v4212 = vpop.f32.mrf.mxu0
  %v4213 = vadd.f32 0.0, %v4212
  %v4214 = vpop.f32.mrf.mxu0
  %4215 = vmatprep.mubr.bf16.mxu0 0
  %4216 = vmatmul.mubr.bf16.gmra.mxu0 %v4104
  %v4217 = vpop.f32.mrf.mxu0
  %v4218 = vadd.f32 0.0, %v4217
  %v4219 = vpop.f32.mrf.mxu0
  %v4220 = vpop.f32.mrf.mxu0
  %v4221 = vadd.f32 0.0, %v4220
  %v4222 = vpop.f32.mrf.mxu0
  %4223 = vmatprep.mubr.bf16.mxu0 0
  %4224 = vmatmul.mubr.bf16.gmra.mxu0 %v4105
  %v4225 = vpop.f32.mrf.mxu0
  %v4226 = vadd.f32 0.0, %v4225
  %v4227 = vpop.f32.mrf.mxu0
  %v4228 = vpop.f32.mrf.mxu0
  %v4229 = vadd.f32 0.0, %v4228
  %v4230 = vpop.f32.mrf.mxu0
  %4231 = vmatprep.mubr.bf16.mxu0 0
  %4232 = vmatmul.mubr.bf16.gmra.mxu0 %v4106
  %v4233 = vpop.f32.mrf.mxu0
  %v4234 = vadd.f32 0.0, %v4233
  %v4235 = vpop.f32.mrf.mxu0
  %v4236 = vpop.f32.mrf.mxu0
  %v4237 = vadd.f32 0.0, %v4236
  %v4238 = vpop.f32.mrf.mxu0
  %4239 = vmatprep.mubr.bf16.mxu0 0
  %4240 = vmatmul.mubr.bf16.gmra.mxu0 %v4107
  %v4241 = vpop.f32.mrf.mxu0
  %v4242 = vadd.f32 0.0, %v4241
  %v4243 = vpop.f32.mrf.mxu0
  %v4244 = vpop.f32.mrf.mxu0
  %v4245 = vadd.f32 0.0, %v4244
  %v4246 = vpop.f32.mrf.mxu0
  %4247 = vmatprep.mubr.bf16.mxu0 0
  %4248 = vmatmul.mubr.bf16.gmra.mxu0 %v4108
  %v4249 = vpop.f32.mrf.mxu0
  %v4250 = vadd.f32 0.0, %v4249
  %v4251 = vpop.f32.mrf.mxu0
  %v4252 = vpop.f32.mrf.mxu0
  %v4253 = vadd.f32 0.0, %v4252
  %v4254 = vpop.f32.mrf.mxu0
  %4255 = vmatprep.mubr.bf16.mxu0 0
  %4256 = vmatmul.mubr.bf16.gmra.mxu0 %v4109
  %v4257 = vpop.f32.mrf.mxu0
  %v4258 = vadd.f32 0.0, %v4257
  %v4259 = vpop.f32.mrf.mxu0
  %v4260 = vpop.f32.mrf.mxu0
  %v4261 = vadd.f32 0.0, %v4260
  %v4262 = vpop.f32.mrf.mxu0
  %4263 = vmatprep.mubr.bf16.mxu0 0
  %4264 = vmatmul.mubr.bf16.gmra.mxu0 %v4110
  %v4265 = vpop.f32.mrf.mxu0
  %v4266 = vadd.f32 0.0, %v4265
  %v4267 = vpop.f32.mrf.mxu0
  %v4268 = vpop.f32.mrf.mxu0
  %v4269 = vadd.f32 0.0, %v4268
  %v4270 = vpop.f32.mrf.mxu0
  %4271 = vdwg.mxu0
  %v4272 = vpack.c.bf16 %v4213, %v4210
  %v4273 = vpack.c.bf16 %v4221, %v4218
  %v4274 = vpack.c.bf16 %v4229, %v4226
  %v4275 = vpack.c.bf16 %v4237, %v4234
  %v4276 = vpack.c.bf16 %v4245, %v4242
  %v4277 = vpack.c.bf16 %v4253, %v4250
  %v4278 = vpack.c.bf16 %v4261, %v4258
  %v4279 = vpack.c.bf16 %v4269, %v4266
  %v4280 = vld [vmem:[%s11] sm:$0xf]
  %v4281 = vld [vmem:[%s11 + $0x4] sm:$0xf]
  %v4282 = vld [vmem:[%s11 + $0x8] sm:$0xf]
  %v4283 = vld [vmem:[%s11 + $0xc] sm:$0xf]
  %v4288 = vunpack.c.l.b16 %v4280
  %v4289 = vunpack.c.l.b16 %v4281
  %v4290 = vunpack.c.l.b16 %v4282
  %v4291 = vunpack.c.l.b16 %v4283
  %v4292 = vpack.c.b16 %v4289, %v4288
  %v4293 = vpack.c.b16 %v4291, %v4290
  %v4297 = vsel %vm1455, %v4272, 0
  %v4300 = vsel %vm1455, %v4273, 0
  %v4303 = vsel %vm1455, %v4274, 0
  %v4306 = vsel %vm1455, %v4275, 0
  %v4309 = vsel %vm1455, %v4276, 0
  %v4312 = vsel %vm1455, %v4277, 0
  %v4315 = vsel %vm1455, %v4278, 0
  %v4318 = vsel %vm1455, %v4279, 0
  %4320 = vmatprep.subr.bf16.mxu0 0
  %4321 = vmatpush1.bf16.msra.mxu0 0
  %4322 = vmatprep.subr.bf16.mxu0 0
  %4323 = vmatpush1.bf16.msra.mxu0 0
  %4324 = vmatprep.subr.bf16.mxu0 0
  %4325 = vmatpush1.bf16.msra.mxu0 0
  %4326 = vmatprep.subr.bf16.mxu0 0
  %4327 = vmatpush1.bf16.msra.mxu0 0
  %4328 = vmatprep.subr.bf16.mxu0 0
  %4329 = vmatpush1.bf16.msra.mxu0 0
  %4330 = vmatprep.subr.bf16.mxu0 0
  %4331 = vmatpush1.bf16.msra.mxu0 0
  %4332 = vmatprep.subr.bf16.mxu0 0
  %4333 = vmatpush1.bf16.msra.mxu0 %v4293
  %4334 = vmatprep.subr.bf16.mxu0 0
  %4335 = vmatpush1.bf16.msra.mxu0 %v4292
  %4336 = vmatprep.subr.bf16.mxu0 0
  %4337 = vmatpush2.bf16.msra.mxu0 0
  %4338 = vmatprep.subr.bf16.mxu0 0
  %4339 = vmatpush2.bf16.msra.mxu0 0
  %4340 = vmatprep.subr.bf16.mxu0 0
  %4341 = vmatpush2.bf16.msra.mxu0 0
  %4342 = vmatprep.subr.bf16.mxu0 0
  %4343 = vmatpush2.bf16.msra.mxu0 0
  %4344 = vmatprep.subr.bf16.mxu0 0
  %4345 = vmatpush2.bf16.msra.mxu0 0
  %4346 = vmatprep.subr.bf16.mxu0 0
  %4347 = vmatpush2.bf16.msra.mxu0 0
  %4348 = vmatprep.subr.bf16.mxu0 0
  %4349 = vmatpush2.bf16.msra.mxu0 0
  %4350 = vmatprep.subr.bf16.mxu0 0
  %4351 = vmatpush2.bf16.msra.mxu0 0
  %4352 = vmatprep.mubr.bf16.mxu0 0
  %4353 = vmatmul.mubr.bf16.gmra.mxu0 %v4297
  %v4354 = vpop.f32.mrf.mxu0
  %v4355 = vadd.f32 0.0, %v4354
  %v4356 = vpop.f32.mrf.mxu0
  %v4357 = vpop.f32.mrf.mxu0
  %v4358 = vadd.f32 0.0, %v4357
  %v4359 = vpop.f32.mrf.mxu0
  %4360 = vmatprep.mubr.bf16.mxu0 0
  %4361 = vmatmul.mubr.bf16.gmra.mxu0 %v4300
  %v4362 = vpop.f32.mrf.mxu0
  %v4363 = vadd.f32 0.0, %v4362
  %v4364 = vpop.f32.mrf.mxu0
  %v4365 = vpop.f32.mrf.mxu0
  %v4366 = vadd.f32 0.0, %v4365
  %v4367 = vpop.f32.mrf.mxu0
  %4368 = vmatprep.mubr.bf16.mxu0 0
  %4369 = vmatmul.mubr.bf16.gmra.mxu0 %v4303
  %v4370 = vpop.f32.mrf.mxu0
  %v4371 = vadd.f32 0.0, %v4370
  %v4372 = vpop.f32.mrf.mxu0
  %v4373 = vpop.f32.mrf.mxu0
  %v4374 = vadd.f32 0.0, %v4373
  %v4375 = vpop.f32.mrf.mxu0
  %4376 = vmatprep.mubr.bf16.mxu0 0
  %4377 = vmatmul.mubr.bf16.gmra.mxu0 %v4306
  %v4378 = vpop.f32.mrf.mxu0
  %v4379 = vadd.f32 0.0, %v4378
  %v4380 = vpop.f32.mrf.mxu0
  %v4381 = vpop.f32.mrf.mxu0
  %v4382 = vadd.f32 0.0, %v4381
  %v4383 = vpop.f32.mrf.mxu0
  %4384 = vmatprep.mubr.bf16.mxu0 0
  %4385 = vmatmul.mubr.bf16.gmra.mxu0 %v4309
  %v4386 = vpop.f32.mrf.mxu0
  %v4387 = vadd.f32 0.0, %v4386
  %v4388 = vpop.f32.mrf.mxu0
  %v4389 = vpop.f32.mrf.mxu0
  %v4390 = vadd.f32 0.0, %v4389
  %v4391 = vpop.f32.mrf.mxu0
  %4392 = vmatprep.mubr.bf16.mxu0 0
  %4393 = vmatmul.mubr.bf16.gmra.mxu0 %v4312
  %v4394 = vpop.f32.mrf.mxu0
  %v4395 = vadd.f32 0.0, %v4394
  %v4396 = vpop.f32.mrf.mxu0
  %v4397 = vpop.f32.mrf.mxu0
  %v4398 = vadd.f32 0.0, %v4397
  %v4399 = vpop.f32.mrf.mxu0
  %4400 = vmatprep.mubr.bf16.mxu0 0
  %4401 = vmatmul.mubr.bf16.gmra.mxu0 %v4315
  %v4402 = vpop.f32.mrf.mxu0
  %v4403 = vadd.f32 0.0, %v4402
  %v4404 = vpop.f32.mrf.mxu0
  %v4405 = vpop.f32.mrf.mxu0
  %v4406 = vadd.f32 0.0, %v4405
  %v4407 = vpop.f32.mrf.mxu0
  %4408 = vmatprep.mubr.bf16.mxu0 0
  %4409 = vmatmul.mubr.bf16.gmra.mxu0 %v4318
  %v4410 = vpop.f32.mrf.mxu0
  %v4411 = vadd.f32 0.0, %v4410
  %v4412 = vpop.f32.mrf.mxu0
  %v4413 = vpop.f32.mrf.mxu0
  %v4414 = vadd.f32 0.0, %v4413
  %v4415 = vpop.f32.mrf.mxu0
  %4416 = vdwg.mxu0
  %v4417 = vpack.c.bf16 %v4358, %v4355
  %v4418 = vpack.c.bf16 %v4366, %v4363
  %v4419 = vpack.c.bf16 %v4374, %v4371
  %v4420 = vpack.c.bf16 %v4382, %v4379
  %v4421 = vpack.c.bf16 %v4390, %v4387
  %v4422 = vpack.c.bf16 %v4398, %v4395
  %v4423 = vpack.c.bf16 %v4406, %v4403
  %v4424 = vpack.c.bf16 %v4414, %v4411
  %4425 = vrot.lane.b32.xlu0 %v4355, 127
  %v4426 = vpop.permute.xlu0 %4425
  %4427 = vrot.lane.b32.xlu0 %v4358, 127
  %v4428 = vpop.permute.xlu0 %4427
  %4429 = vrot.lane.b32.xlu0 %v4363, 127
  %v4430 = vpop.permute.xlu0 %4429
  %4431 = vrot.lane.b32.xlu0 %v4366, 127
  %v4432 = vpop.permute.xlu0 %4431
  %4433 = vrot.lane.b32.xlu0 %v4371, 127
  %v4434 = vpop.permute.xlu0 %4433
  %4435 = vrot.lane.b32.xlu0 %v4374, 127
  %v4436 = vpop.permute.xlu0 %4435
  %4437 = vrot.lane.b32.xlu0 %v4379, 127
  %v4438 = vpop.permute.xlu0 %4437
  %4439 = vrot.lane.b32.xlu0 %v4382, 127
  %v4440 = vpop.permute.xlu0 %4439
  %4441 = vrot.lane.b32.xlu0 %v4387, 127
  %v4442 = vpop.permute.xlu0 %4441
  %4443 = vrot.lane.b32.xlu0 %v4390, 127
  %v4444 = vpop.permute.xlu0 %4443
  %4445 = vrot.lane.b32.xlu0 %v4395, 127
  %v4446 = vpop.permute.xlu0 %4445
  %4447 = vrot.lane.b32.xlu0 %v4398, 127
  %v4448 = vpop.permute.xlu0 %4447
  %4449 = vrot.lane.b32.xlu0 %v4403, 127
  %v4450 = vpop.permute.xlu0 %4449
  %4451 = vrot.lane.b32.xlu0 %v4406, 127
  %v4452 = vpop.permute.xlu0 %4451
  %4453 = vrot.lane.b32.xlu0 %v4411, 127
  %v4454 = vpop.permute.xlu0 %4453
  %4455 = vrot.lane.b32.xlu0 %v4414, 127
  %v4456 = vpop.permute.xlu0 %4455
  %v4457 = vmul.f32 %v4426, %v3305
  %v4458 = vmul.f32 %v4428, %v3305
  %v4459 = vmul.f32 %v4430, %v3305
  %v4460 = vmul.f32 %v4432, %v3305
  %v4461 = vmul.f32 %v4434, %v3305
  %v4462 = vmul.f32 %v4436, %v3305
  %v4463 = vmul.f32 %v4438, %v3305
  %v4464 = vmul.f32 %v4440, %v3305
  %v4465 = vmul.f32 %v4442, %v3305
  %v4466 = vmul.f32 %v4444, %v3305
  %v4467 = vmul.f32 %v4446, %v3305
  %v4468 = vmul.f32 %v4448, %v3305
  %v4469 = vmul.f32 %v4450, %v3305
  %v4470 = vmul.f32 %v4452, %v3305
  %v4471 = vmul.f32 %v4454, %v3305
  %v4472 = vmul.f32 %v4456, %v3305
  %v4473 = vpack.c.bf16 %v4458, %v4457
  %v4474 = vpack.c.bf16 %v4460, %v4459
  %v4475 = vpack.c.bf16 %v4462, %v4461
  %v4476 = vpack.c.bf16 %v4464, %v4463
  %v4477 = vpack.c.bf16 %v4466, %v4465
  %v4478 = vpack.c.bf16 %v4468, %v4467
  %v4479 = vpack.c.bf16 %v4470, %v4469
  %v4480 = vpack.c.bf16 %v4472, %v4471
  %4481 = vrot.lane.b32.xlu0 %v4355, 120
  %v4482 = vpop.permute.xlu0 %4481
  %4483 = vrot.lane.b32.xlu0 %v4358, 120
  %v4484 = vpop.permute.xlu0 %4483
  %4485 = vrot.lane.b32.xlu0 %v4363, 120
  %v4486 = vpop.permute.xlu0 %4485
  %4487 = vrot.lane.b32.xlu0 %v4366, 120
  %v4488 = vpop.permute.xlu0 %4487
  %4489 = vrot.lane.b32.xlu0 %v4371, 120
  %v4490 = vpop.permute.xlu0 %4489
  %4491 = vrot.lane.b32.xlu0 %v4374, 120
  %v4492 = vpop.permute.xlu0 %4491
  %4493 = vrot.lane.b32.xlu0 %v4379, 120
  %v4494 = vpop.permute.xlu0 %4493
  %4495 = vrot.lane.b32.xlu0 %v4382, 120
  %v4496 = vpop.permute.xlu0 %4495
  %4497 = vrot.lane.b32.xlu0 %v4387, 120
  %v4498 = vpop.permute.xlu0 %4497
  %4499 = vrot.lane.b32.xlu0 %v4390, 120
  %v4500 = vpop.permute.xlu0 %4499
  %4501 = vrot.lane.b32.xlu0 %v4395, 120
  %v4502 = vpop.permute.xlu0 %4501
  %4503 = vrot.lane.b32.xlu0 %v4398, 120
  %v4504 = vpop.permute.xlu0 %4503
  %4505 = vrot.lane.b32.xlu0 %v4403, 120
  %v4506 = vpop.permute.xlu0 %4505
  %4507 = vrot.lane.b32.xlu0 %v4406, 120
  %v4508 = vpop.permute.xlu0 %4507
  %4509 = vrot.lane.b32.xlu0 %v4411, 120
  %v4510 = vpop.permute.xlu0 %4509
  %4511 = vrot.lane.b32.xlu0 %v4414, 120
  %v4512 = vpop.permute.xlu0 %4511
  %v4513 = vmul.f32 %v4482, %v3377
  %v4514 = vmul.f32 %v4484, %v3377
  %v4515 = vmul.f32 %v4486, %v3377
  %v4516 = vmul.f32 %v4488, %v3377
  %v4517 = vmul.f32 %v4490, %v3377
  %v4518 = vmul.f32 %v4492, %v3377
  %v4519 = vmul.f32 %v4494, %v3377
  %v4520 = vmul.f32 %v4496, %v3377
  %v4521 = vmul.f32 %v4498, %v3377
  %v4522 = vmul.f32 %v4500, %v3377
  %v4523 = vmul.f32 %v4502, %v3377
  %v4524 = vmul.f32 %v4504, %v3377
  %v4525 = vmul.f32 %v4506, %v3377
  %v4526 = vmul.f32 %v4508, %v3377
  %v4527 = vmul.f32 %v4510, %v3377
  %v4528 = vmul.f32 %v4512, %v3377
  %v4529 = vpack.c.bf16 %v4514, %v4513
  %v4530 = vpack.c.bf16 %v4516, %v4515
  %v4531 = vpack.c.bf16 %v4518, %v4517
  %v4532 = vpack.c.bf16 %v4520, %v4519
  %v4533 = vpack.c.bf16 %v4522, %v4521
  %v4534 = vpack.c.bf16 %v4524, %v4523
  %v4535 = vpack.c.bf16 %v4526, %v4525
  %v4536 = vpack.c.bf16 %v4528, %v4527
  %4537 = vrot.lane.b32.xlu0 %v4355, 119
  %v4538 = vpop.permute.xlu0 %4537
  %4539 = vrot.lane.b32.xlu0 %v4358, 119
  %v4540 = vpop.permute.xlu0 %4539
  %4541 = vrot.lane.b32.xlu0 %v4363, 119
  %v4542 = vpop.permute.xlu0 %4541
  %4543 = vrot.lane.b32.xlu0 %v4366, 119
  %v4544 = vpop.permute.xlu0 %4543
  %4545 = vrot.lane.b32.xlu0 %v4371, 119
  %v4546 = vpop.permute.xlu0 %4545
  %4547 = vrot.lane.b32.xlu0 %v4374, 119
  %v4548 = vpop.permute.xlu0 %4547
  %4549 = vrot.lane.b32.xlu0 %v4379, 119
  %v4550 = vpop.permute.xlu0 %4549
  %4551 = vrot.lane.b32.xlu0 %v4382, 119
  %v4552 = vpop.permute.xlu0 %4551
  %4553 = vrot.lane.b32.xlu0 %v4387, 119
  %v4554 = vpop.permute.xlu0 %4553
  %4555 = vrot.lane.b32.xlu0 %v4390, 119
  %v4556 = vpop.permute.xlu0 %4555
  %4557 = vrot.lane.b32.xlu0 %v4395, 119
  %v4558 = vpop.permute.xlu0 %4557
  %4559 = vrot.lane.b32.xlu0 %v4398, 119
  %v4560 = vpop.permute.xlu0 %4559
  %4561 = vrot.lane.b32.xlu0 %v4403, 119
  %v4562 = vpop.permute.xlu0 %4561
  %4563 = vrot.lane.b32.xlu0 %v4406, 119
  %v4564 = vpop.permute.xlu0 %4563
  %4565 = vrot.lane.b32.xlu0 %v4411, 119
  %v4566 = vpop.permute.xlu0 %4565
  %4567 = vrot.lane.b32.xlu0 %v4414, 119
  %v4568 = vpop.permute.xlu0 %4567
  %v4569 = vmul.f32 %v4538, %v3413
  %v4570 = vmul.f32 %v4540, %v3413
  %v4571 = vmul.f32 %v4542, %v3413
  %v4572 = vmul.f32 %v4544, %v3413
  %v4573 = vmul.f32 %v4546, %v3413
  %v4574 = vmul.f32 %v4548, %v3413
  %v4575 = vmul.f32 %v4550, %v3413
  %v4576 = vmul.f32 %v4552, %v3413
  %v4577 = vmul.f32 %v4554, %v3413
  %v4578 = vmul.f32 %v4556, %v3413
  %v4579 = vmul.f32 %v4558, %v3413
  %v4580 = vmul.f32 %v4560, %v3413
  %v4581 = vmul.f32 %v4562, %v3413
  %v4582 = vmul.f32 %v4564, %v3413
  %v4583 = vmul.f32 %v4566, %v3413
  %v4584 = vmul.f32 %v4568, %v3413
  %v4585 = vpack.c.bf16 %v4570, %v4569
  %v4586 = vpack.c.bf16 %v4572, %v4571
  %v4587 = vpack.c.bf16 %v4574, %v4573
  %v4588 = vpack.c.bf16 %v4576, %v4575
  %v4589 = vpack.c.bf16 %v4578, %v4577
  %v4590 = vpack.c.bf16 %v4580, %v4579
  %v4591 = vpack.c.bf16 %v4582, %v4581
  %v4592 = vpack.c.bf16 %v4584, %v4583
  %v4593 = vld [vmem:[%s31] sm:$0xff]
  %v4594 = vld [vmem:[%s31 + $0x8] sm:$0xff]
  %v4595 = vld [vmem:[%s31 + $0x10] sm:$0xff]
  %v4596 = vld [vmem:[%s31 + $0x18] sm:$0xff]
  %v4597 = vld [vmem:[%s31 + $0x20] sm:$0xff]
  %v4598 = vld [vmem:[%s31 + $0x28] sm:$0xff]
  %v4599 = vld [vmem:[%s31 + $0x30] sm:$0xff]
  %v4600 = vld [vmem:[%s31 + $0x38] sm:$0xff]
  %v4601 = vld [vmem:[%s31 + $0x40] sm:$0xff]
  %v4602 = vld [vmem:[%s31 + $0x48] sm:$0xff]
  %v4603 = vld [vmem:[%s31 + $0x50] sm:$0xff]
  %v4604 = vld [vmem:[%s31 + $0x58] sm:$0xff]
  %v4605 = vld [vmem:[%s31 + $0x60] sm:$0xff]
  %v4606 = vld [vmem:[%s31 + $0x68] sm:$0xff]
  %v4607 = vld [vmem:[%s31 + $0x70] sm:$0xff]
  %v4608 = vld [vmem:[%s31 + $0x78] sm:$0xff]
  %v4609 = vld [vmem:[%s33] sm:$0xff]
  %v4610 = vld [vmem:[%s33 + $0x8] sm:$0xff]
  %v4611 = vld [vmem:[%s33 + $0x10] sm:$0xff]
  %v4612 = vld [vmem:[%s33 + $0x18] sm:$0xff]
  %v4613 = vld [vmem:[%s33 + $0x20] sm:$0xff]
  %v4614 = vld [vmem:[%s33 + $0x28] sm:$0xff]
  %v4615 = vld [vmem:[%s33 + $0x30] sm:$0xff]
  %v4616 = vld [vmem:[%s33 + $0x38] sm:$0xff]
  %4618 = vset.pattern.permute.xlu0 0
  %4619 = vperm.xlu0 %4618, %v4609
  %v4620 = vpop.permute.xlu0 %4619
  %4623 = vset.pattern.permute.xlu0 0
  %4624 = vperm.xlu0 %4623, %v4610
  %v4625 = vpop.permute.xlu0 %4624
  %4628 = vset.pattern.permute.xlu0 0
  %4629 = vperm.xlu0 %4628, %v4611
  %v4630 = vpop.permute.xlu0 %4629
  %4633 = vset.pattern.permute.xlu0 0
  %4634 = vperm.xlu0 %4633, %v4612
  %v4635 = vpop.permute.xlu0 %4634
  %4638 = vset.pattern.permute.xlu0 0
  %4639 = vperm.xlu0 %4638, %v4613
  %v4640 = vpop.permute.xlu0 %4639
  %4643 = vset.pattern.permute.xlu0 0
  %4644 = vperm.xlu0 %4643, %v4614
  %v4645 = vpop.permute.xlu0 %4644
  %4648 = vset.pattern.permute.xlu0 0
  %4649 = vperm.xlu0 %4648, %v4615
  %v4650 = vpop.permute.xlu0 %4649
  %4653 = vset.pattern.permute.xlu0 0
  %4654 = vperm.xlu0 %4653, %v4616
  %v4655 = vpop.permute.xlu0 %4654
  %v4673 = vunpack.c.l.b16 %v4593
  %v4674 = vunpack.c.h.b16 %v4593
  %v4675 = vunpack.c.l.b16 %v4594
  %v4676 = vunpack.c.h.b16 %v4594
  %v4677 = vunpack.c.l.b16 %v4595
  %v4678 = vunpack.c.h.b16 %v4595
  %v4679 = vunpack.c.l.b16 %v4596
  %v4680 = vunpack.c.h.b16 %v4596
  %v4681 = vunpack.c.l.b16 %v4597
  %v4682 = vunpack.c.h.b16 %v4597
  %v4683 = vunpack.c.l.b16 %v4598
  %v4684 = vunpack.c.h.b16 %v4598
  %v4685 = vunpack.c.l.b16 %v4599
  %v4686 = vunpack.c.h.b16 %v4599
  %v4687 = vunpack.c.l.b16 %v4600
  %v4688 = vunpack.c.h.b16 %v4600
  %v4689 = vunpack.c.l.b16 %v4601
  %v4690 = vunpack.c.h.b16 %v4601
  %v4691 = vunpack.c.l.b16 %v4602
  %v4692 = vunpack.c.h.b16 %v4602
  %v4693 = vunpack.c.l.b16 %v4603
  %v4694 = vunpack.c.h.b16 %v4603
  %v4695 = vunpack.c.l.b16 %v4604
  %v4696 = vunpack.c.h.b16 %v4604
  %v4697 = vunpack.c.l.b16 %v4605
  %v4698 = vunpack.c.h.b16 %v4605
  %v4699 = vunpack.c.l.b16 %v4606
  %v4700 = vunpack.c.h.b16 %v4606
  %v4701 = vunpack.c.l.b16 %v4607
  %v4702 = vunpack.c.h.b16 %v4607
  %v4703 = vunpack.c.l.b16 %v4608
  %v4704 = vunpack.c.h.b16 %v4608
  %v4705 = vpack.c.b16 %v4677, %v4673
  %v4706 = vpack.c.b16 %v4678, %v4674
  %v4707 = vpack.c.b16 %v4679, %v4675
  %v4708 = vpack.c.b16 %v4680, %v4676
  %v4709 = vpack.c.b16 %v4685, %v4681
  %v4710 = vpack.c.b16 %v4686, %v4682
  %v4711 = vpack.c.b16 %v4687, %v4683
  %v4712 = vpack.c.b16 %v4688, %v4684
  %v4713 = vpack.c.b16 %v4693, %v4689
  %v4714 = vpack.c.b16 %v4694, %v4690
  %v4715 = vpack.c.b16 %v4695, %v4691
  %v4716 = vpack.c.b16 %v4696, %v4692
  %v4717 = vpack.c.b16 %v4701, %v4697
  %v4718 = vpack.c.b16 %v4702, %v4698
  %v4719 = vpack.c.b16 %v4703, %v4699
  %v4720 = vpack.c.b16 %v4704, %v4700
  %4737 = vmatprep.subr.bf16.mxu0 0
  %4738 = vmatpush1.bf16.msra.mxu0 %v4424
  %4739 = vmatprep.subr.bf16.mxu0 0
  %4740 = vmatpush1.bf16.msra.mxu0 %v4423
  %4741 = vmatprep.subr.bf16.mxu0 0
  %4742 = vmatpush1.bf16.msra.mxu0 %v4422
  %4743 = vmatprep.subr.bf16.mxu0 0
  %4744 = vmatpush1.bf16.msra.mxu0 %v4421
  %4745 = vmatprep.subr.bf16.mxu0 0
  %4746 = vmatpush1.bf16.msra.mxu0 %v4420
  %4747 = vmatprep.subr.bf16.mxu0 0
  %4748 = vmatpush1.bf16.msra.mxu0 %v4419
  %4749 = vmatprep.subr.bf16.mxu0 0
  %4750 = vmatpush1.bf16.msra.mxu0 %v4418
  %4751 = vmatprep.subr.bf16.mxu0 0
  %4752 = vmatpush1.bf16.msra.mxu0 %v4417
  %4753 = vmatprep.subr.bf16.mxu0 0
  %4754 = vmatpush2.bf16.msra.mxu0 %v4480
  %4755 = vmatprep.subr.bf16.mxu0 0
  %4756 = vmatpush2.bf16.msra.mxu0 %v4479
  %4757 = vmatprep.subr.bf16.mxu0 0
  %4758 = vmatpush2.bf16.msra.mxu0 %v4478
  %4759 = vmatprep.subr.bf16.mxu0 0
  %4760 = vmatpush2.bf16.msra.mxu0 %v4477
  %4761 = vmatprep.subr.bf16.mxu0 0
  %4762 = vmatpush2.bf16.msra.mxu0 %v4476
  %4763 = vmatprep.subr.bf16.mxu0 0
  %4764 = vmatpush2.bf16.msra.mxu0 %v4475
  %4765 = vmatprep.subr.bf16.mxu0 0
  %4766 = vmatpush2.bf16.msra.mxu0 %v4474
  %4767 = vmatprep.subr.bf16.mxu0 0
  %4768 = vmatpush2.bf16.msra.mxu0 %v4473
  %4769 = vmatprep.mubr.bf16.mxu0 %v4706
  %4770 = vmatmul.mubr.bf16.gmra.mxu0 %v4705
  %v4771 = vpop.f32.mrf.mxu0
  %v4772 = vadd.f32 %v4620, %v4771
  %v4773 = vpop.f32.mrf.mxu0
  %v4774 = vpop.f32.mrf.mxu0
  %v4775 = vadd.f32 %v4625, %v4774
  %v4776 = vpop.f32.mrf.mxu0
  %4777 = vmatprep.mubr.bf16.mxu0 %v4710
  %4778 = vmatmul.mubr.bf16.gmra.mxu0 %v4709
  %v4779 = vpop.f32.mrf.mxu0
  %v4780 = vadd.f32 %v4630, %v4779
  %v4781 = vpop.f32.mrf.mxu0
  %v4782 = vpop.f32.mrf.mxu0
  %v4783 = vadd.f32 %v4635, %v4782
  %v4784 = vpop.f32.mrf.mxu0
  %4785 = vmatprep.mubr.bf16.mxu0 %v4714
  %4786 = vmatmul.mubr.bf16.gmra.mxu0 %v4713
  %v4787 = vpop.f32.mrf.mxu0
  %v4788 = vadd.f32 %v4640, %v4787
  %v4789 = vpop.f32.mrf.mxu0
  %v4790 = vpop.f32.mrf.mxu0
  %v4791 = vadd.f32 %v4645, %v4790
  %v4792 = vpop.f32.mrf.mxu0
  %4793 = vmatprep.mubr.bf16.mxu0 %v4718
  %4794 = vmatmul.mubr.bf16.gmra.mxu0 %v4717
  %v4795 = vpop.f32.mrf.mxu0
  %v4796 = vadd.f32 %v4650, %v4795
  %v4797 = vpop.f32.mrf.mxu0
  %v4798 = vpop.f32.mrf.mxu0
  %v4799 = vadd.f32 %v4655, %v4798
  %v4800 = vpop.f32.mrf.mxu0
  %4801 = vdwg.mxu0
  %4802 = vmatprep.subr.bf16.mxu0 0
  %4803 = vmatpush1.bf16.msra.mxu0 %v4536
  %4804 = vmatprep.subr.bf16.mxu0 0
  %4805 = vmatpush1.bf16.msra.mxu0 %v4535
  %4806 = vmatprep.subr.bf16.mxu0 0
  %4807 = vmatpush1.bf16.msra.mxu0 %v4534
  %4808 = vmatprep.subr.bf16.mxu0 0
  %4809 = vmatpush1.bf16.msra.mxu0 %v4533
  %4810 = vmatprep.subr.bf16.mxu0 0
  %4811 = vmatpush1.bf16.msra.mxu0 %v4532
  %4812 = vmatprep.subr.bf16.mxu0 0
  %4813 = vmatpush1.bf16.msra.mxu0 %v4531
  %4814 = vmatprep.subr.bf16.mxu0 0
  %4815 = vmatpush1.bf16.msra.mxu0 %v4530
  %4816 = vmatprep.subr.bf16.mxu0 0
  %4817 = vmatpush1.bf16.msra.mxu0 %v4529
  %4818 = vmatprep.subr.bf16.mxu0 0
  %4819 = vmatpush2.bf16.msra.mxu0 %v4592
  %4820 = vmatprep.subr.bf16.mxu0 0
  %4821 = vmatpush2.bf16.msra.mxu0 %v4591
  %4822 = vmatprep.subr.bf16.mxu0 0
  %4823 = vmatpush2.bf16.msra.mxu0 %v4590
  %4824 = vmatprep.subr.bf16.mxu0 0
  %4825 = vmatpush2.bf16.msra.mxu0 %v4589
  %4826 = vmatprep.subr.bf16.mxu0 0
  %4827 = vmatpush2.bf16.msra.mxu0 %v4588
  %4828 = vmatprep.subr.bf16.mxu0 0
  %4829 = vmatpush2.bf16.msra.mxu0 %v4587
  %4830 = vmatprep.subr.bf16.mxu0 0
  %4831 = vmatpush2.bf16.msra.mxu0 %v4586
  %4832 = vmatprep.subr.bf16.mxu0 0
  %4833 = vmatpush2.bf16.msra.mxu0 %v4585
  %4834 = vmatprep.mubr.bf16.mxu0 %v4708
  %4835 = vmatmul.mubr.bf16.gmra.mxu0 %v4707
  %v4836 = vpop.f32.mrf.mxu0
  %v4837 = vadd.f32 %v4772, %v4836
  %v4838 = vpop.f32.mrf.mxu0
  %v4839 = vpop.f32.mrf.mxu0
  %v4840 = vadd.f32 %v4775, %v4839
  %v4841 = vpop.f32.mrf.mxu0
  %4842 = vmatprep.mubr.bf16.mxu0 %v4712
  %4843 = vmatmul.mubr.bf16.gmra.mxu0 %v4711
  %v4844 = vpop.f32.mrf.mxu0
  %v4845 = vadd.f32 %v4780, %v4844
  %v4846 = vpop.f32.mrf.mxu0
  %v4847 = vpop.f32.mrf.mxu0
  %v4848 = vadd.f32 %v4783, %v4847
  %v4849 = vpop.f32.mrf.mxu0
  %4850 = vmatprep.mubr.bf16.mxu0 %v4716
  %4851 = vmatmul.mubr.bf16.gmra.mxu0 %v4715
  %v4852 = vpop.f32.mrf.mxu0
  %v4853 = vadd.f32 %v4788, %v4852
  %v4854 = vpop.f32.mrf.mxu0
  %v4855 = vpop.f32.mrf.mxu0
  %v4856 = vadd.f32 %v4791, %v4855
  %v4857 = vpop.f32.mrf.mxu0
  %4858 = vmatprep.mubr.bf16.mxu0 %v4720
  %4859 = vmatmul.mubr.bf16.gmra.mxu0 %v4719
  %v4860 = vpop.f32.mrf.mxu0
  %v4861 = vadd.f32 %v4796, %v4860
  %v4862 = vpop.f32.mrf.mxu0
  %v4863 = vpop.f32.mrf.mxu0
  %v4864 = vadd.f32 %v4799, %v4863
  %v4865 = vpop.f32.mrf.mxu0
  %4866 = vdwg.mxu0
  %v4867 = vmax.f32 %v4837, 0.0
  %v4868 = vmax.f32 %v4840, 0.0
  %v4869 = vmax.f32 %v4845, 0.0
  %v4870 = vmax.f32 %v4848, 0.0
  %v4871 = vmax.f32 %v4853, 0.0
  %v4872 = vmax.f32 %v4856, 0.0
  %v4873 = vmax.f32 %v4861, 0.0
  %v4874 = vmax.f32 %v4864, 0.0
  %4875 = vrot.lane.b32.xlu0 %v4867, 9
  %v4876 = vpop.permute.xlu0 %4875
  %4877 = vrot.lane.b32.xlu0 %v4868, 9
  %v4878 = vpop.permute.xlu0 %4877
  %4879 = vrot.lane.b32.xlu0 %v4869, 9
  %v4880 = vpop.permute.xlu0 %4879
  %4881 = vrot.lane.b32.xlu0 %v4870, 9
  %v4882 = vpop.permute.xlu0 %4881
  %4883 = vrot.lane.b32.xlu0 %v4871, 9
  %v4884 = vpop.permute.xlu0 %4883
  %4885 = vrot.lane.b32.xlu0 %v4872, 9
  %v4886 = vpop.permute.xlu0 %4885
  %4887 = vrot.lane.b32.xlu0 %v4873, 9
  %v4888 = vpop.permute.xlu0 %4887
  %4889 = vrot.lane.b32.xlu0 %v4874, 9
  %v4890 = vpop.permute.xlu0 %4889
  %v4891 = vmul.f32 %v4876, %v3157
  %v4892 = vmul.f32 %v4878, %v3157
  %v4893 = vmul.f32 %v4880, %v3157
  %v4894 = vmul.f32 %v4882, %v3157
  %v4895 = vmul.f32 %v4884, %v3157
  %v4896 = vmul.f32 %v4886, %v3157
  %v4897 = vmul.f32 %v4888, %v3157
  %v4898 = vmul.f32 %v4890, %v3157
  %v4899 = vpack.c.bf16 %v4892, %v4891
  %v4900 = vpack.c.bf16 %v4894, %v4893
  %v4901 = vpack.c.bf16 %v4896, %v4895
  %v4902 = vpack.c.bf16 %v4898, %v4897
  %4903 = vrot.lane.b32.xlu0 %v4867, 8
  %v4904 = vpop.permute.xlu0 %4903
  %4905 = vrot.lane.b32.xlu0 %v4868, 8
  %v4906 = vpop.permute.xlu0 %4905
  %4907 = vrot.lane.b32.xlu0 %v4869, 8
  %v4908 = vpop.permute.xlu0 %4907
  %4909 = vrot.lane.b32.xlu0 %v4870, 8
  %v4910 = vpop.permute.xlu0 %4909
  %4911 = vrot.lane.b32.xlu0 %v4871, 8
  %v4912 = vpop.permute.xlu0 %4911
  %4913 = vrot.lane.b32.xlu0 %v4872, 8
  %v4914 = vpop.permute.xlu0 %4913
  %4915 = vrot.lane.b32.xlu0 %v4873, 8
  %v4916 = vpop.permute.xlu0 %4915
  %4917 = vrot.lane.b32.xlu0 %v4874, 8
  %v4918 = vpop.permute.xlu0 %4917
  %v4919 = vmul.f32 %v4904, %v3193
  %v4920 = vmul.f32 %v4906, %v3193
  %v4921 = vmul.f32 %v4908, %v3193
  %v4922 = vmul.f32 %v4910, %v3193
  %v4923 = vmul.f32 %v4912, %v3193
  %v4924 = vmul.f32 %v4914, %v3193
  %v4925 = vmul.f32 %v4916, %v3193
  %v4926 = vmul.f32 %v4918, %v3193
  %v4927 = vpack.c.bf16 %v4920, %v4919
  %v4928 = vpack.c.bf16 %v4922, %v4921
  %v4929 = vpack.c.bf16 %v4924, %v4923
  %v4930 = vpack.c.bf16 %v4926, %v4925
  %4931 = vrot.lane.b32.xlu0 %v4867, 7
  %v4932 = vpop.permute.xlu0 %4931
  %4933 = vrot.lane.b32.xlu0 %v4868, 7
  %v4934 = vpop.permute.xlu0 %4933
  %4935 = vrot.lane.b32.xlu0 %v4869, 7
  %v4936 = vpop.permute.xlu0 %4935
  %4937 = vrot.lane.b32.xlu0 %v4870, 7
  %v4938 = vpop.permute.xlu0 %4937
  %4939 = vrot.lane.b32.xlu0 %v4871, 7
  %v4940 = vpop.permute.xlu0 %4939
  %4941 = vrot.lane.b32.xlu0 %v4872, 7
  %v4942 = vpop.permute.xlu0 %4941
  %4943 = vrot.lane.b32.xlu0 %v4873, 7
  %v4944 = vpop.permute.xlu0 %4943
  %4945 = vrot.lane.b32.xlu0 %v4874, 7
  %v4946 = vpop.permute.xlu0 %4945
  %v4947 = vmul.f32 %v4932, %v3229
  %v4948 = vmul.f32 %v4934, %v3229
  %v4949 = vmul.f32 %v4936, %v3229
  %v4950 = vmul.f32 %v4938, %v3229
  %v4951 = vmul.f32 %v4940, %v3229
  %v4952 = vmul.f32 %v4942, %v3229
  %v4953 = vmul.f32 %v4944, %v3229
  %v4954 = vmul.f32 %v4946, %v3229
  %v4955 = vpack.c.bf16 %v4948, %v4947
  %v4956 = vpack.c.bf16 %v4950, %v4949
  %v4957 = vpack.c.bf16 %v4952, %v4951
  %v4958 = vpack.c.bf16 %v4954, %v4953
  %4959 = vrot.lane.b32.xlu0 %v4867, 1
  %v4960 = vpop.permute.xlu0 %4959
  %4961 = vrot.lane.b32.xlu0 %v4868, 1
  %v4962 = vpop.permute.xlu0 %4961
  %4963 = vrot.lane.b32.xlu0 %v4869, 1
  %v4964 = vpop.permute.xlu0 %4963
  %4965 = vrot.lane.b32.xlu0 %v4870, 1
  %v4966 = vpop.permute.xlu0 %4965
  %4967 = vrot.lane.b32.xlu0 %v4871, 1
  %v4968 = vpop.permute.xlu0 %4967
  %4969 = vrot.lane.b32.xlu0 %v4872, 1
  %v4970 = vpop.permute.xlu0 %4969
  %4971 = vrot.lane.b32.xlu0 %v4873, 1
  %v4972 = vpop.permute.xlu0 %4971
  %4973 = vrot.lane.b32.xlu0 %v4874, 1
  %v4974 = vpop.permute.xlu0 %4973
  %v4975 = vmul.f32 %v4960, %v3265
  %v4976 = vmul.f32 %v4962, %v3265
  %v4977 = vmul.f32 %v4964, %v3265
  %v4978 = vmul.f32 %v4966, %v3265
  %v4979 = vmul.f32 %v4968, %v3265
  %v4980 = vmul.f32 %v4970, %v3265
  %v4981 = vmul.f32 %v4972, %v3265
  %v4982 = vmul.f32 %v4974, %v3265
  %v4983 = vpack.c.bf16 %v4976, %v4975
  %v4984 = vpack.c.bf16 %v4978, %v4977
  %v4985 = vpack.c.bf16 %v4980, %v4979
  %v4986 = vpack.c.bf16 %v4982, %v4981
  %v4987 = vpack.c.bf16 %v4868, %v4867
  %v4988 = vpack.c.bf16 %v4870, %v4869
  %v4989 = vpack.c.bf16 %v4872, %v4871
  %v4990 = vpack.c.bf16 %v4874, %v4873
  %4991 = vrot.lane.b32.xlu0 %v4867, 127
  %v4992 = vpop.permute.xlu0 %4991
  %4993 = vrot.lane.b32.xlu0 %v4868, 127
  %v4994 = vpop.permute.xlu0 %4993
  %4995 = vrot.lane.b32.xlu0 %v4869, 127
  %v4996 = vpop.permute.xlu0 %4995
  %4997 = vrot.lane.b32.xlu0 %v4870, 127
  %v4998 = vpop.permute.xlu0 %4997
  %4999 = vrot.lane.b32.xlu0 %v4871, 127
  %v5000 = vpop.permute.xlu0 %4999
  %5001 = vrot.lane.b32.xlu0 %v4872, 127
  %v5002 = vpop.permute.xlu0 %5001
  %5003 = vrot.lane.b32.xlu0 %v4873, 127
  %v5004 = vpop.permute.xlu0 %5003
  %5005 = vrot.lane.b32.xlu0 %v4874, 127
  %v5006 = vpop.permute.xlu0 %5005
  %v5007 = vmul.f32 %v4992, %v3305
  %v5008 = vmul.f32 %v4994, %v3305
  %v5009 = vmul.f32 %v4996, %v3305
  %v5010 = vmul.f32 %v4998, %v3305
  %v5011 = vmul.f32 %v5000, %v3305
  %v5012 = vmul.f32 %v5002, %v3305
  %v5013 = vmul.f32 %v5004, %v3305
  %v5014 = vmul.f32 %v5006, %v3305
  %v5015 = vpack.c.bf16 %v5008, %v5007
  %v5016 = vpack.c.bf16 %v5010, %v5009
  %v5017 = vpack.c.bf16 %v5012, %v5011
  %v5018 = vpack.c.bf16 %v5014, %v5013
  %5019 = vrot.lane.b32.xlu0 %v4867, 121
  %v5020 = vpop.permute.xlu0 %5019
  %5021 = vrot.lane.b32.xlu0 %v4868, 121
  %v5022 = vpop.permute.xlu0 %5021
  %5023 = vrot.lane.b32.xlu0 %v4869, 121
  %v5024 = vpop.permute.xlu0 %5023
  %5025 = vrot.lane.b32.xlu0 %v4870, 121
  %v5026 = vpop.permute.xlu0 %5025
  %5027 = vrot.lane.b32.xlu0 %v4871, 121
  %v5028 = vpop.permute.xlu0 %5027
  %5029 = vrot.lane.b32.xlu0 %v4872, 121
  %v5030 = vpop.permute.xlu0 %5029
  %5031 = vrot.lane.b32.xlu0 %v4873, 121
  %v5032 = vpop.permute.xlu0 %5031
  %5033 = vrot.lane.b32.xlu0 %v4874, 121
  %v5034 = vpop.permute.xlu0 %5033
  %v5035 = vmul.f32 %v5020, %v3341
  %v5036 = vmul.f32 %v5022, %v3341
  %v5037 = vmul.f32 %v5024, %v3341
  %v5038 = vmul.f32 %v5026, %v3341
  %v5039 = vmul.f32 %v5028, %v3341
  %v5040 = vmul.f32 %v5030, %v3341
  %v5041 = vmul.f32 %v5032, %v3341
  %v5042 = vmul.f32 %v5034, %v3341
  %v5043 = vpack.c.bf16 %v5036, %v5035
  %v5044 = vpack.c.bf16 %v5038, %v5037
  %v5045 = vpack.c.bf16 %v5040, %v5039
  %v5046 = vpack.c.bf16 %v5042, %v5041
  %5047 = vrot.lane.b32.xlu0 %v4867, 120
  %v5048 = vpop.permute.xlu0 %5047
  %5049 = vrot.lane.b32.xlu0 %v4868, 120
  %v5050 = vpop.permute.xlu0 %5049
  %5051 = vrot.lane.b32.xlu0 %v4869, 120
  %v5052 = vpop.permute.xlu0 %5051
  %5053 = vrot.lane.b32.xlu0 %v4870, 120
  %v5054 = vpop.permute.xlu0 %5053
  %5055 = vrot.lane.b32.xlu0 %v4871, 120
  %v5056 = vpop.permute.xlu0 %5055
  %5057 = vrot.lane.b32.xlu0 %v4872, 120
  %v5058 = vpop.permute.xlu0 %5057
  %5059 = vrot.lane.b32.xlu0 %v4873, 120
  %v5060 = vpop.permute.xlu0 %5059
  %5061 = vrot.lane.b32.xlu0 %v4874, 120
  %v5062 = vpop.permute.xlu0 %5061
  %v5063 = vmul.f32 %v5048, %v3377
  %v5064 = vmul.f32 %v5050, %v3377
  %v5065 = vmul.f32 %v5052, %v3377
  %v5066 = vmul.f32 %v5054, %v3377
  %v5067 = vmul.f32 %v5056, %v3377
  %v5068 = vmul.f32 %v5058, %v3377
  %v5069 = vmul.f32 %v5060, %v3377
  %v5070 = vmul.f32 %v5062, %v3377
  %v5071 = vpack.c.bf16 %v5064, %v5063
  %v5072 = vpack.c.bf16 %v5066, %v5065
  %v5073 = vpack.c.bf16 %v5068, %v5067
  %v5074 = vpack.c.bf16 %v5070, %v5069
  %5075 = vrot.lane.b32.xlu0 %v4867, 119
  %v5076 = vpop.permute.xlu0 %5075
  %5077 = vrot.lane.b32.xlu0 %v4868, 119
  %v5078 = vpop.permute.xlu0 %5077
  %5079 = vrot.lane.b32.xlu0 %v4869, 119
  %v5080 = vpop.permute.xlu0 %5079
  %5081 = vrot.lane.b32.xlu0 %v4870, 119
  %v5082 = vpop.permute.xlu0 %5081
  %5083 = vrot.lane.b32.xlu0 %v4871, 119
  %v5084 = vpop.permute.xlu0 %5083
  %5085 = vrot.lane.b32.xlu0 %v4872, 119
  %v5086 = vpop.permute.xlu0 %5085
  %5087 = vrot.lane.b32.xlu0 %v4873, 119
  %v5088 = vpop.permute.xlu0 %5087
  %5089 = vrot.lane.b32.xlu0 %v4874, 119
  %v5090 = vpop.permute.xlu0 %5089
  %v5091 = vmul.f32 %v5076, %v3413
  %v5092 = vmul.f32 %v5078, %v3413
  %v5093 = vmul.f32 %v5080, %v3413
  %v5094 = vmul.f32 %v5082, %v3413
  %v5095 = vmul.f32 %v5084, %v3413
  %v5096 = vmul.f32 %v5086, %v3413
  %v5097 = vmul.f32 %v5088, %v3413
  %v5098 = vmul.f32 %v5090, %v3413
  %v5099 = vpack.c.bf16 %v5092, %v5091
  %v5100 = vpack.c.bf16 %v5094, %v5093
  %v5101 = vpack.c.bf16 %v5096, %v5095
  %v5102 = vpack.c.bf16 %v5098, %v5097
  %v5103 = vld [vmem:[%s35] sm:$0xff]
  %v5104 = vld [vmem:[%s35 + $0x8] sm:$0xff]
  %v5105 = vld [vmem:[%s35 + $0x10] sm:$0xf]
  %v5106 = vld [vmem:[%s35 + $0x14] sm:$0xff]
  %v5107 = vld [vmem:[%s35 + $0x1c] sm:$0xff]
  %v5108 = vld [vmem:[%s35 + $0x24] sm:$0xf]
  %v5109 = vld [vmem:[%s35 + $0x28] sm:$0xff]
  %v5110 = vld [vmem:[%s35 + $0x30] sm:$0xff]
  %v5111 = vld [vmem:[%s35 + $0x38] sm:$0xf]
  %v5112 = vld [vmem:[%s35 + $0x3c] sm:$0xff]
  %v5113 = vld [vmem:[%s35 + $0x44] sm:$0xff]
  %v5114 = vld [vmem:[%s35 + $0x4c] sm:$0xf]
  %v5115 = vld [vmem:[%s35 + $0x50] sm:$0xff]
  %v5116 = vld [vmem:[%s35 + $0x58] sm:$0xff]
  %v5117 = vld [vmem:[%s35 + $0x60] sm:$0xf]
  %v5118 = vld [vmem:[%s35 + $0x64] sm:$0xff]
  %v5119 = vld [vmem:[%s35 + $0x6c] sm:$0xff]
  %v5120 = vld [vmem:[%s35 + $0x74] sm:$0xf]
  %v5121 = vld [vmem:[%s35 + $0x78] sm:$0xff]
  %v5122 = vld [vmem:[%s35 + $0x80] sm:$0xff]
  %v5123 = vld [vmem:[%s35 + $0x88] sm:$0xf]
  %v5124 = vld [vmem:[%s35 + $0x8c] sm:$0xff]
  %v5125 = vld [vmem:[%s35 + $0x94] sm:$0xff]
  %v5126 = vld [vmem:[%s35 + $0x9c] sm:$0xf]
  %v5127 = vld [vmem:[%s37] sm:$0xff]
  %v5128 = vld [vmem:[%s37 + $0x8] sm:$0xff]
  %v5129 = vld [vmem:[%s37 + $0x10] sm:$0xf]
  %v5130 = vld [vmem:[%s37 + $0x14] sm:$0xff]
  %v5131 = vld [vmem:[%s37 + $0x1c] sm:$0xff]
  %v5132 = vld [vmem:[%s37 + $0x24] sm:$0xf]
  %v5133 = vld [vmem:[%s37 + $0x28] sm:$0xff]
  %v5134 = vld [vmem:[%s37 + $0x30] sm:$0xff]
  %v5135 = vld [vmem:[%s37 + $0x38] sm:$0xf]
  %v5136 = vld [vmem:[%s37 + $0x3c] sm:$0xff]
  %v5137 = vld [vmem:[%s37 + $0x44] sm:$0xff]
  %v5138 = vld [vmem:[%s37 + $0x4c] sm:$0xf]
  %v5139 = vld [vmem:[%s37 + $0x50] sm:$0xff]
  %v5140 = vld [vmem:[%s37 + $0x58] sm:$0xff]
  %v5141 = vld [vmem:[%s37 + $0x60] sm:$0xf]
  %v5142 = vld [vmem:[%s37 + $0x64] sm:$0xff]
  %v5143 = vld [vmem:[%s37 + $0x6c] sm:$0xff]
  %v5144 = vld [vmem:[%s37 + $0x74] sm:$0xf]
  %v5145 = vld [vmem:[%s37 + $0x78] sm:$0xff]
  %v5146 = vld [vmem:[%s37 + $0x80] sm:$0xff]
  %v5147 = vld [vmem:[%s37 + $0x88] sm:$0xf]
  %v5148 = vld [vmem:[%s37 + $0x8c] sm:$0xff]
  %v5149 = vld [vmem:[%s37 + $0x94] sm:$0xff]
  %v5150 = vld [vmem:[%s37 + $0x9c] sm:$0xf]
  %v5175 = vunpack.c.l.b16 %v5127
  %v5176 = vunpack.c.h.b16 %v5127
  %v5177 = vunpack.c.l.b16 %v5128
  %v5178 = vunpack.c.h.b16 %v5128
  %v5179 = vunpack.c.l.b16 %v5129
  %v5180 = vunpack.c.l.b16 %v5130
  %v5181 = vunpack.c.h.b16 %v5130
  %v5182 = vunpack.c.l.b16 %v5131
  %v5183 = vunpack.c.h.b16 %v5131
  %v5184 = vunpack.c.l.b16 %v5132
  %v5185 = vunpack.c.l.b16 %v5133
  %v5186 = vunpack.c.h.b16 %v5133
  %v5187 = vunpack.c.l.b16 %v5134
  %v5188 = vunpack.c.h.b16 %v5134
  %v5189 = vunpack.c.l.b16 %v5135
  %v5190 = vunpack.c.l.b16 %v5136
  %v5191 = vunpack.c.h.b16 %v5136
  %v5192 = vunpack.c.l.b16 %v5137
  %v5193 = vunpack.c.h.b16 %v5137
  %v5194 = vunpack.c.l.b16 %v5138
  %v5195 = vunpack.c.l.b16 %v5139
  %v5196 = vunpack.c.h.b16 %v5139
  %v5197 = vunpack.c.l.b16 %v5140
  %v5198 = vunpack.c.h.b16 %v5140
  %v5199 = vunpack.c.l.b16 %v5141
  %v5200 = vunpack.c.l.b16 %v5142
  %v5201 = vunpack.c.h.b16 %v5142
  %v5202 = vunpack.c.l.b16 %v5143
  %v5203 = vunpack.c.h.b16 %v5143
  %v5204 = vunpack.c.l.b16 %v5144
  %v5205 = vunpack.c.l.b16 %v5145
  %v5206 = vunpack.c.h.b16 %v5145
  %v5207 = vunpack.c.l.b16 %v5146
  %v5208 = vunpack.c.h.b16 %v5146
  %v5209 = vunpack.c.l.b16 %v5147
  %v5210 = vunpack.c.l.b16 %v5148
  %v5211 = vunpack.c.h.b16 %v5148
  %v5212 = vunpack.c.l.b16 %v5149
  %v5213 = vunpack.c.h.b16 %v5149
  %v5214 = vunpack.c.l.b16 %v5150
  %v5215 = vpack.c.b16 %v5180, %v5175
  %v5216 = vpack.c.b16 %v5181, %v5176
  %v5217 = vpack.c.b16 %v5182, %v5177
  %v5218 = vpack.c.b16 %v5183, %v5178
  %v5219 = vpack.c.b16 %v5184, %v5179
  %v5220 = vpack.c.b16 %v5190, %v5185
  %v5221 = vpack.c.b16 %v5191, %v5186
  %v5222 = vpack.c.b16 %v5192, %v5187
  %v5223 = vpack.c.b16 %v5193, %v5188
  %v5224 = vpack.c.b16 %v5194, %v5189
  %v5225 = vpack.c.b16 %v5200, %v5195
  %v5226 = vpack.c.b16 %v5201, %v5196
  %v5227 = vpack.c.b16 %v5202, %v5197
  %v5228 = vpack.c.b16 %v5203, %v5198
  %v5229 = vpack.c.b16 %v5204, %v5199
  %v5230 = vpack.c.b16 %v5210, %v5205
  %v5231 = vpack.c.b16 %v5211, %v5206
  %v5232 = vpack.c.b16 %v5212, %v5207
  %v5233 = vpack.c.b16 %v5213, %v5208
  %v5234 = vpack.c.b16 %v5214, %v5209
  %v5252 = vsel %vm3771, %v5219, 0
  %v5255 = vsel %vm3771, %v5224, 0
  %v5258 = vsel %vm3771, %v5229, 0
  %v5261 = vsel %vm3771, %v5234, 0
  %5263 = vmatprep.subr.bf16.mxu0 0
  %5264 = vmatpush1.bf16.msra.mxu0 %v4930
  %5265 = vmatprep.subr.bf16.mxu0 0
  %5266 = vmatpush1.bf16.msra.mxu0 %v4929
  %5267 = vmatprep.subr.bf16.mxu0 0
  %5268 = vmatpush1.bf16.msra.mxu0 %v4928
  %5269 = vmatprep.subr.bf16.mxu0 0
  %5270 = vmatpush1.bf16.msra.mxu0 %v4927
  %5271 = vmatprep.subr.bf16.mxu0 0
  %5272 = vmatpush1.bf16.msra.mxu0 %v4902
  %5273 = vmatprep.subr.bf16.mxu0 0
  %5274 = vmatpush1.bf16.msra.mxu0 %v4901
  %5275 = vmatprep.subr.bf16.mxu0 0
  %5276 = vmatpush1.bf16.msra.mxu0 %v4900
  %5277 = vmatprep.subr.bf16.mxu0 0
  %5278 = vmatpush1.bf16.msra.mxu0 %v4899
  %5279 = vmatprep.subr.bf16.mxu0 0
  %5280 = vmatpush2.bf16.msra.mxu0 %v4986
  %5281 = vmatprep.subr.bf16.mxu0 0
  %5282 = vmatpush2.bf16.msra.mxu0 %v4985
  %5283 = vmatprep.subr.bf16.mxu0 0
  %5284 = vmatpush2.bf16.msra.mxu0 %v4984
  %5285 = vmatprep.subr.bf16.mxu0 0
  %5286 = vmatpush2.bf16.msra.mxu0 %v4983
  %5287 = vmatprep.subr.bf16.mxu0 0
  %5288 = vmatpush2.bf16.msra.mxu0 %v4958
  %5289 = vmatprep.subr.bf16.mxu0 0
  %5290 = vmatpush2.bf16.msra.mxu0 %v4957
  %5291 = vmatprep.subr.bf16.mxu0 0
  %5292 = vmatpush2.bf16.msra.mxu0 %v4956
  %5293 = vmatprep.subr.bf16.mxu0 0
  %5294 = vmatpush2.bf16.msra.mxu0 %v4955
  %5295 = vmatprep.mubr.bf16.mxu0 %v5216
  %5296 = vmatmul.mubr.bf16.gmra.mxu0 %v5215
  %v5297 = vpop.f32.mrf.mxu0
  %v5298 = vadd.f32 0.0, %v5297
  %v5299 = vpop.f32.mrf.mxu0
  %v5300 = vpop.f32.mrf.mxu0
  %v5301 = vadd.f32 0.0, %v5300
  %v5302 = vpop.f32.mrf.mxu0
  %5303 = vmatprep.mubr.bf16.mxu0 %v5221
  %5304 = vmatmul.mubr.bf16.gmra.mxu0 %v5220
  %v5305 = vpop.f32.mrf.mxu0
  %v5306 = vadd.f32 0.0, %v5305
  %v5307 = vpop.f32.mrf.mxu0
  %v5308 = vpop.f32.mrf.mxu0
  %v5309 = vadd.f32 0.0, %v5308
  %v5310 = vpop.f32.mrf.mxu0
  %5311 = vmatprep.mubr.bf16.mxu0 %v5226
  %5312 = vmatmul.mubr.bf16.gmra.mxu0 %v5225
  %v5313 = vpop.f32.mrf.mxu0
  %v5314 = vadd.f32 0.0, %v5313
  %v5315 = vpop.f32.mrf.mxu0
  %v5316 = vpop.f32.mrf.mxu0
  %v5317 = vadd.f32 0.0, %v5316
  %v5318 = vpop.f32.mrf.mxu0
  %5319 = vmatprep.mubr.bf16.mxu0 %v5231
  %5320 = vmatmul.mubr.bf16.gmra.mxu0 %v5230
  %v5321 = vpop.f32.mrf.mxu0
  %v5322 = vadd.f32 0.0, %v5321
  %v5323 = vpop.f32.mrf.mxu0
  %v5324 = vpop.f32.mrf.mxu0
  %v5325 = vadd.f32 0.0, %v5324
  %v5326 = vpop.f32.mrf.mxu0
  %5327 = vdwg.mxu0
  %5328 = vmatprep.subr.bf16.mxu0 0
  %5329 = vmatpush1.bf16.msra.mxu0 %v5018
  %5330 = vmatprep.subr.bf16.mxu0 0
  %5331 = vmatpush1.bf16.msra.mxu0 %v5017
  %5332 = vmatprep.subr.bf16.mxu0 0
  %5333 = vmatpush1.bf16.msra.mxu0 %v5016
  %5334 = vmatprep.subr.bf16.mxu0 0
  %5335 = vmatpush1.bf16.msra.mxu0 %v5015
  %5336 = vmatprep.subr.bf16.mxu0 0
  %5337 = vmatpush1.bf16.msra.mxu0 %v4990
  %5338 = vmatprep.subr.bf16.mxu0 0
  %5339 = vmatpush1.bf16.msra.mxu0 %v4989
  %5340 = vmatprep.subr.bf16.mxu0 0
  %5341 = vmatpush1.bf16.msra.mxu0 %v4988
  %5342 = vmatprep.subr.bf16.mxu0 0
  %5343 = vmatpush1.bf16.msra.mxu0 %v4987
  %5344 = vmatprep.subr.bf16.mxu0 0
  %5345 = vmatpush2.bf16.msra.mxu0 %v5074
  %5346 = vmatprep.subr.bf16.mxu0 0
  %5347 = vmatpush2.bf16.msra.mxu0 %v5073
  %5348 = vmatprep.subr.bf16.mxu0 0
  %5349 = vmatpush2.bf16.msra.mxu0 %v5072
  %5350 = vmatprep.subr.bf16.mxu0 0
  %5351 = vmatpush2.bf16.msra.mxu0 %v5071
  %5352 = vmatprep.subr.bf16.mxu0 0
  %5353 = vmatpush2.bf16.msra.mxu0 %v5046
  %5354 = vmatprep.subr.bf16.mxu0 0
  %5355 = vmatpush2.bf16.msra.mxu0 %v5045
  %5356 = vmatprep.subr.bf16.mxu0 0
  %5357 = vmatpush2.bf16.msra.mxu0 %v5044
  %5358 = vmatprep.subr.bf16.mxu0 0
  %5359 = vmatpush2.bf16.msra.mxu0 %v5043
  %5360 = vmatprep.mubr.bf16.mxu0 %v5218
  %5361 = vmatmul.mubr.bf16.gmra.mxu0 %v5217
  %v5362 = vpop.f32.mrf.mxu0
  %v5363 = vadd.f32 %v5298, %v5362
  %v5364 = vpop.f32.mrf.mxu0
  %v5365 = vpop.f32.mrf.mxu0
  %v5366 = vadd.f32 %v5301, %v5365
  %v5367 = vpop.f32.mrf.mxu0
  %5368 = vmatprep.mubr.bf16.mxu0 %v5223
  %5369 = vmatmul.mubr.bf16.gmra.mxu0 %v5222
  %v5370 = vpop.f32.mrf.mxu0
  %v5371 = vadd.f32 %v5306, %v5370
  %v5372 = vpop.f32.mrf.mxu0
  %v5373 = vpop.f32.mrf.mxu0
  %v5374 = vadd.f32 %v5309, %v5373
  %v5375 = vpop.f32.mrf.mxu0
  %5376 = vmatprep.mubr.bf16.mxu0 %v5228
  %5377 = vmatmul.mubr.bf16.gmra.mxu0 %v5227
  %v5378 = vpop.f32.mrf.mxu0
  %v5379 = vadd.f32 %v5314, %v5378
  %v5380 = vpop.f32.mrf.mxu0
  %v5381 = vpop.f32.mrf.mxu0
  %v5382 = vadd.f32 %v5317, %v5381
  %v5383 = vpop.f32.mrf.mxu0
  %5384 = vmatprep.mubr.bf16.mxu0 %v5233
  %5385 = vmatmul.mubr.bf16.gmra.mxu0 %v5232
  %v5386 = vpop.f32.mrf.mxu0
  %v5387 = vadd.f32 %v5322, %v5386
  %v5388 = vpop.f32.mrf.mxu0
  %v5389 = vpop.f32.mrf.mxu0
  %v5390 = vadd.f32 %v5325, %v5389
  %v5391 = vpop.f32.mrf.mxu0
  %5392 = vdwg.mxu0
  %5393 = vmatprep.subr.bf16.mxu0 0
  %5394 = vmatpush1.bf16.msra.mxu0 0
  %5395 = vmatprep.subr.bf16.mxu0 0
  %5396 = vmatpush1.bf16.msra.mxu0 0
  %5397 = vmatprep.subr.bf16.mxu0 0
  %5398 = vmatpush1.bf16.msra.mxu0 0
  %5399 = vmatprep.subr.bf16.mxu0 0
  %5400 = vmatpush1.bf16.msra.mxu0 0
  %5401 = vmatprep.subr.bf16.mxu0 0
  %5402 = vmatpush1.bf16.msra.mxu0 %v5102
  %5403 = vmatprep.subr.bf16.mxu0 0
  %5404 = vmatpush1.bf16.msra.mxu0 %v5101
  %5405 = vmatprep.subr.bf16.mxu0 0
  %5406 = vmatpush1.bf16.msra.mxu0 %v5100
  %5407 = vmatprep.subr.bf16.mxu0 0
  %5408 = vmatpush1.bf16.msra.mxu0 %v5099
  %5409 = vmatprep.subr.bf16.mxu0 0
  %5410 = vmatpush2.bf16.msra.mxu0 0
  %5411 = vmatprep.subr.bf16.mxu0 0
  %5412 = vmatpush2.bf16.msra.mxu0 0
  %5413 = vmatprep.subr.bf16.mxu0 0
  %5414 = vmatpush2.bf16.msra.mxu0 0
  %5415 = vmatprep.subr.bf16.mxu0 0
  %5416 = vmatpush2.bf16.msra.mxu0 0
  %5417 = vmatprep.subr.bf16.mxu0 0
  %5418 = vmatpush2.bf16.msra.mxu0 0
  %5419 = vmatprep.subr.bf16.mxu0 0
  %5420 = vmatpush2.bf16.msra.mxu0 0
  %5421 = vmatprep.subr.bf16.mxu0 0
  %5422 = vmatpush2.bf16.msra.mxu0 0
  %5423 = vmatprep.subr.bf16.mxu0 0
  %5424 = vmatpush2.bf16.msra.mxu0 0
  %5425 = vmatprep.mubr.bf16.mxu0 0
  %5426 = vmatmul.mubr.bf16.gmra.mxu0 %v5252
  %v5427 = vpop.f32.mrf.mxu0
  %v5428 = vadd.f32 %v5363, %v5427
  %v5429 = vpop.f32.mrf.mxu0
  %v5430 = vpop.f32.mrf.mxu0
  %v5431 = vadd.f32 %v5366, %v5430
  %v5432 = vpop.f32.mrf.mxu0
  %5433 = vmatprep.mubr.bf16.mxu0 0
  %5434 = vmatmul.mubr.bf16.gmra.mxu0 %v5255
  %v5435 = vpop.f32.mrf.mxu0
  %v5436 = vadd.f32 %v5371, %v5435
  %v5437 = vpop.f32.mrf.mxu0
  %v5438 = vpop.f32.mrf.mxu0
  %v5439 = vadd.f32 %v5374, %v5438
  %v5440 = vpop.f32.mrf.mxu0
  %5441 = vmatprep.mubr.bf16.mxu0 0
  %5442 = vmatmul.mubr.bf16.gmra.mxu0 %v5258
  %v5443 = vpop.f32.mrf.mxu0
  %v5444 = vadd.f32 %v5379, %v5443
  %v5445 = vpop.f32.mrf.mxu0
  %v5446 = vpop.f32.mrf.mxu0
  %v5447 = vadd.f32 %v5382, %v5446
  %v5448 = vpop.f32.mrf.mxu0
  %5449 = vmatprep.mubr.bf16.mxu0 0
  %5450 = vmatmul.mubr.bf16.gmra.mxu0 %v5261
  %v5451 = vpop.f32.mrf.mxu0
  %v5452 = vadd.f32 %v5387, %v5451
  %v5453 = vpop.f32.mrf.mxu0
  %v5454 = vpop.f32.mrf.mxu0
  %v5455 = vadd.f32 %v5390, %v5454
  %v5456 = vpop.f32.mrf.mxu0
  %5457 = vdwg.mxu0
  %v5482 = vunpack.c.l.b16 %v5103
  %v5483 = vunpack.c.h.b16 %v5103
  %v5484 = vunpack.c.l.b16 %v5104
  %v5485 = vunpack.c.h.b16 %v5104
  %v5486 = vunpack.c.l.b16 %v5105
  %v5487 = vunpack.c.l.b16 %v5106
  %v5488 = vunpack.c.h.b16 %v5106
  %v5489 = vunpack.c.l.b16 %v5107
  %v5490 = vunpack.c.h.b16 %v5107
  %v5491 = vunpack.c.l.b16 %v5108
  %v5492 = vunpack.c.l.b16 %v5109
  %v5493 = vunpack.c.h.b16 %v5109
  %v5494 = vunpack.c.l.b16 %v5110
  %v5495 = vunpack.c.h.b16 %v5110
  %v5496 = vunpack.c.l.b16 %v5111
  %v5497 = vunpack.c.l.b16 %v5112
  %v5498 = vunpack.c.h.b16 %v5112
  %v5499 = vunpack.c.l.b16 %v5113
  %v5500 = vunpack.c.h.b16 %v5113
  %v5501 = vunpack.c.l.b16 %v5114
  %v5502 = vunpack.c.l.b16 %v5115
  %v5503 = vunpack.c.h.b16 %v5115
  %v5504 = vunpack.c.l.b16 %v5116
  %v5505 = vunpack.c.h.b16 %v5116
  %v5506 = vunpack.c.l.b16 %v5117
  %v5507 = vunpack.c.l.b16 %v5118
  %v5508 = vunpack.c.h.b16 %v5118
  %v5509 = vunpack.c.l.b16 %v5119
  %v5510 = vunpack.c.h.b16 %v5119
  %v5511 = vunpack.c.l.b16 %v5120
  %v5512 = vunpack.c.l.b16 %v5121
  %v5513 = vunpack.c.h.b16 %v5121
  %v5514 = vunpack.c.l.b16 %v5122
  %v5515 = vunpack.c.h.b16 %v5122
  %v5516 = vunpack.c.l.b16 %v5123
  %v5517 = vunpack.c.l.b16 %v5124
  %v5518 = vunpack.c.h.b16 %v5124
  %v5519 = vunpack.c.l.b16 %v5125
  %v5520 = vunpack.c.h.b16 %v5125
  %v5521 = vunpack.c.l.b16 %v5126
  %v5522 = vpack.c.b16 %v5487, %v5482
  %v5523 = vpack.c.b16 %v5488, %v5483
  %v5524 = vpack.c.b16 %v5489, %v5484
  %v5525 = vpack.c.b16 %v5490, %v5485
  %v5526 = vpack.c.b16 %v5491, %v5486
  %v5527 = vpack.c.b16 %v5497, %v5492
  %v5528 = vpack.c.b16 %v5498, %v5493
  %v5529 = vpack.c.b16 %v5499, %v5494
  %v5530 = vpack.c.b16 %v5500, %v5495
  %v5531 = vpack.c.b16 %v5501, %v5496
  %v5532 = vpack.c.b16 %v5507, %v5502
  %v5533 = vpack.c.b16 %v5508, %v5503
  %v5534 = vpack.c.b16 %v5509, %v5504
  %v5535 = vpack.c.b16 %v5510, %v5505
  %v5536 = vpack.c.b16 %v5511, %v5506
  %v5537 = vpack.c.b16 %v5517, %v5512
  %v5538 = vpack.c.b16 %v5518, %v5513
  %v5539 = vpack.c.b16 %v5519, %v5514
  %v5540 = vpack.c.b16 %v5520, %v5515
  %v5541 = vpack.c.b16 %v5521, %v5516
  %v5559 = vsel %vm3771, %v5526, 0
  %v5562 = vsel %vm3771, %v5531, 0
  %v5565 = vsel %vm3771, %v5536, 0
  %v5568 = vsel %vm3771, %v5541, 0
  %5570 = vmatprep.subr.bf16.mxu0 0
  %5571 = vmatpush1.bf16.msra.mxu0 %v3206
  %5572 = vmatprep.subr.bf16.mxu0 0
  %5573 = vmatpush1.bf16.msra.mxu0 %v3205
  %5574 = vmatprep.subr.bf16.mxu0 0
  %5575 = vmatpush1.bf16.msra.mxu0 %v3204
  %5576 = vmatprep.subr.bf16.mxu0 0
  %5577 = vmatpush1.bf16.msra.mxu0 %v3203
  %5578 = vmatprep.subr.bf16.mxu0 0
  %5579 = vmatpush1.bf16.msra.mxu0 %v3170
  %5580 = vmatprep.subr.bf16.mxu0 0
  %5581 = vmatpush1.bf16.msra.mxu0 %v3169
  %5582 = vmatprep.subr.bf16.mxu0 0
  %5583 = vmatpush1.bf16.msra.mxu0 %v3168
  %5584 = vmatprep.subr.bf16.mxu0 0
  %5585 = vmatpush1.bf16.msra.mxu0 %v3167
  %5586 = vmatprep.subr.bf16.mxu0 0
  %5587 = vmatpush2.bf16.msra.mxu0 %v3278
  %5588 = vmatprep.subr.bf16.mxu0 0
  %5589 = vmatpush2.bf16.msra.mxu0 %v3277
  %5590 = vmatprep.subr.bf16.mxu0 0
  %5591 = vmatpush2.bf16.msra.mxu0 %v3276
  %5592 = vmatprep.subr.bf16.mxu0 0
  %5593 = vmatpush2.bf16.msra.mxu0 %v3275
  %5594 = vmatprep.subr.bf16.mxu0 0
  %5595 = vmatpush2.bf16.msra.mxu0 %v3242
  %5596 = vmatprep.subr.bf16.mxu0 0
  %5597 = vmatpush2.bf16.msra.mxu0 %v3241
  %5598 = vmatprep.subr.bf16.mxu0 0
  %5599 = vmatpush2.bf16.msra.mxu0 %v3240
  %5600 = vmatprep.subr.bf16.mxu0 0
  %5601 = vmatpush2.bf16.msra.mxu0 %v3239
  %5602 = vmatprep.mubr.bf16.mxu0 %v5523
  %5603 = vmatmul.mubr.bf16.gmra.mxu0 %v5522
  %v5604 = vpop.f32.mrf.mxu0
  %v5605 = vadd.f32 %v5428, %v5604
  %v5606 = vpop.f32.mrf.mxu0
  %v5607 = vpop.f32.mrf.mxu0
  %v5608 = vadd.f32 %v5431, %v5607
  %v5609 = vpop.f32.mrf.mxu0
  %5610 = vmatprep.mubr.bf16.mxu0 %v5528
  %5611 = vmatmul.mubr.bf16.gmra.mxu0 %v5527
  %v5612 = vpop.f32.mrf.mxu0
  %v5613 = vadd.f32 %v5436, %v5612
  %v5614 = vpop.f32.mrf.mxu0
  %v5615 = vpop.f32.mrf.mxu0
  %v5616 = vadd.f32 %v5439, %v5615
  %v5617 = vpop.f32.mrf.mxu0
  %5618 = vmatprep.mubr.bf16.mxu0 %v5533
  %5619 = vmatmul.mubr.bf16.gmra.mxu0 %v5532
  %v5620 = vpop.f32.mrf.mxu0
  %v5621 = vadd.f32 %v5444, %v5620
  %v5622 = vpop.f32.mrf.mxu0
  %v5623 = vpop.f32.mrf.mxu0
  %v5624 = vadd.f32 %v5447, %v5623
  %v5625 = vpop.f32.mrf.mxu0
  %5626 = vmatprep.mubr.bf16.mxu0 %v5538
  %5627 = vmatmul.mubr.bf16.gmra.mxu0 %v5537
  %v5628 = vpop.f32.mrf.mxu0
  %v5629 = vadd.f32 %v5452, %v5628
  %v5630 = vpop.f32.mrf.mxu0
  %v5631 = vpop.f32.mrf.mxu0
  %v5632 = vadd.f32 %v5455, %v5631
  %v5633 = vpop.f32.mrf.mxu0
  %5634 = vdwg.mxu0
  %5635 = vmatprep.subr.bf16.mxu0 0
  %5636 = vmatpush1.bf16.msra.mxu0 %v3318
  %5637 = vmatprep.subr.bf16.mxu0 0
  %5638 = vmatpush1.bf16.msra.mxu0 %v3317
  %5639 = vmatprep.subr.bf16.mxu0 0
  %5640 = vmatpush1.bf16.msra.mxu0 %v3316
  %5641 = vmatprep.subr.bf16.mxu0 0
  %5642 = vmatpush1.bf16.msra.mxu0 %v3315
  %5643 = vmatprep.subr.bf16.mxu0 0
  %5644 = vmatpush1.bf16.msra.mxu0 %v3282
  %5645 = vmatprep.subr.bf16.mxu0 0
  %5646 = vmatpush1.bf16.msra.mxu0 %v3281
  %5647 = vmatprep.subr.bf16.mxu0 0
  %5648 = vmatpush1.bf16.msra.mxu0 %v3280
  %5649 = vmatprep.subr.bf16.mxu0 0
  %5650 = vmatpush1.bf16.msra.mxu0 %v3279
  %5651 = vmatprep.subr.bf16.mxu0 0
  %5652 = vmatpush2.bf16.msra.mxu0 %v3390
  %5653 = vmatprep.subr.bf16.mxu0 0
  %5654 = vmatpush2.bf16.msra.mxu0 %v3389
  %5655 = vmatprep.subr.bf16.mxu0 0
  %5656 = vmatpush2.bf16.msra.mxu0 %v3388
  %5657 = vmatprep.subr.bf16.mxu0 0
  %5658 = vmatpush2.bf16.msra.mxu0 %v3387
  %5659 = vmatprep.subr.bf16.mxu0 0
  %5660 = vmatpush2.bf16.msra.mxu0 %v3354
  %5661 = vmatprep.subr.bf16.mxu0 0
  %5662 = vmatpush2.bf16.msra.mxu0 %v3353
  %5663 = vmatprep.subr.bf16.mxu0 0
  %5664 = vmatpush2.bf16.msra.mxu0 %v3352
  %5665 = vmatprep.subr.bf16.mxu0 0
  %5666 = vmatpush2.bf16.msra.mxu0 %v3351
  %5667 = vmatprep.mubr.bf16.mxu0 %v5525
  %5668 = vmatmul.mubr.bf16.gmra.mxu0 %v5524
  %v5669 = vpop.f32.mrf.mxu0
  %v5670 = vadd.f32 %v5605, %v5669
  %v5671 = vpop.f32.mrf.mxu0
  %v5672 = vpop.f32.mrf.mxu0
  %v5673 = vadd.f32 %v5608, %v5672
  %v5674 = vpop.f32.mrf.mxu0
  %5675 = vmatprep.mubr.bf16.mxu0 %v5530
  %5676 = vmatmul.mubr.bf16.gmra.mxu0 %v5529
  %v5677 = vpop.f32.mrf.mxu0
  %v5678 = vadd.f32 %v5613, %v5677
  %v5679 = vpop.f32.mrf.mxu0
  %v5680 = vpop.f32.mrf.mxu0
  %v5681 = vadd.f32 %v5616, %v5680
  %v5682 = vpop.f32.mrf.mxu0
  %5683 = vmatprep.mubr.bf16.mxu0 %v5535
  %5684 = vmatmul.mubr.bf16.gmra.mxu0 %v5534
  %v5685 = vpop.f32.mrf.mxu0
  %v5686 = vadd.f32 %v5621, %v5685
  %v5687 = vpop.f32.mrf.mxu0
  %v5688 = vpop.f32.mrf.mxu0
  %v5689 = vadd.f32 %v5624, %v5688
  %v5690 = vpop.f32.mrf.mxu0
  %5691 = vmatprep.mubr.bf16.mxu0 %v5540
  %5692 = vmatmul.mubr.bf16.gmra.mxu0 %v5539
  %v5693 = vpop.f32.mrf.mxu0
  %v5694 = vadd.f32 %v5629, %v5693
  %v5695 = vpop.f32.mrf.mxu0
  %v5696 = vpop.f32.mrf.mxu0
  %v5697 = vadd.f32 %v5632, %v5696
  %v5698 = vpop.f32.mrf.mxu0
  %5699 = vdwg.mxu0
  %5700 = vmatprep.subr.bf16.mxu0 0
  %5701 = vmatpush1.bf16.msra.mxu0 0
  %5702 = vmatprep.subr.bf16.mxu0 0
  %5703 = vmatpush1.bf16.msra.mxu0 0
  %5704 = vmatprep.subr.bf16.mxu0 0
  %5705 = vmatpush1.bf16.msra.mxu0 0
  %5706 = vmatprep.subr.bf16.mxu0 0
  %5707 = vmatpush1.bf16.msra.mxu0 0
  %5708 = vmatprep.subr.bf16.mxu0 0
  %5709 = vmatpush1.bf16.msra.mxu0 %v3426
  %5710 = vmatprep.subr.bf16.mxu0 0
  %5711 = vmatpush1.bf16.msra.mxu0 %v3425
  %5712 = vmatprep.subr.bf16.mxu0 0
  %5713 = vmatpush1.bf16.msra.mxu0 %v3424
  %5714 = vmatprep.subr.bf16.mxu0 0
  %5715 = vmatpush1.bf16.msra.mxu0 %v3423
  %5716 = vmatprep.subr.bf16.mxu0 0
  %5717 = vmatpush2.bf16.msra.mxu0 0
  %5718 = vmatprep.subr.bf16.mxu0 0
  %5719 = vmatpush2.bf16.msra.mxu0 0
  %5720 = vmatprep.subr.bf16.mxu0 0
  %5721 = vmatpush2.bf16.msra.mxu0 0
  %5722 = vmatprep.subr.bf16.mxu0 0
  %5723 = vmatpush2.bf16.msra.mxu0 0
  %5724 = vmatprep.subr.bf16.mxu0 0
  %5725 = vmatpush2.bf16.msra.mxu0 0
  %5726 = vmatprep.subr.bf16.mxu0 0
  %5727 = vmatpush2.bf16.msra.mxu0 0
  %5728 = vmatprep.subr.bf16.mxu0 0
  %5729 = vmatpush2.bf16.msra.mxu0 0
  %5730 = vmatprep.subr.bf16.mxu0 0
  %5731 = vmatpush2.bf16.msra.mxu0 0
  %5732 = vmatprep.mubr.bf16.mxu0 0
  %5733 = vmatmul.mubr.bf16.gmra.mxu0 %v5559
  %v5734 = vpop.f32.mrf.mxu0
  %v5735 = vadd.f32 %v5670, %v5734
  %v5736 = vpop.f32.mrf.mxu0
  %v5737 = vpop.f32.mrf.mxu0
  %v5738 = vadd.f32 %v5673, %v5737
  %v5739 = vpop.f32.mrf.mxu0
  %5740 = vmatprep.mubr.bf16.mxu0 0
  %5741 = vmatmul.mubr.bf16.gmra.mxu0 %v5562
  %v5742 = vpop.f32.mrf.mxu0
  %v5743 = vadd.f32 %v5678, %v5742
  %v5744 = vpop.f32.mrf.mxu0
  %v5745 = vpop.f32.mrf.mxu0
  %v5746 = vadd.f32 %v5681, %v5745
  %v5747 = vpop.f32.mrf.mxu0
  %5748 = vmatprep.mubr.bf16.mxu0 0
  %5749 = vmatmul.mubr.bf16.gmra.mxu0 %v5565
  %v5750 = vpop.f32.mrf.mxu0
  %v5751 = vadd.f32 %v5686, %v5750
  %v5752 = vpop.f32.mrf.mxu0
  %v5753 = vpop.f32.mrf.mxu0
  %v5754 = vadd.f32 %v5689, %v5753
  %v5755 = vpop.f32.mrf.mxu0
  %5756 = vmatprep.mubr.bf16.mxu0 0
  %5757 = vmatmul.mubr.bf16.gmra.mxu0 %v5568
  %v5758 = vpop.f32.mrf.mxu0
  %v5759 = vadd.f32 %v5694, %v5758
  %v5760 = vpop.f32.mrf.mxu0
  %v5761 = vpop.f32.mrf.mxu0
  %v5762 = vadd.f32 %v5697, %v5761
  %v5763 = vpop.f32.mrf.mxu0
  %5764 = vdwg.mxu0
  %v5765 = vld [vmem:[%s39] sm:$0xff]
  %v5766 = vld [vmem:[%s39 + $0x8] sm:$0xff]
  %v5767 = vld [vmem:[%s39 + $0x10] sm:$0xff]
  %v5768 = vld [vmem:[%s39 + $0x18] sm:$0xff]
  %v5769 = vld [vmem:[%s39 + $0x20] sm:$0xff]
  %v5770 = vld [vmem:[%s39 + $0x28] sm:$0xff]
  %v5771 = vld [vmem:[%s39 + $0x30] sm:$0xff]
  %v5772 = vld [vmem:[%s39 + $0x38] sm:$0xff]
  %5774 = vset.pattern.permute.xlu0 0
  %5775 = vperm.xlu0 %5774, %v5765
  %v5776 = vpop.permute.xlu0 %5775
  %5779 = vset.pattern.permute.xlu0 0
  %5780 = vperm.xlu0 %5779, %v5766
  %v5781 = vpop.permute.xlu0 %5780
  %5784 = vset.pattern.permute.xlu0 0
  %5785 = vperm.xlu0 %5784, %v5767
  %v5786 = vpop.permute.xlu0 %5785
  %5789 = vset.pattern.permute.xlu0 0
  %5790 = vperm.xlu0 %5789, %v5768
  %v5791 = vpop.permute.xlu0 %5790
  %5794 = vset.pattern.permute.xlu0 0
  %5795 = vperm.xlu0 %5794, %v5769
  %v5796 = vpop.permute.xlu0 %5795
  %5799 = vset.pattern.permute.xlu0 0
  %5800 = vperm.xlu0 %5799, %v5770
  %v5801 = vpop.permute.xlu0 %5800
  %5804 = vset.pattern.permute.xlu0 0
  %5805 = vperm.xlu0 %5804, %v5771
  %v5806 = vpop.permute.xlu0 %5805
  %5809 = vset.pattern.permute.xlu0 0
  %5810 = vperm.xlu0 %5809, %v5772
  %v5811 = vpop.permute.xlu0 %5810
  %v5813 = vadd.f32 %v5735, %v5776
  %v5814 = vadd.f32 %v5738, %v5781
  %v5815 = vadd.f32 %v5743, %v5786
  %v5816 = vadd.f32 %v5746, %v5791
  %v5817 = vadd.f32 %v5751, %v5796
  %v5818 = vadd.f32 %v5754, %v5801
  %v5819 = vadd.f32 %v5759, %v5806
  %v5820 = vadd.f32 %v5762, %v5811
  %v5821 = vmax.f32 %v5813, 0.0
  %v5822 = vmax.f32 %v5814, 0.0
  %v5823 = vmax.f32 %v5815, 0.0
  %v5824 = vmax.f32 %v5816, 0.0
  %v5825 = vmax.f32 %v5817, 0.0
  %v5826 = vmax.f32 %v5818, 0.0
  %v5827 = vmax.f32 %v5819, 0.0
  %v5828 = vmax.f32 %v5820, 0.0
  %v5829 = vpack.c.bf16 %v5822, %v5821
  %v5830 = vpack.c.bf16 %v5824, %v5823
  %v5831 = vpack.c.bf16 %v5826, %v5825
  %v5832 = vpack.c.bf16 %v5828, %v5827
  %v5833 = vld [vmem:[%s13] sm:$0xff]
  %v5834 = vld [vmem:[%s13 + $0x8] sm:$0xff]
  %v5835 = vld [vmem:[%s13 + $0x10] sm:$0xff]
  %v5836 = vld [vmem:[%s13 + $0x18] sm:$0xff]
  %v5837 = vld [vmem:[%s13 + $0x20] sm:$0xff]
  %v5838 = vld [vmem:[%s13 + $0x28] sm:$0xff]
  %v5839 = vld [vmem:[%s13 + $0x30] sm:$0xff]
  %v5840 = vld [vmem:[%s13 + $0x38] sm:$0xff]
  %v5841 = vld [vmem:[%s13 + $0x40] sm:$0xff]
  %v5842 = vld [vmem:[%s13 + $0x48] sm:$0xff]
  %v5843 = vld [vmem:[%s13 + $0x50] sm:$0xff]
  %v5844 = vld [vmem:[%s13 + $0x58] sm:$0xff]
  %v5845 = vld [vmem:[%s13 + $0x60] sm:$0xff]
  %v5846 = vld [vmem:[%s13 + $0x68] sm:$0xff]
  %v5847 = vld [vmem:[%s13 + $0x70] sm:$0xff]
  %v5848 = vld [vmem:[%s13 + $0x78] sm:$0xff]
  %v5849 = vld [vmem:[%s13 + $0x80] sm:$0xff]
  %v5850 = vld [vmem:[%s13 + $0x88] sm:$0xff]
  %v5851 = vld [vmem:[%s13 + $0x90] sm:$0xff]
  %v5852 = vld [vmem:[%s13 + $0x98] sm:$0xff]
  %v5853 = vld [vmem:[%s13 + $0xa0] sm:$0xff]
  %v5854 = vld [vmem:[%s13 + $0xa8] sm:$0xff]
  %v5855 = vld [vmem:[%s13 + $0xb0] sm:$0xff]
  %v5856 = vld [vmem:[%s13 + $0xb8] sm:$0xff]
  %v5857 = vld [vmem:[%s13 + $0xc0] sm:$0xff]
  %v5858 = vld [vmem:[%s13 + $0xc8] sm:$0xff]
  %v5859 = vld [vmem:[%s13 + $0xd0] sm:$0xff]
  %v5860 = vld [vmem:[%s13 + $0xd8] sm:$0xff]
  %v5861 = vld [vmem:[%s13 + $0xe0] sm:$0xff]
  %v5862 = vld [vmem:[%s13 + $0xe8] sm:$0xff]
  %v5863 = vld [vmem:[%s13 + $0xf0] sm:$0xff]
  %v5864 = vld [vmem:[%s13 + $0xf8] sm:$0xff]
  %v5897 = vunpack.c.l.b16 %v5833
  %v5898 = vunpack.c.h.b16 %v5833
  %v5899 = vunpack.c.l.b16 %v5834
  %v5900 = vunpack.c.h.b16 %v5834
  %v5901 = vunpack.c.l.b16 %v5835
  %v5902 = vunpack.c.h.b16 %v5835
  %v5903 = vunpack.c.l.b16 %v5836
  %v5904 = vunpack.c.h.b16 %v5836
  %v5905 = vunpack.c.l.b16 %v5837
  %v5906 = vunpack.c.h.b16 %v5837
  %v5907 = vunpack.c.l.b16 %v5838
  %v5908 = vunpack.c.h.b16 %v5838
  %v5909 = vunpack.c.l.b16 %v5839
  %v5910 = vunpack.c.h.b16 %v5839
  %v5911 = vunpack.c.l.b16 %v5840
  %v5912 = vunpack.c.h.b16 %v5840
  %v5913 = vunpack.c.l.b16 %v5841
  %v5914 = vunpack.c.h.b16 %v5841
  %v5915 = vunpack.c.l.b16 %v5842
  %v5916 = vunpack.c.h.b16 %v5842
  %v5917 = vunpack.c.l.b16 %v5843
  %v5918 = vunpack.c.h.b16 %v5843
  %v5919 = vunpack.c.l.b16 %v5844
  %v5920 = vunpack.c.h.b16 %v5844
  %v5921 = vunpack.c.l.b16 %v5845
  %v5922 = vunpack.c.h.b16 %v5845
  %v5923 = vunpack.c.l.b16 %v5846
  %v5924 = vunpack.c.h.b16 %v5846
  %v5925 = vunpack.c.l.b16 %v5847
  %v5926 = vunpack.c.h.b16 %v5847
  %v5927 = vunpack.c.l.b16 %v5848
  %v5928 = vunpack.c.h.b16 %v5848
  %v5929 = vunpack.c.l.b16 %v5849
  %v5930 = vunpack.c.h.b16 %v5849
  %v5931 = vunpack.c.l.b16 %v5850
  %v5932 = vunpack.c.h.b16 %v5850
  %v5933 = vunpack.c.l.b16 %v5851
  %v5934 = vunpack.c.h.b16 %v5851
  %v5935 = vunpack.c.l.b16 %v5852
  %v5936 = vunpack.c.h.b16 %v5852
  %v5937 = vunpack.c.l.b16 %v5853
  %v5938 = vunpack.c.h.b16 %v5853
  %v5939 = vunpack.c.l.b16 %v5854
  %v5940 = vunpack.c.h.b16 %v5854
  %v5941 = vunpack.c.l.b16 %v5855
  %v5942 = vunpack.c.h.b16 %v5855
  %v5943 = vunpack.c.l.b16 %v5856
  %v5944 = vunpack.c.h.b16 %v5856
  %v5945 = vunpack.c.l.b16 %v5857
  %v5946 = vunpack.c.h.b16 %v5857
  %v5947 = vunpack.c.l.b16 %v5858
  %v5948 = vunpack.c.h.b16 %v5858
  %v5949 = vunpack.c.l.b16 %v5859
  %v5950 = vunpack.c.h.b16 %v5859
  %v5951 = vunpack.c.l.b16 %v5860
  %v5952 = vunpack.c.h.b16 %v5860
  %v5953 = vunpack.c.l.b16 %v5861
  %v5954 = vunpack.c.h.b16 %v5861
  %v5955 = vunpack.c.l.b16 %v5862
  %v5956 = vunpack.c.h.b16 %v5862
  %v5957 = vunpack.c.l.b16 %v5863
  %v5958 = vunpack.c.h.b16 %v5863
  %v5959 = vunpack.c.l.b16 %v5864
  %v5960 = vunpack.c.h.b16 %v5864
  %v5961 = vpack.c.b16 %v5901, %v5897
  %v5962 = vpack.c.b16 %v5902, %v5898
  %v5963 = vpack.c.b16 %v5903, %v5899
  %v5964 = vpack.c.b16 %v5904, %v5900
  %v5965 = vpack.c.b16 %v5909, %v5905
  %v5966 = vpack.c.b16 %v5910, %v5906
  %v5967 = vpack.c.b16 %v5911, %v5907
  %v5968 = vpack.c.b16 %v5912, %v5908
  %v5969 = vpack.c.b16 %v5917, %v5913
  %v5970 = vpack.c.b16 %v5918, %v5914
  %v5971 = vpack.c.b16 %v5919, %v5915
  %v5972 = vpack.c.b16 %v5920, %v5916
  %v5973 = vpack.c.b16 %v5925, %v5921
  %v5974 = vpack.c.b16 %v5926, %v5922
  %v5975 = vpack.c.b16 %v5927, %v5923
  %v5976 = vpack.c.b16 %v5928, %v5924
  %v5977 = vpack.c.b16 %v5933, %v5929
  %v5978 = vpack.c.b16 %v5934, %v5930
  %v5979 = vpack.c.b16 %v5935, %v5931
  %v5980 = vpack.c.b16 %v5936, %v5932
  %v5981 = vpack.c.b16 %v5941, %v5937
  %v5982 = vpack.c.b16 %v5942, %v5938
  %v5983 = vpack.c.b16 %v5943, %v5939
  %v5984 = vpack.c.b16 %v5944, %v5940
  %v5985 = vpack.c.b16 %v5949, %v5945
  %v5986 = vpack.c.b16 %v5950, %v5946
  %v5987 = vpack.c.b16 %v5951, %v5947
  %v5988 = vpack.c.b16 %v5952, %v5948
  %v5989 = vpack.c.b16 %v5957, %v5953
  %v5990 = vpack.c.b16 %v5958, %v5954
  %v5991 = vpack.c.b16 %v5959, %v5955
  %v5992 = vpack.c.b16 %v5960, %v5956
  %6025 = vmatprep.subr.bf16.mxu0 %v5990
  %6026 = vmatpush1.bf16.msra.mxu0 %v5989
  %6027 = vmatprep.subr.bf16.mxu0 %v5986
  %6028 = vmatpush1.bf16.msra.mxu0 %v5985
  %6029 = vmatprep.subr.bf16.mxu0 %v5982
  %6030 = vmatpush1.bf16.msra.mxu0 %v5981
  %6031 = vmatprep.subr.bf16.mxu0 %v5978
  %6032 = vmatpush1.bf16.msra.mxu0 %v5977
  %6033 = vmatprep.subr.bf16.mxu0 %v5974
  %6034 = vmatpush1.bf16.msra.mxu0 %v5973
  %6035 = vmatprep.subr.bf16.mxu0 %v5970
  %6036 = vmatpush1.bf16.msra.mxu0 %v5969
  %6037 = vmatprep.subr.bf16.mxu0 %v5966
  %6038 = vmatpush1.bf16.msra.mxu0 %v5965
  %6039 = vmatprep.subr.bf16.mxu0 %v5962
  %6040 = vmatpush1.bf16.msra.mxu0 %v5961
  %6041 = vmatprep.subr.bf16.mxu0 0
  %6042 = vmatpush2.bf16.msra.mxu0 0
  %6043 = vmatprep.subr.bf16.mxu0 0
  %6044 = vmatpush2.bf16.msra.mxu0 0
  %6045 = vmatprep.subr.bf16.mxu0 0
  %6046 = vmatpush2.bf16.msra.mxu0 0
  %6047 = vmatprep.subr.bf16.mxu0 0
  %6048 = vmatpush2.bf16.msra.mxu0 0
  %6049 = vmatprep.subr.bf16.mxu0 0
  %6050 = vmatpush2.bf16.msra.mxu0 0
  %6051 = vmatprep.subr.bf16.mxu0 0
  %6052 = vmatpush2.bf16.msra.mxu0 0
  %6053 = vmatprep.subr.bf16.mxu0 0
  %6054 = vmatpush2.bf16.msra.mxu0 0
  %6055 = vmatprep.subr.bf16.mxu0 0
  %6056 = vmatpush2.bf16.msra.mxu0 0
  %6057 = vmatprep.mubr.bf16.mxu0 0
  %6058 = vmatmul.mubr.bf16.gmra.mxu0 %v5829
  %v6059 = vpop.f32.mrf.mxu0
  %v6060 = vadd.f32 0.0, %v6059
  %v6061 = vpop.f32.mrf.mxu0
  %v6062 = vadd.f32 0.0, %v6061
  %v6063 = vpop.f32.mrf.mxu0
  %v6064 = vadd.f32 0.0, %v6063
  %v6065 = vpop.f32.mrf.mxu0
  %v6066 = vadd.f32 0.0, %v6065
  %6067 = vmatprep.mubr.bf16.mxu0 0
  %6068 = vmatmul.mubr.bf16.gmra.mxu0 %v5830
  %v6069 = vpop.f32.mrf.mxu0
  %v6070 = vadd.f32 0.0, %v6069
  %v6071 = vpop.f32.mrf.mxu0
  %v6072 = vadd.f32 0.0, %v6071
  %v6073 = vpop.f32.mrf.mxu0
  %v6074 = vadd.f32 0.0, %v6073
  %v6075 = vpop.f32.mrf.mxu0
  %v6076 = vadd.f32 0.0, %v6075
  %6077 = vmatprep.mubr.bf16.mxu0 0
  %6078 = vmatmul.mubr.bf16.gmra.mxu0 %v5831
  %v6079 = vpop.f32.mrf.mxu0
  %v6080 = vadd.f32 0.0, %v6079
  %v6081 = vpop.f32.mrf.mxu0
  %v6082 = vadd.f32 0.0, %v6081
  %v6083 = vpop.f32.mrf.mxu0
  %v6084 = vadd.f32 0.0, %v6083
  %v6085 = vpop.f32.mrf.mxu0
  %v6086 = vadd.f32 0.0, %v6085
  %6087 = vmatprep.mubr.bf16.mxu0 0
  %6088 = vmatmul.mubr.bf16.gmra.mxu0 %v5832
  %v6089 = vpop.f32.mrf.mxu0
  %v6090 = vadd.f32 0.0, %v6089
  %v6091 = vpop.f32.mrf.mxu0
  %v6092 = vadd.f32 0.0, %v6091
  %v6093 = vpop.f32.mrf.mxu0
  %v6094 = vadd.f32 0.0, %v6093
  %v6095 = vpop.f32.mrf.mxu0
  %v6096 = vadd.f32 0.0, %v6095
  %6097 = vdwg.mxu0
  %6098 = vmatprep.subr.bf16.mxu0 %v5992
  %6099 = vmatpush1.bf16.msra.mxu0 %v5991
  %6100 = vmatprep.subr.bf16.mxu0 %v5988
  %6101 = vmatpush1.bf16.msra.mxu0 %v5987
  %6102 = vmatprep.subr.bf16.mxu0 %v5984
  %6103 = vmatpush1.bf16.msra.mxu0 %v5983
  %6104 = vmatprep.subr.bf16.mxu0 %v5980
  %6105 = vmatpush1.bf16.msra.mxu0 %v5979
  %6106 = vmatprep.subr.bf16.mxu0 %v5976
  %6107 = vmatpush1.bf16.msra.mxu0 %v5975
  %6108 = vmatprep.subr.bf16.mxu0 %v5972
  %6109 = vmatpush1.bf16.msra.mxu0 %v5971
  %6110 = vmatprep.subr.bf16.mxu0 %v5968
  %6111 = vmatpush1.bf16.msra.mxu0 %v5967
  %6112 = vmatprep.subr.bf16.mxu0 %v5964
  %6113 = vmatpush1.bf16.msra.mxu0 %v5963
  %6114 = vmatprep.subr.bf16.mxu0 0
  %6115 = vmatpush2.bf16.msra.mxu0 0
  %6116 = vmatprep.subr.bf16.mxu0 0
  %6117 = vmatpush2.bf16.msra.mxu0 0
  %6118 = vmatprep.subr.bf16.mxu0 0
  %6119 = vmatpush2.bf16.msra.mxu0 0
  %6120 = vmatprep.subr.bf16.mxu0 0
  %6121 = vmatpush2.bf16.msra.mxu0 0
  %6122 = vmatprep.subr.bf16.mxu0 0
  %6123 = vmatpush2.bf16.msra.mxu0 0
  %6124 = vmatprep.subr.bf16.mxu0 0
  %6125 = vmatpush2.bf16.msra.mxu0 0
  %6126 = vmatprep.subr.bf16.mxu0 0
  %6127 = vmatpush2.bf16.msra.mxu0 0
  %6128 = vmatprep.subr.bf16.mxu0 0
  %6129 = vmatpush2.bf16.msra.mxu0 0
  %6130 = vmatprep.mubr.bf16.mxu0 0
  %6131 = vmatmul.mubr.bf16.gmra.mxu0 %v5829
  %v6132 = vpop.f32.mrf.mxu0
  %v6133 = vadd.f32 0.0, %v6132
  %v6134 = vpop.f32.mrf.mxu0
  %v6135 = vadd.f32 0.0, %v6134
  %v6136 = vpop.f32.mrf.mxu0
  %v6137 = vadd.f32 0.0, %v6136
  %v6138 = vpop.f32.mrf.mxu0
  %v6139 = vadd.f32 0.0, %v6138
  %6140 = vmatprep.mubr.bf16.mxu0 0
  %6141 = vmatmul.mubr.bf16.gmra.mxu0 %v5830
  %v6142 = vpop.f32.mrf.mxu0
  %v6143 = vadd.f32 0.0, %v6142
  %v6144 = vpop.f32.mrf.mxu0
  %v6145 = vadd.f32 0.0, %v6144
  %v6146 = vpop.f32.mrf.mxu0
  %v6147 = vadd.f32 0.0, %v6146
  %v6148 = vpop.f32.mrf.mxu0
  %v6149 = vadd.f32 0.0, %v6148
  %6150 = vmatprep.mubr.bf16.mxu0 0
  %6151 = vmatmul.mubr.bf16.gmra.mxu0 %v5831
  %v6152 = vpop.f32.mrf.mxu0
  %v6153 = vadd.f32 0.0, %v6152
  %v6154 = vpop.f32.mrf.mxu0
  %v6155 = vadd.f32 0.0, %v6154
  %v6156 = vpop.f32.mrf.mxu0
  %v6157 = vadd.f32 0.0, %v6156
  %v6158 = vpop.f32.mrf.mxu0
  %v6159 = vadd.f32 0.0, %v6158
  %6160 = vmatprep.mubr.bf16.mxu0 0
  %6161 = vmatmul.mubr.bf16.gmra.mxu0 %v5832
  %v6162 = vpop.f32.mrf.mxu0
  %v6163 = vadd.f32 0.0, %v6162
  %v6164 = vpop.f32.mrf.mxu0
  %v6165 = vadd.f32 0.0, %v6164
  %v6166 = vpop.f32.mrf.mxu0
  %v6167 = vadd.f32 0.0, %v6166
  %v6168 = vpop.f32.mrf.mxu0
  %v6169 = vadd.f32 0.0, %v6168
  %6170 = vdwg.mxu0
  %v6171 = vpack.c.bf16 %v6064, %v6060
  %v6172 = vpack.c.bf16 %v6066, %v6062
  %v6173 = vpack.c.bf16 %v6137, %v6133
  %v6174 = vpack.c.bf16 %v6139, %v6135
  %v6175 = vpack.c.bf16 %v6074, %v6070
  %v6176 = vpack.c.bf16 %v6076, %v6072
  %v6177 = vpack.c.bf16 %v6147, %v6143
  %v6178 = vpack.c.bf16 %v6149, %v6145
  %v6179 = vpack.c.bf16 %v6084, %v6080
  %v6180 = vpack.c.bf16 %v6086, %v6082
  %v6181 = vpack.c.bf16 %v6157, %v6153
  %v6182 = vpack.c.bf16 %v6159, %v6155
  %v6183 = vpack.c.bf16 %v6094, %v6090
  %v6184 = vpack.c.bf16 %v6096, %v6092
  %v6185 = vpack.c.bf16 %v6167, %v6163
  %v6186 = vpack.c.bf16 %v6169, %v6165
  %6187 = vrot.lane.b32.xlu0 %v6060, 127
  %v6188 = vpop.permute.xlu0 %6187
  %6189 = vrot.lane.b32.xlu0 %v6064, 127
  %v6190 = vpop.permute.xlu0 %6189
  %6191 = vrot.lane.b32.xlu0 %v6070, 127
  %v6192 = vpop.permute.xlu0 %6191
  %6193 = vrot.lane.b32.xlu0 %v6074, 127
  %v6194 = vpop.permute.xlu0 %6193
  %6195 = vrot.lane.b32.xlu0 %v6080, 127
  %v6196 = vpop.permute.xlu0 %6195
  %6197 = vrot.lane.b32.xlu0 %v6084, 127
  %v6198 = vpop.permute.xlu0 %6197
  %6199 = vrot.lane.b32.xlu0 %v6090, 127
  %v6200 = vpop.permute.xlu0 %6199
  %6201 = vrot.lane.b32.xlu0 %v6094, 127
  %v6202 = vpop.permute.xlu0 %6201
  %6203 = vrot.lane.b32.xlu0 %v6062, 127
  %v6204 = vpop.permute.xlu0 %6203
  %6205 = vrot.lane.b32.xlu0 %v6066, 127
  %v6206 = vpop.permute.xlu0 %6205
  %6207 = vrot.lane.b32.xlu0 %v6072, 127
  %v6208 = vpop.permute.xlu0 %6207
  %6209 = vrot.lane.b32.xlu0 %v6076, 127
  %v6210 = vpop.permute.xlu0 %6209
  %6211 = vrot.lane.b32.xlu0 %v6082, 127
  %v6212 = vpop.permute.xlu0 %6211
  %6213 = vrot.lane.b32.xlu0 %v6086, 127
  %v6214 = vpop.permute.xlu0 %6213
  %6215 = vrot.lane.b32.xlu0 %v6092, 127
  %v6216 = vpop.permute.xlu0 %6215
  %6217 = vrot.lane.b32.xlu0 %v6096, 127
  %v6218 = vpop.permute.xlu0 %6217
  %6219 = vrot.lane.b32.xlu0 %v6133, 127
  %v6220 = vpop.permute.xlu0 %6219
  %6221 = vrot.lane.b32.xlu0 %v6137, 127
  %v6222 = vpop.permute.xlu0 %6221
  %6223 = vrot.lane.b32.xlu0 %v6143, 127
  %v6224 = vpop.permute.xlu0 %6223
  %6225 = vrot.lane.b32.xlu0 %v6147, 127
  %v6226 = vpop.permute.xlu0 %6225
  %6227 = vrot.lane.b32.xlu0 %v6153, 127
  %v6228 = vpop.permute.xlu0 %6227
  %6229 = vrot.lane.b32.xlu0 %v6157, 127
  %v6230 = vpop.permute.xlu0 %6229
  %6231 = vrot.lane.b32.xlu0 %v6163, 127
  %v6232 = vpop.permute.xlu0 %6231
  %6233 = vrot.lane.b32.xlu0 %v6167, 127
  %v6234 = vpop.permute.xlu0 %6233
  %6235 = vrot.lane.b32.xlu0 %v6135, 127
  %v6236 = vpop.permute.xlu0 %6235
  %6237 = vrot.lane.b32.xlu0 %v6139, 127
  %v6238 = vpop.permute.xlu0 %6237
  %6239 = vrot.lane.b32.xlu0 %v6145, 127
  %v6240 = vpop.permute.xlu0 %6239
  %6241 = vrot.lane.b32.xlu0 %v6149, 127
  %v6242 = vpop.permute.xlu0 %6241
  %6243 = vrot.lane.b32.xlu0 %v6155, 127
  %v6244 = vpop.permute.xlu0 %6243
  %6245 = vrot.lane.b32.xlu0 %v6159, 127
  %v6246 = vpop.permute.xlu0 %6245
  %6247 = vrot.lane.b32.xlu0 %v6165, 127
  %v6248 = vpop.permute.xlu0 %6247
  %6249 = vrot.lane.b32.xlu0 %v6169, 127
  %v6250 = vpop.permute.xlu0 %6249
  %v6251 = vsel %vm410, %v6220, %v6236
  %v6252 = vsel %vm410, %v6222, %v6238
  %v6253 = vsel %vm410, %v6224, %v6240
  %v6254 = vsel %vm410, %v6226, %v6242
  %v6255 = vsel %vm410, %v6228, %v6244
  %v6256 = vsel %vm410, %v6230, %v6246
  %v6257 = vsel %vm410, %v6232, %v6248
  %v6258 = vsel %vm410, %v6234, %v6250
  %v6259 = vsel %vm410, %v6204, %v6220
  %v6260 = vsel %vm410, %v6206, %v6222
  %v6261 = vsel %vm410, %v6208, %v6224
  %v6262 = vsel %vm410, %v6210, %v6226
  %v6263 = vsel %vm410, %v6212, %v6228
  %v6264 = vsel %vm410, %v6214, %v6230
  %v6265 = vsel %vm410, %v6216, %v6232
  %v6266 = vsel %vm410, %v6218, %v6234
  %v6267 = vsel %vm410, %v6188, %v6204
  %v6268 = vsel %vm410, %v6190, %v6206
  %v6269 = vsel %vm410, %v6192, %v6208
  %v6270 = vsel %vm410, %v6194, %v6210
  %v6271 = vsel %vm410, %v6196, %v6212
  %v6272 = vsel %vm410, %v6198, %v6214
  %v6273 = vsel %vm410, %v6200, %v6216
  %v6274 = vsel %vm410, %v6202, %v6218
  %v6275 = vsel %vm410, %v6236, %v6188
  %v6276 = vsel %vm410, %v6238, %v6190
  %v6277 = vsel %vm410, %v6240, %v6192
  %v6278 = vsel %vm410, %v6242, %v6194
  %v6279 = vsel %vm410, %v6244, %v6196
  %v6280 = vsel %vm410, %v6246, %v6198
  %v6281 = vsel %vm410, %v6248, %v6200
  %v6282 = vsel %vm410, %v6250, %v6202
  %v6283 = vmul.f32 %v6267, %v425
  %v6284 = vmul.f32 %v6259, %v429
  %v6285 = vmul.f32 %v6251, %v433
  %v6286 = vmul.f32 %v6275, %v437
  %v6287 = vmul.f32 %v6268, %v425
  %v6288 = vmul.f32 %v6260, %v429
  %v6289 = vmul.f32 %v6252, %v433
  %v6290 = vmul.f32 %v6276, %v437
  %v6291 = vmul.f32 %v6269, %v425
  %v6292 = vmul.f32 %v6261, %v429
  %v6293 = vmul.f32 %v6253, %v433
  %v6294 = vmul.f32 %v6277, %v437
  %v6295 = vmul.f32 %v6270, %v425
  %v6296 = vmul.f32 %v6262, %v429
  %v6297 = vmul.f32 %v6254, %v433
  %v6298 = vmul.f32 %v6278, %v437
  %v6299 = vmul.f32 %v6271, %v425
  %v6300 = vmul.f32 %v6263, %v429
  %v6301 = vmul.f32 %v6255, %v433
  %v6302 = vmul.f32 %v6279, %v437
  %v6303 = vmul.f32 %v6272, %v425
  %v6304 = vmul.f32 %v6264, %v429
  %v6305 = vmul.f32 %v6256, %v433
  %v6306 = vmul.f32 %v6280, %v437
  %v6307 = vmul.f32 %v6273, %v425
  %v6308 = vmul.f32 %v6265, %v429
  %v6309 = vmul.f32 %v6257, %v433
  %v6310 = vmul.f32 %v6281, %v437
  %v6311 = vmul.f32 %v6274, %v425
  %v6312 = vmul.f32 %v6266, %v429
  %v6313 = vmul.f32 %v6258, %v433
  %v6314 = vmul.f32 %v6282, %v437
  %v6315 = vpack.c.bf16 %v6287, %v6283
  %v6316 = vpack.c.bf16 %v6288, %v6284
  %v6317 = vpack.c.bf16 %v6289, %v6285
  %v6318 = vpack.c.bf16 %v6290, %v6286
  %v6319 = vpack.c.bf16 %v6295, %v6291
  %v6320 = vpack.c.bf16 %v6296, %v6292
  %v6321 = vpack.c.bf16 %v6297, %v6293
  %v6322 = vpack.c.bf16 %v6298, %v6294
  %v6323 = vpack.c.bf16 %v6303, %v6299
  %v6324 = vpack.c.bf16 %v6304, %v6300
  %v6325 = vpack.c.bf16 %v6305, %v6301
  %v6326 = vpack.c.bf16 %v6306, %v6302
  %v6327 = vpack.c.bf16 %v6311, %v6307
  %v6328 = vpack.c.bf16 %v6312, %v6308
  %v6329 = vpack.c.bf16 %v6313, %v6309
  %v6330 = vpack.c.bf16 %v6314, %v6310
  %6331 = vrot.lane.b32.xlu0 %v6060, 112
  %v6332 = vpop.permute.xlu0 %6331
  %6333 = vrot.lane.b32.xlu0 %v6064, 112
  %v6334 = vpop.permute.xlu0 %6333
  %6335 = vrot.lane.b32.xlu0 %v6070, 112
  %v6336 = vpop.permute.xlu0 %6335
  %6337 = vrot.lane.b32.xlu0 %v6074, 112
  %v6338 = vpop.permute.xlu0 %6337
  %6339 = vrot.lane.b32.xlu0 %v6080, 112
  %v6340 = vpop.permute.xlu0 %6339
  %6341 = vrot.lane.b32.xlu0 %v6084, 112
  %v6342 = vpop.permute.xlu0 %6341
  %6343 = vrot.lane.b32.xlu0 %v6090, 112
  %v6344 = vpop.permute.xlu0 %6343
  %6345 = vrot.lane.b32.xlu0 %v6094, 112
  %v6346 = vpop.permute.xlu0 %6345
  %6347 = vrot.lane.b32.xlu0 %v6062, 112
  %v6348 = vpop.permute.xlu0 %6347
  %6349 = vrot.lane.b32.xlu0 %v6066, 112
  %v6350 = vpop.permute.xlu0 %6349
  %6351 = vrot.lane.b32.xlu0 %v6072, 112
  %v6352 = vpop.permute.xlu0 %6351
  %6353 = vrot.lane.b32.xlu0 %v6076, 112
  %v6354 = vpop.permute.xlu0 %6353
  %6355 = vrot.lane.b32.xlu0 %v6082, 112
  %v6356 = vpop.permute.xlu0 %6355
  %6357 = vrot.lane.b32.xlu0 %v6086, 112
  %v6358 = vpop.permute.xlu0 %6357
  %6359 = vrot.lane.b32.xlu0 %v6092, 112
  %v6360 = vpop.permute.xlu0 %6359
  %6361 = vrot.lane.b32.xlu0 %v6096, 112
  %v6362 = vpop.permute.xlu0 %6361
  %6363 = vrot.lane.b32.xlu0 %v6133, 112
  %v6364 = vpop.permute.xlu0 %6363
  %6365 = vrot.lane.b32.xlu0 %v6137, 112
  %v6366 = vpop.permute.xlu0 %6365
  %6367 = vrot.lane.b32.xlu0 %v6143, 112
  %v6368 = vpop.permute.xlu0 %6367
  %6369 = vrot.lane.b32.xlu0 %v6147, 112
  %v6370 = vpop.permute.xlu0 %6369
  %6371 = vrot.lane.b32.xlu0 %v6153, 112
  %v6372 = vpop.permute.xlu0 %6371
  %6373 = vrot.lane.b32.xlu0 %v6157, 112
  %v6374 = vpop.permute.xlu0 %6373
  %6375 = vrot.lane.b32.xlu0 %v6163, 112
  %v6376 = vpop.permute.xlu0 %6375
  %6377 = vrot.lane.b32.xlu0 %v6167, 112
  %v6378 = vpop.permute.xlu0 %6377
  %6379 = vrot.lane.b32.xlu0 %v6135, 112
  %v6380 = vpop.permute.xlu0 %6379
  %6381 = vrot.lane.b32.xlu0 %v6139, 112
  %v6382 = vpop.permute.xlu0 %6381
  %6383 = vrot.lane.b32.xlu0 %v6145, 112
  %v6384 = vpop.permute.xlu0 %6383
  %6385 = vrot.lane.b32.xlu0 %v6149, 112
  %v6386 = vpop.permute.xlu0 %6385
  %6387 = vrot.lane.b32.xlu0 %v6155, 112
  %v6388 = vpop.permute.xlu0 %6387
  %6389 = vrot.lane.b32.xlu0 %v6159, 112
  %v6390 = vpop.permute.xlu0 %6389
  %6391 = vrot.lane.b32.xlu0 %v6165, 112
  %v6392 = vpop.permute.xlu0 %6391
  %6393 = vrot.lane.b32.xlu0 %v6169, 112
  %v6394 = vpop.permute.xlu0 %6393
  %v6395 = vsel %vm530, %v6364, %v6380
  %v6396 = vsel %vm530, %v6366, %v6382
  %v6397 = vsel %vm530, %v6368, %v6384
  %v6398 = vsel %vm530, %v6370, %v6386
  %v6399 = vsel %vm530, %v6372, %v6388
  %v6400 = vsel %vm530, %v6374, %v6390
  %v6401 = vsel %vm530, %v6376, %v6392
  %v6402 = vsel %vm530, %v6378, %v6394
  %v6403 = vsel %vm530, %v6348, %v6364
  %v6404 = vsel %vm530, %v6350, %v6366
  %v6405 = vsel %vm530, %v6352, %v6368
  %v6406 = vsel %vm530, %v6354, %v6370
  %v6407 = vsel %vm530, %v6356, %v6372
  %v6408 = vsel %vm530, %v6358, %v6374
  %v6409 = vsel %vm530, %v6360, %v6376
  %v6410 = vsel %vm530, %v6362, %v6378
  %v6411 = vsel %vm530, %v6332, %v6348
  %v6412 = vsel %vm530, %v6334, %v6350
  %v6413 = vsel %vm530, %v6336, %v6352
  %v6414 = vsel %vm530, %v6338, %v6354
  %v6415 = vsel %vm530, %v6340, %v6356
  %v6416 = vsel %vm530, %v6342, %v6358
  %v6417 = vsel %vm530, %v6344, %v6360
  %v6418 = vsel %vm530, %v6346, %v6362
  %v6419 = vsel %vm530, %v6380, %v6332
  %v6420 = vsel %vm530, %v6382, %v6334
  %v6421 = vsel %vm530, %v6384, %v6336
  %v6422 = vsel %vm530, %v6386, %v6338
  %v6423 = vsel %vm530, %v6388, %v6340
  %v6424 = vsel %vm530, %v6390, %v6342
  %v6425 = vsel %vm530, %v6392, %v6344
  %v6426 = vsel %vm530, %v6394, %v6346
  %v6427 = vmul.f32 %v6411, %v545
  %v6428 = vmul.f32 %v6403, %v549
  %v6429 = vmul.f32 %v6395, %v553
  %v6430 = vmul.f32 %v6419, %v557
  %v6431 = vmul.f32 %v6412, %v545
  %v6432 = vmul.f32 %v6404, %v549
  %v6433 = vmul.f32 %v6396, %v553
  %v6434 = vmul.f32 %v6420, %v557
  %v6435 = vmul.f32 %v6413, %v545
  %v6436 = vmul.f32 %v6405, %v549
  %v6437 = vmul.f32 %v6397, %v553
  %v6438 = vmul.f32 %v6421, %v557
  %v6439 = vmul.f32 %v6414, %v545
  %v6440 = vmul.f32 %v6406, %v549
  %v6441 = vmul.f32 %v6398, %v553
  %v6442 = vmul.f32 %v6422, %v557
  %v6443 = vmul.f32 %v6415, %v545
  %v6444 = vmul.f32 %v6407, %v549
  %v6445 = vmul.f32 %v6399, %v553
  %v6446 = vmul.f32 %v6423, %v557
  %v6447 = vmul.f32 %v6416, %v545
  %v6448 = vmul.f32 %v6408, %v549
  %v6449 = vmul.f32 %v6400, %v553
  %v6450 = vmul.f32 %v6424, %v557
  %v6451 = vmul.f32 %v6417, %v545
  %v6452 = vmul.f32 %v6409, %v549
  %v6453 = vmul.f32 %v6401, %v553
  %v6454 = vmul.f32 %v6425, %v557
  %v6455 = vmul.f32 %v6418, %v545
  %v6456 = vmul.f32 %v6410, %v549
  %v6457 = vmul.f32 %v6402, %v553
  %v6458 = vmul.f32 %v6426, %v557
  %v6459 = vpack.c.bf16 %v6431, %v6427
  %v6460 = vpack.c.bf16 %v6432, %v6428
  %v6461 = vpack.c.bf16 %v6433, %v6429
  %v6462 = vpack.c.bf16 %v6434, %v6430
  %v6463 = vpack.c.bf16 %v6439, %v6435
  %v6464 = vpack.c.bf16 %v6440, %v6436
  %v6465 = vpack.c.bf16 %v6441, %v6437
  %v6466 = vpack.c.bf16 %v6442, %v6438
  %v6467 = vpack.c.bf16 %v6447, %v6443
  %v6468 = vpack.c.bf16 %v6448, %v6444
  %v6469 = vpack.c.bf16 %v6449, %v6445
  %v6470 = vpack.c.bf16 %v6450, %v6446
  %v6471 = vpack.c.bf16 %v6455, %v6451
  %v6472 = vpack.c.bf16 %v6456, %v6452
  %v6473 = vpack.c.bf16 %v6457, %v6453
  %v6474 = vpack.c.bf16 %v6458, %v6454
  %6475 = vrot.lane.b32.xlu0 %v6060, 111
  %v6476 = vpop.permute.xlu0 %6475
  %6477 = vrot.lane.b32.xlu0 %v6064, 111
  %v6478 = vpop.permute.xlu0 %6477
  %6479 = vrot.lane.b32.xlu0 %v6070, 111
  %v6480 = vpop.permute.xlu0 %6479
  %6481 = vrot.lane.b32.xlu0 %v6074, 111
  %v6482 = vpop.permute.xlu0 %6481
  %6483 = vrot.lane.b32.xlu0 %v6080, 111
  %v6484 = vpop.permute.xlu0 %6483
  %6485 = vrot.lane.b32.xlu0 %v6084, 111
  %v6486 = vpop.permute.xlu0 %6485
  %6487 = vrot.lane.b32.xlu0 %v6090, 111
  %v6488 = vpop.permute.xlu0 %6487
  %6489 = vrot.lane.b32.xlu0 %v6094, 111
  %v6490 = vpop.permute.xlu0 %6489
  %6491 = vrot.lane.b32.xlu0 %v6062, 111
  %v6492 = vpop.permute.xlu0 %6491
  %6493 = vrot.lane.b32.xlu0 %v6066, 111
  %v6494 = vpop.permute.xlu0 %6493
  %6495 = vrot.lane.b32.xlu0 %v6072, 111
  %v6496 = vpop.permute.xlu0 %6495
  %6497 = vrot.lane.b32.xlu0 %v6076, 111
  %v6498 = vpop.permute.xlu0 %6497
  %6499 = vrot.lane.b32.xlu0 %v6082, 111
  %v6500 = vpop.permute.xlu0 %6499
  %6501 = vrot.lane.b32.xlu0 %v6086, 111
  %v6502 = vpop.permute.xlu0 %6501
  %6503 = vrot.lane.b32.xlu0 %v6092, 111
  %v6504 = vpop.permute.xlu0 %6503
  %6505 = vrot.lane.b32.xlu0 %v6096, 111
  %v6506 = vpop.permute.xlu0 %6505
  %6507 = vrot.lane.b32.xlu0 %v6133, 111
  %v6508 = vpop.permute.xlu0 %6507
  %6509 = vrot.lane.b32.xlu0 %v6137, 111
  %v6510 = vpop.permute.xlu0 %6509
  %6511 = vrot.lane.b32.xlu0 %v6143, 111
  %v6512 = vpop.permute.xlu0 %6511
  %6513 = vrot.lane.b32.xlu0 %v6147, 111
  %v6514 = vpop.permute.xlu0 %6513
  %6515 = vrot.lane.b32.xlu0 %v6153, 111
  %v6516 = vpop.permute.xlu0 %6515
  %6517 = vrot.lane.b32.xlu0 %v6157, 111
  %v6518 = vpop.permute.xlu0 %6517
  %6519 = vrot.lane.b32.xlu0 %v6163, 111
  %v6520 = vpop.permute.xlu0 %6519
  %6521 = vrot.lane.b32.xlu0 %v6167, 111
  %v6522 = vpop.permute.xlu0 %6521
  %6523 = vrot.lane.b32.xlu0 %v6135, 111
  %v6524 = vpop.permute.xlu0 %6523
  %6525 = vrot.lane.b32.xlu0 %v6139, 111
  %v6526 = vpop.permute.xlu0 %6525
  %6527 = vrot.lane.b32.xlu0 %v6145, 111
  %v6528 = vpop.permute.xlu0 %6527
  %6529 = vrot.lane.b32.xlu0 %v6149, 111
  %v6530 = vpop.permute.xlu0 %6529
  %6531 = vrot.lane.b32.xlu0 %v6155, 111
  %v6532 = vpop.permute.xlu0 %6531
  %6533 = vrot.lane.b32.xlu0 %v6159, 111
  %v6534 = vpop.permute.xlu0 %6533
  %6535 = vrot.lane.b32.xlu0 %v6165, 111
  %v6536 = vpop.permute.xlu0 %6535
  %6537 = vrot.lane.b32.xlu0 %v6169, 111
  %v6538 = vpop.permute.xlu0 %6537
  %v6539 = vsel %vm590, %v6508, %v6524
  %v6540 = vsel %vm590, %v6510, %v6526
  %v6541 = vsel %vm590, %v6512, %v6528
  %v6542 = vsel %vm590, %v6514, %v6530
  %v6543 = vsel %vm590, %v6516, %v6532
  %v6544 = vsel %vm590, %v6518, %v6534
  %v6545 = vsel %vm590, %v6520, %v6536
  %v6546 = vsel %vm590, %v6522, %v6538
  %v6547 = vsel %vm590, %v6492, %v6508
  %v6548 = vsel %vm590, %v6494, %v6510
  %v6549 = vsel %vm590, %v6496, %v6512
  %v6550 = vsel %vm590, %v6498, %v6514
  %v6551 = vsel %vm590, %v6500, %v6516
  %v6552 = vsel %vm590, %v6502, %v6518
  %v6553 = vsel %vm590, %v6504, %v6520
  %v6554 = vsel %vm590, %v6506, %v6522
  %v6555 = vsel %vm590, %v6476, %v6492
  %v6556 = vsel %vm590, %v6478, %v6494
  %v6557 = vsel %vm590, %v6480, %v6496
  %v6558 = vsel %vm590, %v6482, %v6498
  %v6559 = vsel %vm590, %v6484, %v6500
  %v6560 = vsel %vm590, %v6486, %v6502
  %v6561 = vsel %vm590, %v6488, %v6504
  %v6562 = vsel %vm590, %v6490, %v6506
  %v6563 = vsel %vm590, %v6524, %v6476
  %v6564 = vsel %vm590, %v6526, %v6478
  %v6565 = vsel %vm590, %v6528, %v6480
  %v6566 = vsel %vm590, %v6530, %v6482
  %v6567 = vsel %vm590, %v6532, %v6484
  %v6568 = vsel %vm590, %v6534, %v6486
  %v6569 = vsel %vm590, %v6536, %v6488
  %v6570 = vsel %vm590, %v6538, %v6490
  %v6571 = vmul.f32 %v6555, %v605
  %v6572 = vmul.f32 %v6547, %v609
  %v6573 = vmul.f32 %v6539, %v613
  %v6574 = vmul.f32 %v6563, %v617
  %v6575 = vmul.f32 %v6556, %v605
  %v6576 = vmul.f32 %v6548, %v609
  %v6577 = vmul.f32 %v6540, %v613
  %v6578 = vmul.f32 %v6564, %v617
  %v6579 = vmul.f32 %v6557, %v605
  %v6580 = vmul.f32 %v6549, %v609
  %v6581 = vmul.f32 %v6541, %v613
  %v6582 = vmul.f32 %v6565, %v617
  %v6583 = vmul.f32 %v6558, %v605
  %v6584 = vmul.f32 %v6550, %v609
  %v6585 = vmul.f32 %v6542, %v613
  %v6586 = vmul.f32 %v6566, %v617
  %v6587 = vmul.f32 %v6559, %v605
  %v6588 = vmul.f32 %v6551, %v609
  %v6589 = vmul.f32 %v6543, %v613
  %v6590 = vmul.f32 %v6567, %v617
  %v6591 = vmul.f32 %v6560, %v605
  %v6592 = vmul.f32 %v6552, %v609
  %v6593 = vmul.f32 %v6544, %v613
  %v6594 = vmul.f32 %v6568, %v617
  %v6595 = vmul.f32 %v6561, %v605
  %v6596 = vmul.f32 %v6553, %v609
  %v6597 = vmul.f32 %v6545, %v613
  %v6598 = vmul.f32 %v6569, %v617
  %v6599 = vmul.f32 %v6562, %v605
  %v6600 = vmul.f32 %v6554, %v609
  %v6601 = vmul.f32 %v6546, %v613
  %v6602 = vmul.f32 %v6570, %v617
  %v6603 = vpack.c.bf16 %v6575, %v6571
  %v6604 = vpack.c.bf16 %v6576, %v6572
  %v6605 = vpack.c.bf16 %v6577, %v6573
  %v6606 = vpack.c.bf16 %v6578, %v6574
  %v6607 = vpack.c.bf16 %v6583, %v6579
  %v6608 = vpack.c.bf16 %v6584, %v6580
  %v6609 = vpack.c.bf16 %v6585, %v6581
  %v6610 = vpack.c.bf16 %v6586, %v6582
  %v6611 = vpack.c.bf16 %v6591, %v6587
  %v6612 = vpack.c.bf16 %v6592, %v6588
  %v6613 = vpack.c.bf16 %v6593, %v6589
  %v6614 = vpack.c.bf16 %v6594, %v6590
  %v6615 = vpack.c.bf16 %v6599, %v6595
  %v6616 = vpack.c.bf16 %v6600, %v6596
  %v6617 = vpack.c.bf16 %v6601, %v6597
  %v6618 = vpack.c.bf16 %v6602, %v6598
  %v6619 = vld [vmem:[%s41] sm:$0xff]
  %v6620 = vld [vmem:[%s41 + $0x8] sm:$0xff]
  %v6621 = vld [vmem:[%s41 + $0x10] sm:$0xff]
  %v6622 = vld [vmem:[%s41 + $0x18] sm:$0xff]
  %v6623 = vld [vmem:[%s43] sm:$0xff]
  %v6624 = vld [vmem:[%s43 + $0x8] sm:$0xff]
  %v6625 = vld [vmem:[%s43 + $0x10] sm:$0xff]
  %v6626 = vld [vmem:[%s43 + $0x18] sm:$0xff]
  %6628 = vset.pattern.permute.xlu0 0
  %6629 = vperm.xlu0 %6628, %v6623
  %v6630 = vpop.permute.xlu0 %6629
  %6633 = vset.pattern.permute.xlu0 0
  %6634 = vperm.xlu0 %6633, %v6624
  %v6635 = vpop.permute.xlu0 %6634
  %6638 = vset.pattern.permute.xlu0 0
  %6639 = vperm.xlu0 %6638, %v6625
  %v6640 = vpop.permute.xlu0 %6639
  %6643 = vset.pattern.permute.xlu0 0
  %6644 = vperm.xlu0 %6643, %v6626
  %v6645 = vpop.permute.xlu0 %6644
  %v6651 = vunpack.c.l.b16 %v6619
  %v6652 = vunpack.c.h.b16 %v6619
  %v6653 = vunpack.c.l.b16 %v6620
  %v6654 = vunpack.c.h.b16 %v6620
  %v6655 = vunpack.c.l.b16 %v6621
  %v6656 = vunpack.c.h.b16 %v6621
  %v6657 = vunpack.c.l.b16 %v6622
  %v6658 = vunpack.c.h.b16 %v6622
  %v6659 = vpack.c.b16 %v6653, %v6651
  %v6660 = vpack.c.b16 %v6654, %v6652
  %v6661 = vpack.c.b16 %v6657, %v6655
  %v6662 = vpack.c.b16 %v6658, %v6656
  %6667 = vmatprep.subr.bf16.mxu0 %v6328
  %6668 = vmatpush1.bf16.msra.mxu0 %v6327
  %6669 = vmatprep.subr.bf16.mxu0 %v6324
  %6670 = vmatpush1.bf16.msra.mxu0 %v6323
  %6671 = vmatprep.subr.bf16.mxu0 %v6320
  %6672 = vmatpush1.bf16.msra.mxu0 %v6319
  %6673 = vmatprep.subr.bf16.mxu0 %v6316
  %6674 = vmatpush1.bf16.msra.mxu0 %v6315
  %6675 = vmatprep.subr.bf16.mxu0 %v6184
  %6676 = vmatpush1.bf16.msra.mxu0 %v6183
  %6677 = vmatprep.subr.bf16.mxu0 %v6180
  %6678 = vmatpush1.bf16.msra.mxu0 %v6179
  %6679 = vmatprep.subr.bf16.mxu0 %v6176
  %6680 = vmatpush1.bf16.msra.mxu0 %v6175
  %6681 = vmatprep.subr.bf16.mxu0 %v6172
  %6682 = vmatpush1.bf16.msra.mxu0 %v6171
  %6683 = vmatprep.subr.bf16.mxu0 %v6616
  %6684 = vmatpush2.bf16.msra.mxu0 %v6615
  %6685 = vmatprep.subr.bf16.mxu0 %v6612
  %6686 = vmatpush2.bf16.msra.mxu0 %v6611
  %6687 = vmatprep.subr.bf16.mxu0 %v6608
  %6688 = vmatpush2.bf16.msra.mxu0 %v6607
  %6689 = vmatprep.subr.bf16.mxu0 %v6604
  %6690 = vmatpush2.bf16.msra.mxu0 %v6603
  %6691 = vmatprep.subr.bf16.mxu0 %v6472
  %6692 = vmatpush2.bf16.msra.mxu0 %v6471
  %6693 = vmatprep.subr.bf16.mxu0 %v6468
  %6694 = vmatpush2.bf16.msra.mxu0 %v6467
  %6695 = vmatprep.subr.bf16.mxu0 %v6464
  %6696 = vmatpush2.bf16.msra.mxu0 %v6463
  %6697 = vmatprep.subr.bf16.mxu0 %v6460
  %6698 = vmatpush2.bf16.msra.mxu0 %v6459
  %6699 = vmatprep.mubr.bf16.mxu0 %v6660
  %6700 = vmatmul.mubr.bf16.gmra.mxu0 %v6659
  %v6701 = vpop.f32.mrf.mxu0
  %v6702 = vadd.f32 %v6630, %v6701
  %v6703 = vpop.f32.mrf.mxu0
  %v6704 = vadd.f32 %v6630, %v6703
  %v6705 = vpop.f32.mrf.mxu0
  %v6706 = vadd.f32 %v6635, %v6705
  %v6707 = vpop.f32.mrf.mxu0
  %v6708 = vadd.f32 %v6635, %v6707
  %6709 = vmatprep.mubr.bf16.mxu0 %v6662
  %6710 = vmatmul.mubr.bf16.gmra.mxu0 %v6661
  %v6711 = vpop.f32.mrf.mxu0
  %v6712 = vadd.f32 %v6640, %v6711
  %v6713 = vpop.f32.mrf.mxu0
  %v6714 = vadd.f32 %v6640, %v6713
  %v6715 = vpop.f32.mrf.mxu0
  %v6716 = vadd.f32 %v6645, %v6715
  %v6717 = vpop.f32.mrf.mxu0
  %v6718 = vadd.f32 %v6645, %v6717
  %6719 = vdwg.mxu0
  %6720 = vmatprep.subr.bf16.mxu0 %v6330
  %6721 = vmatpush1.bf16.msra.mxu0 %v6329
  %6722 = vmatprep.subr.bf16.mxu0 %v6326
  %6723 = vmatpush1.bf16.msra.mxu0 %v6325
  %6724 = vmatprep.subr.bf16.mxu0 %v6322
  %6725 = vmatpush1.bf16.msra.mxu0 %v6321
  %6726 = vmatprep.subr.bf16.mxu0 %v6318
  %6727 = vmatpush1.bf16.msra.mxu0 %v6317
  %6728 = vmatprep.subr.bf16.mxu0 %v6186
  %6729 = vmatpush1.bf16.msra.mxu0 %v6185
  %6730 = vmatprep.subr.bf16.mxu0 %v6182
  %6731 = vmatpush1.bf16.msra.mxu0 %v6181
  %6732 = vmatprep.subr.bf16.mxu0 %v6178
  %6733 = vmatpush1.bf16.msra.mxu0 %v6177
  %6734 = vmatprep.subr.bf16.mxu0 %v6174
  %6735 = vmatpush1.bf16.msra.mxu0 %v6173
  %6736 = vmatprep.subr.bf16.mxu0 %v6618
  %6737 = vmatpush2.bf16.msra.mxu0 %v6617
  %6738 = vmatprep.subr.bf16.mxu0 %v6614
  %6739 = vmatpush2.bf16.msra.mxu0 %v6613
  %6740 = vmatprep.subr.bf16.mxu0 %v6610
  %6741 = vmatpush2.bf16.msra.mxu0 %v6609
  %6742 = vmatprep.subr.bf16.mxu0 %v6606
  %6743 = vmatpush2.bf16.msra.mxu0 %v6605
  %6744 = vmatprep.subr.bf16.mxu0 %v6474
  %6745 = vmatpush2.bf16.msra.mxu0 %v6473
  %6746 = vmatprep.subr.bf16.mxu0 %v6470
  %6747 = vmatpush2.bf16.msra.mxu0 %v6469
  %6748 = vmatprep.subr.bf16.mxu0 %v6466
  %6749 = vmatpush2.bf16.msra.mxu0 %v6465
  %6750 = vmatprep.subr.bf16.mxu0 %v6462
  %6751 = vmatpush2.bf16.msra.mxu0 %v6461
  %6752 = vmatprep.mubr.bf16.mxu0 %v6660
  %6753 = vmatmul.mubr.bf16.gmra.mxu0 %v6659
  %v6754 = vpop.f32.mrf.mxu0
  %v6755 = vadd.f32 %v6630, %v6754
  %v6756 = vpop.f32.mrf.mxu0
  %v6757 = vadd.f32 %v6630, %v6756
  %v6758 = vpop.f32.mrf.mxu0
  %v6759 = vadd.f32 %v6635, %v6758
  %v6760 = vpop.f32.mrf.mxu0
  %v6761 = vadd.f32 %v6635, %v6760
  %6762 = vmatprep.mubr.bf16.mxu0 %v6662
  %6763 = vmatmul.mubr.bf16.gmra.mxu0 %v6661
  %v6764 = vpop.f32.mrf.mxu0
  %v6765 = vadd.f32 %v6640, %v6764
  %v6766 = vpop.f32.mrf.mxu0
  %v6767 = vadd.f32 %v6640, %v6766
  %v6768 = vpop.f32.mrf.mxu0
  %v6769 = vadd.f32 %v6645, %v6768
  %v6770 = vpop.f32.mrf.mxu0
  %v6771 = vadd.f32 %v6645, %v6770
  %6772 = vdwg.mxu0
  %v6773 = vmax.f32 %v6702, 0.0
  %v6774 = vmax.f32 %v6704, 0.0
  %v6775 = vmax.f32 %v6755, 0.0
  %v6776 = vmax.f32 %v6757, 0.0
  %v6777 = vmax.f32 %v6706, 0.0
  %v6778 = vmax.f32 %v6708, 0.0
  %v6779 = vmax.f32 %v6759, 0.0
  %v6780 = vmax.f32 %v6761, 0.0
  %v6781 = vmax.f32 %v6712, 0.0
  %v6782 = vmax.f32 %v6714, 0.0
  %v6783 = vmax.f32 %v6765, 0.0
  %v6784 = vmax.f32 %v6767, 0.0
  %v6785 = vmax.f32 %v6716, 0.0
  %v6786 = vmax.f32 %v6718, 0.0
  %v6787 = vmax.f32 %v6769, 0.0
  %v6788 = vmax.f32 %v6771, 0.0
  %6789 = vrot.lane.b32.xlu0 %v6773, 17
  %v6790 = vpop.permute.xlu0 %6789
  %6791 = vrot.lane.b32.xlu0 %v6777, 17
  %v6792 = vpop.permute.xlu0 %6791
  %6793 = vrot.lane.b32.xlu0 %v6781, 17
  %v6794 = vpop.permute.xlu0 %6793
  %6795 = vrot.lane.b32.xlu0 %v6785, 17
  %v6796 = vpop.permute.xlu0 %6795
  %6797 = vrot.lane.b32.xlu0 %v6774, 17
  %v6798 = vpop.permute.xlu0 %6797
  %6799 = vrot.lane.b32.xlu0 %v6778, 17
  %v6800 = vpop.permute.xlu0 %6799
  %6801 = vrot.lane.b32.xlu0 %v6782, 17
  %v6802 = vpop.permute.xlu0 %6801
  %6803 = vrot.lane.b32.xlu0 %v6786, 17
  %v6804 = vpop.permute.xlu0 %6803
  %6805 = vrot.lane.b32.xlu0 %v6775, 17
  %v6806 = vpop.permute.xlu0 %6805
  %6807 = vrot.lane.b32.xlu0 %v6779, 17
  %v6808 = vpop.permute.xlu0 %6807
  %6809 = vrot.lane.b32.xlu0 %v6783, 17
  %v6810 = vpop.permute.xlu0 %6809
  %6811 = vrot.lane.b32.xlu0 %v6787, 17
  %v6812 = vpop.permute.xlu0 %6811
  %6813 = vrot.lane.b32.xlu0 %v6776, 17
  %v6814 = vpop.permute.xlu0 %6813
  %6815 = vrot.lane.b32.xlu0 %v6780, 17
  %v6816 = vpop.permute.xlu0 %6815
  %6817 = vrot.lane.b32.xlu0 %v6784, 17
  %v6818 = vpop.permute.xlu0 %6817
  %6819 = vrot.lane.b32.xlu0 %v6788, 17
  %v6820 = vpop.permute.xlu0 %6819
  %v6821 = vsel %vm167, %v6806, %v6814
  %v6822 = vsel %vm167, %v6808, %v6816
  %v6823 = vsel %vm167, %v6810, %v6818
  %v6824 = vsel %vm167, %v6812, %v6820
  %v6825 = vsel %vm167, %v6798, %v6806
  %v6826 = vsel %vm167, %v6800, %v6808
  %v6827 = vsel %vm167, %v6802, %v6810
  %v6828 = vsel %vm167, %v6804, %v6812
  %v6829 = vsel %vm167, %v6790, %v6798
  %v6830 = vsel %vm167, %v6792, %v6800
  %v6831 = vsel %vm167, %v6794, %v6802
  %v6832 = vsel %vm167, %v6796, %v6804
  %v6833 = vsel %vm167, %v6814, %v6790
  %v6834 = vsel %vm167, %v6816, %v6792
  %v6835 = vsel %vm167, %v6818, %v6794
  %v6836 = vsel %vm167, %v6820, %v6796
  %v6837 = vmul.f32 %v6833, %v181
  %v6838 = vmul.f32 %v6829, %v185
  %v6839 = vmul.f32 %v6825, %v189
  %v6840 = vmul.f32 %v6821, %v193
  %v6841 = vmul.f32 %v6834, %v181
  %v6842 = vmul.f32 %v6830, %v185
  %v6843 = vmul.f32 %v6826, %v189
  %v6844 = vmul.f32 %v6822, %v193
  %v6845 = vmul.f32 %v6835, %v181
  %v6846 = vmul.f32 %v6831, %v185
  %v6847 = vmul.f32 %v6827, %v189
  %v6848 = vmul.f32 %v6823, %v193
  %v6849 = vmul.f32 %v6836, %v181
  %v6850 = vmul.f32 %v6832, %v185
  %v6851 = vmul.f32 %v6828, %v189
  %v6852 = vmul.f32 %v6824, %v193
  %v6853 = vpack.c.bf16 %v6841, %v6837
  %v6854 = vpack.c.bf16 %v6842, %v6838
  %v6855 = vpack.c.bf16 %v6843, %v6839
  %v6856 = vpack.c.bf16 %v6844, %v6840
  %v6857 = vpack.c.bf16 %v6849, %v6845
  %v6858 = vpack.c.bf16 %v6850, %v6846
  %v6859 = vpack.c.bf16 %v6851, %v6847
  %v6860 = vpack.c.bf16 %v6852, %v6848
  %6861 = vrot.lane.b32.xlu0 %v6773, 16
  %v6862 = vpop.permute.xlu0 %6861
  %6863 = vrot.lane.b32.xlu0 %v6777, 16
  %v6864 = vpop.permute.xlu0 %6863
  %6865 = vrot.lane.b32.xlu0 %v6781, 16
  %v6866 = vpop.permute.xlu0 %6865
  %6867 = vrot.lane.b32.xlu0 %v6785, 16
  %v6868 = vpop.permute.xlu0 %6867
  %6869 = vrot.lane.b32.xlu0 %v6774, 16
  %v6870 = vpop.permute.xlu0 %6869
  %6871 = vrot.lane.b32.xlu0 %v6778, 16
  %v6872 = vpop.permute.xlu0 %6871
  %6873 = vrot.lane.b32.xlu0 %v6782, 16
  %v6874 = vpop.permute.xlu0 %6873
  %6875 = vrot.lane.b32.xlu0 %v6786, 16
  %v6876 = vpop.permute.xlu0 %6875
  %6877 = vrot.lane.b32.xlu0 %v6775, 16
  %v6878 = vpop.permute.xlu0 %6877
  %6879 = vrot.lane.b32.xlu0 %v6779, 16
  %v6880 = vpop.permute.xlu0 %6879
  %6881 = vrot.lane.b32.xlu0 %v6783, 16
  %v6882 = vpop.permute.xlu0 %6881
  %6883 = vrot.lane.b32.xlu0 %v6787, 16
  %v6884 = vpop.permute.xlu0 %6883
  %6885 = vrot.lane.b32.xlu0 %v6776, 16
  %v6886 = vpop.permute.xlu0 %6885
  %6887 = vrot.lane.b32.xlu0 %v6780, 16
  %v6888 = vpop.permute.xlu0 %6887
  %6889 = vrot.lane.b32.xlu0 %v6784, 16
  %v6890 = vpop.permute.xlu0 %6889
  %6891 = vrot.lane.b32.xlu0 %v6788, 16
  %v6892 = vpop.permute.xlu0 %6891
  %v6893 = vsel %vm226, %v6878, %v6886
  %v6894 = vsel %vm226, %v6880, %v6888
  %v6895 = vsel %vm226, %v6882, %v6890
  %v6896 = vsel %vm226, %v6884, %v6892
  %v6897 = vsel %vm226, %v6870, %v6878
  %v6898 = vsel %vm226, %v6872, %v6880
  %v6899 = vsel %vm226, %v6874, %v6882
  %v6900 = vsel %vm226, %v6876, %v6884
  %v6901 = vsel %vm226, %v6862, %v6870
  %v6902 = vsel %vm226, %v6864, %v6872
  %v6903 = vsel %vm226, %v6866, %v6874
  %v6904 = vsel %vm226, %v6868, %v6876
  %v6905 = vsel %vm226, %v6886, %v6862
  %v6906 = vsel %vm226, %v6888, %v6864
  %v6907 = vsel %vm226, %v6890, %v6866
  %v6908 = vsel %vm226, %v6892, %v6868
  %v6909 = vmul.f32 %v6905, %v241
  %v6910 = vmul.f32 %v6901, %v245
  %v6911 = vmul.f32 %v6897, %v249
  %v6912 = vmul.f32 %v6893, %v253
  %v6913 = vmul.f32 %v6906, %v241
  %v6914 = vmul.f32 %v6902, %v245
  %v6915 = vmul.f32 %v6898, %v249
  %v6916 = vmul.f32 %v6894, %v253
  %v6917 = vmul.f32 %v6907, %v241
  %v6918 = vmul.f32 %v6903, %v245
  %v6919 = vmul.f32 %v6899, %v249
  %v6920 = vmul.f32 %v6895, %v253
  %v6921 = vmul.f32 %v6908, %v241
  %v6922 = vmul.f32 %v6904, %v245
  %v6923 = vmul.f32 %v6900, %v249
  %v6924 = vmul.f32 %v6896, %v253
  %v6925 = vpack.c.bf16 %v6913, %v6909
  %v6926 = vpack.c.bf16 %v6914, %v6910
  %v6927 = vpack.c.bf16 %v6915, %v6911
  %v6928 = vpack.c.bf16 %v6916, %v6912
  %v6929 = vpack.c.bf16 %v6921, %v6917
  %v6930 = vpack.c.bf16 %v6922, %v6918
  %v6931 = vpack.c.bf16 %v6923, %v6919
  %v6932 = vpack.c.bf16 %v6924, %v6920
  %6933 = vrot.lane.b32.xlu0 %v6773, 15
  %v6934 = vpop.permute.xlu0 %6933
  %6935 = vrot.lane.b32.xlu0 %v6777, 15
  %v6936 = vpop.permute.xlu0 %6935
  %6937 = vrot.lane.b32.xlu0 %v6781, 15
  %v6938 = vpop.permute.xlu0 %6937
  %6939 = vrot.lane.b32.xlu0 %v6785, 15
  %v6940 = vpop.permute.xlu0 %6939
  %6941 = vrot.lane.b32.xlu0 %v6774, 15
  %v6942 = vpop.permute.xlu0 %6941
  %6943 = vrot.lane.b32.xlu0 %v6778, 15
  %v6944 = vpop.permute.xlu0 %6943
  %6945 = vrot.lane.b32.xlu0 %v6782, 15
  %v6946 = vpop.permute.xlu0 %6945
  %6947 = vrot.lane.b32.xlu0 %v6786, 15
  %v6948 = vpop.permute.xlu0 %6947
  %6949 = vrot.lane.b32.xlu0 %v6775, 15
  %v6950 = vpop.permute.xlu0 %6949
  %6951 = vrot.lane.b32.xlu0 %v6779, 15
  %v6952 = vpop.permute.xlu0 %6951
  %6953 = vrot.lane.b32.xlu0 %v6783, 15
  %v6954 = vpop.permute.xlu0 %6953
  %6955 = vrot.lane.b32.xlu0 %v6787, 15
  %v6956 = vpop.permute.xlu0 %6955
  %6957 = vrot.lane.b32.xlu0 %v6776, 15
  %v6958 = vpop.permute.xlu0 %6957
  %6959 = vrot.lane.b32.xlu0 %v6780, 15
  %v6960 = vpop.permute.xlu0 %6959
  %6961 = vrot.lane.b32.xlu0 %v6784, 15
  %v6962 = vpop.permute.xlu0 %6961
  %6963 = vrot.lane.b32.xlu0 %v6788, 15
  %v6964 = vpop.permute.xlu0 %6963
  %v6965 = vsel %vm286, %v6950, %v6958
  %v6966 = vsel %vm286, %v6952, %v6960
  %v6967 = vsel %vm286, %v6954, %v6962
  %v6968 = vsel %vm286, %v6956, %v6964
  %v6969 = vsel %vm286, %v6942, %v6950
  %v6970 = vsel %vm286, %v6944, %v6952
  %v6971 = vsel %vm286, %v6946, %v6954
  %v6972 = vsel %vm286, %v6948, %v6956
  %v6973 = vsel %vm286, %v6934, %v6942
  %v6974 = vsel %vm286, %v6936, %v6944
  %v6975 = vsel %vm286, %v6938, %v6946
  %v6976 = vsel %vm286, %v6940, %v6948
  %v6977 = vsel %vm286, %v6958, %v6934
  %v6978 = vsel %vm286, %v6960, %v6936
  %v6979 = vsel %vm286, %v6962, %v6938
  %v6980 = vsel %vm286, %v6964, %v6940
  %v6981 = vmul.f32 %v6977, %v301
  %v6982 = vmul.f32 %v6973, %v305
  %v6983 = vmul.f32 %v6969, %v309
  %v6984 = vmul.f32 %v6965, %v313
  %v6985 = vmul.f32 %v6978, %v301
  %v6986 = vmul.f32 %v6974, %v305
  %v6987 = vmul.f32 %v6970, %v309
  %v6988 = vmul.f32 %v6966, %v313
  %v6989 = vmul.f32 %v6979, %v301
  %v6990 = vmul.f32 %v6975, %v305
  %v6991 = vmul.f32 %v6971, %v309
  %v6992 = vmul.f32 %v6967, %v313
  %v6993 = vmul.f32 %v6980, %v301
  %v6994 = vmul.f32 %v6976, %v305
  %v6995 = vmul.f32 %v6972, %v309
  %v6996 = vmul.f32 %v6968, %v313
  %v6997 = vpack.c.bf16 %v6985, %v6981
  %v6998 = vpack.c.bf16 %v6986, %v6982
  %v6999 = vpack.c.bf16 %v6987, %v6983
  %v7000 = vpack.c.bf16 %v6988, %v6984
  %v7001 = vpack.c.bf16 %v6993, %v6989
  %v7002 = vpack.c.bf16 %v6994, %v6990
  %v7003 = vpack.c.bf16 %v6995, %v6991
  %v7004 = vpack.c.bf16 %v6996, %v6992
  %7005 = vrot.lane.b32.xlu0 %v6773, 1
  %v7006 = vpop.permute.xlu0 %7005
  %7007 = vrot.lane.b32.xlu0 %v6777, 1
  %v7008 = vpop.permute.xlu0 %7007
  %7009 = vrot.lane.b32.xlu0 %v6781, 1
  %v7010 = vpop.permute.xlu0 %7009
  %7011 = vrot.lane.b32.xlu0 %v6785, 1
  %v7012 = vpop.permute.xlu0 %7011
  %7013 = vrot.lane.b32.xlu0 %v6774, 1
  %v7014 = vpop.permute.xlu0 %7013
  %7015 = vrot.lane.b32.xlu0 %v6778, 1
  %v7016 = vpop.permute.xlu0 %7015
  %7017 = vrot.lane.b32.xlu0 %v6782, 1
  %v7018 = vpop.permute.xlu0 %7017
  %7019 = vrot.lane.b32.xlu0 %v6786, 1
  %v7020 = vpop.permute.xlu0 %7019
  %7021 = vrot.lane.b32.xlu0 %v6775, 1
  %v7022 = vpop.permute.xlu0 %7021
  %7023 = vrot.lane.b32.xlu0 %v6779, 1
  %v7024 = vpop.permute.xlu0 %7023
  %7025 = vrot.lane.b32.xlu0 %v6783, 1
  %v7026 = vpop.permute.xlu0 %7025
  %7027 = vrot.lane.b32.xlu0 %v6787, 1
  %v7028 = vpop.permute.xlu0 %7027
  %7029 = vrot.lane.b32.xlu0 %v6776, 1
  %v7030 = vpop.permute.xlu0 %7029
  %7031 = vrot.lane.b32.xlu0 %v6780, 1
  %v7032 = vpop.permute.xlu0 %7031
  %7033 = vrot.lane.b32.xlu0 %v6784, 1
  %v7034 = vpop.permute.xlu0 %7033
  %7035 = vrot.lane.b32.xlu0 %v6788, 1
  %v7036 = vpop.permute.xlu0 %7035
  %v7037 = vsel %vm346, %v7022, %v7030
  %v7038 = vsel %vm346, %v7024, %v7032
  %v7039 = vsel %vm346, %v7026, %v7034
  %v7040 = vsel %vm346, %v7028, %v7036
  %v7041 = vsel %vm346, %v7014, %v7022
  %v7042 = vsel %vm346, %v7016, %v7024
  %v7043 = vsel %vm346, %v7018, %v7026
  %v7044 = vsel %vm346, %v7020, %v7028
  %v7045 = vsel %vm346, %v7006, %v7014
  %v7046 = vsel %vm346, %v7008, %v7016
  %v7047 = vsel %vm346, %v7010, %v7018
  %v7048 = vsel %vm346, %v7012, %v7020
  %v7049 = vsel %vm346, %v7030, %v7006
  %v7050 = vsel %vm346, %v7032, %v7008
  %v7051 = vsel %vm346, %v7034, %v7010
  %v7052 = vsel %vm346, %v7036, %v7012
  %v7053 = vmul.f32 %v7049, %v361
  %v7054 = vmul.f32 %v7045, %v365
  %v7055 = vmul.f32 %v7041, %v369
  %v7056 = vmul.f32 %v7037, %v373
  %v7057 = vmul.f32 %v7050, %v361
  %v7058 = vmul.f32 %v7046, %v365
  %v7059 = vmul.f32 %v7042, %v369
  %v7060 = vmul.f32 %v7038, %v373
  %v7061 = vmul.f32 %v7051, %v361
  %v7062 = vmul.f32 %v7047, %v365
  %v7063 = vmul.f32 %v7043, %v369
  %v7064 = vmul.f32 %v7039, %v373
  %v7065 = vmul.f32 %v7052, %v361
  %v7066 = vmul.f32 %v7048, %v365
  %v7067 = vmul.f32 %v7044, %v369
  %v7068 = vmul.f32 %v7040, %v373
  %v7069 = vpack.c.bf16 %v7057, %v7053
  %v7070 = vpack.c.bf16 %v7058, %v7054
  %v7071 = vpack.c.bf16 %v7059, %v7055
  %v7072 = vpack.c.bf16 %v7060, %v7056
  %v7073 = vpack.c.bf16 %v7065, %v7061
  %v7074 = vpack.c.bf16 %v7066, %v7062
  %v7075 = vpack.c.bf16 %v7067, %v7063
  %v7076 = vpack.c.bf16 %v7068, %v7064
  %v7077 = vpack.c.bf16 %v6777, %v6773
  %v7078 = vpack.c.bf16 %v6778, %v6774
  %v7079 = vpack.c.bf16 %v6779, %v6775
  %v7080 = vpack.c.bf16 %v6780, %v6776
  %v7081 = vpack.c.bf16 %v6785, %v6781
  %v7082 = vpack.c.bf16 %v6786, %v6782
  %v7083 = vpack.c.bf16 %v6787, %v6783
  %v7084 = vpack.c.bf16 %v6788, %v6784
  %7085 = vrot.lane.b32.xlu0 %v6773, 127
  %v7086 = vpop.permute.xlu0 %7085
  %7087 = vrot.lane.b32.xlu0 %v6777, 127
  %v7088 = vpop.permute.xlu0 %7087
  %7089 = vrot.lane.b32.xlu0 %v6781, 127
  %v7090 = vpop.permute.xlu0 %7089
  %7091 = vrot.lane.b32.xlu0 %v6785, 127
  %v7092 = vpop.permute.xlu0 %7091
  %7093 = vrot.lane.b32.xlu0 %v6774, 127
  %v7094 = vpop.permute.xlu0 %7093
  %7095 = vrot.lane.b32.xlu0 %v6778, 127
  %v7096 = vpop.permute.xlu0 %7095
  %7097 = vrot.lane.b32.xlu0 %v6782, 127
  %v7098 = vpop.permute.xlu0 %7097
  %7099 = vrot.lane.b32.xlu0 %v6786, 127
  %v7100 = vpop.permute.xlu0 %7099
  %7101 = vrot.lane.b32.xlu0 %v6775, 127
  %v7102 = vpop.permute.xlu0 %7101
  %7103 = vrot.lane.b32.xlu0 %v6779, 127
  %v7104 = vpop.permute.xlu0 %7103
  %7105 = vrot.lane.b32.xlu0 %v6783, 127
  %v7106 = vpop.permute.xlu0 %7105
  %7107 = vrot.lane.b32.xlu0 %v6787, 127
  %v7108 = vpop.permute.xlu0 %7107
  %7109 = vrot.lane.b32.xlu0 %v6776, 127
  %v7110 = vpop.permute.xlu0 %7109
  %7111 = vrot.lane.b32.xlu0 %v6780, 127
  %v7112 = vpop.permute.xlu0 %7111
  %7113 = vrot.lane.b32.xlu0 %v6784, 127
  %v7114 = vpop.permute.xlu0 %7113
  %7115 = vrot.lane.b32.xlu0 %v6788, 127
  %v7116 = vpop.permute.xlu0 %7115
  %v7117 = vsel %vm410, %v7102, %v7110
  %v7118 = vsel %vm410, %v7104, %v7112
  %v7119 = vsel %vm410, %v7106, %v7114
  %v7120 = vsel %vm410, %v7108, %v7116
  %v7121 = vsel %vm410, %v7094, %v7102
  %v7122 = vsel %vm410, %v7096, %v7104
  %v7123 = vsel %vm410, %v7098, %v7106
  %v7124 = vsel %vm410, %v7100, %v7108
  %v7125 = vsel %vm410, %v7086, %v7094
  %v7126 = vsel %vm410, %v7088, %v7096
  %v7127 = vsel %vm410, %v7090, %v7098
  %v7128 = vsel %vm410, %v7092, %v7100
  %v7129 = vsel %vm410, %v7110, %v7086
  %v7130 = vsel %vm410, %v7112, %v7088
  %v7131 = vsel %vm410, %v7114, %v7090
  %v7132 = vsel %vm410, %v7116, %v7092
  %v7133 = vmul.f32 %v7125, %v425
  %v7134 = vmul.f32 %v7121, %v429
  %v7135 = vmul.f32 %v7117, %v433
  %v7136 = vmul.f32 %v7129, %v437
  %v7137 = vmul.f32 %v7126, %v425
  %v7138 = vmul.f32 %v7122, %v429
  %v7139 = vmul.f32 %v7118, %v433
  %v7140 = vmul.f32 %v7130, %v437
  %v7141 = vmul.f32 %v7127, %v425
  %v7142 = vmul.f32 %v7123, %v429
  %v7143 = vmul.f32 %v7119, %v433
  %v7144 = vmul.f32 %v7131, %v437
  %v7145 = vmul.f32 %v7128, %v425
  %v7146 = vmul.f32 %v7124, %v429
  %v7147 = vmul.f32 %v7120, %v433
  %v7148 = vmul.f32 %v7132, %v437
  %v7149 = vpack.c.bf16 %v7137, %v7133
  %v7150 = vpack.c.bf16 %v7138, %v7134
  %v7151 = vpack.c.bf16 %v7139, %v7135
  %v7152 = vpack.c.bf16 %v7140, %v7136
  %v7153 = vpack.c.bf16 %v7145, %v7141
  %v7154 = vpack.c.bf16 %v7146, %v7142
  %v7155 = vpack.c.bf16 %v7147, %v7143
  %v7156 = vpack.c.bf16 %v7148, %v7144
  %7157 = vrot.lane.b32.xlu0 %v6773, 113
  %v7158 = vpop.permute.xlu0 %7157
  %7159 = vrot.lane.b32.xlu0 %v6777, 113
  %v7160 = vpop.permute.xlu0 %7159
  %7161 = vrot.lane.b32.xlu0 %v6781, 113
  %v7162 = vpop.permute.xlu0 %7161
  %7163 = vrot.lane.b32.xlu0 %v6785, 113
  %v7164 = vpop.permute.xlu0 %7163
  %7165 = vrot.lane.b32.xlu0 %v6774, 113
  %v7166 = vpop.permute.xlu0 %7165
  %7167 = vrot.lane.b32.xlu0 %v6778, 113
  %v7168 = vpop.permute.xlu0 %7167
  %7169 = vrot.lane.b32.xlu0 %v6782, 113
  %v7170 = vpop.permute.xlu0 %7169
  %7171 = vrot.lane.b32.xlu0 %v6786, 113
  %v7172 = vpop.permute.xlu0 %7171
  %7173 = vrot.lane.b32.xlu0 %v6775, 113
  %v7174 = vpop.permute.xlu0 %7173
  %7175 = vrot.lane.b32.xlu0 %v6779, 113
  %v7176 = vpop.permute.xlu0 %7175
  %7177 = vrot.lane.b32.xlu0 %v6783, 113
  %v7178 = vpop.permute.xlu0 %7177
  %7179 = vrot.lane.b32.xlu0 %v6787, 113
  %v7180 = vpop.permute.xlu0 %7179
  %7181 = vrot.lane.b32.xlu0 %v6776, 113
  %v7182 = vpop.permute.xlu0 %7181
  %7183 = vrot.lane.b32.xlu0 %v6780, 113
  %v7184 = vpop.permute.xlu0 %7183
  %7185 = vrot.lane.b32.xlu0 %v6784, 113
  %v7186 = vpop.permute.xlu0 %7185
  %7187 = vrot.lane.b32.xlu0 %v6788, 113
  %v7188 = vpop.permute.xlu0 %7187
  %v7189 = vsel %vm470, %v7174, %v7182
  %v7190 = vsel %vm470, %v7176, %v7184
  %v7191 = vsel %vm470, %v7178, %v7186
  %v7192 = vsel %vm470, %v7180, %v7188
  %v7193 = vsel %vm470, %v7166, %v7174
  %v7194 = vsel %vm470, %v7168, %v7176
  %v7195 = vsel %vm470, %v7170, %v7178
  %v7196 = vsel %vm470, %v7172, %v7180
  %v7197 = vsel %vm470, %v7158, %v7166
  %v7198 = vsel %vm470, %v7160, %v7168
  %v7199 = vsel %vm470, %v7162, %v7170
  %v7200 = vsel %vm470, %v7164, %v7172
  %v7201 = vsel %vm470, %v7182, %v7158
  %v7202 = vsel %vm470, %v7184, %v7160
  %v7203 = vsel %vm470, %v7186, %v7162
  %v7204 = vsel %vm470, %v7188, %v7164
  %v7205 = vmul.f32 %v7197, %v485
  %v7206 = vmul.f32 %v7193, %v489
  %v7207 = vmul.f32 %v7189, %v493
  %v7208 = vmul.f32 %v7201, %v497
  %v7209 = vmul.f32 %v7198, %v485
  %v7210 = vmul.f32 %v7194, %v489
  %v7211 = vmul.f32 %v7190, %v493
  %v7212 = vmul.f32 %v7202, %v497
  %v7213 = vmul.f32 %v7199, %v485
  %v7214 = vmul.f32 %v7195, %v489
  %v7215 = vmul.f32 %v7191, %v493
  %v7216 = vmul.f32 %v7203, %v497
  %v7217 = vmul.f32 %v7200, %v485
  %v7218 = vmul.f32 %v7196, %v489
  %v7219 = vmul.f32 %v7192, %v493
  %v7220 = vmul.f32 %v7204, %v497
  %v7221 = vpack.c.bf16 %v7209, %v7205
  %v7222 = vpack.c.bf16 %v7210, %v7206
  %v7223 = vpack.c.bf16 %v7211, %v7207
  %v7224 = vpack.c.bf16 %v7212, %v7208
  %v7225 = vpack.c.bf16 %v7217, %v7213
  %v7226 = vpack.c.bf16 %v7218, %v7214
  %v7227 = vpack.c.bf16 %v7219, %v7215
  %v7228 = vpack.c.bf16 %v7220, %v7216
  %7229 = vrot.lane.b32.xlu0 %v6773, 112
  %v7230 = vpop.permute.xlu0 %7229
  %7231 = vrot.lane.b32.xlu0 %v6777, 112
  %v7232 = vpop.permute.xlu0 %7231
  %7233 = vrot.lane.b32.xlu0 %v6781, 112
  %v7234 = vpop.permute.xlu0 %7233
  %7235 = vrot.lane.b32.xlu0 %v6785, 112
  %v7236 = vpop.permute.xlu0 %7235
  %7237 = vrot.lane.b32.xlu0 %v6774, 112
  %v7238 = vpop.permute.xlu0 %7237
  %7239 = vrot.lane.b32.xlu0 %v6778, 112
  %v7240 = vpop.permute.xlu0 %7239
  %7241 = vrot.lane.b32.xlu0 %v6782, 112
  %v7242 = vpop.permute.xlu0 %7241
  %7243 = vrot.lane.b32.xlu0 %v6786, 112
  %v7244 = vpop.permute.xlu0 %7243
  %7245 = vrot.lane.b32.xlu0 %v6775, 112
  %v7246 = vpop.permute.xlu0 %7245
  %7247 = vrot.lane.b32.xlu0 %v6779, 112
  %v7248 = vpop.permute.xlu0 %7247
  %7249 = vrot.lane.b32.xlu0 %v6783, 112
  %v7250 = vpop.permute.xlu0 %7249
  %7251 = vrot.lane.b32.xlu0 %v6787, 112
  %v7252 = vpop.permute.xlu0 %7251
  %7253 = vrot.lane.b32.xlu0 %v6776, 112
  %v7254 = vpop.permute.xlu0 %7253
  %7255 = vrot.lane.b32.xlu0 %v6780, 112
  %v7256 = vpop.permute.xlu0 %7255
  %7257 = vrot.lane.b32.xlu0 %v6784, 112
  %v7258 = vpop.permute.xlu0 %7257
  %7259 = vrot.lane.b32.xlu0 %v6788, 112
  %v7260 = vpop.permute.xlu0 %7259
  %v7261 = vsel %vm530, %v7246, %v7254
  %v7262 = vsel %vm530, %v7248, %v7256
  %v7263 = vsel %vm530, %v7250, %v7258
  %v7264 = vsel %vm530, %v7252, %v7260
  %v7265 = vsel %vm530, %v7238, %v7246
  %v7266 = vsel %vm530, %v7240, %v7248
  %v7267 = vsel %vm530, %v7242, %v7250
  %v7268 = vsel %vm530, %v7244, %v7252
  %v7269 = vsel %vm530, %v7230, %v7238
  %v7270 = vsel %vm530, %v7232, %v7240
  %v7271 = vsel %vm530, %v7234, %v7242
  %v7272 = vsel %vm530, %v7236, %v7244
  %v7273 = vsel %vm530, %v7254, %v7230
  %v7274 = vsel %vm530, %v7256, %v7232
  %v7275 = vsel %vm530, %v7258, %v7234
  %v7276 = vsel %vm530, %v7260, %v7236
  %v7277 = vmul.f32 %v7269, %v545
  %v7278 = vmul.f32 %v7265, %v549
  %v7279 = vmul.f32 %v7261, %v553
  %v7280 = vmul.f32 %v7273, %v557
  %v7281 = vmul.f32 %v7270, %v545
  %v7282 = vmul.f32 %v7266, %v549
  %v7283 = vmul.f32 %v7262, %v553
  %v7284 = vmul.f32 %v7274, %v557
  %v7285 = vmul.f32 %v7271, %v545
  %v7286 = vmul.f32 %v7267, %v549
  %v7287 = vmul.f32 %v7263, %v553
  %v7288 = vmul.f32 %v7275, %v557
  %v7289 = vmul.f32 %v7272, %v545
  %v7290 = vmul.f32 %v7268, %v549
  %v7291 = vmul.f32 %v7264, %v553
  %v7292 = vmul.f32 %v7276, %v557
  %v7293 = vpack.c.bf16 %v7281, %v7277
  %v7294 = vpack.c.bf16 %v7282, %v7278
  %v7295 = vpack.c.bf16 %v7283, %v7279
  %v7296 = vpack.c.bf16 %v7284, %v7280
  %v7297 = vpack.c.bf16 %v7289, %v7285
  %v7298 = vpack.c.bf16 %v7290, %v7286
  %v7299 = vpack.c.bf16 %v7291, %v7287
  %v7300 = vpack.c.bf16 %v7292, %v7288
  %7301 = vrot.lane.b32.xlu0 %v6773, 111
  %v7302 = vpop.permute.xlu0 %7301
  %7303 = vrot.lane.b32.xlu0 %v6777, 111
  %v7304 = vpop.permute.xlu0 %7303
  %7305 = vrot.lane.b32.xlu0 %v6781, 111
  %v7306 = vpop.permute.xlu0 %7305
  %7307 = vrot.lane.b32.xlu0 %v6785, 111
  %v7308 = vpop.permute.xlu0 %7307
  %7309 = vrot.lane.b32.xlu0 %v6774, 111
  %v7310 = vpop.permute.xlu0 %7309
  %7311 = vrot.lane.b32.xlu0 %v6778, 111
  %v7312 = vpop.permute.xlu0 %7311
  %7313 = vrot.lane.b32.xlu0 %v6782, 111
  %v7314 = vpop.permute.xlu0 %7313
  %7315 = vrot.lane.b32.xlu0 %v6786, 111
  %v7316 = vpop.permute.xlu0 %7315
  %7317 = vrot.lane.b32.xlu0 %v6775, 111
  %v7318 = vpop.permute.xlu0 %7317
  %7319 = vrot.lane.b32.xlu0 %v6779, 111
  %v7320 = vpop.permute.xlu0 %7319
  %7321 = vrot.lane.b32.xlu0 %v6783, 111
  %v7322 = vpop.permute.xlu0 %7321
  %7323 = vrot.lane.b32.xlu0 %v6787, 111
  %v7324 = vpop.permute.xlu0 %7323
  %7325 = vrot.lane.b32.xlu0 %v6776, 111
  %v7326 = vpop.permute.xlu0 %7325
  %7327 = vrot.lane.b32.xlu0 %v6780, 111
  %v7328 = vpop.permute.xlu0 %7327
  %7329 = vrot.lane.b32.xlu0 %v6784, 111
  %v7330 = vpop.permute.xlu0 %7329
  %7331 = vrot.lane.b32.xlu0 %v6788, 111
  %v7332 = vpop.permute.xlu0 %7331
  %v7333 = vsel %vm590, %v7318, %v7326
  %v7334 = vsel %vm590, %v7320, %v7328
  %v7335 = vsel %vm590, %v7322, %v7330
  %v7336 = vsel %vm590, %v7324, %v7332
  %v7337 = vsel %vm590, %v7310, %v7318
  %v7338 = vsel %vm590, %v7312, %v7320
  %v7339 = vsel %vm590, %v7314, %v7322
  %v7340 = vsel %vm590, %v7316, %v7324
  %v7341 = vsel %vm590, %v7302, %v7310
  %v7342 = vsel %vm590, %v7304, %v7312
  %v7343 = vsel %vm590, %v7306, %v7314
  %v7344 = vsel %vm590, %v7308, %v7316
  %v7345 = vsel %vm590, %v7326, %v7302
  %v7346 = vsel %vm590, %v7328, %v7304
  %v7347 = vsel %vm590, %v7330, %v7306
  %v7348 = vsel %vm590, %v7332, %v7308
  %v7349 = vmul.f32 %v7341, %v605
  %v7350 = vmul.f32 %v7337, %v609
  %v7351 = vmul.f32 %v7333, %v613
  %v7352 = vmul.f32 %v7345, %v617
  %v7353 = vmul.f32 %v7342, %v605
  %v7354 = vmul.f32 %v7338, %v609
  %v7355 = vmul.f32 %v7334, %v613
  %v7356 = vmul.f32 %v7346, %v617
  %v7357 = vmul.f32 %v7343, %v605
  %v7358 = vmul.f32 %v7339, %v609
  %v7359 = vmul.f32 %v7335, %v613
  %v7360 = vmul.f32 %v7347, %v617
  %v7361 = vmul.f32 %v7344, %v605
  %v7362 = vmul.f32 %v7340, %v609
  %v7363 = vmul.f32 %v7336, %v613
  %v7364 = vmul.f32 %v7348, %v617
  %v7365 = vpack.c.bf16 %v7353, %v7349
  %v7366 = vpack.c.bf16 %v7354, %v7350
  %v7367 = vpack.c.bf16 %v7355, %v7351
  %v7368 = vpack.c.bf16 %v7356, %v7352
  %v7369 = vpack.c.bf16 %v7361, %v7357
  %v7370 = vpack.c.bf16 %v7362, %v7358
  %v7371 = vpack.c.bf16 %v7363, %v7359
  %v7372 = vpack.c.bf16 %v7364, %v7360
  %v7373 = vld [vmem:[%s45] sm:$0xff]
  %v7374 = vld [vmem:[%s45 + $0x8] sm:$0xf]
  %v7375 = vld [vmem:[%s45 + $0xc] sm:$0xff]
  %v7376 = vld [vmem:[%s45 + $0x14] sm:$0xf]
  %v7377 = vld [vmem:[%s45 + $0x18] sm:$0xff]
  %v7378 = vld [vmem:[%s45 + $0x20] sm:$0xf]
  %v7379 = vld [vmem:[%s45 + $0x24] sm:$0xff]
  %v7380 = vld [vmem:[%s45 + $0x2c] sm:$0xf]
  %v7381 = vld [vmem:[%s47] sm:$0xff]
  %v7382 = vld [vmem:[%s47 + $0x8] sm:$0xf]
  %v7383 = vld [vmem:[%s47 + $0xc] sm:$0xff]
  %v7384 = vld [vmem:[%s47 + $0x14] sm:$0xf]
  %v7385 = vld [vmem:[%s47 + $0x18] sm:$0xff]
  %v7386 = vld [vmem:[%s47 + $0x20] sm:$0xf]
  %v7387 = vld [vmem:[%s47 + $0x24] sm:$0xff]
  %v7388 = vld [vmem:[%s47 + $0x2c] sm:$0xf]
  %v7397 = vunpack.c.l.b16 %v7381
  %v7398 = vunpack.c.h.b16 %v7381
  %v7399 = vunpack.c.l.b16 %v7382
  %v7400 = vunpack.c.l.b16 %v7383
  %v7401 = vunpack.c.h.b16 %v7383
  %v7402 = vunpack.c.l.b16 %v7384
  %v7403 = vunpack.c.l.b16 %v7385
  %v7404 = vunpack.c.h.b16 %v7385
  %v7405 = vunpack.c.l.b16 %v7386
  %v7406 = vunpack.c.l.b16 %v7387
  %v7407 = vunpack.c.h.b16 %v7387
  %v7408 = vunpack.c.l.b16 %v7388
  %v7409 = vpack.c.b16 %v7400, %v7397
  %v7410 = vpack.c.b16 %v7401, %v7398
  %v7411 = vpack.c.b16 %v7402, %v7399
  %v7412 = vpack.c.b16 %v7406, %v7403
  %v7413 = vpack.c.b16 %v7407, %v7404
  %v7414 = vpack.c.b16 %v7408, %v7405
  %v7420 = vsel %vm1455, %v7411, 0
  %v7423 = vsel %vm1455, %v7414, 0
  %7425 = vmatprep.subr.bf16.mxu0 %v7074
  %7426 = vmatpush1.bf16.msra.mxu0 %v7073
  %7427 = vmatprep.subr.bf16.mxu0 %v7070
  %7428 = vmatpush1.bf16.msra.mxu0 %v7069
  %7429 = vmatprep.subr.bf16.mxu0 %v7002
  %7430 = vmatpush1.bf16.msra.mxu0 %v7001
  %7431 = vmatprep.subr.bf16.mxu0 %v6998
  %7432 = vmatpush1.bf16.msra.mxu0 %v6997
  %7433 = vmatprep.subr.bf16.mxu0 %v6930
  %7434 = vmatpush1.bf16.msra.mxu0 %v6929
  %7435 = vmatprep.subr.bf16.mxu0 %v6926
  %7436 = vmatpush1.bf16.msra.mxu0 %v6925
  %7437 = vmatprep.subr.bf16.mxu0 %v6858
  %7438 = vmatpush1.bf16.msra.mxu0 %v6857
  %7439 = vmatprep.subr.bf16.mxu0 %v6854
  %7440 = vmatpush1.bf16.msra.mxu0 %v6853
  %7441 = vmatprep.subr.bf16.mxu0 %v7298
  %7442 = vmatpush2.bf16.msra.mxu0 %v7297
  %7443 = vmatprep.subr.bf16.mxu0 %v7294
  %7444 = vmatpush2.bf16.msra.mxu0 %v7293
  %7445 = vmatprep.subr.bf16.mxu0 %v7226
  %7446 = vmatpush2.bf16.msra.mxu0 %v7225
  %7447 = vmatprep.subr.bf16.mxu0 %v7222
  %7448 = vmatpush2.bf16.msra.mxu0 %v7221
  %7449 = vmatprep.subr.bf16.mxu0 %v7154
  %7450 = vmatpush2.bf16.msra.mxu0 %v7153
  %7451 = vmatprep.subr.bf16.mxu0 %v7150
  %7452 = vmatpush2.bf16.msra.mxu0 %v7149
  %7453 = vmatprep.subr.bf16.mxu0 %v7082
  %7454 = vmatpush2.bf16.msra.mxu0 %v7081
  %7455 = vmatprep.subr.bf16.mxu0 %v7078
  %7456 = vmatpush2.bf16.msra.mxu0 %v7077
  %7457 = vmatprep.mubr.bf16.mxu0 %v7410
  %7458 = vmatmul.mubr.bf16.gmra.mxu0 %v7409
  %v7459 = vpop.f32.mrf.mxu0
  %v7460 = vadd.f32 0.0, %v7459
  %v7461 = vpop.f32.mrf.mxu0
  %v7462 = vadd.f32 0.0, %v7461
  %v7463 = vpop.f32.mrf.mxu0
  %v7464 = vadd.f32 0.0, %v7463
  %v7465 = vpop.f32.mrf.mxu0
  %v7466 = vadd.f32 0.0, %v7465
  %7467 = vmatprep.mubr.bf16.mxu0 %v7413
  %7468 = vmatmul.mubr.bf16.gmra.mxu0 %v7412
  %v7469 = vpop.f32.mrf.mxu0
  %v7470 = vadd.f32 0.0, %v7469
  %v7471 = vpop.f32.mrf.mxu0
  %v7472 = vadd.f32 0.0, %v7471
  %v7473 = vpop.f32.mrf.mxu0
  %v7474 = vadd.f32 0.0, %v7473
  %v7475 = vpop.f32.mrf.mxu0
  %v7476 = vadd.f32 0.0, %v7475
  %7477 = vdwg.mxu0
  %7478 = vmatprep.subr.bf16.mxu0 0
  %7479 = vmatpush1.bf16.msra.mxu0 0
  %7480 = vmatprep.subr.bf16.mxu0 0
  %7481 = vmatpush1.bf16.msra.mxu0 0
  %7482 = vmatprep.subr.bf16.mxu0 0
  %7483 = vmatpush1.bf16.msra.mxu0 0
  %7484 = vmatprep.subr.bf16.mxu0 0
  %7485 = vmatpush1.bf16.msra.mxu0 0
  %7486 = vmatprep.subr.bf16.mxu0 0
  %7487 = vmatpush1.bf16.msra.mxu0 0
  %7488 = vmatprep.subr.bf16.mxu0 0
  %7489 = vmatpush1.bf16.msra.mxu0 0
  %7490 = vmatprep.subr.bf16.mxu0 %v7370
  %7491 = vmatpush1.bf16.msra.mxu0 %v7369
  %7492 = vmatprep.subr.bf16.mxu0 %v7366
  %7493 = vmatpush1.bf16.msra.mxu0 %v7365
  %7494 = vmatprep.subr.bf16.mxu0 0
  %7495 = vmatpush2.bf16.msra.mxu0 0
  %7496 = vmatprep.subr.bf16.mxu0 0
  %7497 = vmatpush2.bf16.msra.mxu0 0
  %7498 = vmatprep.subr.bf16.mxu0 0
  %7499 = vmatpush2.bf16.msra.mxu0 0
  %7500 = vmatprep.subr.bf16.mxu0 0
  %7501 = vmatpush2.bf16.msra.mxu0 0
  %7502 = vmatprep.subr.bf16.mxu0 0
  %7503 = vmatpush2.bf16.msra.mxu0 0
  %7504 = vmatprep.subr.bf16.mxu0 0
  %7505 = vmatpush2.bf16.msra.mxu0 0
  %7506 = vmatprep.subr.bf16.mxu0 0
  %7507 = vmatpush2.bf16.msra.mxu0 0
  %7508 = vmatprep.subr.bf16.mxu0 0
  %7509 = vmatpush2.bf16.msra.mxu0 0
  %7510 = vmatprep.mubr.bf16.mxu0 0
  %7511 = vmatmul.mubr.bf16.gmra.mxu0 %v7420
  %v7512 = vpop.f32.mrf.mxu0
  %v7513 = vadd.f32 %v7460, %v7512
  %v7514 = vpop.f32.mrf.mxu0
  %v7515 = vadd.f32 %v7462, %v7514
  %v7516 = vpop.f32.mrf.mxu0
  %v7517 = vadd.f32 %v7464, %v7516
  %v7518 = vpop.f32.mrf.mxu0
  %v7519 = vadd.f32 %v7466, %v7518
  %7520 = vmatprep.mubr.bf16.mxu0 0
  %7521 = vmatmul.mubr.bf16.gmra.mxu0 %v7423
  %v7522 = vpop.f32.mrf.mxu0
  %v7523 = vadd.f32 %v7470, %v7522
  %v7524 = vpop.f32.mrf.mxu0
  %v7525 = vadd.f32 %v7472, %v7524
  %v7526 = vpop.f32.mrf.mxu0
  %v7527 = vadd.f32 %v7474, %v7526
  %v7528 = vpop.f32.mrf.mxu0
  %v7529 = vadd.f32 %v7476, %v7528
  %7530 = vdwg.mxu0
  %7531 = vmatprep.subr.bf16.mxu0 %v7076
  %7532 = vmatpush1.bf16.msra.mxu0 %v7075
  %7533 = vmatprep.subr.bf16.mxu0 %v7072
  %7534 = vmatpush1.bf16.msra.mxu0 %v7071
  %7535 = vmatprep.subr.bf16.mxu0 %v7004
  %7536 = vmatpush1.bf16.msra.mxu0 %v7003
  %7537 = vmatprep.subr.bf16.mxu0 %v7000
  %7538 = vmatpush1.bf16.msra.mxu0 %v6999
  %7539 = vmatprep.subr.bf16.mxu0 %v6932
  %7540 = vmatpush1.bf16.msra.mxu0 %v6931
  %7541 = vmatprep.subr.bf16.mxu0 %v6928
  %7542 = vmatpush1.bf16.msra.mxu0 %v6927
  %7543 = vmatprep.subr.bf16.mxu0 %v6860
  %7544 = vmatpush1.bf16.msra.mxu0 %v6859
  %7545 = vmatprep.subr.bf16.mxu0 %v6856
  %7546 = vmatpush1.bf16.msra.mxu0 %v6855
  %7547 = vmatprep.subr.bf16.mxu0 %v7300
  %7548 = vmatpush2.bf16.msra.mxu0 %v7299
  %7549 = vmatprep.subr.bf16.mxu0 %v7296
  %7550 = vmatpush2.bf16.msra.mxu0 %v7295
  %7551 = vmatprep.subr.bf16.mxu0 %v7228
  %7552 = vmatpush2.bf16.msra.mxu0 %v7227
  %7553 = vmatprep.subr.bf16.mxu0 %v7224
  %7554 = vmatpush2.bf16.msra.mxu0 %v7223
  %7555 = vmatprep.subr.bf16.mxu0 %v7156
  %7556 = vmatpush2.bf16.msra.mxu0 %v7155
  %7557 = vmatprep.subr.bf16.mxu0 %v7152
  %7558 = vmatpush2.bf16.msra.mxu0 %v7151
  %7559 = vmatprep.subr.bf16.mxu0 %v7084
  %7560 = vmatpush2.bf16.msra.mxu0 %v7083
  %7561 = vmatprep.subr.bf16.mxu0 %v7080
  %7562 = vmatpush2.bf16.msra.mxu0 %v7079
  %7563 = vmatprep.mubr.bf16.mxu0 %v7410
  %7564 = vmatmul.mubr.bf16.gmra.mxu0 %v7409
  %v7565 = vpop.f32.mrf.mxu0
  %v7566 = vadd.f32 0.0, %v7565
  %v7567 = vpop.f32.mrf.mxu0
  %v7568 = vadd.f32 0.0, %v7567
  %v7569 = vpop.f32.mrf.mxu0
  %v7570 = vadd.f32 0.0, %v7569
  %v7571 = vpop.f32.mrf.mxu0
  %v7572 = vadd.f32 0.0, %v7571
  %7573 = vmatprep.mubr.bf16.mxu0 %v7413
  %7574 = vmatmul.mubr.bf16.gmra.mxu0 %v7412
  %v7575 = vpop.f32.mrf.mxu0
  %v7576 = vadd.f32 0.0, %v7575
  %v7577 = vpop.f32.mrf.mxu0
  %v7578 = vadd.f32 0.0, %v7577
  %v7579 = vpop.f32.mrf.mxu0
  %v7580 = vadd.f32 0.0, %v7579
  %v7581 = vpop.f32.mrf.mxu0
  %v7582 = vadd.f32 0.0, %v7581
  %7583 = vdwg.mxu0
  %7584 = vmatprep.subr.bf16.mxu0 0
  %7585 = vmatpush1.bf16.msra.mxu0 0
  %7586 = vmatprep.subr.bf16.mxu0 0
  %7587 = vmatpush1.bf16.msra.mxu0 0
  %7588 = vmatprep.subr.bf16.mxu0 0
  %7589 = vmatpush1.bf16.msra.mxu0 0
  %7590 = vmatprep.subr.bf16.mxu0 0
  %7591 = vmatpush1.bf16.msra.mxu0 0
  %7592 = vmatprep.subr.bf16.mxu0 0
  %7593 = vmatpush1.bf16.msra.mxu0 0
  %7594 = vmatprep.subr.bf16.mxu0 0
  %7595 = vmatpush1.bf16.msra.mxu0 0
  %7596 = vmatprep.subr.bf16.mxu0 %v7372
  %7597 = vmatpush1.bf16.msra.mxu0 %v7371
  %7598 = vmatprep.subr.bf16.mxu0 %v7368
  %7599 = vmatpush1.bf16.msra.mxu0 %v7367
  %7600 = vmatprep.subr.bf16.mxu0 0
  %7601 = vmatpush2.bf16.msra.mxu0 0
  %7602 = vmatprep.subr.bf16.mxu0 0
  %7603 = vmatpush2.bf16.msra.mxu0 0
  %7604 = vmatprep.subr.bf16.mxu0 0
  %7605 = vmatpush2.bf16.msra.mxu0 0
  %7606 = vmatprep.subr.bf16.mxu0 0
  %7607 = vmatpush2.bf16.msra.mxu0 0
  %7608 = vmatprep.subr.bf16.mxu0 0
  %7609 = vmatpush2.bf16.msra.mxu0 0
  %7610 = vmatprep.subr.bf16.mxu0 0
  %7611 = vmatpush2.bf16.msra.mxu0 0
  %7612 = vmatprep.subr.bf16.mxu0 0
  %7613 = vmatpush2.bf16.msra.mxu0 0
  %7614 = vmatprep.subr.bf16.mxu0 0
  %7615 = vmatpush2.bf16.msra.mxu0 0
  %7616 = vmatprep.mubr.bf16.mxu0 0
  %7617 = vmatmul.mubr.bf16.gmra.mxu0 %v7420
  %v7618 = vpop.f32.mrf.mxu0
  %v7619 = vadd.f32 %v7566, %v7618
  %v7620 = vpop.f32.mrf.mxu0
  %v7621 = vadd.f32 %v7568, %v7620
  %v7622 = vpop.f32.mrf.mxu0
  %v7623 = vadd.f32 %v7570, %v7622
  %v7624 = vpop.f32.mrf.mxu0
  %v7625 = vadd.f32 %v7572, %v7624
  %7626 = vmatprep.mubr.bf16.mxu0 0
  %7627 = vmatmul.mubr.bf16.gmra.mxu0 %v7423
  %v7628 = vpop.f32.mrf.mxu0
  %v7629 = vadd.f32 %v7576, %v7628
  %v7630 = vpop.f32.mrf.mxu0
  %v7631 = vadd.f32 %v7578, %v7630
  %v7632 = vpop.f32.mrf.mxu0
  %v7633 = vadd.f32 %v7580, %v7632
  %v7634 = vpop.f32.mrf.mxu0
  %v7635 = vadd.f32 %v7582, %v7634
  %7636 = vdwg.mxu0
  %v7645 = vunpack.c.l.b16 %v7373
  %v7646 = vunpack.c.h.b16 %v7373
  %v7647 = vunpack.c.l.b16 %v7374
  %v7648 = vunpack.c.l.b16 %v7375
  %v7649 = vunpack.c.h.b16 %v7375
  %v7650 = vunpack.c.l.b16 %v7376
  %v7651 = vunpack.c.l.b16 %v7377
  %v7652 = vunpack.c.h.b16 %v7377
  %v7653 = vunpack.c.l.b16 %v7378
  %v7654 = vunpack.c.l.b16 %v7379
  %v7655 = vunpack.c.h.b16 %v7379
  %v7656 = vunpack.c.l.b16 %v7380
  %v7657 = vpack.c.b16 %v7648, %v7645
  %v7658 = vpack.c.b16 %v7649, %v7646
  %v7659 = vpack.c.b16 %v7650, %v7647
  %v7660 = vpack.c.b16 %v7654, %v7651
  %v7661 = vpack.c.b16 %v7655, %v7652
  %v7662 = vpack.c.b16 %v7656, %v7653
  %v7668 = vsel %vm1455, %v7659, 0
  %v7671 = vsel %vm1455, %v7662, 0
  %7673 = vmatprep.subr.bf16.mxu0 %v1975
  %7674 = vmatpush1.bf16.msra.mxu0 %v1974
  %7675 = vmatprep.subr.bf16.mxu0 %v1971
  %7676 = vmatpush1.bf16.msra.mxu0 %v1970
  %7677 = vmatprep.subr.bf16.mxu0 %v1903
  %7678 = vmatpush1.bf16.msra.mxu0 %v1902
  %7679 = vmatprep.subr.bf16.mxu0 %v1899
  %7680 = vmatpush1.bf16.msra.mxu0 %v1898
  %7681 = vmatprep.subr.bf16.mxu0 %v1831
  %7682 = vmatpush1.bf16.msra.mxu0 %v1830
  %7683 = vmatprep.subr.bf16.mxu0 %v1827
  %7684 = vmatpush1.bf16.msra.mxu0 %v1826
  %7685 = vmatprep.subr.bf16.mxu0 %v1759
  %7686 = vmatpush1.bf16.msra.mxu0 %v1758
  %7687 = vmatprep.subr.bf16.mxu0 %v1755
  %7688 = vmatpush1.bf16.msra.mxu0 %v1754
  %7689 = vmatprep.subr.bf16.mxu0 %v2199
  %7690 = vmatpush2.bf16.msra.mxu0 %v2198
  %7691 = vmatprep.subr.bf16.mxu0 %v2195
  %7692 = vmatpush2.bf16.msra.mxu0 %v2194
  %7693 = vmatprep.subr.bf16.mxu0 %v2127
  %7694 = vmatpush2.bf16.msra.mxu0 %v2126
  %7695 = vmatprep.subr.bf16.mxu0 %v2123
  %7696 = vmatpush2.bf16.msra.mxu0 %v2122
  %7697 = vmatprep.subr.bf16.mxu0 %v2055
  %7698 = vmatpush2.bf16.msra.mxu0 %v2054
  %7699 = vmatprep.subr.bf16.mxu0 %v2051
  %7700 = vmatpush2.bf16.msra.mxu0 %v2050
  %7701 = vmatprep.subr.bf16.mxu0 %v1983
  %7702 = vmatpush2.bf16.msra.mxu0 %v1982
  %7703 = vmatprep.subr.bf16.mxu0 %v1979
  %7704 = vmatpush2.bf16.msra.mxu0 %v1978
  %7705 = vmatprep.mubr.bf16.mxu0 %v7658
  %7706 = vmatmul.mubr.bf16.gmra.mxu0 %v7657
  %v7707 = vpop.f32.mrf.mxu0
  %v7708 = vadd.f32 %v7513, %v7707
  %v7709 = vpop.f32.mrf.mxu0
  %v7710 = vadd.f32 %v7515, %v7709
  %v7711 = vpop.f32.mrf.mxu0
  %v7712 = vadd.f32 %v7517, %v7711
  %v7713 = vpop.f32.mrf.mxu0
  %v7714 = vadd.f32 %v7519, %v7713
  %7715 = vmatprep.mubr.bf16.mxu0 %v7661
  %7716 = vmatmul.mubr.bf16.gmra.mxu0 %v7660
  %v7717 = vpop.f32.mrf.mxu0
  %v7718 = vadd.f32 %v7523, %v7717
  %v7719 = vpop.f32.mrf.mxu0
  %v7720 = vadd.f32 %v7525, %v7719
  %v7721 = vpop.f32.mrf.mxu0
  %v7722 = vadd.f32 %v7527, %v7721
  %v7723 = vpop.f32.mrf.mxu0
  %v7724 = vadd.f32 %v7529, %v7723
  %7725 = vdwg.mxu0
  %7726 = vmatprep.subr.bf16.mxu0 0
  %7727 = vmatpush1.bf16.msra.mxu0 0
  %7728 = vmatprep.subr.bf16.mxu0 0
  %7729 = vmatpush1.bf16.msra.mxu0 0
  %7730 = vmatprep.subr.bf16.mxu0 0
  %7731 = vmatpush1.bf16.msra.mxu0 0
  %7732 = vmatprep.subr.bf16.mxu0 0
  %7733 = vmatpush1.bf16.msra.mxu0 0
  %7734 = vmatprep.subr.bf16.mxu0 0
  %7735 = vmatpush1.bf16.msra.mxu0 0
  %7736 = vmatprep.subr.bf16.mxu0 0
  %7737 = vmatpush1.bf16.msra.mxu0 0
  %7738 = vmatprep.subr.bf16.mxu0 %v2271
  %7739 = vmatpush1.bf16.msra.mxu0 %v2270
  %7740 = vmatprep.subr.bf16.mxu0 %v2267
  %7741 = vmatpush1.bf16.msra.mxu0 %v2266
  %7742 = vmatprep.subr.bf16.mxu0 0
  %7743 = vmatpush2.bf16.msra.mxu0 0
  %7744 = vmatprep.subr.bf16.mxu0 0
  %7745 = vmatpush2.bf16.msra.mxu0 0
  %7746 = vmatprep.subr.bf16.mxu0 0
  %7747 = vmatpush2.bf16.msra.mxu0 0
  %7748 = vmatprep.subr.bf16.mxu0 0
  %7749 = vmatpush2.bf16.msra.mxu0 0
  %7750 = vmatprep.subr.bf16.mxu0 0
  %7751 = vmatpush2.bf16.msra.mxu0 0
  %7752 = vmatprep.subr.bf16.mxu0 0
  %7753 = vmatpush2.bf16.msra.mxu0 0
  %7754 = vmatprep.subr.bf16.mxu0 0
  %7755 = vmatpush2.bf16.msra.mxu0 0
  %7756 = vmatprep.subr.bf16.mxu0 0
  %7757 = vmatpush2.bf16.msra.mxu0 0
  %7758 = vmatprep.mubr.bf16.mxu0 0
  %7759 = vmatmul.mubr.bf16.gmra.mxu0 %v7668
  %v7760 = vpop.f32.mrf.mxu0
  %v7761 = vadd.f32 %v7708, %v7760
  %v7762 = vpop.f32.mrf.mxu0
  %v7763 = vadd.f32 %v7710, %v7762
  %v7764 = vpop.f32.mrf.mxu0
  %v7765 = vadd.f32 %v7712, %v7764
  %v7766 = vpop.f32.mrf.mxu0
  %v7767 = vadd.f32 %v7714, %v7766
  %7768 = vmatprep.mubr.bf16.mxu0 0
  %7769 = vmatmul.mubr.bf16.gmra.mxu0 %v7671
  %v7770 = vpop.f32.mrf.mxu0
  %v7771 = vadd.f32 %v7718, %v7770
  %v7772 = vpop.f32.mrf.mxu0
  %v7773 = vadd.f32 %v7720, %v7772
  %v7774 = vpop.f32.mrf.mxu0
  %v7775 = vadd.f32 %v7722, %v7774
  %v7776 = vpop.f32.mrf.mxu0
  %v7777 = vadd.f32 %v7724, %v7776
  %7778 = vdwg.mxu0
  %7779 = vmatprep.subr.bf16.mxu0 %v1977
  %7780 = vmatpush1.bf16.msra.mxu0 %v1976
  %7781 = vmatprep.subr.bf16.mxu0 %v1973
  %7782 = vmatpush1.bf16.msra.mxu0 %v1972
  %7783 = vmatprep.subr.bf16.mxu0 %v1905
  %7784 = vmatpush1.bf16.msra.mxu0 %v1904
  %7785 = vmatprep.subr.bf16.mxu0 %v1901
  %7786 = vmatpush1.bf16.msra.mxu0 %v1900
  %7787 = vmatprep.subr.bf16.mxu0 %v1833
  %7788 = vmatpush1.bf16.msra.mxu0 %v1832
  %7789 = vmatprep.subr.bf16.mxu0 %v1829
  %7790 = vmatpush1.bf16.msra.mxu0 %v1828
  %7791 = vmatprep.subr.bf16.mxu0 %v1761
  %7792 = vmatpush1.bf16.msra.mxu0 %v1760
  %7793 = vmatprep.subr.bf16.mxu0 %v1757
  %7794 = vmatpush1.bf16.msra.mxu0 %v1756
  %7795 = vmatprep.subr.bf16.mxu0 %v2201
  %7796 = vmatpush2.bf16.msra.mxu0 %v2200
  %7797 = vmatprep.subr.bf16.mxu0 %v2197
  %7798 = vmatpush2.bf16.msra.mxu0 %v2196
  %7799 = vmatprep.subr.bf16.mxu0 %v2129
  %7800 = vmatpush2.bf16.msra.mxu0 %v2128
  %7801 = vmatprep.subr.bf16.mxu0 %v2125
  %7802 = vmatpush2.bf16.msra.mxu0 %v2124
  %7803 = vmatprep.subr.bf16.mxu0 %v2057
  %7804 = vmatpush2.bf16.msra.mxu0 %v2056
  %7805 = vmatprep.subr.bf16.mxu0 %v2053
  %7806 = vmatpush2.bf16.msra.mxu0 %v2052
  %7807 = vmatprep.subr.bf16.mxu0 %v1985
  %7808 = vmatpush2.bf16.msra.mxu0 %v1984
  %7809 = vmatprep.subr.bf16.mxu0 %v1981
  %7810 = vmatpush2.bf16.msra.mxu0 %v1980
  %7811 = vmatprep.mubr.bf16.mxu0 %v7658
  %7812 = vmatmul.mubr.bf16.gmra.mxu0 %v7657
  %v7813 = vpop.f32.mrf.mxu0
  %v7814 = vadd.f32 %v7619, %v7813
  %v7815 = vpop.f32.mrf.mxu0
  %v7816 = vadd.f32 %v7621, %v7815
  %v7817 = vpop.f32.mrf.mxu0
  %v7818 = vadd.f32 %v7623, %v7817
  %v7819 = vpop.f32.mrf.mxu0
  %v7820 = vadd.f32 %v7625, %v7819
  %7821 = vmatprep.mubr.bf16.mxu0 %v7661
  %7822 = vmatmul.mubr.bf16.gmra.mxu0 %v7660
  %v7823 = vpop.f32.mrf.mxu0
  %v7824 = vadd.f32 %v7629, %v7823
  %v7825 = vpop.f32.mrf.mxu0
  %v7826 = vadd.f32 %v7631, %v7825
  %v7827 = vpop.f32.mrf.mxu0
  %v7828 = vadd.f32 %v7633, %v7827
  %v7829 = vpop.f32.mrf.mxu0
  %v7830 = vadd.f32 %v7635, %v7829
  %7831 = vdwg.mxu0
  %7832 = vmatprep.subr.bf16.mxu0 0
  %7833 = vmatpush1.bf16.msra.mxu0 0
  %7834 = vmatprep.subr.bf16.mxu0 0
  %7835 = vmatpush1.bf16.msra.mxu0 0
  %7836 = vmatprep.subr.bf16.mxu0 0
  %7837 = vmatpush1.bf16.msra.mxu0 0
  %7838 = vmatprep.subr.bf16.mxu0 0
  %7839 = vmatpush1.bf16.msra.mxu0 0
  %7840 = vmatprep.subr.bf16.mxu0 0
  %7841 = vmatpush1.bf16.msra.mxu0 0
  %7842 = vmatprep.subr.bf16.mxu0 0
  %7843 = vmatpush1.bf16.msra.mxu0 0
  %7844 = vmatprep.subr.bf16.mxu0 %v2273
  %7845 = vmatpush1.bf16.msra.mxu0 %v2272
  %7846 = vmatprep.subr.bf16.mxu0 %v2269
  %7847 = vmatpush1.bf16.msra.mxu0 %v2268
  %7848 = vmatprep.subr.bf16.mxu0 0
  %7849 = vmatpush2.bf16.msra.mxu0 0
  %7850 = vmatprep.subr.bf16.mxu0 0
  %7851 = vmatpush2.bf16.msra.mxu0 0
  %7852 = vmatprep.subr.bf16.mxu0 0
  %7853 = vmatpush2.bf16.msra.mxu0 0
  %7854 = vmatprep.subr.bf16.mxu0 0
  %7855 = vmatpush2.bf16.msra.mxu0 0
  %7856 = vmatprep.subr.bf16.mxu0 0
  %7857 = vmatpush2.bf16.msra.mxu0 0
  %7858 = vmatprep.subr.bf16.mxu0 0
  %7859 = vmatpush2.bf16.msra.mxu0 0
  %7860 = vmatprep.subr.bf16.mxu0 0
  %7861 = vmatpush2.bf16.msra.mxu0 0
  %7862 = vmatprep.subr.bf16.mxu0 0
  %7863 = vmatpush2.bf16.msra.mxu0 0
  %7864 = vmatprep.mubr.bf16.mxu0 0
  %7865 = vmatmul.mubr.bf16.gmra.mxu0 %v7668
  %v7866 = vpop.f32.mrf.mxu0
  %v7867 = vadd.f32 %v7814, %v7866
  %v7868 = vpop.f32.mrf.mxu0
  %v7869 = vadd.f32 %v7816, %v7868
  %v7870 = vpop.f32.mrf.mxu0
  %v7871 = vadd.f32 %v7818, %v7870
  %v7872 = vpop.f32.mrf.mxu0
  %v7873 = vadd.f32 %v7820, %v7872
  %7874 = vmatprep.mubr.bf16.mxu0 0
  %7875 = vmatmul.mubr.bf16.gmra.mxu0 %v7671
  %v7876 = vpop.f32.mrf.mxu0
  %v7877 = vadd.f32 %v7824, %v7876
  %v7878 = vpop.f32.mrf.mxu0
  %v7879 = vadd.f32 %v7826, %v7878
  %v7880 = vpop.f32.mrf.mxu0
  %v7881 = vadd.f32 %v7828, %v7880
  %v7882 = vpop.f32.mrf.mxu0
  %v7883 = vadd.f32 %v7830, %v7882
  %7884 = vdwg.mxu0
  %v7885 = vld [vmem:[%s49] sm:$0xff]
  %v7886 = vld [vmem:[%s49 + $0x8] sm:$0xff]
  %v7887 = vld [vmem:[%s49 + $0x10] sm:$0xff]
  %v7888 = vld [vmem:[%s49 + $0x18] sm:$0xff]
  %7890 = vset.pattern.permute.xlu0 0
  %7891 = vperm.xlu0 %7890, %v7885
  %v7892 = vpop.permute.xlu0 %7891
  %7895 = vset.pattern.permute.xlu0 0
  %7896 = vperm.xlu0 %7895, %v7886
  %v7897 = vpop.permute.xlu0 %7896
  %7900 = vset.pattern.permute.xlu0 0
  %7901 = vperm.xlu0 %7900, %v7887
  %v7902 = vpop.permute.xlu0 %7901
  %7905 = vset.pattern.permute.xlu0 0
  %7906 = vperm.xlu0 %7905, %v7888
  %v7907 = vpop.permute.xlu0 %7906
  %v7909 = vadd.f32 %v7761, %v7892
  %v7910 = vadd.f32 %v7763, %v7892
  %v7911 = vadd.f32 %v7867, %v7892
  %v7912 = vadd.f32 %v7869, %v7892
  %v7913 = vadd.f32 %v7765, %v7897
  %v7914 = vadd.f32 %v7767, %v7897
  %v7915 = vadd.f32 %v7871, %v7897
  %v7916 = vadd.f32 %v7873, %v7897
  %v7917 = vadd.f32 %v7771, %v7902
  %v7918 = vadd.f32 %v7773, %v7902
  %v7919 = vadd.f32 %v7877, %v7902
  %v7920 = vadd.f32 %v7879, %v7902
  %v7921 = vadd.f32 %v7775, %v7907
  %v7922 = vadd.f32 %v7777, %v7907
  %v7923 = vadd.f32 %v7881, %v7907
  %v7924 = vadd.f32 %v7883, %v7907
  %v7925 = vmax.f32 %v7909, 0.0
  %v7926 = vmax.f32 %v7910, 0.0
  %v7927 = vmax.f32 %v7911, 0.0
  %v7928 = vmax.f32 %v7912, 0.0
  %v7929 = vmax.f32 %v7913, 0.0
  %v7930 = vmax.f32 %v7914, 0.0
  %v7931 = vmax.f32 %v7915, 0.0
  %v7932 = vmax.f32 %v7916, 0.0
  %v7933 = vmax.f32 %v7917, 0.0
  %v7934 = vmax.f32 %v7918, 0.0
  %v7935 = vmax.f32 %v7919, 0.0
  %v7936 = vmax.f32 %v7920, 0.0
  %v7937 = vmax.f32 %v7921, 0.0
  %v7938 = vmax.f32 %v7922, 0.0
  %v7939 = vmax.f32 %v7923, 0.0
  %v7940 = vmax.f32 %v7924, 0.0
  %v7941 = vpack.c.bf16 %v7929, %v7925
  %v7942 = vpack.c.bf16 %v7930, %v7926
  %v7943 = vpack.c.bf16 %v7931, %v7927
  %v7944 = vpack.c.bf16 %v7932, %v7928
  %v7945 = vpack.c.bf16 %v7937, %v7933
  %v7946 = vpack.c.bf16 %v7938, %v7934
  %v7947 = vpack.c.bf16 %v7939, %v7935
  %v7948 = vpack.c.bf16 %v7940, %v7936
  %7949 = vrot.lane.b32.xlu0 %v7925, 127
  %v7950 = vpop.permute.xlu0 %7949
  %7951 = vrot.lane.b32.xlu0 %v7929, 127
  %v7952 = vpop.permute.xlu0 %7951
  %7953 = vrot.lane.b32.xlu0 %v7933, 127
  %v7954 = vpop.permute.xlu0 %7953
  %7955 = vrot.lane.b32.xlu0 %v7937, 127
  %v7956 = vpop.permute.xlu0 %7955
  %7957 = vrot.lane.b32.xlu0 %v7926, 127
  %v7958 = vpop.permute.xlu0 %7957
  %7959 = vrot.lane.b32.xlu0 %v7930, 127
  %v7960 = vpop.permute.xlu0 %7959
  %7961 = vrot.lane.b32.xlu0 %v7934, 127
  %v7962 = vpop.permute.xlu0 %7961
  %7963 = vrot.lane.b32.xlu0 %v7938, 127
  %v7964 = vpop.permute.xlu0 %7963
  %7965 = vrot.lane.b32.xlu0 %v7927, 127
  %v7966 = vpop.permute.xlu0 %7965
  %7967 = vrot.lane.b32.xlu0 %v7931, 127
  %v7968 = vpop.permute.xlu0 %7967
  %7969 = vrot.lane.b32.xlu0 %v7935, 127
  %v7970 = vpop.permute.xlu0 %7969
  %7971 = vrot.lane.b32.xlu0 %v7939, 127
  %v7972 = vpop.permute.xlu0 %7971
  %7973 = vrot.lane.b32.xlu0 %v7928, 127
  %v7974 = vpop.permute.xlu0 %7973
  %7975 = vrot.lane.b32.xlu0 %v7932, 127
  %v7976 = vpop.permute.xlu0 %7975
  %7977 = vrot.lane.b32.xlu0 %v7936, 127
  %v7978 = vpop.permute.xlu0 %7977
  %7979 = vrot.lane.b32.xlu0 %v7940, 127
  %v7980 = vpop.permute.xlu0 %7979
  %v7981 = vsel %vm410, %v7966, %v7974
  %v7982 = vsel %vm410, %v7968, %v7976
  %v7983 = vsel %vm410, %v7970, %v7978
  %v7984 = vsel %vm410, %v7972, %v7980
  %v7985 = vsel %vm410, %v7958, %v7966
  %v7986 = vsel %vm410, %v7960, %v7968
  %v7987 = vsel %vm410, %v7962, %v7970
  %v7988 = vsel %vm410, %v7964, %v7972
  %v7989 = vsel %vm410, %v7950, %v7958
  %v7990 = vsel %vm410, %v7952, %v7960
  %v7991 = vsel %vm410, %v7954, %v7962
  %v7992 = vsel %vm410, %v7956, %v7964
  %v7993 = vsel %vm410, %v7974, %v7950
  %v7994 = vsel %vm410, %v7976, %v7952
  %v7995 = vsel %vm410, %v7978, %v7954
  %v7996 = vsel %vm410, %v7980, %v7956
  %v7997 = vmul.f32 %v7989, %v425
  %v7998 = vmul.f32 %v7985, %v429
  %v7999 = vmul.f32 %v7981, %v433
  %v8000 = vmul.f32 %v7993, %v437
  %v8001 = vmul.f32 %v7990, %v425
  %v8002 = vmul.f32 %v7986, %v429
  %v8003 = vmul.f32 %v7982, %v433
  %v8004 = vmul.f32 %v7994, %v437
  %v8005 = vmul.f32 %v7991, %v425
  %v8006 = vmul.f32 %v7987, %v429
  %v8007 = vmul.f32 %v7983, %v433
  %v8008 = vmul.f32 %v7995, %v437
  %v8009 = vmul.f32 %v7992, %v425
  %v8010 = vmul.f32 %v7988, %v429
  %v8011 = vmul.f32 %v7984, %v433
  %v8012 = vmul.f32 %v7996, %v437
  %v8013 = vpack.c.bf16 %v8001, %v7997
  %v8014 = vpack.c.bf16 %v8002, %v7998
  %v8015 = vpack.c.bf16 %v8003, %v7999
  %v8016 = vpack.c.bf16 %v8004, %v8000
  %v8017 = vpack.c.bf16 %v8009, %v8005
  %v8018 = vpack.c.bf16 %v8010, %v8006
  %v8019 = vpack.c.bf16 %v8011, %v8007
  %v8020 = vpack.c.bf16 %v8012, %v8008
  %8021 = vrot.lane.b32.xlu0 %v7925, 112
  %v8022 = vpop.permute.xlu0 %8021
  %8023 = vrot.lane.b32.xlu0 %v7929, 112
  %v8024 = vpop.permute.xlu0 %8023
  %8025 = vrot.lane.b32.xlu0 %v7933, 112
  %v8026 = vpop.permute.xlu0 %8025
  %8027 = vrot.lane.b32.xlu0 %v7937, 112
  %v8028 = vpop.permute.xlu0 %8027
  %8029 = vrot.lane.b32.xlu0 %v7926, 112
  %v8030 = vpop.permute.xlu0 %8029
  %8031 = vrot.lane.b32.xlu0 %v7930, 112
  %v8032 = vpop.permute.xlu0 %8031
  %8033 = vrot.lane.b32.xlu0 %v7934, 112
  %v8034 = vpop.permute.xlu0 %8033
  %8035 = vrot.lane.b32.xlu0 %v7938, 112
  %v8036 = vpop.permute.xlu0 %8035
  %8037 = vrot.lane.b32.xlu0 %v7927, 112
  %v8038 = vpop.permute.xlu0 %8037
  %8039 = vrot.lane.b32.xlu0 %v7931, 112
  %v8040 = vpop.permute.xlu0 %8039
  %8041 = vrot.lane.b32.xlu0 %v7935, 112
  %v8042 = vpop.permute.xlu0 %8041
  %8043 = vrot.lane.b32.xlu0 %v7939, 112
  %v8044 = vpop.permute.xlu0 %8043
  %8045 = vrot.lane.b32.xlu0 %v7928, 112
  %v8046 = vpop.permute.xlu0 %8045
  %8047 = vrot.lane.b32.xlu0 %v7932, 112
  %v8048 = vpop.permute.xlu0 %8047
  %8049 = vrot.lane.b32.xlu0 %v7936, 112
  %v8050 = vpop.permute.xlu0 %8049
  %8051 = vrot.lane.b32.xlu0 %v7940, 112
  %v8052 = vpop.permute.xlu0 %8051
  %v8053 = vsel %vm530, %v8038, %v8046
  %v8054 = vsel %vm530, %v8040, %v8048
  %v8055 = vsel %vm530, %v8042, %v8050
  %v8056 = vsel %vm530, %v8044, %v8052
  %v8057 = vsel %vm530, %v8030, %v8038
  %v8058 = vsel %vm530, %v8032, %v8040
  %v8059 = vsel %vm530, %v8034, %v8042
  %v8060 = vsel %vm530, %v8036, %v8044
  %v8061 = vsel %vm530, %v8022, %v8030
  %v8062 = vsel %vm530, %v8024, %v8032
  %v8063 = vsel %vm530, %v8026, %v8034
  %v8064 = vsel %vm530, %v8028, %v8036
  %v8065 = vsel %vm530, %v8046, %v8022
  %v8066 = vsel %vm530, %v8048, %v8024
  %v8067 = vsel %vm530, %v8050, %v8026
  %v8068 = vsel %vm530, %v8052, %v8028
  %v8069 = vmul.f32 %v8061, %v545
  %v8070 = vmul.f32 %v8057, %v549
  %v8071 = vmul.f32 %v8053, %v553
  %v8072 = vmul.f32 %v8065, %v557
  %v8073 = vmul.f32 %v8062, %v545
  %v8074 = vmul.f32 %v8058, %v549
  %v8075 = vmul.f32 %v8054, %v553
  %v8076 = vmul.f32 %v8066, %v557
  %v8077 = vmul.f32 %v8063, %v545
  %v8078 = vmul.f32 %v8059, %v549
  %v8079 = vmul.f32 %v8055, %v553
  %v8080 = vmul.f32 %v8067, %v557
  %v8081 = vmul.f32 %v8064, %v545
  %v8082 = vmul.f32 %v8060, %v549
  %v8083 = vmul.f32 %v8056, %v553
  %v8084 = vmul.f32 %v8068, %v557
  %v8085 = vpack.c.bf16 %v8073, %v8069
  %v8086 = vpack.c.bf16 %v8074, %v8070
  %v8087 = vpack.c.bf16 %v8075, %v8071
  %v8088 = vpack.c.bf16 %v8076, %v8072
  %v8089 = vpack.c.bf16 %v8081, %v8077
  %v8090 = vpack.c.bf16 %v8082, %v8078
  %v8091 = vpack.c.bf16 %v8083, %v8079
  %v8092 = vpack.c.bf16 %v8084, %v8080
  %8093 = vrot.lane.b32.xlu0 %v7925, 111
  %v8094 = vpop.permute.xlu0 %8093
  %8095 = vrot.lane.b32.xlu0 %v7929, 111
  %v8096 = vpop.permute.xlu0 %8095
  %8097 = vrot.lane.b32.xlu0 %v7933, 111
  %v8098 = vpop.permute.xlu0 %8097
  %8099 = vrot.lane.b32.xlu0 %v7937, 111
  %v8100 = vpop.permute.xlu0 %8099
  %8101 = vrot.lane.b32.xlu0 %v7926, 111
  %v8102 = vpop.permute.xlu0 %8101
  %8103 = vrot.lane.b32.xlu0 %v7930, 111
  %v8104 = vpop.permute.xlu0 %8103
  %8105 = vrot.lane.b32.xlu0 %v7934, 111
  %v8106 = vpop.permute.xlu0 %8105
  %8107 = vrot.lane.b32.xlu0 %v7938, 111
  %v8108 = vpop.permute.xlu0 %8107
  %8109 = vrot.lane.b32.xlu0 %v7927, 111
  %v8110 = vpop.permute.xlu0 %8109
  %8111 = vrot.lane.b32.xlu0 %v7931, 111
  %v8112 = vpop.permute.xlu0 %8111
  %8113 = vrot.lane.b32.xlu0 %v7935, 111
  %v8114 = vpop.permute.xlu0 %8113
  %8115 = vrot.lane.b32.xlu0 %v7939, 111
  %v8116 = vpop.permute.xlu0 %8115
  %8117 = vrot.lane.b32.xlu0 %v7928, 111
  %v8118 = vpop.permute.xlu0 %8117
  %8119 = vrot.lane.b32.xlu0 %v7932, 111
  %v8120 = vpop.permute.xlu0 %8119
  %8121 = vrot.lane.b32.xlu0 %v7936, 111
  %v8122 = vpop.permute.xlu0 %8121
  %8123 = vrot.lane.b32.xlu0 %v7940, 111
  %v8124 = vpop.permute.xlu0 %8123
  %v8125 = vsel %vm590, %v8110, %v8118
  %v8126 = vsel %vm590, %v8112, %v8120
  %v8127 = vsel %vm590, %v8114, %v8122
  %v8128 = vsel %vm590, %v8116, %v8124
  %v8129 = vsel %vm590, %v8102, %v8110
  %v8130 = vsel %vm590, %v8104, %v8112
  %v8131 = vsel %vm590, %v8106, %v8114
  %v8132 = vsel %vm590, %v8108, %v8116
  %v8133 = vsel %vm590, %v8094, %v8102
  %v8134 = vsel %vm590, %v8096, %v8104
  %v8135 = vsel %vm590, %v8098, %v8106
  %v8136 = vsel %vm590, %v8100, %v8108
  %v8137 = vsel %vm590, %v8118, %v8094
  %v8138 = vsel %vm590, %v8120, %v8096
  %v8139 = vsel %vm590, %v8122, %v8098
  %v8140 = vsel %vm590, %v8124, %v8100
  %v8141 = vmul.f32 %v8133, %v605
  %v8142 = vmul.f32 %v8129, %v609
  %v8143 = vmul.f32 %v8125, %v613
  %v8144 = vmul.f32 %v8137, %v617
  %v8145 = vmul.f32 %v8134, %v605
  %v8146 = vmul.f32 %v8130, %v609
  %v8147 = vmul.f32 %v8126, %v613
  %v8148 = vmul.f32 %v8138, %v617
  %v8149 = vmul.f32 %v8135, %v605
  %v8150 = vmul.f32 %v8131, %v609
  %v8151 = vmul.f32 %v8127, %v613
  %v8152 = vmul.f32 %v8139, %v617
  %v8153 = vmul.f32 %v8136, %v605
  %v8154 = vmul.f32 %v8132, %v609
  %v8155 = vmul.f32 %v8128, %v613
  %v8156 = vmul.f32 %v8140, %v617
  %v8157 = vpack.c.bf16 %v8145, %v8141
  %v8158 = vpack.c.bf16 %v8146, %v8142
  %v8159 = vpack.c.bf16 %v8147, %v8143
  %v8160 = vpack.c.bf16 %v8148, %v8144
  %v8161 = vpack.c.bf16 %v8153, %v8149
  %v8162 = vpack.c.bf16 %v8154, %v8150
  %v8163 = vpack.c.bf16 %v8155, %v8151
  %v8164 = vpack.c.bf16 %v8156, %v8152
  %v8165 = vld [vmem:[%s51] sm:$0xf]
  %v8166 = vld [vmem:[%s51 + $0x4] sm:$0xf]
  %v8167 = vld [vmem:[%s51 + $0x8] sm:$0xf]
  %v8168 = vld [vmem:[%s51 + $0xc] sm:$0xf]
  %v8169 = vld [vmem:[%s53] sm:$0xff]
  %v8170 = vld [vmem:[%s53 + $0x8] sm:$0xff]
  %v8171 = vld [vmem:[%s53 + $0x10] sm:$0xff]
  %v8172 = vld [vmem:[%s53 + $0x18] sm:$0xff]
  %8174 = vset.pattern.permute.xlu0 0
  %8175 = vperm.xlu0 %8174, %v8169
  %v8176 = vpop.permute.xlu0 %8175
  %8179 = vset.pattern.permute.xlu0 0
  %8180 = vperm.xlu0 %8179, %v8170
  %v8181 = vpop.permute.xlu0 %8180
  %8184 = vset.pattern.permute.xlu0 0
  %8185 = vperm.xlu0 %8184, %v8171
  %v8186 = vpop.permute.xlu0 %8185
  %8189 = vset.pattern.permute.xlu0 0
  %8190 = vperm.xlu0 %8189, %v8172
  %v8191 = vpop.permute.xlu0 %8190
  %v8197 = vunpack.c.l.b16 %v8165
  %v8198 = vunpack.c.l.b16 %v8166
  %v8199 = vunpack.c.l.b16 %v8167
  %v8200 = vunpack.c.l.b16 %v8168
  %v8201 = vpack.c.b16 %v8198, %v8197
  %v8202 = vpack.c.b16 %v8200, %v8199
  %8205 = vmatprep.subr.bf16.mxu0 %v8162
  %8206 = vmatpush1.bf16.msra.mxu0 %v8161
  %8207 = vmatprep.subr.bf16.mxu0 %v8158
  %8208 = vmatpush1.bf16.msra.mxu0 %v8157
  %8209 = vmatprep.subr.bf16.mxu0 %v8090
  %8210 = vmatpush1.bf16.msra.mxu0 %v8089
  %8211 = vmatprep.subr.bf16.mxu0 %v8086
  %8212 = vmatpush1.bf16.msra.mxu0 %v8085
  %8213 = vmatprep.subr.bf16.mxu0 %v8018
  %8214 = vmatpush1.bf16.msra.mxu0 %v8017
  %8215 = vmatprep.subr.bf16.mxu0 %v8014
  %8216 = vmatpush1.bf16.msra.mxu0 %v8013
  %8217 = vmatprep.subr.bf16.mxu0 %v7946
  %8218 = vmatpush1.bf16.msra.mxu0 %v7945
  %8219 = vmatprep.subr.bf16.mxu0 %v7942
  %8220 = vmatpush1.bf16.msra.mxu0 %v7941
  %8221 = vmatprep.subr.bf16.mxu0 0
  %8222 = vmatpush2.bf16.msra.mxu0 0
  %8223 = vmatprep.subr.bf16.mxu0 0
  %8224 = vmatpush2.bf16.msra.mxu0 0
  %8225 = vmatprep.subr.bf16.mxu0 0
  %8226 = vmatpush2.bf16.msra.mxu0 0
  %8227 = vmatprep.subr.bf16.mxu0 0
  %8228 = vmatpush2.bf16.msra.mxu0 0
  %8229 = vmatprep.subr.bf16.mxu0 0
  %8230 = vmatpush2.bf16.msra.mxu0 0
  %8231 = vmatprep.subr.bf16.mxu0 0
  %8232 = vmatpush2.bf16.msra.mxu0 0
  %8233 = vmatprep.subr.bf16.mxu0 0
  %8234 = vmatpush2.bf16.msra.mxu0 0
  %8235 = vmatprep.subr.bf16.mxu0 0
  %8236 = vmatpush2.bf16.msra.mxu0 0
  %8237 = vmatprep.mubr.bf16.mxu0 0
  %8238 = vmatmul.mubr.bf16.gmra.mxu0 %v8201
  %v8239 = vpop.f32.mrf.mxu0
  %v8240 = vadd.f32 %v8176, %v8239
  %v8241 = vpop.f32.mrf.mxu0
  %v8242 = vadd.f32 %v8176, %v8241
  %v8243 = vpop.f32.mrf.mxu0
  %v8244 = vadd.f32 %v8181, %v8243
  %v8245 = vpop.f32.mrf.mxu0
  %v8246 = vadd.f32 %v8181, %v8245
  %8247 = vmatprep.mubr.bf16.mxu0 0
  %8248 = vmatmul.mubr.bf16.gmra.mxu0 %v8202
  %v8249 = vpop.f32.mrf.mxu0
  %v8250 = vadd.f32 %v8186, %v8249
  %v8251 = vpop.f32.mrf.mxu0
  %v8252 = vadd.f32 %v8186, %v8251
  %v8253 = vpop.f32.mrf.mxu0
  %v8254 = vadd.f32 %v8191, %v8253
  %v8255 = vpop.f32.mrf.mxu0
  %v8256 = vadd.f32 %v8191, %v8255
  %8257 = vdwg.mxu0
  %8258 = vmatprep.subr.bf16.mxu0 %v8164
  %8259 = vmatpush1.bf16.msra.mxu0 %v8163
  %8260 = vmatprep.subr.bf16.mxu0 %v8160
  %8261 = vmatpush1.bf16.msra.mxu0 %v8159
  %8262 = vmatprep.subr.bf16.mxu0 %v8092
  %8263 = vmatpush1.bf16.msra.mxu0 %v8091
  %8264 = vmatprep.subr.bf16.mxu0 %v8088
  %8265 = vmatpush1.bf16.msra.mxu0 %v8087
  %8266 = vmatprep.subr.bf16.mxu0 %v8020
  %8267 = vmatpush1.bf16.msra.mxu0 %v8019
  %8268 = vmatprep.subr.bf16.mxu0 %v8016
  %8269 = vmatpush1.bf16.msra.mxu0 %v8015
  %8270 = vmatprep.subr.bf16.mxu0 %v7948
  %8271 = vmatpush1.bf16.msra.mxu0 %v7947
  %8272 = vmatprep.subr.bf16.mxu0 %v7944
  %8273 = vmatpush1.bf16.msra.mxu0 %v7943
  %8274 = vmatprep.subr.bf16.mxu0 0
  %8275 = vmatpush2.bf16.msra.mxu0 0
  %8276 = vmatprep.subr.bf16.mxu0 0
  %8277 = vmatpush2.bf16.msra.mxu0 0
  %8278 = vmatprep.subr.bf16.mxu0 0
  %8279 = vmatpush2.bf16.msra.mxu0 0
  %8280 = vmatprep.subr.bf16.mxu0 0
  %8281 = vmatpush2.bf16.msra.mxu0 0
  %8282 = vmatprep.subr.bf16.mxu0 0
  %8283 = vmatpush2.bf16.msra.mxu0 0
  %8284 = vmatprep.subr.bf16.mxu0 0
  %8285 = vmatpush2.bf16.msra.mxu0 0
  %8286 = vmatprep.subr.bf16.mxu0 0
  %8287 = vmatpush2.bf16.msra.mxu0 0
  %8288 = vmatprep.subr.bf16.mxu0 0
  %8289 = vmatpush2.bf16.msra.mxu0 0
  %8290 = vmatprep.mubr.bf16.mxu0 0
  %8291 = vmatmul.mubr.bf16.gmra.mxu0 %v8201
  %v8292 = vpop.f32.mrf.mxu0
  %v8293 = vadd.f32 %v8176, %v8292
  %v8294 = vpop.f32.mrf.mxu0
  %v8295 = vadd.f32 %v8176, %v8294
  %v8296 = vpop.f32.mrf.mxu0
  %v8297 = vadd.f32 %v8181, %v8296
  %v8298 = vpop.f32.mrf.mxu0
  %v8299 = vadd.f32 %v8181, %v8298
  %8300 = vmatprep.mubr.bf16.mxu0 0
  %8301 = vmatmul.mubr.bf16.gmra.mxu0 %v8202
  %v8302 = vpop.f32.mrf.mxu0
  %v8303 = vadd.f32 %v8186, %v8302
  %v8304 = vpop.f32.mrf.mxu0
  %v8305 = vadd.f32 %v8186, %v8304
  %v8306 = vpop.f32.mrf.mxu0
  %v8307 = vadd.f32 %v8191, %v8306
  %v8308 = vpop.f32.mrf.mxu0
  %v8309 = vadd.f32 %v8191, %v8308
  %8310 = vdwg.mxu0
  %v8311 = vmax.f32 %v8240, 0.0
  %v8312 = vmax.f32 %v8242, 0.0
  %v8313 = vmax.f32 %v8293, 0.0
  %v8314 = vmax.f32 %v8295, 0.0
  %v8315 = vmax.f32 %v8244, 0.0
  %v8316 = vmax.f32 %v8246, 0.0
  %v8317 = vmax.f32 %v8297, 0.0
  %v8318 = vmax.f32 %v8299, 0.0
  %v8319 = vmax.f32 %v8250, 0.0
  %v8320 = vmax.f32 %v8252, 0.0
  %v8321 = vmax.f32 %v8303, 0.0
  %v8322 = vmax.f32 %v8305, 0.0
  %v8323 = vmax.f32 %v8254, 0.0
  %v8324 = vmax.f32 %v8256, 0.0
  %v8325 = vmax.f32 %v8307, 0.0
  %v8326 = vmax.f32 %v8309, 0.0
  %8327 = vrot.lane.b32.xlu0 %v8311, 17
  %v8328 = vpop.permute.xlu0 %8327
  %8329 = vrot.lane.b32.xlu0 %v8315, 17
  %v8330 = vpop.permute.xlu0 %8329
  %8331 = vrot.lane.b32.xlu0 %v8319, 17
  %v8332 = vpop.permute.xlu0 %8331
  %8333 = vrot.lane.b32.xlu0 %v8323, 17
  %v8334 = vpop.permute.xlu0 %8333
  %8335 = vrot.lane.b32.xlu0 %v8312, 17
  %v8336 = vpop.permute.xlu0 %8335
  %8337 = vrot.lane.b32.xlu0 %v8316, 17
  %v8338 = vpop.permute.xlu0 %8337
  %8339 = vrot.lane.b32.xlu0 %v8320, 17
  %v8340 = vpop.permute.xlu0 %8339
  %8341 = vrot.lane.b32.xlu0 %v8324, 17
  %v8342 = vpop.permute.xlu0 %8341
  %8343 = vrot.lane.b32.xlu0 %v8313, 17
  %v8344 = vpop.permute.xlu0 %8343
  %8345 = vrot.lane.b32.xlu0 %v8317, 17
  %v8346 = vpop.permute.xlu0 %8345
  %8347 = vrot.lane.b32.xlu0 %v8321, 17
  %v8348 = vpop.permute.xlu0 %8347
  %8349 = vrot.lane.b32.xlu0 %v8325, 17
  %v8350 = vpop.permute.xlu0 %8349
  %8351 = vrot.lane.b32.xlu0 %v8314, 17
  %v8352 = vpop.permute.xlu0 %8351
  %8353 = vrot.lane.b32.xlu0 %v8318, 17
  %v8354 = vpop.permute.xlu0 %8353
  %8355 = vrot.lane.b32.xlu0 %v8322, 17
  %v8356 = vpop.permute.xlu0 %8355
  %8357 = vrot.lane.b32.xlu0 %v8326, 17
  %v8358 = vpop.permute.xlu0 %8357
  %v8359 = vsel %vm167, %v8344, %v8352
  %v8360 = vsel %vm167, %v8346, %v8354
  %v8361 = vsel %vm167, %v8348, %v8356
  %v8362 = vsel %vm167, %v8350, %v8358
  %v8363 = vsel %vm167, %v8336, %v8344
  %v8364 = vsel %vm167, %v8338, %v8346
  %v8365 = vsel %vm167, %v8340, %v8348
  %v8366 = vsel %vm167, %v8342, %v8350
  %v8367 = vsel %vm167, %v8328, %v8336
  %v8368 = vsel %vm167, %v8330, %v8338
  %v8369 = vsel %vm167, %v8332, %v8340
  %v8370 = vsel %vm167, %v8334, %v8342
  %v8371 = vsel %vm167, %v8352, %v8328
  %v8372 = vsel %vm167, %v8354, %v8330
  %v8373 = vsel %vm167, %v8356, %v8332
  %v8374 = vsel %vm167, %v8358, %v8334
  %v8375 = vmul.f32 %v8371, %v181
  %v8376 = vmul.f32 %v8367, %v185
  %v8377 = vmul.f32 %v8363, %v189
  %v8378 = vmul.f32 %v8359, %v193
  %v8379 = vmul.f32 %v8372, %v181
  %v8380 = vmul.f32 %v8368, %v185
  %v8381 = vmul.f32 %v8364, %v189
  %v8382 = vmul.f32 %v8360, %v193
  %v8383 = vmul.f32 %v8373, %v181
  %v8384 = vmul.f32 %v8369, %v185
  %v8385 = vmul.f32 %v8365, %v189
  %v8386 = vmul.f32 %v8361, %v193
  %v8387 = vmul.f32 %v8374, %v181
  %v8388 = vmul.f32 %v8370, %v185
  %v8389 = vmul.f32 %v8366, %v189
  %v8390 = vmul.f32 %v8362, %v193
  %v8391 = vpack.c.bf16 %v8379, %v8375
  %v8392 = vpack.c.bf16 %v8380, %v8376
  %v8393 = vpack.c.bf16 %v8381, %v8377
  %v8394 = vpack.c.bf16 %v8382, %v8378
  %v8395 = vpack.c.bf16 %v8387, %v8383
  %v8396 = vpack.c.bf16 %v8388, %v8384
  %v8397 = vpack.c.bf16 %v8389, %v8385
  %v8398 = vpack.c.bf16 %v8390, %v8386
  %8399 = vrot.lane.b32.xlu0 %v8311, 16
  %v8400 = vpop.permute.xlu0 %8399
  %8401 = vrot.lane.b32.xlu0 %v8315, 16
  %v8402 = vpop.permute.xlu0 %8401
  %8403 = vrot.lane.b32.xlu0 %v8319, 16
  %v8404 = vpop.permute.xlu0 %8403
  %8405 = vrot.lane.b32.xlu0 %v8323, 16
  %v8406 = vpop.permute.xlu0 %8405
  %8407 = vrot.lane.b32.xlu0 %v8312, 16
  %v8408 = vpop.permute.xlu0 %8407
  %8409 = vrot.lane.b32.xlu0 %v8316, 16
  %v8410 = vpop.permute.xlu0 %8409
  %8411 = vrot.lane.b32.xlu0 %v8320, 16
  %v8412 = vpop.permute.xlu0 %8411
  %8413 = vrot.lane.b32.xlu0 %v8324, 16
  %v8414 = vpop.permute.xlu0 %8413
  %8415 = vrot.lane.b32.xlu0 %v8313, 16
  %v8416 = vpop.permute.xlu0 %8415
  %8417 = vrot.lane.b32.xlu0 %v8317, 16
  %v8418 = vpop.permute.xlu0 %8417
  %8419 = vrot.lane.b32.xlu0 %v8321, 16
  %v8420 = vpop.permute.xlu0 %8419
  %8421 = vrot.lane.b32.xlu0 %v8325, 16
  %v8422 = vpop.permute.xlu0 %8421
  %8423 = vrot.lane.b32.xlu0 %v8314, 16
  %v8424 = vpop.permute.xlu0 %8423
  %8425 = vrot.lane.b32.xlu0 %v8318, 16
  %v8426 = vpop.permute.xlu0 %8425
  %8427 = vrot.lane.b32.xlu0 %v8322, 16
  %v8428 = vpop.permute.xlu0 %8427
  %8429 = vrot.lane.b32.xlu0 %v8326, 16
  %v8430 = vpop.permute.xlu0 %8429
  %v8431 = vsel %vm226, %v8416, %v8424
  %v8432 = vsel %vm226, %v8418, %v8426
  %v8433 = vsel %vm226, %v8420, %v8428
  %v8434 = vsel %vm226, %v8422, %v8430
  %v8435 = vsel %vm226, %v8408, %v8416
  %v8436 = vsel %vm226, %v8410, %v8418
  %v8437 = vsel %vm226, %v8412, %v8420
  %v8438 = vsel %vm226, %v8414, %v8422
  %v8439 = vsel %vm226, %v8400, %v8408
  %v8440 = vsel %vm226, %v8402, %v8410
  %v8441 = vsel %vm226, %v8404, %v8412
  %v8442 = vsel %vm226, %v8406, %v8414
  %v8443 = vsel %vm226, %v8424, %v8400
  %v8444 = vsel %vm226, %v8426, %v8402
  %v8445 = vsel %vm226, %v8428, %v8404
  %v8446 = vsel %vm226, %v8430, %v8406
  %v8447 = vmul.f32 %v8443, %v241
  %v8448 = vmul.f32 %v8439, %v245
  %v8449 = vmul.f32 %v8435, %v249
  %v8450 = vmul.f32 %v8431, %v253
  %v8451 = vmul.f32 %v8444, %v241
  %v8452 = vmul.f32 %v8440, %v245
  %v8453 = vmul.f32 %v8436, %v249
  %v8454 = vmul.f32 %v8432, %v253
  %v8455 = vmul.f32 %v8445, %v241
  %v8456 = vmul.f32 %v8441, %v245
  %v8457 = vmul.f32 %v8437, %v249
  %v8458 = vmul.f32 %v8433, %v253
  %v8459 = vmul.f32 %v8446, %v241
  %v8460 = vmul.f32 %v8442, %v245
  %v8461 = vmul.f32 %v8438, %v249
  %v8462 = vmul.f32 %v8434, %v253
  %v8463 = vpack.c.bf16 %v8451, %v8447
  %v8464 = vpack.c.bf16 %v8452, %v8448
  %v8465 = vpack.c.bf16 %v8453, %v8449
  %v8466 = vpack.c.bf16 %v8454, %v8450
  %v8467 = vpack.c.bf16 %v8459, %v8455
  %v8468 = vpack.c.bf16 %v8460, %v8456
  %v8469 = vpack.c.bf16 %v8461, %v8457
  %v8470 = vpack.c.bf16 %v8462, %v8458
  %8471 = vrot.lane.b32.xlu0 %v8311, 15
  %v8472 = vpop.permute.xlu0 %8471
  %8473 = vrot.lane.b32.xlu0 %v8315, 15
  %v8474 = vpop.permute.xlu0 %8473
  %8475 = vrot.lane.b32.xlu0 %v8319, 15
  %v8476 = vpop.permute.xlu0 %8475
  %8477 = vrot.lane.b32.xlu0 %v8323, 15
  %v8478 = vpop.permute.xlu0 %8477
  %8479 = vrot.lane.b32.xlu0 %v8312, 15
  %v8480 = vpop.permute.xlu0 %8479
  %8481 = vrot.lane.b32.xlu0 %v8316, 15
  %v8482 = vpop.permute.xlu0 %8481
  %8483 = vrot.lane.b32.xlu0 %v8320, 15
  %v8484 = vpop.permute.xlu0 %8483
  %8485 = vrot.lane.b32.xlu0 %v8324, 15
  %v8486 = vpop.permute.xlu0 %8485
  %8487 = vrot.lane.b32.xlu0 %v8313, 15
  %v8488 = vpop.permute.xlu0 %8487
  %8489 = vrot.lane.b32.xlu0 %v8317, 15
  %v8490 = vpop.permute.xlu0 %8489
  %8491 = vrot.lane.b32.xlu0 %v8321, 15
  %v8492 = vpop.permute.xlu0 %8491
  %8493 = vrot.lane.b32.xlu0 %v8325, 15
  %v8494 = vpop.permute.xlu0 %8493
  %8495 = vrot.lane.b32.xlu0 %v8314, 15
  %v8496 = vpop.permute.xlu0 %8495
  %8497 = vrot.lane.b32.xlu0 %v8318, 15
  %v8498 = vpop.permute.xlu0 %8497
  %8499 = vrot.lane.b32.xlu0 %v8322, 15
  %v8500 = vpop.permute.xlu0 %8499
  %8501 = vrot.lane.b32.xlu0 %v8326, 15
  %v8502 = vpop.permute.xlu0 %8501
  %v8503 = vsel %vm286, %v8488, %v8496
  %v8504 = vsel %vm286, %v8490, %v8498
  %v8505 = vsel %vm286, %v8492, %v8500
  %v8506 = vsel %vm286, %v8494, %v8502
  %v8507 = vsel %vm286, %v8480, %v8488
  %v8508 = vsel %vm286, %v8482, %v8490
  %v8509 = vsel %vm286, %v8484, %v8492
  %v8510 = vsel %vm286, %v8486, %v8494
  %v8511 = vsel %vm286, %v8472, %v8480
  %v8512 = vsel %vm286, %v8474, %v8482
  %v8513 = vsel %vm286, %v8476, %v8484
  %v8514 = vsel %vm286, %v8478, %v8486
  %v8515 = vsel %vm286, %v8496, %v8472
  %v8516 = vsel %vm286, %v8498, %v8474
  %v8517 = vsel %vm286, %v8500, %v8476
  %v8518 = vsel %vm286, %v8502, %v8478
  %v8519 = vmul.f32 %v8515, %v301
  %v8520 = vmul.f32 %v8511, %v305
  %v8521 = vmul.f32 %v8507, %v309
  %v8522 = vmul.f32 %v8503, %v313
  %v8523 = vmul.f32 %v8516, %v301
  %v8524 = vmul.f32 %v8512, %v305
  %v8525 = vmul.f32 %v8508, %v309
  %v8526 = vmul.f32 %v8504, %v313
  %v8527 = vmul.f32 %v8517, %v301
  %v8528 = vmul.f32 %v8513, %v305
  %v8529 = vmul.f32 %v8509, %v309
  %v8530 = vmul.f32 %v8505, %v313
  %v8531 = vmul.f32 %v8518, %v301
  %v8532 = vmul.f32 %v8514, %v305
  %v8533 = vmul.f32 %v8510, %v309
  %v8534 = vmul.f32 %v8506, %v313
  %v8535 = vpack.c.bf16 %v8523, %v8519
  %v8536 = vpack.c.bf16 %v8524, %v8520
  %v8537 = vpack.c.bf16 %v8525, %v8521
  %v8538 = vpack.c.bf16 %v8526, %v8522
  %v8539 = vpack.c.bf16 %v8531, %v8527
  %v8540 = vpack.c.bf16 %v8532, %v8528
  %v8541 = vpack.c.bf16 %v8533, %v8529
  %v8542 = vpack.c.bf16 %v8534, %v8530
  %8543 = vrot.lane.b32.xlu0 %v8311, 1
  %v8544 = vpop.permute.xlu0 %8543
  %8545 = vrot.lane.b32.xlu0 %v8315, 1
  %v8546 = vpop.permute.xlu0 %8545
  %8547 = vrot.lane.b32.xlu0 %v8319, 1
  %v8548 = vpop.permute.xlu0 %8547
  %8549 = vrot.lane.b32.xlu0 %v8323, 1
  %v8550 = vpop.permute.xlu0 %8549
  %8551 = vrot.lane.b32.xlu0 %v8312, 1
  %v8552 = vpop.permute.xlu0 %8551
  %8553 = vrot.lane.b32.xlu0 %v8316, 1
  %v8554 = vpop.permute.xlu0 %8553
  %8555 = vrot.lane.b32.xlu0 %v8320, 1
  %v8556 = vpop.permute.xlu0 %8555
  %8557 = vrot.lane.b32.xlu0 %v8324, 1
  %v8558 = vpop.permute.xlu0 %8557
  %8559 = vrot.lane.b32.xlu0 %v8313, 1
  %v8560 = vpop.permute.xlu0 %8559
  %8561 = vrot.lane.b32.xlu0 %v8317, 1
  %v8562 = vpop.permute.xlu0 %8561
  %8563 = vrot.lane.b32.xlu0 %v8321, 1
  %v8564 = vpop.permute.xlu0 %8563
  %8565 = vrot.lane.b32.xlu0 %v8325, 1
  %v8566 = vpop.permute.xlu0 %8565
  %8567 = vrot.lane.b32.xlu0 %v8314, 1
  %v8568 = vpop.permute.xlu0 %8567
  %8569 = vrot.lane.b32.xlu0 %v8318, 1
  %v8570 = vpop.permute.xlu0 %8569
  %8571 = vrot.lane.b32.xlu0 %v8322, 1
  %v8572 = vpop.permute.xlu0 %8571
  %8573 = vrot.lane.b32.xlu0 %v8326, 1
  %v8574 = vpop.permute.xlu0 %8573
  %v8575 = vsel %vm346, %v8560, %v8568
  %v8576 = vsel %vm346, %v8562, %v8570
  %v8577 = vsel %vm346, %v8564, %v8572
  %v8578 = vsel %vm346, %v8566, %v8574
  %v8579 = vsel %vm346, %v8552, %v8560
  %v8580 = vsel %vm346, %v8554, %v8562
  %v8581 = vsel %vm346, %v8556, %v8564
  %v8582 = vsel %vm346, %v8558, %v8566
  %v8583 = vsel %vm346, %v8544, %v8552
  %v8584 = vsel %vm346, %v8546, %v8554
  %v8585 = vsel %vm346, %v8548, %v8556
  %v8586 = vsel %vm346, %v8550, %v8558
  %v8587 = vsel %vm346, %v8568, %v8544
  %v8588 = vsel %vm346, %v8570, %v8546
  %v8589 = vsel %vm346, %v8572, %v8548
  %v8590 = vsel %vm346, %v8574, %v8550
  %v8591 = vmul.f32 %v8587, %v361
  %v8592 = vmul.f32 %v8583, %v365
  %v8593 = vmul.f32 %v8579, %v369
  %v8594 = vmul.f32 %v8575, %v373
  %v8595 = vmul.f32 %v8588, %v361
  %v8596 = vmul.f32 %v8584, %v365
  %v8597 = vmul.f32 %v8580, %v369
  %v8598 = vmul.f32 %v8576, %v373
  %v8599 = vmul.f32 %v8589, %v361
  %v8600 = vmul.f32 %v8585, %v365
  %v8601 = vmul.f32 %v8581, %v369
  %v8602 = vmul.f32 %v8577, %v373
  %v8603 = vmul.f32 %v8590, %v361
  %v8604 = vmul.f32 %v8586, %v365
  %v8605 = vmul.f32 %v8582, %v369
  %v8606 = vmul.f32 %v8578, %v373
  %v8607 = vpack.c.bf16 %v8595, %v8591
  %v8608 = vpack.c.bf16 %v8596, %v8592
  %v8609 = vpack.c.bf16 %v8597, %v8593
  %v8610 = vpack.c.bf16 %v8598, %v8594
  %v8611 = vpack.c.bf16 %v8603, %v8599
  %v8612 = vpack.c.bf16 %v8604, %v8600
  %v8613 = vpack.c.bf16 %v8605, %v8601
  %v8614 = vpack.c.bf16 %v8606, %v8602
  %v8615 = vpack.c.bf16 %v8315, %v8311
  %v8616 = vpack.c.bf16 %v8316, %v8312
  %v8617 = vpack.c.bf16 %v8317, %v8313
  %v8618 = vpack.c.bf16 %v8318, %v8314
  %v8619 = vpack.c.bf16 %v8323, %v8319
  %v8620 = vpack.c.bf16 %v8324, %v8320
  %v8621 = vpack.c.bf16 %v8325, %v8321
  %v8622 = vpack.c.bf16 %v8326, %v8322
  %8623 = vrot.lane.b32.xlu0 %v8311, 127
  %v8624 = vpop.permute.xlu0 %8623
  %8625 = vrot.lane.b32.xlu0 %v8315, 127
  %v8626 = vpop.permute.xlu0 %8625
  %8627 = vrot.lane.b32.xlu0 %v8319, 127
  %v8628 = vpop.permute.xlu0 %8627
  %8629 = vrot.lane.b32.xlu0 %v8323, 127
  %v8630 = vpop.permute.xlu0 %8629
  %8631 = vrot.lane.b32.xlu0 %v8312, 127
  %v8632 = vpop.permute.xlu0 %8631
  %8633 = vrot.lane.b32.xlu0 %v8316, 127
  %v8634 = vpop.permute.xlu0 %8633
  %8635 = vrot.lane.b32.xlu0 %v8320, 127
  %v8636 = vpop.permute.xlu0 %8635
  %8637 = vrot.lane.b32.xlu0 %v8324, 127
  %v8638 = vpop.permute.xlu0 %8637
  %8639 = vrot.lane.b32.xlu0 %v8313, 127
  %v8640 = vpop.permute.xlu0 %8639
  %8641 = vrot.lane.b32.xlu0 %v8317, 127
  %v8642 = vpop.permute.xlu0 %8641
  %8643 = vrot.lane.b32.xlu0 %v8321, 127
  %v8644 = vpop.permute.xlu0 %8643
  %8645 = vrot.lane.b32.xlu0 %v8325, 127
  %v8646 = vpop.permute.xlu0 %8645
  %8647 = vrot.lane.b32.xlu0 %v8314, 127
  %v8648 = vpop.permute.xlu0 %8647
  %8649 = vrot.lane.b32.xlu0 %v8318, 127
  %v8650 = vpop.permute.xlu0 %8649
  %8651 = vrot.lane.b32.xlu0 %v8322, 127
  %v8652 = vpop.permute.xlu0 %8651
  %8653 = vrot.lane.b32.xlu0 %v8326, 127
  %v8654 = vpop.permute.xlu0 %8653
  %v8655 = vsel %vm410, %v8640, %v8648
  %v8656 = vsel %vm410, %v8642, %v8650
  %v8657 = vsel %vm410, %v8644, %v8652
  %v8658 = vsel %vm410, %v8646, %v8654
  %v8659 = vsel %vm410, %v8632, %v8640
  %v8660 = vsel %vm410, %v8634, %v8642
  %v8661 = vsel %vm410, %v8636, %v8644
  %v8662 = vsel %vm410, %v8638, %v8646
  %v8663 = vsel %vm410, %v8624, %v8632
  %v8664 = vsel %vm410, %v8626, %v8634
  %v8665 = vsel %vm410, %v8628, %v8636
  %v8666 = vsel %vm410, %v8630, %v8638
  %v8667 = vsel %vm410, %v8648, %v8624
  %v8668 = vsel %vm410, %v8650, %v8626
  %v8669 = vsel %vm410, %v8652, %v8628
  %v8670 = vsel %vm410, %v8654, %v8630
  %v8671 = vmul.f32 %v8663, %v425
  %v8672 = vmul.f32 %v8659, %v429
  %v8673 = vmul.f32 %v8655, %v433
  %v8674 = vmul.f32 %v8667, %v437
  %v8675 = vmul.f32 %v8664, %v425
  %v8676 = vmul.f32 %v8660, %v429
  %v8677 = vmul.f32 %v8656, %v433
  %v8678 = vmul.f32 %v8668, %v437
  %v8679 = vmul.f32 %v8665, %v425
  %v8680 = vmul.f32 %v8661, %v429
  %v8681 = vmul.f32 %v8657, %v433
  %v8682 = vmul.f32 %v8669, %v437
  %v8683 = vmul.f32 %v8666, %v425
  %v8684 = vmul.f32 %v8662, %v429
  %v8685 = vmul.f32 %v8658, %v433
  %v8686 = vmul.f32 %v8670, %v437
  %v8687 = vpack.c.bf16 %v8675, %v8671
  %v8688 = vpack.c.bf16 %v8676, %v8672
  %v8689 = vpack.c.bf16 %v8677, %v8673
  %v8690 = vpack.c.bf16 %v8678, %v8674
  %v8691 = vpack.c.bf16 %v8683, %v8679
  %v8692 = vpack.c.bf16 %v8684, %v8680
  %v8693 = vpack.c.bf16 %v8685, %v8681
  %v8694 = vpack.c.bf16 %v8686, %v8682
  %8695 = vrot.lane.b32.xlu0 %v8311, 113
  %v8696 = vpop.permute.xlu0 %8695
  %8697 = vrot.lane.b32.xlu0 %v8315, 113
  %v8698 = vpop.permute.xlu0 %8697
  %8699 = vrot.lane.b32.xlu0 %v8319, 113
  %v8700 = vpop.permute.xlu0 %8699
  %8701 = vrot.lane.b32.xlu0 %v8323, 113
  %v8702 = vpop.permute.xlu0 %8701
  %8703 = vrot.lane.b32.xlu0 %v8312, 113
  %v8704 = vpop.permute.xlu0 %8703
  %8705 = vrot.lane.b32.xlu0 %v8316, 113
  %v8706 = vpop.permute.xlu0 %8705
  %8707 = vrot.lane.b32.xlu0 %v8320, 113
  %v8708 = vpop.permute.xlu0 %8707
  %8709 = vrot.lane.b32.xlu0 %v8324, 113
  %v8710 = vpop.permute.xlu0 %8709
  %8711 = vrot.lane.b32.xlu0 %v8313, 113
  %v8712 = vpop.permute.xlu0 %8711
  %8713 = vrot.lane.b32.xlu0 %v8317, 113
  %v8714 = vpop.permute.xlu0 %8713
  %8715 = vrot.lane.b32.xlu0 %v8321, 113
  %v8716 = vpop.permute.xlu0 %8715
  %8717 = vrot.lane.b32.xlu0 %v8325, 113
  %v8718 = vpop.permute.xlu0 %8717
  %8719 = vrot.lane.b32.xlu0 %v8314, 113
  %v8720 = vpop.permute.xlu0 %8719
  %8721 = vrot.lane.b32.xlu0 %v8318, 113
  %v8722 = vpop.permute.xlu0 %8721
  %8723 = vrot.lane.b32.xlu0 %v8322, 113
  %v8724 = vpop.permute.xlu0 %8723
  %8725 = vrot.lane.b32.xlu0 %v8326, 113
  %v8726 = vpop.permute.xlu0 %8725
  %v8727 = vsel %vm470, %v8712, %v8720
  %v8728 = vsel %vm470, %v8714, %v8722
  %v8729 = vsel %vm470, %v8716, %v8724
  %v8730 = vsel %vm470, %v8718, %v8726
  %v8731 = vsel %vm470, %v8704, %v8712
  %v8732 = vsel %vm470, %v8706, %v8714
  %v8733 = vsel %vm470, %v8708, %v8716
  %v8734 = vsel %vm470, %v8710, %v8718
  %v8735 = vsel %vm470, %v8696, %v8704
  %v8736 = vsel %vm470, %v8698, %v8706
  %v8737 = vsel %vm470, %v8700, %v8708
  %v8738 = vsel %vm470, %v8702, %v8710
  %v8739 = vsel %vm470, %v8720, %v8696
  %v8740 = vsel %vm470, %v8722, %v8698
  %v8741 = vsel %vm470, %v8724, %v8700
  %v8742 = vsel %vm470, %v8726, %v8702
  %v8743 = vmul.f32 %v8735, %v485
  %v8744 = vmul.f32 %v8731, %v489
  %v8745 = vmul.f32 %v8727, %v493
  %v8746 = vmul.f32 %v8739, %v497
  %v8747 = vmul.f32 %v8736, %v485
  %v8748 = vmul.f32 %v8732, %v489
  %v8749 = vmul.f32 %v8728, %v493
  %v8750 = vmul.f32 %v8740, %v497
  %v8751 = vmul.f32 %v8737, %v485
  %v8752 = vmul.f32 %v8733, %v489
  %v8753 = vmul.f32 %v8729, %v493
  %v8754 = vmul.f32 %v8741, %v497
  %v8755 = vmul.f32 %v8738, %v485
  %v8756 = vmul.f32 %v8734, %v489
  %v8757 = vmul.f32 %v8730, %v493
  %v8758 = vmul.f32 %v8742, %v497
  %v8759 = vpack.c.bf16 %v8747, %v8743
  %v8760 = vpack.c.bf16 %v8748, %v8744
  %v8761 = vpack.c.bf16 %v8749, %v8745
  %v8762 = vpack.c.bf16 %v8750, %v8746
  %v8763 = vpack.c.bf16 %v8755, %v8751
  %v8764 = vpack.c.bf16 %v8756, %v8752
  %v8765 = vpack.c.bf16 %v8757, %v8753
  %v8766 = vpack.c.bf16 %v8758, %v8754
  %8767 = vrot.lane.b32.xlu0 %v8311, 112
  %v8768 = vpop.permute.xlu0 %8767
  %8769 = vrot.lane.b32.xlu0 %v8315, 112
  %v8770 = vpop.permute.xlu0 %8769
  %8771 = vrot.lane.b32.xlu0 %v8319, 112
  %v8772 = vpop.permute.xlu0 %8771
  %8773 = vrot.lane.b32.xlu0 %v8323, 112
  %v8774 = vpop.permute.xlu0 %8773
  %8775 = vrot.lane.b32.xlu0 %v8312, 112
  %v8776 = vpop.permute.xlu0 %8775
  %8777 = vrot.lane.b32.xlu0 %v8316, 112
  %v8778 = vpop.permute.xlu0 %8777
  %8779 = vrot.lane.b32.xlu0 %v8320, 112
  %v8780 = vpop.permute.xlu0 %8779
  %8781 = vrot.lane.b32.xlu0 %v8324, 112
  %v8782 = vpop.permute.xlu0 %8781
  %8783 = vrot.lane.b32.xlu0 %v8313, 112
  %v8784 = vpop.permute.xlu0 %8783
  %8785 = vrot.lane.b32.xlu0 %v8317, 112
  %v8786 = vpop.permute.xlu0 %8785
  %8787 = vrot.lane.b32.xlu0 %v8321, 112
  %v8788 = vpop.permute.xlu0 %8787
  %8789 = vrot.lane.b32.xlu0 %v8325, 112
  %v8790 = vpop.permute.xlu0 %8789
  %8791 = vrot.lane.b32.xlu0 %v8314, 112
  %v8792 = vpop.permute.xlu0 %8791
  %8793 = vrot.lane.b32.xlu0 %v8318, 112
  %v8794 = vpop.permute.xlu0 %8793
  %8795 = vrot.lane.b32.xlu0 %v8322, 112
  %v8796 = vpop.permute.xlu0 %8795
  %8797 = vrot.lane.b32.xlu0 %v8326, 112
  %v8798 = vpop.permute.xlu0 %8797
  %v8799 = vsel %vm530, %v8784, %v8792
  %v8800 = vsel %vm530, %v8786, %v8794
  %v8801 = vsel %vm530, %v8788, %v8796
  %v8802 = vsel %vm530, %v8790, %v8798
  %v8803 = vsel %vm530, %v8776, %v8784
  %v8804 = vsel %vm530, %v8778, %v8786
  %v8805 = vsel %vm530, %v8780, %v8788
  %v8806 = vsel %vm530, %v8782, %v8790
  %v8807 = vsel %vm530, %v8768, %v8776
  %v8808 = vsel %vm530, %v8770, %v8778
  %v8809 = vsel %vm530, %v8772, %v8780
  %v8810 = vsel %vm530, %v8774, %v8782
  %v8811 = vsel %vm530, %v8792, %v8768
  %v8812 = vsel %vm530, %v8794, %v8770
  %v8813 = vsel %vm530, %v8796, %v8772
  %v8814 = vsel %vm530, %v8798, %v8774
  %v8815 = vmul.f32 %v8807, %v545
  %v8816 = vmul.f32 %v8803, %v549
  %v8817 = vmul.f32 %v8799, %v553
  %v8818 = vmul.f32 %v8811, %v557
  %v8819 = vmul.f32 %v8808, %v545
  %v8820 = vmul.f32 %v8804, %v549
  %v8821 = vmul.f32 %v8800, %v553
  %v8822 = vmul.f32 %v8812, %v557
  %v8823 = vmul.f32 %v8809, %v545
  %v8824 = vmul.f32 %v8805, %v549
  %v8825 = vmul.f32 %v8801, %v553
  %v8826 = vmul.f32 %v8813, %v557
  %v8827 = vmul.f32 %v8810, %v545
  %v8828 = vmul.f32 %v8806, %v549
  %v8829 = vmul.f32 %v8802, %v553
  %v8830 = vmul.f32 %v8814, %v557
  %v8831 = vpack.c.bf16 %v8819, %v8815
  %v8832 = vpack.c.bf16 %v8820, %v8816
  %v8833 = vpack.c.bf16 %v8821, %v8817
  %v8834 = vpack.c.bf16 %v8822, %v8818
  %v8835 = vpack.c.bf16 %v8827, %v8823
  %v8836 = vpack.c.bf16 %v8828, %v8824
  %v8837 = vpack.c.bf16 %v8829, %v8825
  %v8838 = vpack.c.bf16 %v8830, %v8826
  %8839 = vrot.lane.b32.xlu0 %v8311, 111
  %v8840 = vpop.permute.xlu0 %8839
  %8841 = vrot.lane.b32.xlu0 %v8315, 111
  %v8842 = vpop.permute.xlu0 %8841
  %8843 = vrot.lane.b32.xlu0 %v8319, 111
  %v8844 = vpop.permute.xlu0 %8843
  %8845 = vrot.lane.b32.xlu0 %v8323, 111
  %v8846 = vpop.permute.xlu0 %8845
  %8847 = vrot.lane.b32.xlu0 %v8312, 111
  %v8848 = vpop.permute.xlu0 %8847
  %8849 = vrot.lane.b32.xlu0 %v8316, 111
  %v8850 = vpop.permute.xlu0 %8849
  %8851 = vrot.lane.b32.xlu0 %v8320, 111
  %v8852 = vpop.permute.xlu0 %8851
  %8853 = vrot.lane.b32.xlu0 %v8324, 111
  %v8854 = vpop.permute.xlu0 %8853
  %8855 = vrot.lane.b32.xlu0 %v8313, 111
  %v8856 = vpop.permute.xlu0 %8855
  %8857 = vrot.lane.b32.xlu0 %v8317, 111
  %v8858 = vpop.permute.xlu0 %8857
  %8859 = vrot.lane.b32.xlu0 %v8321, 111
  %v8860 = vpop.permute.xlu0 %8859
  %8861 = vrot.lane.b32.xlu0 %v8325, 111
  %v8862 = vpop.permute.xlu0 %8861
  %8863 = vrot.lane.b32.xlu0 %v8314, 111
  %v8864 = vpop.permute.xlu0 %8863
  %8865 = vrot.lane.b32.xlu0 %v8318, 111
  %v8866 = vpop.permute.xlu0 %8865
  %8867 = vrot.lane.b32.xlu0 %v8322, 111
  %v8868 = vpop.permute.xlu0 %8867
  %8869 = vrot.lane.b32.xlu0 %v8326, 111
  %v8870 = vpop.permute.xlu0 %8869
  %v8871 = vsel %vm590, %v8856, %v8864
  %v8872 = vsel %vm590, %v8858, %v8866
  %v8873 = vsel %vm590, %v8860, %v8868
  %v8874 = vsel %vm590, %v8862, %v8870
  %v8875 = vsel %vm590, %v8848, %v8856
  %v8876 = vsel %vm590, %v8850, %v8858
  %v8877 = vsel %vm590, %v8852, %v8860
  %v8878 = vsel %vm590, %v8854, %v8862
  %v8879 = vsel %vm590, %v8840, %v8848
  %v8880 = vsel %vm590, %v8842, %v8850
  %v8881 = vsel %vm590, %v8844, %v8852
  %v8882 = vsel %vm590, %v8846, %v8854
  %v8883 = vsel %vm590, %v8864, %v8840
  %v8884 = vsel %vm590, %v8866, %v8842
  %v8885 = vsel %vm590, %v8868, %v8844
  %v8886 = vsel %vm590, %v8870, %v8846
  %v8887 = vmul.f32 %v8879, %v605
  %v8888 = vmul.f32 %v8875, %v609
  %v8889 = vmul.f32 %v8871, %v613
  %v8890 = vmul.f32 %v8883, %v617
  %v8891 = vmul.f32 %v8880, %v605
  %v8892 = vmul.f32 %v8876, %v609
  %v8893 = vmul.f32 %v8872, %v613
  %v8894 = vmul.f32 %v8884, %v617
  %v8895 = vmul.f32 %v8881, %v605
  %v8896 = vmul.f32 %v8877, %v609
  %v8897 = vmul.f32 %v8873, %v613
  %v8898 = vmul.f32 %v8885, %v617
  %v8899 = vmul.f32 %v8882, %v605
  %v8900 = vmul.f32 %v8878, %v609
  %v8901 = vmul.f32 %v8874, %v613
  %v8902 = vmul.f32 %v8886, %v617
  %v8903 = vpack.c.bf16 %v8891, %v8887
  %v8904 = vpack.c.bf16 %v8892, %v8888
  %v8905 = vpack.c.bf16 %v8893, %v8889
  %v8906 = vpack.c.bf16 %v8894, %v8890
  %v8907 = vpack.c.bf16 %v8899, %v8895
  %v8908 = vpack.c.bf16 %v8900, %v8896
  %v8909 = vpack.c.bf16 %v8901, %v8897
  %v8910 = vpack.c.bf16 %v8902, %v8898
  %v8911 = vld [vmem:[%s55] sm:$0xff]
  %v8912 = vld [vmem:[%s55 + $0x8] sm:$0xf]
  %v8913 = vld [vmem:[%s55 + $0xc] sm:$0xff]
  %v8914 = vld [vmem:[%s55 + $0x14] sm:$0xf]
  %v8915 = vld [vmem:[%s55 + $0x18] sm:$0xff]
  %v8916 = vld [vmem:[%s55 + $0x20] sm:$0xf]
  %v8917 = vld [vmem:[%s55 + $0x24] sm:$0xff]
  %v8918 = vld [vmem:[%s55 + $0x2c] sm:$0xf]
  %v8919 = vld [vmem:[%s57] sm:$0xff]
  %v8920 = vld [vmem:[%s57 + $0x8] sm:$0xf]
  %v8921 = vld [vmem:[%s57 + $0xc] sm:$0xff]
  %v8922 = vld [vmem:[%s57 + $0x14] sm:$0xf]
  %v8923 = vld [vmem:[%s57 + $0x18] sm:$0xff]
  %v8924 = vld [vmem:[%s57 + $0x20] sm:$0xf]
  %v8925 = vld [vmem:[%s57 + $0x24] sm:$0xff]
  %v8926 = vld [vmem:[%s57 + $0x2c] sm:$0xf]
  %v8935 = vunpack.c.l.b16 %v8919
  %v8936 = vunpack.c.h.b16 %v8919
  %v8937 = vunpack.c.l.b16 %v8920
  %v8938 = vunpack.c.l.b16 %v8921
  %v8939 = vunpack.c.h.b16 %v8921
  %v8940 = vunpack.c.l.b16 %v8922
  %v8941 = vunpack.c.l.b16 %v8923
  %v8942 = vunpack.c.h.b16 %v8923
  %v8943 = vunpack.c.l.b16 %v8924
  %v8944 = vunpack.c.l.b16 %v8925
  %v8945 = vunpack.c.h.b16 %v8925
  %v8946 = vunpack.c.l.b16 %v8926
  %v8947 = vpack.c.b16 %v8938, %v8935
  %v8948 = vpack.c.b16 %v8939, %v8936
  %v8949 = vpack.c.b16 %v8940, %v8937
  %v8950 = vpack.c.b16 %v8944, %v8941
  %v8951 = vpack.c.b16 %v8945, %v8942
  %v8952 = vpack.c.b16 %v8946, %v8943
  %v8958 = vsel %vm1455, %v8949, 0
  %v8961 = vsel %vm1455, %v8952, 0
  %8963 = vmatprep.subr.bf16.mxu0 %v8612
  %8964 = vmatpush1.bf16.msra.mxu0 %v8611
  %8965 = vmatprep.subr.bf16.mxu0 %v8608
  %8966 = vmatpush1.bf16.msra.mxu0 %v8607
  %8967 = vmatprep.subr.bf16.mxu0 %v8540
  %8968 = vmatpush1.bf16.msra.mxu0 %v8539
  %8969 = vmatprep.subr.bf16.mxu0 %v8536
  %8970 = vmatpush1.bf16.msra.mxu0 %v8535
  %8971 = vmatprep.subr.bf16.mxu0 %v8468
  %8972 = vmatpush1.bf16.msra.mxu0 %v8467
  %8973 = vmatprep.subr.bf16.mxu0 %v8464
  %8974 = vmatpush1.bf16.msra.mxu0 %v8463
  %8975 = vmatprep.subr.bf16.mxu0 %v8396
  %8976 = vmatpush1.bf16.msra.mxu0 %v8395
  %8977 = vmatprep.subr.bf16.mxu0 %v8392
  %8978 = vmatpush1.bf16.msra.mxu0 %v8391
  %8979 = vmatprep.subr.bf16.mxu0 %v8836
  %8980 = vmatpush2.bf16.msra.mxu0 %v8835
  %8981 = vmatprep.subr.bf16.mxu0 %v8832
  %8982 = vmatpush2.bf16.msra.mxu0 %v8831
  %8983 = vmatprep.subr.bf16.mxu0 %v8764
  %8984 = vmatpush2.bf16.msra.mxu0 %v8763
  %8985 = vmatprep.subr.bf16.mxu0 %v8760
  %8986 = vmatpush2.bf16.msra.mxu0 %v8759
  %8987 = vmatprep.subr.bf16.mxu0 %v8692
  %8988 = vmatpush2.bf16.msra.mxu0 %v8691
  %8989 = vmatprep.subr.bf16.mxu0 %v8688
  %8990 = vmatpush2.bf16.msra.mxu0 %v8687
  %8991 = vmatprep.subr.bf16.mxu0 %v8620
  %8992 = vmatpush2.bf16.msra.mxu0 %v8619
  %8993 = vmatprep.subr.bf16.mxu0 %v8616
  %8994 = vmatpush2.bf16.msra.mxu0 %v8615
  %8995 = vmatprep.mubr.bf16.mxu0 %v8948
  %8996 = vmatmul.mubr.bf16.gmra.mxu0 %v8947
  %v8997 = vpop.f32.mrf.mxu0
  %v8998 = vadd.f32 0.0, %v8997
  %v8999 = vpop.f32.mrf.mxu0
  %v9000 = vadd.f32 0.0, %v8999
  %v9001 = vpop.f32.mrf.mxu0
  %v9002 = vadd.f32 0.0, %v9001
  %v9003 = vpop.f32.mrf.mxu0
  %v9004 = vadd.f32 0.0, %v9003
  %9005 = vmatprep.mubr.bf16.mxu0 %v8951
  %9006 = vmatmul.mubr.bf16.gmra.mxu0 %v8950
  %v9007 = vpop.f32.mrf.mxu0
  %v9008 = vadd.f32 0.0, %v9007
  %v9009 = vpop.f32.mrf.mxu0
  %v9010 = vadd.f32 0.0, %v9009
  %v9011 = vpop.f32.mrf.mxu0
  %v9012 = vadd.f32 0.0, %v9011
  %v9013 = vpop.f32.mrf.mxu0
  %v9014 = vadd.f32 0.0, %v9013
  %9015 = vdwg.mxu0
  %9016 = vmatprep.subr.bf16.mxu0 0
  %9017 = vmatpush1.bf16.msra.mxu0 0
  %9018 = vmatprep.subr.bf16.mxu0 0
  %9019 = vmatpush1.bf16.msra.mxu0 0
  %9020 = vmatprep.subr.bf16.mxu0 0
  %9021 = vmatpush1.bf16.msra.mxu0 0
  %9022 = vmatprep.subr.bf16.mxu0 0
  %9023 = vmatpush1.bf16.msra.mxu0 0
  %9024 = vmatprep.subr.bf16.mxu0 0
  %9025 = vmatpush1.bf16.msra.mxu0 0
  %9026 = vmatprep.subr.bf16.mxu0 0
  %9027 = vmatpush1.bf16.msra.mxu0 0
  %9028 = vmatprep.subr.bf16.mxu0 %v8908
  %9029 = vmatpush1.bf16.msra.mxu0 %v8907
  %9030 = vmatprep.subr.bf16.mxu0 %v8904
  %9031 = vmatpush1.bf16.msra.mxu0 %v8903
  %9032 = vmatprep.subr.bf16.mxu0 0
  %9033 = vmatpush2.bf16.msra.mxu0 0
  %9034 = vmatprep.subr.bf16.mxu0 0
  %9035 = vmatpush2.bf16.msra.mxu0 0
  %9036 = vmatprep.subr.bf16.mxu0 0
  %9037 = vmatpush2.bf16.msra.mxu0 0
  %9038 = vmatprep.subr.bf16.mxu0 0
  %9039 = vmatpush2.bf16.msra.mxu0 0
  %9040 = vmatprep.subr.bf16.mxu0 0
  %9041 = vmatpush2.bf16.msra.mxu0 0
  %9042 = vmatprep.subr.bf16.mxu0 0
  %9043 = vmatpush2.bf16.msra.mxu0 0
  %9044 = vmatprep.subr.bf16.mxu0 0
  %9045 = vmatpush2.bf16.msra.mxu0 0
  %9046 = vmatprep.subr.bf16.mxu0 0
  %9047 = vmatpush2.bf16.msra.mxu0 0
  %9048 = vmatprep.mubr.bf16.mxu0 0
  %9049 = vmatmul.mubr.bf16.gmra.mxu0 %v8958
  %v9050 = vpop.f32.mrf.mxu0
  %v9051 = vadd.f32 %v8998, %v9050
  %v9052 = vpop.f32.mrf.mxu0
  %v9053 = vadd.f32 %v9000, %v9052
  %v9054 = vpop.f32.mrf.mxu0
  %v9055 = vadd.f32 %v9002, %v9054
  %v9056 = vpop.f32.mrf.mxu0
  %v9057 = vadd.f32 %v9004, %v9056
  %9058 = vmatprep.mubr.bf16.mxu0 0
  %9059 = vmatmul.mubr.bf16.gmra.mxu0 %v8961
  %v9060 = vpop.f32.mrf.mxu0
  %v9061 = vadd.f32 %v9008, %v9060
  %v9062 = vpop.f32.mrf.mxu0
  %v9063 = vadd.f32 %v9010, %v9062
  %v9064 = vpop.f32.mrf.mxu0
  %v9065 = vadd.f32 %v9012, %v9064
  %v9066 = vpop.f32.mrf.mxu0
  %v9067 = vadd.f32 %v9014, %v9066
  %9068 = vdwg.mxu0
  %9069 = vmatprep.subr.bf16.mxu0 %v8614
  %9070 = vmatpush1.bf16.msra.mxu0 %v8613
  %9071 = vmatprep.subr.bf16.mxu0 %v8610
  %9072 = vmatpush1.bf16.msra.mxu0 %v8609
  %9073 = vmatprep.subr.bf16.mxu0 %v8542
  %9074 = vmatpush1.bf16.msra.mxu0 %v8541
  %9075 = vmatprep.subr.bf16.mxu0 %v8538
  %9076 = vmatpush1.bf16.msra.mxu0 %v8537
  %9077 = vmatprep.subr.bf16.mxu0 %v8470
  %9078 = vmatpush1.bf16.msra.mxu0 %v8469
  %9079 = vmatprep.subr.bf16.mxu0 %v8466
  %9080 = vmatpush1.bf16.msra.mxu0 %v8465
  %9081 = vmatprep.subr.bf16.mxu0 %v8398
  %9082 = vmatpush1.bf16.msra.mxu0 %v8397
  %9083 = vmatprep.subr.bf16.mxu0 %v8394
  %9084 = vmatpush1.bf16.msra.mxu0 %v8393
  %9085 = vmatprep.subr.bf16.mxu0 %v8838
  %9086 = vmatpush2.bf16.msra.mxu0 %v8837
  %9087 = vmatprep.subr.bf16.mxu0 %v8834
  %9088 = vmatpush2.bf16.msra.mxu0 %v8833
  %9089 = vmatprep.subr.bf16.mxu0 %v8766
  %9090 = vmatpush2.bf16.msra.mxu0 %v8765
  %9091 = vmatprep.subr.bf16.mxu0 %v8762
  %9092 = vmatpush2.bf16.msra.mxu0 %v8761
  %9093 = vmatprep.subr.bf16.mxu0 %v8694
  %9094 = vmatpush2.bf16.msra.mxu0 %v8693
  %9095 = vmatprep.subr.bf16.mxu0 %v8690
  %9096 = vmatpush2.bf16.msra.mxu0 %v8689
  %9097 = vmatprep.subr.bf16.mxu0 %v8622
  %9098 = vmatpush2.bf16.msra.mxu0 %v8621
  %9099 = vmatprep.subr.bf16.mxu0 %v8618
  %9100 = vmatpush2.bf16.msra.mxu0 %v8617
  %9101 = vmatprep.mubr.bf16.mxu0 %v8948
  %9102 = vmatmul.mubr.bf16.gmra.mxu0 %v8947
  %v9103 = vpop.f32.mrf.mxu0
  %v9104 = vadd.f32 0.0, %v9103
  %v9105 = vpop.f32.mrf.mxu0
  %v9106 = vadd.f32 0.0, %v9105
  %v9107 = vpop.f32.mrf.mxu0
  %v9108 = vadd.f32 0.0, %v9107
  %v9109 = vpop.f32.mrf.mxu0
  %v9110 = vadd.f32 0.0, %v9109
  %9111 = vmatprep.mubr.bf16.mxu0 %v8951
  %9112 = vmatmul.mubr.bf16.gmra.mxu0 %v8950
  %v9113 = vpop.f32.mrf.mxu0
  %v9114 = vadd.f32 0.0, %v9113
  %v9115 = vpop.f32.mrf.mxu0
  %v9116 = vadd.f32 0.0, %v9115
  %v9117 = vpop.f32.mrf.mxu0
  %v9118 = vadd.f32 0.0, %v9117
  %v9119 = vpop.f32.mrf.mxu0
  %v9120 = vadd.f32 0.0, %v9119
  %9121 = vdwg.mxu0
  %9122 = vmatprep.subr.bf16.mxu0 0
  %9123 = vmatpush1.bf16.msra.mxu0 0
  %9124 = vmatprep.subr.bf16.mxu0 0
  %9125 = vmatpush1.bf16.msra.mxu0 0
  %9126 = vmatprep.subr.bf16.mxu0 0
  %9127 = vmatpush1.bf16.msra.mxu0 0
  %9128 = vmatprep.subr.bf16.mxu0 0
  %9129 = vmatpush1.bf16.msra.mxu0 0
  %9130 = vmatprep.subr.bf16.mxu0 0
  %9131 = vmatpush1.bf16.msra.mxu0 0
  %9132 = vmatprep.subr.bf16.mxu0 0
  %9133 = vmatpush1.bf16.msra.mxu0 0
  %9134 = vmatprep.subr.bf16.mxu0 %v8910
  %9135 = vmatpush1.bf16.msra.mxu0 %v8909
  %9136 = vmatprep.subr.bf16.mxu0 %v8906
  %9137 = vmatpush1.bf16.msra.mxu0 %v8905
  %9138 = vmatprep.subr.bf16.mxu0 0
  %9139 = vmatpush2.bf16.msra.mxu0 0
  %9140 = vmatprep.subr.bf16.mxu0 0
  %9141 = vmatpush2.bf16.msra.mxu0 0
  %9142 = vmatprep.subr.bf16.mxu0 0
  %9143 = vmatpush2.bf16.msra.mxu0 0
  %9144 = vmatprep.subr.bf16.mxu0 0
  %9145 = vmatpush2.bf16.msra.mxu0 0
  %9146 = vmatprep.subr.bf16.mxu0 0
  %9147 = vmatpush2.bf16.msra.mxu0 0
  %9148 = vmatprep.subr.bf16.mxu0 0
  %9149 = vmatpush2.bf16.msra.mxu0 0
  %9150 = vmatprep.subr.bf16.mxu0 0
  %9151 = vmatpush2.bf16.msra.mxu0 0
  %9152 = vmatprep.subr.bf16.mxu0 0
  %9153 = vmatpush2.bf16.msra.mxu0 0
  %9154 = vmatprep.mubr.bf16.mxu0 0
  %9155 = vmatmul.mubr.bf16.gmra.mxu0 %v8958
  %v9156 = vpop.f32.mrf.mxu0
  %v9157 = vadd.f32 %v9104, %v9156
  %v9158 = vpop.f32.mrf.mxu0
  %v9159 = vadd.f32 %v9106, %v9158
  %v9160 = vpop.f32.mrf.mxu0
  %v9161 = vadd.f32 %v9108, %v9160
  %v9162 = vpop.f32.mrf.mxu0
  %v9163 = vadd.f32 %v9110, %v9162
  %9164 = vmatprep.mubr.bf16.mxu0 0
  %9165 = vmatmul.mubr.bf16.gmra.mxu0 %v8961
  %v9166 = vpop.f32.mrf.mxu0
  %v9167 = vadd.f32 %v9114, %v9166
  %v9168 = vpop.f32.mrf.mxu0
  %v9169 = vadd.f32 %v9116, %v9168
  %v9170 = vpop.f32.mrf.mxu0
  %v9171 = vadd.f32 %v9118, %v9170
  %v9172 = vpop.f32.mrf.mxu0
  %v9173 = vadd.f32 %v9120, %v9172
  %9174 = vdwg.mxu0
  %v9183 = vunpack.c.l.b16 %v8911
  %v9184 = vunpack.c.h.b16 %v8911
  %v9185 = vunpack.c.l.b16 %v8912
  %v9186 = vunpack.c.l.b16 %v8913
  %v9187 = vunpack.c.h.b16 %v8913
  %v9188 = vunpack.c.l.b16 %v8914
  %v9189 = vunpack.c.l.b16 %v8915
  %v9190 = vunpack.c.h.b16 %v8915
  %v9191 = vunpack.c.l.b16 %v8916
  %v9192 = vunpack.c.l.b16 %v8917
  %v9193 = vunpack.c.h.b16 %v8917
  %v9194 = vunpack.c.l.b16 %v8918
  %v9195 = vpack.c.b16 %v9186, %v9183
  %v9196 = vpack.c.b16 %v9187, %v9184
  %v9197 = vpack.c.b16 %v9188, %v9185
  %v9198 = vpack.c.b16 %v9192, %v9189
  %v9199 = vpack.c.b16 %v9193, %v9190
  %v9200 = vpack.c.b16 %v9194, %v9191
  %v9206 = vsel %vm1455, %v9197, 0
  %v9209 = vsel %vm1455, %v9200, 0
  %9211 = vmatprep.subr.bf16.mxu0 %v1094
  %9212 = vmatpush1.bf16.msra.mxu0 %v1093
  %9213 = vmatprep.subr.bf16.mxu0 %v1090
  %9214 = vmatpush1.bf16.msra.mxu0 %v1089
  %9215 = vmatprep.subr.bf16.mxu0 %v1022
  %9216 = vmatpush1.bf16.msra.mxu0 %v1021
  %9217 = vmatprep.subr.bf16.mxu0 %v1018
  %9218 = vmatpush1.bf16.msra.mxu0 %v1017
  %9219 = vmatprep.subr.bf16.mxu0 %v950
  %9220 = vmatpush1.bf16.msra.mxu0 %v949
  %9221 = vmatprep.subr.bf16.mxu0 %v946
  %9222 = vmatpush1.bf16.msra.mxu0 %v945
  %9223 = vmatprep.subr.bf16.mxu0 %v878
  %9224 = vmatpush1.bf16.msra.mxu0 %v877
  %9225 = vmatprep.subr.bf16.mxu0 %v874
  %9226 = vmatpush1.bf16.msra.mxu0 %v873
  %9227 = vmatprep.subr.bf16.mxu0 %v1318
  %9228 = vmatpush2.bf16.msra.mxu0 %v1317
  %9229 = vmatprep.subr.bf16.mxu0 %v1314
  %9230 = vmatpush2.bf16.msra.mxu0 %v1313
  %9231 = vmatprep.subr.bf16.mxu0 %v1246
  %9232 = vmatpush2.bf16.msra.mxu0 %v1245
  %9233 = vmatprep.subr.bf16.mxu0 %v1242
  %9234 = vmatpush2.bf16.msra.mxu0 %v1241
  %9235 = vmatprep.subr.bf16.mxu0 %v1174
  %9236 = vmatpush2.bf16.msra.mxu0 %v1173
  %9237 = vmatprep.subr.bf16.mxu0 %v1170
  %9238 = vmatpush2.bf16.msra.mxu0 %v1169
  %9239 = vmatprep.subr.bf16.mxu0 %v1102
  %9240 = vmatpush2.bf16.msra.mxu0 %v1101
  %9241 = vmatprep.subr.bf16.mxu0 %v1098
  %9242 = vmatpush2.bf16.msra.mxu0 %v1097
  %9243 = vmatprep.mubr.bf16.mxu0 %v9196
  %9244 = vmatmul.mubr.bf16.gmra.mxu0 %v9195
  %v9245 = vpop.f32.mrf.mxu0
  %v9246 = vadd.f32 %v9051, %v9245
  %v9247 = vpop.f32.mrf.mxu0
  %v9248 = vadd.f32 %v9053, %v9247
  %v9249 = vpop.f32.mrf.mxu0
  %v9250 = vadd.f32 %v9055, %v9249
  %v9251 = vpop.f32.mrf.mxu0
  %v9252 = vadd.f32 %v9057, %v9251
  %9253 = vmatprep.mubr.bf16.mxu0 %v9199
  %9254 = vmatmul.mubr.bf16.gmra.mxu0 %v9198
  %v9255 = vpop.f32.mrf.mxu0
  %v9256 = vadd.f32 %v9061, %v9255
  %v9257 = vpop.f32.mrf.mxu0
  %v9258 = vadd.f32 %v9063, %v9257
  %v9259 = vpop.f32.mrf.mxu0
  %v9260 = vadd.f32 %v9065, %v9259
  %v9261 = vpop.f32.mrf.mxu0
  %v9262 = vadd.f32 %v9067, %v9261
  %9263 = vdwg.mxu0
  %9264 = vmatprep.subr.bf16.mxu0 0
  %9265 = vmatpush1.bf16.msra.mxu0 0
  %9266 = vmatprep.subr.bf16.mxu0 0
  %9267 = vmatpush1.bf16.msra.mxu0 0
  %9268 = vmatprep.subr.bf16.mxu0 0
  %9269 = vmatpush1.bf16.msra.mxu0 0
  %9270 = vmatprep.subr.bf16.mxu0 0
  %9271 = vmatpush1.bf16.msra.mxu0 0
  %9272 = vmatprep.subr.bf16.mxu0 0
  %9273 = vmatpush1.bf16.msra.mxu0 0
  %9274 = vmatprep.subr.bf16.mxu0 0
  %9275 = vmatpush1.bf16.msra.mxu0 0
  %9276 = vmatprep.subr.bf16.mxu0 %v1390
  %9277 = vmatpush1.bf16.msra.mxu0 %v1389
  %9278 = vmatprep.subr.bf16.mxu0 %v1386
  %9279 = vmatpush1.bf16.msra.mxu0 %v1385
  %9280 = vmatprep.subr.bf16.mxu0 0
  %9281 = vmatpush2.bf16.msra.mxu0 0
  %9282 = vmatprep.subr.bf16.mxu0 0
  %9283 = vmatpush2.bf16.msra.mxu0 0
  %9284 = vmatprep.subr.bf16.mxu0 0
  %9285 = vmatpush2.bf16.msra.mxu0 0
  %9286 = vmatprep.subr.bf16.mxu0 0
  %9287 = vmatpush2.bf16.msra.mxu0 0
  %9288 = vmatprep.subr.bf16.mxu0 0
  %9289 = vmatpush2.bf16.msra.mxu0 0
  %9290 = vmatprep.subr.bf16.mxu0 0
  %9291 = vmatpush2.bf16.msra.mxu0 0
  %9292 = vmatprep.subr.bf16.mxu0 0
  %9293 = vmatpush2.bf16.msra.mxu0 0
  %9294 = vmatprep.subr.bf16.mxu0 0
  %9295 = vmatpush2.bf16.msra.mxu0 0
  %9296 = vmatprep.mubr.bf16.mxu0 0
  %9297 = vmatmul.mubr.bf16.gmra.mxu0 %v9206
  %v9298 = vpop.f32.mrf.mxu0
  %v9299 = vadd.f32 %v9246, %v9298
  %v9300 = vpop.f32.mrf.mxu0
  %v9301 = vadd.f32 %v9248, %v9300
  %v9302 = vpop.f32.mrf.mxu0
  %v9303 = vadd.f32 %v9250, %v9302
  %v9304 = vpop.f32.mrf.mxu0
  %v9305 = vadd.f32 %v9252, %v9304
  %9306 = vmatprep.mubr.bf16.mxu0 0
  %9307 = vmatmul.mubr.bf16.gmra.mxu0 %v9209
  %v9308 = vpop.f32.mrf.mxu0
  %v9309 = vadd.f32 %v9256, %v9308
  %v9310 = vpop.f32.mrf.mxu0
  %v9311 = vadd.f32 %v9258, %v9310
  %v9312 = vpop.f32.mrf.mxu0
  %v9313 = vadd.f32 %v9260, %v9312
  %v9314 = vpop.f32.mrf.mxu0
  %v9315 = vadd.f32 %v9262, %v9314
  %9316 = vdwg.mxu0
  %9317 = vmatprep.subr.bf16.mxu0 %v1096
  %9318 = vmatpush1.bf16.msra.mxu0 %v1095
  %9319 = vmatprep.subr.bf16.mxu0 %v1092
  %9320 = vmatpush1.bf16.msra.mxu0 %v1091
  %9321 = vmatprep.subr.bf16.mxu0 %v1024
  %9322 = vmatpush1.bf16.msra.mxu0 %v1023
  %9323 = vmatprep.subr.bf16.mxu0 %v1020
  %9324 = vmatpush1.bf16.msra.mxu0 %v1019
  %9325 = vmatprep.subr.bf16.mxu0 %v952
  %9326 = vmatpush1.bf16.msra.mxu0 %v951
  %9327 = vmatprep.subr.bf16.mxu0 %v948
  %9328 = vmatpush1.bf16.msra.mxu0 %v947
  %9329 = vmatprep.subr.bf16.mxu0 %v880
  %9330 = vmatpush1.bf16.msra.mxu0 %v879
  %9331 = vmatprep.subr.bf16.mxu0 %v876
  %9332 = vmatpush1.bf16.msra.mxu0 %v875
  %9333 = vmatprep.subr.bf16.mxu0 %v1320
  %9334 = vmatpush2.bf16.msra.mxu0 %v1319
  %9335 = vmatprep.subr.bf16.mxu0 %v1316
  %9336 = vmatpush2.bf16.msra.mxu0 %v1315
  %9337 = vmatprep.subr.bf16.mxu0 %v1248
  %9338 = vmatpush2.bf16.msra.mxu0 %v1247
  %9339 = vmatprep.subr.bf16.mxu0 %v1244
  %9340 = vmatpush2.bf16.msra.mxu0 %v1243
  %9341 = vmatprep.subr.bf16.mxu0 %v1176
  %9342 = vmatpush2.bf16.msra.mxu0 %v1175
  %9343 = vmatprep.subr.bf16.mxu0 %v1172
  %9344 = vmatpush2.bf16.msra.mxu0 %v1171
  %9345 = vmatprep.subr.bf16.mxu0 %v1104
  %9346 = vmatpush2.bf16.msra.mxu0 %v1103
  %9347 = vmatprep.subr.bf16.mxu0 %v1100
  %9348 = vmatpush2.bf16.msra.mxu0 %v1099
  %9349 = vmatprep.mubr.bf16.mxu0 %v9196
  %9350 = vmatmul.mubr.bf16.gmra.mxu0 %v9195
  %v9351 = vpop.f32.mrf.mxu0
  %v9352 = vadd.f32 %v9157, %v9351
  %v9353 = vpop.f32.mrf.mxu0
  %v9354 = vadd.f32 %v9159, %v9353
  %v9355 = vpop.f32.mrf.mxu0
  %v9356 = vadd.f32 %v9161, %v9355
  %v9357 = vpop.f32.mrf.mxu0
  %v9358 = vadd.f32 %v9163, %v9357
  %9359 = vmatprep.mubr.bf16.mxu0 %v9199
  %9360 = vmatmul.mubr.bf16.gmra.mxu0 %v9198
  %v9361 = vpop.f32.mrf.mxu0
  %v9362 = vadd.f32 %v9167, %v9361
  %v9363 = vpop.f32.mrf.mxu0
  %v9364 = vadd.f32 %v9169, %v9363
  %v9365 = vpop.f32.mrf.mxu0
  %v9366 = vadd.f32 %v9171, %v9365
  %v9367 = vpop.f32.mrf.mxu0
  %v9368 = vadd.f32 %v9173, %v9367
  %9369 = vdwg.mxu0
  %9370 = vmatprep.subr.bf16.mxu0 0
  %9371 = vmatpush1.bf16.msra.mxu0 0
  %9372 = vmatprep.subr.bf16.mxu0 0
  %9373 = vmatpush1.bf16.msra.mxu0 0
  %9374 = vmatprep.subr.bf16.mxu0 0
  %9375 = vmatpush1.bf16.msra.mxu0 0
  %9376 = vmatprep.subr.bf16.mxu0 0
  %9377 = vmatpush1.bf16.msra.mxu0 0
  %9378 = vmatprep.subr.bf16.mxu0 0
  %9379 = vmatpush1.bf16.msra.mxu0 0
  %9380 = vmatprep.subr.bf16.mxu0 0
  %9381 = vmatpush1.bf16.msra.mxu0 0
  %9382 = vmatprep.subr.bf16.mxu0 %v1392
  %9383 = vmatpush1.bf16.msra.mxu0 %v1391
  %9384 = vmatprep.subr.bf16.mxu0 %v1388
  %9385 = vmatpush1.bf16.msra.mxu0 %v1387
  %9386 = vmatprep.subr.bf16.mxu0 0
  %9387 = vmatpush2.bf16.msra.mxu0 0
  %9388 = vmatprep.subr.bf16.mxu0 0
  %9389 = vmatpush2.bf16.msra.mxu0 0
  %9390 = vmatprep.subr.bf16.mxu0 0
  %9391 = vmatpush2.bf16.msra.mxu0 0
  %9392 = vmatprep.subr.bf16.mxu0 0
  %9393 = vmatpush2.bf16.msra.mxu0 0
  %9394 = vmatprep.subr.bf16.mxu0 0
  %9395 = vmatpush2.bf16.msra.mxu0 0
  %9396 = vmatprep.subr.bf16.mxu0 0
  %9397 = vmatpush2.bf16.msra.mxu0 0
  %9398 = vmatprep.subr.bf16.mxu0 0
  %9399 = vmatpush2.bf16.msra.mxu0 0
  %9400 = vmatprep.subr.bf16.mxu0 0
  %9401 = vmatpush2.bf16.msra.mxu0 0
  %9402 = vmatprep.mubr.bf16.mxu0 0
  %9403 = vmatmul.mubr.bf16.gmra.mxu0 %v9206
  %v9404 = vpop.f32.mrf.mxu0
  %v9405 = vadd.f32 %v9352, %v9404
  %v9406 = vpop.f32.mrf.mxu0
  %v9407 = vadd.f32 %v9354, %v9406
  %v9408 = vpop.f32.mrf.mxu0
  %v9409 = vadd.f32 %v9356, %v9408
  %v9410 = vpop.f32.mrf.mxu0
  %v9411 = vadd.f32 %v9358, %v9410
  %9412 = vmatprep.mubr.bf16.mxu0 0
  %9413 = vmatmul.mubr.bf16.gmra.mxu0 %v9209
  %v9414 = vpop.f32.mrf.mxu0
  %v9415 = vadd.f32 %v9362, %v9414
  %v9416 = vpop.f32.mrf.mxu0
  %v9417 = vadd.f32 %v9364, %v9416
  %v9418 = vpop.f32.mrf.mxu0
  %v9419 = vadd.f32 %v9366, %v9418
  %v9420 = vpop.f32.mrf.mxu0
  %v9421 = vadd.f32 %v9368, %v9420
  %9422 = vdwg.mxu0
  %v9423 = vld [vmem:[%s59] sm:$0xff]
  %v9424 = vld [vmem:[%s59 + $0x8] sm:$0xff]
  %v9425 = vld [vmem:[%s59 + $0x10] sm:$0xff]
  %v9426 = vld [vmem:[%s59 + $0x18] sm:$0xff]
  %v9431 = vunpack.c.l.b16 %v9423
  %v9432 = vunpack.c.h.b16 %v9423
  %v9433 = vunpack.c.l.b16 %v9424
  %v9434 = vunpack.c.h.b16 %v9424
  %v9435 = vunpack.c.l.b16 %v9425
  %v9436 = vunpack.c.h.b16 %v9425
  %v9437 = vunpack.c.l.b16 %v9426
  %v9438 = vunpack.c.h.b16 %v9426
  %v9439 = vpack.c.b16 %v9433, %v9431
  %v9440 = vpack.c.b16 %v9434, %v9432
  %v9441 = vpack.c.b16 %v9437, %v9435
  %v9442 = vpack.c.b16 %v9438, %v9436
  %v9446 = vsel %vm680, %v9440, 0
  %v9449 = vsel %vm680, %v9442, 0
  %9451 = vmatprep.subr.bf16.mxu0 %v571
  %9452 = vmatpush1.bf16.msra.mxu0 %v570
  %9453 = vmatprep.subr.bf16.mxu0 %v511
  %9454 = vmatpush1.bf16.msra.mxu0 %v510
  %9455 = vmatprep.subr.bf16.mxu0 %v451
  %9456 = vmatpush1.bf16.msra.mxu0 %v450
  %9457 = vmatprep.subr.bf16.mxu0 %v391
  %9458 = vmatpush1.bf16.msra.mxu0 %v390
  %9459 = vmatprep.subr.bf16.mxu0 %v387
  %9460 = vmatpush1.bf16.msra.mxu0 %v386
  %9461 = vmatprep.subr.bf16.mxu0 %v327
  %9462 = vmatpush1.bf16.msra.mxu0 %v326
  %9463 = vmatprep.subr.bf16.mxu0 %v267
  %9464 = vmatpush1.bf16.msra.mxu0 %v266
  %9465 = vmatprep.subr.bf16.mxu0 %v207
  %9466 = vmatpush1.bf16.msra.mxu0 %v206
  %9467 = vmatprep.subr.bf16.mxu0 0
  %9468 = vmatpush2.bf16.msra.mxu0 0
  %9469 = vmatprep.subr.bf16.mxu0 0
  %9470 = vmatpush2.bf16.msra.mxu0 0
  %9471 = vmatprep.subr.bf16.mxu0 0
  %9472 = vmatpush2.bf16.msra.mxu0 0
  %9473 = vmatprep.subr.bf16.mxu0 0
  %9474 = vmatpush2.bf16.msra.mxu0 0
  %9475 = vmatprep.subr.bf16.mxu0 0
  %9476 = vmatpush2.bf16.msra.mxu0 0
  %9477 = vmatprep.subr.bf16.mxu0 0
  %9478 = vmatpush2.bf16.msra.mxu0 0
  %9479 = vmatprep.subr.bf16.mxu0 0
  %9480 = vmatpush2.bf16.msra.mxu0 0
  %9481 = vmatprep.subr.bf16.mxu0 %v631
  %9482 = vmatpush2.bf16.msra.mxu0 %v630
  %9483 = vmatprep.mubr.bf16.mxu0 %v9446
  %9484 = vmatmul.mubr.bf16.gmra.mxu0 %v9439
  %v9485 = vpop.f32.mrf.mxu0
  %v9486 = vadd.f32 0.0, %v9485
  %v9487 = vpop.f32.mrf.mxu0
  %v9488 = vadd.f32 0.0, %v9487
  %v9489 = vpop.f32.mrf.mxu0
  %v9490 = vadd.f32 0.0, %v9489
  %v9491 = vpop.f32.mrf.mxu0
  %v9492 = vadd.f32 0.0, %v9491
  %9493 = vmatprep.mubr.bf16.mxu0 %v9449
  %9494 = vmatmul.mubr.bf16.gmra.mxu0 %v9441
  %v9495 = vpop.f32.mrf.mxu0
  %v9496 = vadd.f32 0.0, %v9495
  %v9497 = vpop.f32.mrf.mxu0
  %v9498 = vadd.f32 0.0, %v9497
  %v9499 = vpop.f32.mrf.mxu0
  %v9500 = vadd.f32 0.0, %v9499
  %v9501 = vpop.f32.mrf.mxu0
  %v9502 = vadd.f32 0.0, %v9501
  %9503 = vdwg.mxu0
  %9504 = vmatprep.subr.bf16.mxu0 %v573
  %9505 = vmatpush1.bf16.msra.mxu0 %v572
  %9506 = vmatprep.subr.bf16.mxu0 %v513
  %9507 = vmatpush1.bf16.msra.mxu0 %v512
  %9508 = vmatprep.subr.bf16.mxu0 %v453
  %9509 = vmatpush1.bf16.msra.mxu0 %v452
  %9510 = vmatprep.subr.bf16.mxu0 %v393
  %9511 = vmatpush1.bf16.msra.mxu0 %v392
  %9512 = vmatprep.subr.bf16.mxu0 %v389
  %9513 = vmatpush1.bf16.msra.mxu0 %v388
  %9514 = vmatprep.subr.bf16.mxu0 %v329
  %9515 = vmatpush1.bf16.msra.mxu0 %v328
  %9516 = vmatprep.subr.bf16.mxu0 %v269
  %9517 = vmatpush1.bf16.msra.mxu0 %v268
  %9518 = vmatprep.subr.bf16.mxu0 %v209
  %9519 = vmatpush1.bf16.msra.mxu0 %v208
  %9520 = vmatprep.subr.bf16.mxu0 0
  %9521 = vmatpush2.bf16.msra.mxu0 0
  %9522 = vmatprep.subr.bf16.mxu0 0
  %9523 = vmatpush2.bf16.msra.mxu0 0
  %9524 = vmatprep.subr.bf16.mxu0 0
  %9525 = vmatpush2.bf16.msra.mxu0 0
  %9526 = vmatprep.subr.bf16.mxu0 0
  %9527 = vmatpush2.bf16.msra.mxu0 0
  %9528 = vmatprep.subr.bf16.mxu0 0
  %9529 = vmatpush2.bf16.msra.mxu0 0
  %9530 = vmatprep.subr.bf16.mxu0 0
  %9531 = vmatpush2.bf16.msra.mxu0 0
  %9532 = vmatprep.subr.bf16.mxu0 0
  %9533 = vmatpush2.bf16.msra.mxu0 0
  %9534 = vmatprep.subr.bf16.mxu0 %v633
  %9535 = vmatpush2.bf16.msra.mxu0 %v632
  %9536 = vmatprep.mubr.bf16.mxu0 %v9446
  %9537 = vmatmul.mubr.bf16.gmra.mxu0 %v9439
  %v9538 = vpop.f32.mrf.mxu0
  %v9539 = vadd.f32 0.0, %v9538
  %v9540 = vpop.f32.mrf.mxu0
  %v9541 = vadd.f32 0.0, %v9540
  %v9542 = vpop.f32.mrf.mxu0
  %v9543 = vadd.f32 0.0, %v9542
  %v9544 = vpop.f32.mrf.mxu0
  %v9545 = vadd.f32 0.0, %v9544
  %9546 = vmatprep.mubr.bf16.mxu0 %v9449
  %9547 = vmatmul.mubr.bf16.gmra.mxu0 %v9441
  %v9548 = vpop.f32.mrf.mxu0
  %v9549 = vadd.f32 0.0, %v9548
  %v9550 = vpop.f32.mrf.mxu0
  %v9551 = vadd.f32 0.0, %v9550
  %v9552 = vpop.f32.mrf.mxu0
  %v9553 = vadd.f32 0.0, %v9552
  %v9554 = vpop.f32.mrf.mxu0
  %v9555 = vadd.f32 0.0, %v9554
  %9556 = vdwg.mxu0
  %v9557 = vadd.f32 %v9299, %v9486
  %v9558 = vadd.f32 %v9301, %v9488
  %v9559 = vadd.f32 %v9405, %v9539
  %v9560 = vadd.f32 %v9407, %v9541
  %v9561 = vadd.f32 %v9303, %v9490
  %v9562 = vadd.f32 %v9305, %v9492
  %v9563 = vadd.f32 %v9409, %v9543
  %v9564 = vadd.f32 %v9411, %v9545
  %v9565 = vadd.f32 %v9309, %v9496
  %v9566 = vadd.f32 %v9311, %v9498
  %v9567 = vadd.f32 %v9415, %v9549
  %v9568 = vadd.f32 %v9417, %v9551
  %v9569 = vadd.f32 %v9313, %v9500
  %v9570 = vadd.f32 %v9315, %v9502
  %v9571 = vadd.f32 %v9419, %v9553
  %v9572 = vadd.f32 %v9421, %v9555
  %v9573 = vld [vmem:[%s61] sm:$0xff]
  %v9574 = vld [vmem:[%s61 + $0x8] sm:$0xff]
  %v9575 = vld [vmem:[%s61 + $0x10] sm:$0xff]
  %v9576 = vld [vmem:[%s61 + $0x18] sm:$0xff]
  %9578 = vset.pattern.permute.xlu0 0
  %9579 = vperm.xlu0 %9578, %v9573
  %v9580 = vpop.permute.xlu0 %9579
  %9583 = vset.pattern.permute.xlu0 0
  %9584 = vperm.xlu0 %9583, %v9574
  %v9585 = vpop.permute.xlu0 %9584
  %9588 = vset.pattern.permute.xlu0 0
  %9589 = vperm.xlu0 %9588, %v9575
  %v9590 = vpop.permute.xlu0 %9589
  %9593 = vset.pattern.permute.xlu0 0
  %9594 = vperm.xlu0 %9593, %v9576
  %v9595 = vpop.permute.xlu0 %9594
  %v9597 = vadd.f32 %v9557, %v9580
  %v9598 = vadd.f32 %v9558, %v9580
  %v9599 = vadd.f32 %v9559, %v9580
  %v9600 = vadd.f32 %v9560, %v9580
  %v9601 = vadd.f32 %v9561, %v9585
  %v9602 = vadd.f32 %v9562, %v9585
  %v9603 = vadd.f32 %v9563, %v9585
  %v9604 = vadd.f32 %v9564, %v9585
  %v9605 = vadd.f32 %v9565, %v9590
  %v9606 = vadd.f32 %v9566, %v9590
  %v9607 = vadd.f32 %v9567, %v9590
  %v9608 = vadd.f32 %v9568, %v9590
  %v9609 = vadd.f32 %v9569, %v9595
  %v9610 = vadd.f32 %v9570, %v9595
  %v9611 = vadd.f32 %v9571, %v9595
  %v9612 = vadd.f32 %v9572, %v9595
  %v9613 = vmax.f32 %v9597, 0.0
  %v9614 = vmax.f32 %v9598, 0.0
  %v9615 = vmax.f32 %v9599, 0.0
  %v9616 = vmax.f32 %v9600, 0.0
  %v9617 = vmax.f32 %v9601, 0.0
  %v9618 = vmax.f32 %v9602, 0.0
  %v9619 = vmax.f32 %v9603, 0.0
  %v9620 = vmax.f32 %v9604, 0.0
  %v9621 = vmax.f32 %v9605, 0.0
  %v9622 = vmax.f32 %v9606, 0.0
  %v9623 = vmax.f32 %v9607, 0.0
  %v9624 = vmax.f32 %v9608, 0.0
  %v9625 = vmax.f32 %v9609, 0.0
  %v9626 = vmax.f32 %v9610, 0.0
  %v9627 = vmax.f32 %v9611, 0.0
  %v9628 = vmax.f32 %v9612, 0.0
  %v9629 = vld [vmem:[%s63] sm:$0xff]
  %v9630 = vld [vmem:[%s63 + $0x8] sm:$0xff]
  %v9631 = vld [vmem:[%s63 + $0x10] sm:$0xff]
  %v9632 = vld [vmem:[%s63 + $0x18] sm:$0xff]
  %9634 = vset.pattern.permute.xlu0 0
  %9635 = vperm.xlu0 %9634, %v9629
  %v9636 = vpop.permute.xlu0 %9635
  %9639 = vset.pattern.permute.xlu0 0
  %9640 = vperm.xlu0 %9639, %v9630
  %v9641 = vpop.permute.xlu0 %9640
  %9644 = vset.pattern.permute.xlu0 0
  %9645 = vperm.xlu0 %9644, %v9631
  %v9646 = vpop.permute.xlu0 %9645
  %9649 = vset.pattern.permute.xlu0 0
  %9650 = vperm.xlu0 %9649, %v9632
  %v9651 = vpop.permute.xlu0 %9650
  %v9653 = vmul.f32 %v9636, %v9613
  %v9654 = vmul.f32 %v9636, %v9614
  %v9655 = vmul.f32 %v9636, %v9615
  %v9656 = vmul.f32 %v9636, %v9616
  %v9657 = vmul.f32 %v9641, %v9617
  %v9658 = vmul.f32 %v9641, %v9618
  %v9659 = vmul.f32 %v9641, %v9619
  %v9660 = vmul.f32 %v9641, %v9620
  %v9661 = vmul.f32 %v9646, %v9621
  %v9662 = vmul.f32 %v9646, %v9622
  %v9663 = vmul.f32 %v9646, %v9623
  %v9664 = vmul.f32 %v9646, %v9624
  %v9665 = vmul.f32 %v9651, %v9625
  %v9666 = vmul.f32 %v9651, %v9626
  %v9667 = vmul.f32 %v9651, %v9627
  %v9668 = vmul.f32 %v9651, %v9628
  %v9669 = vadd.f32 %v9653, %v9657
  %v9670 = vadd.f32 %v9669, %v9661
  %v9671 = vadd.f32 %v9670, %v9665
  %v9672 = vrot.slane %v9671, 4
  %v9673 = vadd.f32 %v9671, %v9672
  %v9674 = vrot.slane %v9673, 2
  %v9675 = vadd.f32 %v9673, %v9674
  %v9676 = vrot.slane %v9675, 1
  %v9677 = vadd.f32 %v9675, %v9676
  %v9678 = vadd.f32 %v9654, %v9658
  %v9679 = vadd.f32 %v9678, %v9662
  %v9680 = vadd.f32 %v9679, %v9666
  %v9681 = vrot.slane %v9680, 4
  %v9682 = vadd.f32 %v9680, %v9681
  %v9683 = vrot.slane %v9682, 2
  %v9684 = vadd.f32 %v9682, %v9683
  %v9685 = vrot.slane %v9684, 1
  %v9686 = vadd.f32 %v9684, %v9685
  %v9687 = vadd.f32 %v9655, %v9659
  %v9688 = vadd.f32 %v9687, %v9663
  %v9689 = vadd.f32 %v9688, %v9667
  %v9690 = vrot.slane %v9689, 4
  %v9691 = vadd.f32 %v9689, %v9690
  %v9692 = vrot.slane %v9691, 2
  %v9693 = vadd.f32 %v9691, %v9692
  %v9694 = vrot.slane %v9693, 1
  %v9695 = vadd.f32 %v9693, %v9694
  %v9696 = vadd.f32 %v9656, %v9660
  %v9697 = vadd.f32 %v9696, %v9664
  %v9698 = vadd.f32 %v9697, %v9668
  %v9699 = vrot.slane %v9698, 4
  %v9700 = vadd.f32 %v9698, %v9699
  %v9701 = vrot.slane %v9700, 2
  %v9702 = vadd.f32 %v9700, %v9701
  %v9703 = vrot.slane %v9702, 1
  %v9704 = vadd.f32 %v9702, %v9703
  %v9705 = vld [vmem:[#allocation2] sm:$0x1]
  %9707 = vset.pattern.permute.xlu0 0
  %9708 = vperm.xlu0 %9707, %v9705
  %v9709 = vpop.permute.xlu0 %9708
  %v9711 = vlaneseq
  %v9712 = vshrl.u32 %v9711, 7
  %v9713 = vsub.s32 0, %v9712
  %v9714 = vrot.slane %v9709, %v9713
  %v9715 = vadd.f32 %v9677, %v9714
  %v9716 = vadd.f32 %v9686, %v9714
  %v9717 = vadd.f32 %v9695, %v9714
  %v9718 = vadd.f32 %v9704, %v9714
  %v9723 = vcombine.low %v9715, %v9716
  %v9724 = vcombine.low %v9717, %v9718
  %v9726 = vunpack.c.l.s4 1966171168
  %v9727 = vunpack.c.0.s8 %v9726
  %v9728 = vlaneseq
  %v9729 = vshrl.u32 %v9728, 7
  %v9730 = vsub.s32 %v9727, %v9729
  %v9731 = vrot.slane %v9723, %v9730
  %v9733 = vunpack.c.l.s4 1966171168
  %v9734 = vunpack.c.0.s8 %v9733
  %v9735 = vlaneseq
  %v9736 = vshrl.u32 %v9735, 7
  %v9737 = vsub.s32 %v9734, %v9736
  %v9738 = vrot.slane %v9724, %v9737
  %v9739 = vcombine.low %v9731, %v9738
  %v9741 = vunpack.c.l.s4 1966171168
  %v9742 = vunpack.c.0.s8 %v9741
  %v9743 = vlaneseq
  %v9744 = vshrl.u32 %v9743, 7
  %v9745 = vsub.s32 %v9742, %v9744
  %v9746 = vrot.slane %v9739, %v9745
  %v9748 = vlaneseq
  %vm9749 = vcmp.ge.s32.totalorder %v9748, 0
  %vm9750 = vcmp.lt.s32.totalorder %v9748, 512
  %vm9751 = vmand %vm9749, %vm9750
  %9752 = vst.msk [vmem:[%s67] sm:$0xf] %vm9751, %v9746
  // Predicated region
  $region134: #{encoder_forward.1} parent=0 // pred_check
    _
  $region135: #{encoder_forward.1} parent=0 // pred_check_branch
    %9754 = sbr.rel (0) target = $region137
  $region136: #{encoder_forward.1} parent=0 // pred_region
    _
  $region137: #{encoder_forward.1} parent=0 // pred_fallthru
    _
  // Predicated region
  $region138: #{encoder_forward.1} parent=0 // pred_check
    _
  $region139: #{encoder_forward.1} parent=0 // pred_check_branch
    %9756 = sbr.rel (0) target = $region141
  $region140: #{encoder_forward.1} parent=0 // pred_region
    _
  $region141: #{encoder_forward.1} parent=0 // pred_fallthru
    _

</llo_original>
